<compile_context>
chip_gen: v6e
topology: v6e:2x2x1
jax: 0.10.0
libtpu: 0.0.40
codegen_flags: <defaults>
</compile_context>

<pallas_src>
import functools

import numpy as np
import jax
import jax.numpy as jnp
from jax import lax
from jax.experimental import pallas as pl
from jax.experimental.pallas import tpu as pltpu


# ----------------------------------------------------------------------------
# Fixed network geometry (MNIST LeNet from the reference PyTorch module)
# ----------------------------------------------------------------------------
H_IN = W_IN = 28            # input image
C1, C2 = 20, 50             # conv1 / conv2 output channels
H1, W1 = 24, 24             # conv1 output spatial size
HP1, WP1 = 12, 12           # after 2x2/2 pool
H2, W2 = 8, 8               # conv2 output spatial size
HP2, WP2 = 4, 4             # after 2x2/2 pool
KH = KW = 5                 # conv kernel
FC1_IN, FC1_OUT, FC2_OUT = 800, 500, 10

LANES = 256                 # lane-block width for the even/odd output-column split
N1 = 2 * LANES              # conv1 band-GEMM N   (even-w block | odd-w block)
K2 = LANES                  # conv2 band-GEMM K   (w1*20 + c1, padded 240 -> 256)
N2 = 2 * LANES              # conv2 band-GEMM N


# ----------------------------------------------------------------------------
# Fused whole-network kernel (one batch tile of `bt` images per grid step)
# ----------------------------------------------------------------------------
def _net_kernel(x_ref, c1w_ref, c1b_ref, c2w_ref, c2b_ref,
                w1_ref, fb1_ref, w2_ref, fb2_ref, out_ref, a1_ref, *, bt):
    """Layouts (h-major, batch minor):

      x_ref   : (28, bt, 28)        image rows h on the leading axis
      c1w_ref : (5, 28, 512)  f32   conv1 band weights, one per kernel row di
      c1b_ref : (1, 512)      f32
      c2w_ref : (5, 256, 512) bf16  conv2 band weights
      c2b_ref : (1, 512)      f32
      w1_ref  : (4, 256, 500) bf16  fc1 weights, one K-block per pooled row hq
      fb1_ref : (1, 500)      f32
      w2_ref  : (500, 10)     bf16
      fb2_ref : (1, 10)       f32
      out_ref : (bt, 10)      f32   log_softmax output
      a1_ref  : (12*bt, 256)  f32   scratch: pooled conv1 acts, row = h1*bt + b,
                                    lane = w1*20 + c1 (lanes 240..255 are zero)
    """
    f32 = jnp.float32
    bf16 = jnp.bfloat16

    # ---- conv1 (+bias, ReLU, 2x2/2 max-pool) --------------------------------
    # 5 accumulating band GEMMs; rows are (h_out, b), contraction over the 28
    # input columns, output lanes are (w_out parity | w_out//2, c_out).
    def x_rows(di):
        return x_ref[pl.ds(di, H1), :, :].reshape(H1 * bt, W_IN)

    acc1 = jnp.dot(x_rows(0), c1w_ref[0], preferred_element_type=f32)
    for di in range(1, KH):
        acc1 = acc1 + jnp.dot(x_rows(di), c1w_ref[di], preferred_element_type=f32)
    a1 = jnp.maximum(acc1 + c1b_ref[...], 0.0)                    # [24*bt, 512]
    a1 = jnp.maximum(a1[:, :LANES], a1[:, LANES:])                # W-pool  [24*bt, 256]
    for h1 in range(HP1):                                         # H-pool: aligned blocks
        a1_ref[pl.ds(h1 * bt, bt), :] = jnp.maximum(
            a1[(2 * h1) * bt:(2 * h1 + 1) * bt, :],
            a1[(2 * h1 + 1) * bt:(2 * h1 + 2) * bt, :])

    # ---- conv2 (+bias, ReLU, W-pool) ----------------------------------------
    def a1_rows(di):
        return a1_ref[pl.ds(di * bt, H2 * bt), :].astype(bf16)

    acc2 = jnp.dot(a1_rows(0), c2w_ref[0], preferred_element_type=f32)
    for di in range(1, KH):
        acc2 = acc2 + jnp.dot(a1_rows(di), c2w_ref[di], preferred_element_type=f32)
    r2 = jnp.maximum(acc2 + c2b_ref[...], 0.0)                    # [8*bt, 512]
    r2 = jnp.maximum(r2[:, :LANES], r2[:, LANES:])                # W-pool  [8*bt, 256]

    # ---- fc1 (conv2's H-pool folded into the four row-block maxes) ----------
    accf = None
    for hq in range(HP2):
        xq = jnp.maximum(r2[(2 * hq) * bt:(2 * hq + 1) * bt, :],
                         r2[(2 * hq + 1) * bt:(2 * hq + 2) * bt, :]).astype(bf16)
        d = jnp.dot(xq, w1_ref[hq], preferred_element_type=f32)
        accf = d if accf is None else accf + d
    h = jnp.maximum(accf + fb1_ref[...], 0.0)                     # [bt, 500]

    # ---- fc2 + log_softmax ---------------------------------------------------
    y = jnp.dot(h.astype(bf16), w2_ref[...], preferred_element_type=f32) + fb2_ref[...]
    m = jnp.max(y, axis=-1, keepdims=True)
    lse = m + jnp.log(jnp.sum(jnp.exp(y - m), axis=-1, keepdims=True))
    out_ref[...] = (y - lse).astype(out_ref.dtype)


def _pick_bt(batch):
    """Batch-tile size: multiple of 8 (aligned h-major layout); prefer >=2 grid
    steps so both TensorCores get work on v7x."""
    for bt in (32, 16, 8):
        if batch >= 2 * bt:
            return bt
    return 8


@jax.jit
def net_forward(params, x_nchw):
    """log_softmax(Net(x)) for x of shape [B, 1, 28, 28] (PyTorch NCHW layout)."""
    B = x_nchw.shape[0]
    bt = _pick_bt(B)
    Bp = ((B + bt - 1) // bt) * bt
    nb = Bp // bt

    # h-major input layout (h, b, w); pad the batch to a multiple of the tile.
    xi = x_nchw.reshape(B, H_IN, W_IN).astype(jnp.float32)
    xi = jnp.pad(xi, ((0, Bp - B), (0, 0), (0, 0)))
    xi = jnp.transpose(xi, (1, 0, 2))                             # (28, Bp, 28)

    m1, m2 = H1 * bt, H2 * bt
    step_flops = 2 * (KH * m1 * W_IN * N1 + KH * m2 * K2 * N2
                      + HP2 * bt * LANES * FC1_OUT + bt * FC1_OUT * FC2_OUT)
    weight_bytes = sum(int(np.prod(v.shape)) * v.dtype.itemsize
                       for v in params.values())
    cost = pl.CostEstimate(
        flops=int(nb * step_flops),
        transcendentals=int(Bp * (FC2_OUT + 1)),
        bytes_accessed=int(xi.size * 4 + weight_bytes + Bp * FC2_OUT * 4))

    out = pl.pallas_call(
        functools.partial(_net_kernel, bt=bt),
        out_shape=jax.ShapeDtypeStruct((Bp, FC2_OUT), jnp.float32),
        grid=(nb,),
        in_specs=[
            pl.BlockSpec((H_IN, bt, W_IN), lambda i: (0, i, 0)),        # images
            pl.BlockSpec((KH, H_IN, N1), lambda i: (0, 0, 0)),          # conv1 bands
            pl.BlockSpec((1, N1), lambda i: (0, 0)),
            pl.BlockSpec((KH, K2, N2), lambda i: (0, 0, 0)),            # conv2 bands
            pl.BlockSpec((1, N2), lambda i: (0, 0)),
            pl.BlockSpec((HP2, LANES, FC1_OUT), lambda i: (0, 0, 0)),   # fc1
            pl.BlockSpec((1, FC1_OUT), lambda i: (0, 0)),
            pl.BlockSpec((FC1_OUT, FC2_OUT), lambda i: (0, 0)),         # fc2
            pl.BlockSpec((1, FC2_OUT), lambda i: (0, 0)),
        ],
        out_specs=pl.BlockSpec((bt, FC2_OUT), lambda i: (i, 0)),
        scratch_shapes=[pltpu.VMEM((HP1 * bt, LANES), jnp.float32)],
        compiler_params=pltpu.CompilerParams(
            dimension_semantics=("parallel",),
            vmem_limit_bytes=32 * 1024 * 1024),
        cost_estimate=cost,
    )(xi, params["c1w"], params["c1b"], params["c2w"], params["c2b"],
      params["w1"], params["b1"], params["w2"], params["b2"])
    return out[:B]


# ----------------------------------------------------------------------------
# Parameters (PyTorch layouts) and one-time host-side weight re-layout
# ----------------------------------------------------------------------------
def init_params(key):
    """Random parameters in the exact PyTorch layouts of the reference Net."""
    ks = jax.random.split(key, 8)

    def uniform(k, shape, fan_in):
        bound = 1.0 / float(np.sqrt(fan_in))
        return jax.random.uniform(k, shape, jnp.float32, -bound, bound)

    return {
        "conv1_w": uniform(ks[0], (C1, 1, KH, KW), 25),
        "conv1_b": uniform(ks[1], (C1,), 25),
        "conv2_w": uniform(ks[2], (C2, C1, KH, KW), 500),
        "conv2_b": uniform(ks[3], (C2,), 500),
        "fc1_w":   uniform(ks[4], (FC1_OUT, FC1_IN), FC1_IN),
        "fc1_b":   uniform(ks[5], (FC1_OUT,), FC1_IN),
        "fc2_w":   uniform(ks[6], (FC2_OUT, FC1_OUT), FC1_OUT),
        "fc2_b":   uniform(ks[7], (FC2_OUT,), FC1_OUT),
    }


def prepare_params(p):
    """Host-side re-layout: conv weights become banded matrices (one per kernel row
    di) whose output columns interleave even/odd output positions into two 256-lane
    blocks (so the W-pool is an aligned lane-slice max); fc1 rows are permuted to
    the kernel's (hq, wq, c) flatten order instead of torch's NCHW .view order."""
    pn = {k: np.asarray(v, np.float32) for k, v in p.items()}

    # conv1: band[di][w, col(wo, co)] = conv1_w[co, 0, di, w - wo]
    c1 = np.zeros((KH, H_IN, N1), np.float32)
    for di in range(KH):
        for dj in range(KW):
            for wo in range(W1):
                col = (wo % 2) * LANES + (wo // 2) * C1
                c1[di, wo + dj, col:col + C1] = pn["conv1_w"][:, 0, di, dj]
    c1b = np.zeros((1, N1), np.float32)
    c1b[0, :WP1 * C1] = np.tile(pn["conv1_b"], WP1)
    c1b[0, LANES:LANES + WP1 * C1] = np.tile(pn["conv1_b"], WP1)

    # conv2: band[di][w1*20 + ci, col(w2, co)] = conv2_w[co, ci, di, w1 - w2]
    c2 = np.zeros((KH, K2, N2), np.float32)
    for di in range(KH):
        for dj in range(KW):
            for w2 in range(W2):
                w1 = w2 + dj
                col = (w2 % 2) * LANES + (w2 // 2) * C2
                c2[di, w1 * C1:(w1 + 1) * C1, col:col + C2] = \
                    pn["conv2_w"][:, :, di, dj].T
    c2b = np.zeros((1, N2), np.float32)
    c2b[0, :WP2 * C2] = np.tile(pn["conv2_b"], WP2)
    c2b[0, LANES:LANES + WP2 * C2] = np.tile(pn["conv2_b"], WP2)

    # fc1: torch consumes .view(-1, 800) with index c*16 + hq*4 + wq (NCHW); the
    # kernel's per-hq input block is lane-ordered (wq*50 + c), padded to 256 lanes.
    fw = pn["fc1_w"].reshape(FC1_OUT, C2, HP2, WP2)               # [o, c, hq, wq]
    w1p = np.zeros((HP2, LANES, FC1_OUT), np.float32)
    w1p[:, :WP2 * C2, :] = np.transpose(fw, (2, 3, 1, 0)).reshape(HP2, WP2 * C2, FC1_OUT)

    return {
        "c1w": jnp.asarray(c1, jnp.float32),
        "c1b": jnp.asarray(c1b, jnp.float32),
        "c2w": jnp.asarray(c2, jnp.bfloat16),
        "c2b": jnp.asarray(c2b, jnp.float32),
        "w1":  jnp.asarray(w1p, jnp.bfloat16),
        "b1":  jnp.asarray(pn["fc1_b"].reshape(1, FC1_OUT), jnp.float32),
        "w2":  jnp.asarray(pn["fc2_w"].T, jnp.bfloat16),
        "b2":  jnp.asarray(pn["fc2_b"].reshape(1, FC2_OUT), jnp.float32),
    }


# ----------------------------------------------------------------------------
# Pure-JAX reference (torch layouts) for numerical validation
# ----------------------------------------------------------------------------
@jax.jit
def reference_forward(p, x_nchw):
    dn = ("NCHW", "OIHW", "NCHW")
    y = lax.conv_general_dilated(x_nchw, p["conv1_w"], (1, 1), "VALID",
                                 dimension_numbers=dn)
    y = jnp.maximum(y + p["conv1_b"][None, :, None, None], 0.0)
    y = lax.reduce_window(y, -jnp.inf, lax.max, (1, 1, 2, 2), (1, 1, 2, 2), "VALID")
    y = lax.conv_general_dilated(y, p["conv2_w"], (1, 1), "VALID",
                                 dimension_numbers=dn)
    y = jnp.maximum(y + p["conv2_b"][None, :, None, None], 0.0)
    y = lax.reduce_window(y, -jnp.inf, lax.max, (1, 1, 2, 2), (1, 1, 2, 2), "VALID")
    y = y.reshape(y.shape[0], -1)                                 # NCHW flatten == .view
    y = jnp.maximum(y @ p["fc1_w"].T + p["fc1_b"], 0.0)
    y = y @ p["fc2_w"].T + p["fc2_b"]
    return jax.nn.log_softmax(y, axis=-1)


if __name__ == "__main__":
    key = jax.random.PRNGKey(0)
    pkey, xkey = jax.random.split(key)
    torch_params = init_params(pkey)
    params = prepare_params(torch_params)

    # MNIST-shaped input (28x28, 1 channel) so the .view(-1, 4*4*50) flatten matches.
    # Batch 16 -> tile 8 -> a 2-step "parallel" grid (both v7x TensorCores busy).
    x = jax.random.normal(xkey, (16, 1, 28, 28), jnp.float32)

    out = jax.block_until_ready(net_forward(params, x))
    assert out.shape == (16, FC2_OUT), out.shape

    # log_softmax rows exponentiate-and-sum to ~1.
    row_sums = jnp.sum(jnp.exp(out), axis=1)
    assert bool(jnp.all(jnp.abs(row_sums - 1.0) < 1e-3)), row_sums

    # Validate against the pure-JAX f32 reference (kernel uses bf16 MXU inputs for
    # conv2 / fc with f32 accumulation -> small tolerance).
    ref = jax.block_until_ready(reference_forward(torch_params, x))
    max_err = float(jnp.max(jnp.abs(out - ref)))
    assert max_err < 5e-2, f"max |kernel - reference| = {max_err}"

    print("KERNEL_OK")
</pallas_src>

<mosaic_0001>
module attributes {stable_mosaic.version = 11 : i64} {
  func.func @_net_kernel(%arg0: i32, %arg1: memref<28x8x28xf32, #tpu.memory_space<vmem>>, %arg2: memref<5x28x512xf32, #tpu.memory_space<vmem>>, %arg3: memref<1x512xf32, #tpu.memory_space<vmem>>, %arg4: memref<5x256x512xbf16, #tpu.memory_space<vmem>>, %arg5: memref<1x512xf32, #tpu.memory_space<vmem>>, %arg6: memref<4x256x500xbf16, #tpu.memory_space<vmem>>, %arg7: memref<1x500xf32, #tpu.memory_space<vmem>>, %arg8: memref<500x10xbf16, #tpu.memory_space<vmem>>, %arg9: memref<1x10xf32, #tpu.memory_space<vmem>>, %arg10: memref<8x10xf32, #tpu.memory_space<vmem>>, %arg11: memref<96x256xf32, #tpu.memory_space<vmem>>) attributes {dimension_semantics = [#tpu.dimension_semantics<parallel>], iteration_bounds = array<i64: 2>, scalar_prefetch = 0 : i64, scratch_operands = 1 : i64, tpu.core_type = #tpu.core_type<tc>, window_params = [{transform_indices = @transform_0, window_bounds = array<i64: 28, 8, 28>}, {pipeline_mode = #tpu.pipeline_mode<synchronous>, transform_indices = @transform_1, window_bounds = array<i64: 5, 28, 512>}, {pipeline_mode = #tpu.pipeline_mode<synchronous>, transform_indices = @transform_2, window_bounds = array<i64: 1, 512>}, {pipeline_mode = #tpu.pipeline_mode<synchronous>, transform_indices = @transform_3, window_bounds = array<i64: 5, 256, 512>}, {pipeline_mode = #tpu.pipeline_mode<synchronous>, transform_indices = @transform_4, window_bounds = array<i64: 1, 512>}, {pipeline_mode = #tpu.pipeline_mode<synchronous>, transform_indices = @transform_5, window_bounds = array<i64: 4, 256, 500>}, {pipeline_mode = #tpu.pipeline_mode<synchronous>, transform_indices = @transform_6, window_bounds = array<i64: 1, 500>}, {pipeline_mode = #tpu.pipeline_mode<synchronous>, transform_indices = @transform_7, window_bounds = array<i64: 500, 10>}, {pipeline_mode = #tpu.pipeline_mode<synchronous>, transform_indices = @transform_8, window_bounds = array<i64: 1, 10>}, {transform_indices = @transform_9, window_bounds = array<i64: 8, 10>}]} {
    %c0 = arith.constant 0 : index
    %c0_0 = arith.constant 0 : index
    %c0_1 = arith.constant 0 : index
    %0 = vector.load %arg1[%c0, %c0_0, %c0_1] : memref<28x8x28xf32, #tpu.memory_space<vmem>>, vector<24x8x28xf32>
    %1 = vector.shape_cast %0 : vector<24x8x28xf32> to vector<192x28xf32>
    %c0_2 = arith.constant 0 : index
    %c0_3 = arith.constant 0 : index
    %c0_4 = arith.constant 0 : index
    %2 = vector.load %arg2[%c0_2, %c0_3, %c0_4] : memref<5x28x512xf32, #tpu.memory_space<vmem>>, vector<1x28x512xf32>
    %3 = vector.shape_cast %2 : vector<1x28x512xf32> to vector<28x512xf32>
    %cst = arith.constant dense<0.000000e+00> : vector<192x512xf32>
    %4 = tpu.matmul %1, %3, %cst {dimension_numbers = #tpu.dot_dimension_numbers<[1], [0], [0], [1], [0, 0, 1, 1], [], []>} : vector<192x28xf32>, vector<28x512xf32>, vector<192x512xf32> -> vector<192x512xf32>
    %c1 = arith.constant 1 : index
    %c0_5 = arith.constant 0 : index
    %c0_6 = arith.constant 0 : index
    %5 = vector.load %arg1[%c1, %c0_5, %c0_6] : memref<28x8x28xf32, #tpu.memory_space<vmem>>, vector<24x8x28xf32>
    %6 = vector.shape_cast %5 : vector<24x8x28xf32> to vector<192x28xf32>
    %c1_7 = arith.constant 1 : index
    %c0_8 = arith.constant 0 : index
    %c0_9 = arith.constant 0 : index
    %7 = vector.load %arg2[%c1_7, %c0_8, %c0_9] : memref<5x28x512xf32, #tpu.memory_space<vmem>>, vector<1x28x512xf32>
    %8 = vector.shape_cast %7 : vector<1x28x512xf32> to vector<28x512xf32>
    %cst_10 = arith.constant dense<0.000000e+00> : vector<192x512xf32>
    %9 = tpu.matmul %6, %8, %cst_10 {dimension_numbers = #tpu.dot_dimension_numbers<[1], [0], [0], [1], [0, 0, 1, 1], [], []>} : vector<192x28xf32>, vector<28x512xf32>, vector<192x512xf32> -> vector<192x512xf32>
    %10 = arith.addf %4, %9 : vector<192x512xf32>
    %c2 = arith.constant 2 : index
    %c0_11 = arith.constant 0 : index
    %c0_12 = arith.constant 0 : index
    %11 = vector.load %arg1[%c2, %c0_11, %c0_12] : memref<28x8x28xf32, #tpu.memory_space<vmem>>, vector<24x8x28xf32>
    %12 = vector.shape_cast %11 : vector<24x8x28xf32> to vector<192x28xf32>
    %c2_13 = arith.constant 2 : index
    %c0_14 = arith.constant 0 : index
    %c0_15 = arith.constant 0 : index
    %13 = vector.load %arg2[%c2_13, %c0_14, %c0_15] : memref<5x28x512xf32, #tpu.memory_space<vmem>>, vector<1x28x512xf32>
    %14 = vector.shape_cast %13 : vector<1x28x512xf32> to vector<28x512xf32>
    %cst_16 = arith.constant dense<0.000000e+00> : vector<192x512xf32>
    %15 = tpu.matmul %12, %14, %cst_16 {dimension_numbers = #tpu.dot_dimension_numbers<[1], [0], [0], [1], [0, 0, 1, 1], [], []>} : vector<192x28xf32>, vector<28x512xf32>, vector<192x512xf32> -> vector<192x512xf32>
    %16 = arith.addf %10, %15 : vector<192x512xf32>
    %c3 = arith.constant 3 : index
    %c0_17 = arith.constant 0 : index
    %c0_18 = arith.constant 0 : index
    %17 = vector.load %arg1[%c3, %c0_17, %c0_18] : memref<28x8x28xf32, #tpu.memory_space<vmem>>, vector<24x8x28xf32>
    %18 = vector.shape_cast %17 : vector<24x8x28xf32> to vector<192x28xf32>
    %c3_19 = arith.constant 3 : index
    %c0_20 = arith.constant 0 : index
    %c0_21 = arith.constant 0 : index
    %19 = vector.load %arg2[%c3_19, %c0_20, %c0_21] : memref<5x28x512xf32, #tpu.memory_space<vmem>>, vector<1x28x512xf32>
    %20 = vector.shape_cast %19 : vector<1x28x512xf32> to vector<28x512xf32>
    %cst_22 = arith.constant dense<0.000000e+00> : vector<192x512xf32>
    %21 = tpu.matmul %18, %20, %cst_22 {dimension_numbers = #tpu.dot_dimension_numbers<[1], [0], [0], [1], [0, 0, 1, 1], [], []>} : vector<192x28xf32>, vector<28x512xf32>, vector<192x512xf32> -> vector<192x512xf32>
    %22 = arith.addf %16, %21 : vector<192x512xf32>
    %c4 = arith.constant 4 : index
    %c0_23 = arith.constant 0 : index
    %c0_24 = arith.constant 0 : index
    %23 = vector.load %arg1[%c4, %c0_23, %c0_24] : memref<28x8x28xf32, #tpu.memory_space<vmem>>, vector<24x8x28xf32>
    %24 = vector.shape_cast %23 : vector<24x8x28xf32> to vector<192x28xf32>
    %c4_25 = arith.constant 4 : index
    %c0_26 = arith.constant 0 : index
    %c0_27 = arith.constant 0 : index
    %25 = vector.load %arg2[%c4_25, %c0_26, %c0_27] : memref<5x28x512xf32, #tpu.memory_space<vmem>>, vector<1x28x512xf32>
    %26 = vector.shape_cast %25 : vector<1x28x512xf32> to vector<28x512xf32>
    %cst_28 = arith.constant dense<0.000000e+00> : vector<192x512xf32>
    %27 = tpu.matmul %24, %26, %cst_28 {dimension_numbers = #tpu.dot_dimension_numbers<[1], [0], [0], [1], [0, 0, 1, 1], [], []>} : vector<192x28xf32>, vector<28x512xf32>, vector<192x512xf32> -> vector<192x512xf32>
    %28 = arith.addf %22, %27 : vector<192x512xf32>
    %c0_29 = arith.constant 0 : index
    %c0_30 = arith.constant 0 : index
    %29 = vector.load %arg3[%c0_29, %c0_30] : memref<1x512xf32, #tpu.memory_space<vmem>>, vector<1x512xf32>
    %30 = vector.broadcast %29 : vector<1x512xf32> to vector<192x512xf32>
    %31 = arith.addf %28, %30 : vector<192x512xf32>
    %cst_31 = arith.constant 0.000000e+00 : f32
    %32 = vector.broadcast %cst_31 : f32 to vector<192x512xf32>
    %33 = arith.maximumf %31, %32 : vector<192x512xf32>
    %34 = vector.extract_strided_slice %33 {offsets = [0, 0], sizes = [192, 256], strides = [1, 1]} : vector<192x512xf32> to vector<192x256xf32>
    %35 = vector.extract_strided_slice %33 {offsets = [0, 256], sizes = [192, 256], strides = [1, 1]} : vector<192x512xf32> to vector<192x256xf32>
    %36 = arith.maximumf %34, %35 : vector<192x256xf32>
    %37 = vector.extract_strided_slice %36 {offsets = [0, 0], sizes = [8, 256], strides = [1, 1]} : vector<192x256xf32> to vector<8x256xf32>
    %38 = vector.extract_strided_slice %36 {offsets = [8, 0], sizes = [8, 256], strides = [1, 1]} : vector<192x256xf32> to vector<8x256xf32>
    %39 = arith.maximumf %37, %38 : vector<8x256xf32>
    %c0_32 = arith.constant 0 : index
    %c0_33 = arith.constant 0 : index
    %40 = vector.load %arg11[%c0_32, %c0_33] : memref<96x256xf32, #tpu.memory_space<vmem>>, vector<8x256xf32>
    tpu.vector_store %arg11[%c0_32, %c0_33], %39 {strides = array<i32>} : memref<96x256xf32, #tpu.memory_space<vmem>>, vector<8x256xf32>,
    %41 = vector.extract_strided_slice %36 {offsets = [16, 0], sizes = [8, 256], strides = [1, 1]} : vector<192x256xf32> to vector<8x256xf32>
    %42 = vector.extract_strided_slice %36 {offsets = [24, 0], sizes = [8, 256], strides = [1, 1]} : vector<192x256xf32> to vector<8x256xf32>
    %43 = arith.maximumf %41, %42 : vector<8x256xf32>
    %c8 = arith.constant 8 : index
    %c0_34 = arith.constant 0 : index
    %44 = vector.load %arg11[%c8, %c0_34] : memref<96x256xf32, #tpu.memory_space<vmem>>, vector<8x256xf32>
    tpu.vector_store %arg11[%c8, %c0_34], %43 {strides = array<i32>} : memref<96x256xf32, #tpu.memory_space<vmem>>, vector<8x256xf32>,
    %45 = vector.extract_strided_slice %36 {offsets = [32, 0], sizes = [8, 256], strides = [1, 1]} : vector<192x256xf32> to vector<8x256xf32>
    %46 = vector.extract_strided_slice %36 {offsets = [40, 0], sizes = [8, 256], strides = [1, 1]} : vector<192x256xf32> to vector<8x256xf32>
    %47 = arith.maximumf %45, %46 : vector<8x256xf32>
    %c16 = arith.constant 16 : index
    %c0_35 = arith.constant 0 : index
    %48 = vector.load %arg11[%c16, %c0_35] : memref<96x256xf32, #tpu.memory_space<vmem>>, vector<8x256xf32>
    tpu.vector_store %arg11[%c16, %c0_35], %47 {strides = array<i32>} : memref<96x256xf32, #tpu.memory_space<vmem>>, vector<8x256xf32>,
    %49 = vector.extract_strided_slice %36 {offsets = [48, 0], sizes = [8, 256], strides = [1, 1]} : vector<192x256xf32> to vector<8x256xf32>
    %50 = vector.extract_strided_slice %36 {offsets = [56, 0], sizes = [8, 256], strides = [1, 1]} : vector<192x256xf32> to vector<8x256xf32>
    %51 = arith.maximumf %49, %50 : vector<8x256xf32>
    %c24 = arith.constant 24 : index
    %c0_36 = arith.constant 0 : index
    %52 = vector.load %arg11[%c24, %c0_36] : memref<96x256xf32, #tpu.memory_space<vmem>>, vector<8x256xf32>
    tpu.vector_store %arg11[%c24, %c0_36], %51 {strides = array<i32>} : memref<96x256xf32, #tpu.memory_space<vmem>>, vector<8x256xf32>,
    %53 = vector.extract_strided_slice %36 {offsets = [64, 0], sizes = [8, 256], strides = [1, 1]} : vector<192x256xf32> to vector<8x256xf32>
    %54 = vector.extract_strided_slice %36 {offsets = [72, 0], sizes = [8, 256], strides = [1, 1]} : vector<192x256xf32> to vector<8x256xf32>
    %55 = arith.maximumf %53, %54 : vector<8x256xf32>
    %c32 = arith.constant 32 : index
    %c0_37 = arith.constant 0 : index
    %56 = vector.load %arg11[%c32, %c0_37] : memref<96x256xf32, #tpu.memory_space<vmem>>, vector<8x256xf32>
    tpu.vector_store %arg11[%c32, %c0_37], %55 {strides = array<i32>} : memref<96x256xf32, #tpu.memory_space<vmem>>, vector<8x256xf32>,
    %57 = vector.extract_strided_slice %36 {offsets = [80, 0], sizes = [8, 256], strides = [1, 1]} : vector<192x256xf32> to vector<8x256xf32>
    %58 = vector.extract_strided_slice %36 {offsets = [88, 0], sizes = [8, 256], strides = [1, 1]} : vector<192x256xf32> to vector<8x256xf32>
    %59 = arith.maximumf %57, %58 : vector<8x256xf32>
    %c40 = arith.constant 40 : index
    %c0_38 = arith.constant 0 : index
    %60 = vector.load %arg11[%c40, %c0_38] : memref<96x256xf32, #tpu.memory_space<vmem>>, vector<8x256xf32>
    tpu.vector_store %arg11[%c40, %c0_38], %59 {strides = array<i32>} : memref<96x256xf32, #tpu.memory_space<vmem>>, vector<8x256xf32>,
    %61 = vector.extract_strided_slice %36 {offsets = [96, 0], sizes = [8, 256], strides = [1, 1]} : vector<192x256xf32> to vector<8x256xf32>
    %62 = vector.extract_strided_slice %36 {offsets = [104, 0], sizes = [8, 256], strides = [1, 1]} : vector<192x256xf32> to vector<8x256xf32>
    %63 = arith.maximumf %61, %62 : vector<8x256xf32>
    %c48 = arith.constant 48 : index
    %c0_39 = arith.constant 0 : index
    %64 = vector.load %arg11[%c48, %c0_39] : memref<96x256xf32, #tpu.memory_space<vmem>>, vector<8x256xf32>
    tpu.vector_store %arg11[%c48, %c0_39], %63 {strides = array<i32>} : memref<96x256xf32, #tpu.memory_space<vmem>>, vector<8x256xf32>,
    %65 = vector.extract_strided_slice %36 {offsets = [112, 0], sizes = [8, 256], strides = [1, 1]} : vector<192x256xf32> to vector<8x256xf32>
    %66 = vector.extract_strided_slice %36 {offsets = [120, 0], sizes = [8, 256], strides = [1, 1]} : vector<192x256xf32> to vector<8x256xf32>
    %67 = arith.maximumf %65, %66 : vector<8x256xf32>
    %c56 = arith.constant 56 : index
    %c0_40 = arith.constant 0 : index
    %68 = vector.load %arg11[%c56, %c0_40] : memref<96x256xf32, #tpu.memory_space<vmem>>, vector<8x256xf32>
    tpu.vector_store %arg11[%c56, %c0_40], %67 {strides = array<i32>} : memref<96x256xf32, #tpu.memory_space<vmem>>, vector<8x256xf32>,
    %69 = vector.extract_strided_slice %36 {offsets = [128, 0], sizes = [8, 256], strides = [1, 1]} : vector<192x256xf32> to vector<8x256xf32>
    %70 = vector.extract_strided_slice %36 {offsets = [136, 0], sizes = [8, 256], strides = [1, 1]} : vector<192x256xf32> to vector<8x256xf32>
    %71 = arith.maximumf %69, %70 : vector<8x256xf32>
    %c64 = arith.constant 64 : index
    %c0_41 = arith.constant 0 : index
    %72 = vector.load %arg11[%c64, %c0_41] : memref<96x256xf32, #tpu.memory_space<vmem>>, vector<8x256xf32>
    tpu.vector_store %arg11[%c64, %c0_41], %71 {strides = array<i32>} : memref<96x256xf32, #tpu.memory_space<vmem>>, vector<8x256xf32>,
    %73 = vector.extract_strided_slice %36 {offsets = [144, 0], sizes = [8, 256], strides = [1, 1]} : vector<192x256xf32> to vector<8x256xf32>
    %74 = vector.extract_strided_slice %36 {offsets = [152, 0], sizes = [8, 256], strides = [1, 1]} : vector<192x256xf32> to vector<8x256xf32>
    %75 = arith.maximumf %73, %74 : vector<8x256xf32>
    %c72 = arith.constant 72 : index
    %c0_42 = arith.constant 0 : index
    %76 = vector.load %arg11[%c72, %c0_42] : memref<96x256xf32, #tpu.memory_space<vmem>>, vector<8x256xf32>
    tpu.vector_store %arg11[%c72, %c0_42], %75 {strides = array<i32>} : memref<96x256xf32, #tpu.memory_space<vmem>>, vector<8x256xf32>,
    %77 = vector.extract_strided_slice %36 {offsets = [160, 0], sizes = [8, 256], strides = [1, 1]} : vector<192x256xf32> to vector<8x256xf32>
    %78 = vector.extract_strided_slice %36 {offsets = [168, 0], sizes = [8, 256], strides = [1, 1]} : vector<192x256xf32> to vector<8x256xf32>
    %79 = arith.maximumf %77, %78 : vector<8x256xf32>
    %c80 = arith.constant 80 : index
    %c0_43 = arith.constant 0 : index
    %80 = vector.load %arg11[%c80, %c0_43] : memref<96x256xf32, #tpu.memory_space<vmem>>, vector<8x256xf32>
    tpu.vector_store %arg11[%c80, %c0_43], %79 {strides = array<i32>} : memref<96x256xf32, #tpu.memory_space<vmem>>, vector<8x256xf32>,
    %81 = vector.extract_strided_slice %36 {offsets = [176, 0], sizes = [8, 256], strides = [1, 1]} : vector<192x256xf32> to vector<8x256xf32>
    %82 = vector.extract_strided_slice %36 {offsets = [184, 0], sizes = [8, 256], strides = [1, 1]} : vector<192x256xf32> to vector<8x256xf32>
    %83 = arith.maximumf %81, %82 : vector<8x256xf32>
    %c88 = arith.constant 88 : index
    %c0_44 = arith.constant 0 : index
    %84 = vector.load %arg11[%c88, %c0_44] : memref<96x256xf32, #tpu.memory_space<vmem>>, vector<8x256xf32>
    tpu.vector_store %arg11[%c88, %c0_44], %83 {strides = array<i32>} : memref<96x256xf32, #tpu.memory_space<vmem>>, vector<8x256xf32>,
    %c0_45 = arith.constant 0 : index
    %c0_46 = arith.constant 0 : index
    %85 = vector.load %arg11[%c0_45, %c0_46] : memref<96x256xf32, #tpu.memory_space<vmem>>, vector<64x256xf32>
    %86 = arith.truncf %85 : vector<64x256xf32> to vector<64x256xbf16>
    %c0_47 = arith.constant 0 : index
    %c0_48 = arith.constant 0 : index
    %c0_49 = arith.constant 0 : index
    %87 = vector.load %arg4[%c0_47, %c0_48, %c0_49] : memref<5x256x512xbf16, #tpu.memory_space<vmem>>, vector<1x256x512xbf16>
    %88 = vector.shape_cast %87 : vector<1x256x512xbf16> to vector<256x512xbf16>
    %cst_50 = arith.constant dense<0.000000e+00> : vector<64x512xf32>
    %89 = tpu.matmul %86, %88, %cst_50 {dimension_numbers = #tpu.dot_dimension_numbers<[1], [0], [0], [1], [0, 0, 1, 1], [], []>} : vector<64x256xbf16>, vector<256x512xbf16>, vector<64x512xf32> -> vector<64x512xf32>
    %c8_51 = arith.constant 8 : index
    %c0_52 = arith.constant 0 : index
    %90 = vector.load %arg11[%c8_51, %c0_52] : memref<96x256xf32, #tpu.memory_space<vmem>>, vector<64x256xf32>
    %91 = arith.truncf %90 : vector<64x256xf32> to vector<64x256xbf16>
    %c1_53 = arith.constant 1 : index
    %c0_54 = arith.constant 0 : index
    %c0_55 = arith.constant 0 : index
    %92 = vector.load %arg4[%c1_53, %c0_54, %c0_55] : memref<5x256x512xbf16, #tpu.memory_space<vmem>>, vector<1x256x512xbf16>
    %93 = vector.shape_cast %92 : vector<1x256x512xbf16> to vector<256x512xbf16>
    %cst_56 = arith.constant dense<0.000000e+00> : vector<64x512xf32>
    %94 = tpu.matmul %91, %93, %cst_56 {dimension_numbers = #tpu.dot_dimension_numbers<[1], [0], [0], [1], [0, 0, 1, 1], [], []>} : vector<64x256xbf16>, vector<256x512xbf16>, vector<64x512xf32> -> vector<64x512xf32>
    %95 = arith.addf %89, %94 : vector<64x512xf32>
    %c16_57 = arith.constant 16 : index
    %c0_58 = arith.constant 0 : index
    %96 = vector.load %arg11[%c16_57, %c0_58] : memref<96x256xf32, #tpu.memory_space<vmem>>, vector<64x256xf32>
    %97 = arith.truncf %96 : vector<64x256xf32> to vector<64x256xbf16>
    %c2_59 = arith.constant 2 : index
    %c0_60 = arith.constant 0 : index
    %c0_61 = arith.constant 0 : index
    %98 = vector.load %arg4[%c2_59, %c0_60, %c0_61] : memref<5x256x512xbf16, #tpu.memory_space<vmem>>, vector<1x256x512xbf16>
    %99 = vector.shape_cast %98 : vector<1x256x512xbf16> to vector<256x512xbf16>
    %cst_62 = arith.constant dense<0.000000e+00> : vector<64x512xf32>
    %100 = tpu.matmul %97, %99, %cst_62 {dimension_numbers = #tpu.dot_dimension_numbers<[1], [0], [0], [1], [0, 0, 1, 1], [], []>} : vector<64x256xbf16>, vector<256x512xbf16>, vector<64x512xf32> -> vector<64x512xf32>
    %101 = arith.addf %95, %100 : vector<64x512xf32>
    %c24_63 = arith.constant 24 : index
    %c0_64 = arith.constant 0 : index
    %102 = vector.load %arg11[%c24_63, %c0_64] : memref<96x256xf32, #tpu.memory_space<vmem>>, vector<64x256xf32>
    %103 = arith.truncf %102 : vector<64x256xf32> to vector<64x256xbf16>
    %c3_65 = arith.constant 3 : index
    %c0_66 = arith.constant 0 : index
    %c0_67 = arith.constant 0 : index
    %104 = vector.load %arg4[%c3_65, %c0_66, %c0_67] : memref<5x256x512xbf16, #tpu.memory_space<vmem>>, vector<1x256x512xbf16>
    %105 = vector.shape_cast %104 : vector<1x256x512xbf16> to vector<256x512xbf16>
    %cst_68 = arith.constant dense<0.000000e+00> : vector<64x512xf32>
    %106 = tpu.matmul %103, %105, %cst_68 {dimension_numbers = #tpu.dot_dimension_numbers<[1], [0], [0], [1], [0, 0, 1, 1], [], []>} : vector<64x256xbf16>, vector<256x512xbf16>, vector<64x512xf32> -> vector<64x512xf32>
    %107 = arith.addf %101, %106 : vector<64x512xf32>
    %c32_69 = arith.constant 32 : index
    %c0_70 = arith.constant 0 : index
    %108 = vector.load %arg11[%c32_69, %c0_70] : memref<96x256xf32, #tpu.memory_space<vmem>>, vector<64x256xf32>
    %109 = arith.truncf %108 : vector<64x256xf32> to vector<64x256xbf16>
    %c4_71 = arith.constant 4 : index
    %c0_72 = arith.constant 0 : index
    %c0_73 = arith.constant 0 : index
    %110 = vector.load %arg4[%c4_71, %c0_72, %c0_73] : memref<5x256x512xbf16, #tpu.memory_space<vmem>>, vector<1x256x512xbf16>
    %111 = vector.shape_cast %110 : vector<1x256x512xbf16> to vector<256x512xbf16>
    %cst_74 = arith.constant dense<0.000000e+00> : vector<64x512xf32>
    %112 = tpu.matmul %109, %111, %cst_74 {dimension_numbers = #tpu.dot_dimension_numbers<[1], [0], [0], [1], [0, 0, 1, 1], [], []>} : vector<64x256xbf16>, vector<256x512xbf16>, vector<64x512xf32> -> vector<64x512xf32>
    %113 = arith.addf %107, %112 : vector<64x512xf32>
    %c0_75 = arith.constant 0 : index
    %c0_76 = arith.constant 0 : index
    %114 = vector.load %arg5[%c0_75, %c0_76] : memref<1x512xf32, #tpu.memory_space<vmem>>, vector<1x512xf32>
    %115 = vector.broadcast %114 : vector<1x512xf32> to vector<64x512xf32>
    %116 = arith.addf %113, %115 : vector<64x512xf32>
    %cst_77 = arith.constant 0.000000e+00 : f32
    %117 = vector.broadcast %cst_77 : f32 to vector<64x512xf32>
    %118 = arith.maximumf %116, %117 : vector<64x512xf32>
    %119 = vector.extract_strided_slice %118 {offsets = [0, 0], sizes = [64, 256], strides = [1, 1]} : vector<64x512xf32> to vector<64x256xf32>
    %120 = vector.extract_strided_slice %118 {offsets = [0, 256], sizes = [64, 256], strides = [1, 1]} : vector<64x512xf32> to vector<64x256xf32>
    %121 = arith.maximumf %119, %120 : vector<64x256xf32>
    %122 = vector.extract_strided_slice %121 {offsets = [0, 0], sizes = [8, 256], strides = [1, 1]} : vector<64x256xf32> to vector<8x256xf32>
    %123 = vector.extract_strided_slice %121 {offsets = [8, 0], sizes = [8, 256], strides = [1, 1]} : vector<64x256xf32> to vector<8x256xf32>
    %124 = arith.maximumf %122, %123 : vector<8x256xf32>
    %125 = arith.truncf %124 : vector<8x256xf32> to vector<8x256xbf16>
    %c0_78 = arith.constant 0 : index
    %c0_79 = arith.constant 0 : index
    %c0_80 = arith.constant 0 : index
    %126 = vector.load %arg6[%c0_78, %c0_79, %c0_80] : memref<4x256x500xbf16, #tpu.memory_space<vmem>>, vector<1x256x500xbf16>
    %127 = vector.shape_cast %126 : vector<1x256x500xbf16> to vector<256x500xbf16>
    %cst_81 = arith.constant dense<0.000000e+00> : vector<8x500xf32>
    %128 = tpu.matmul %125, %127, %cst_81 {dimension_numbers = #tpu.dot_dimension_numbers<[1], [0], [0], [1], [0, 0, 1, 1], [], []>} : vector<8x256xbf16>, vector<256x500xbf16>, vector<8x500xf32> -> vector<8x500xf32>
    %129 = vector.extract_strided_slice %121 {offsets = [16, 0], sizes = [8, 256], strides = [1, 1]} : vector<64x256xf32> to vector<8x256xf32>
    %130 = vector.extract_strided_slice %121 {offsets = [24, 0], sizes = [8, 256], strides = [1, 1]} : vector<64x256xf32> to vector<8x256xf32>
    %131 = arith.maximumf %129, %130 : vector<8x256xf32>
    %132 = arith.truncf %131 : vector<8x256xf32> to vector<8x256xbf16>
    %c1_82 = arith.constant 1 : index
    %c0_83 = arith.constant 0 : index
    %c0_84 = arith.constant 0 : index
    %133 = vector.load %arg6[%c1_82, %c0_83, %c0_84] : memref<4x256x500xbf16, #tpu.memory_space<vmem>>, vector<1x256x500xbf16>
    %134 = vector.shape_cast %133 : vector<1x256x500xbf16> to vector<256x500xbf16>
    %cst_85 = arith.constant dense<0.000000e+00> : vector<8x500xf32>
    %135 = tpu.matmul %132, %134, %cst_85 {dimension_numbers = #tpu.dot_dimension_numbers<[1], [0], [0], [1], [0, 0, 1, 1], [], []>} : vector<8x256xbf16>, vector<256x500xbf16>, vector<8x500xf32> -> vector<8x500xf32>
    %136 = arith.addf %128, %135 : vector<8x500xf32>
    %137 = vector.extract_strided_slice %121 {offsets = [32, 0], sizes = [8, 256], strides = [1, 1]} : vector<64x256xf32> to vector<8x256xf32>
    %138 = vector.extract_strided_slice %121 {offsets = [40, 0], sizes = [8, 256], strides = [1, 1]} : vector<64x256xf32> to vector<8x256xf32>
    %139 = arith.maximumf %137, %138 : vector<8x256xf32>
    %140 = arith.truncf %139 : vector<8x256xf32> to vector<8x256xbf16>
    %c2_86 = arith.constant 2 : index
    %c0_87 = arith.constant 0 : index
    %c0_88 = arith.constant 0 : index
    %141 = vector.load %arg6[%c2_86, %c0_87, %c0_88] : memref<4x256x500xbf16, #tpu.memory_space<vmem>>, vector<1x256x500xbf16>
    %142 = vector.shape_cast %141 : vector<1x256x500xbf16> to vector<256x500xbf16>
    %cst_89 = arith.constant dense<0.000000e+00> : vector<8x500xf32>
    %143 = tpu.matmul %140, %142, %cst_89 {dimension_numbers = #tpu.dot_dimension_numbers<[1], [0], [0], [1], [0, 0, 1, 1], [], []>} : vector<8x256xbf16>, vector<256x500xbf16>, vector<8x500xf32> -> vector<8x500xf32>
    %144 = arith.addf %136, %143 : vector<8x500xf32>
    %145 = vector.extract_strided_slice %121 {offsets = [48, 0], sizes = [8, 256], strides = [1, 1]} : vector<64x256xf32> to vector<8x256xf32>
    %146 = vector.extract_strided_slice %121 {offsets = [56, 0], sizes = [8, 256], strides = [1, 1]} : vector<64x256xf32> to vector<8x256xf32>
    %147 = arith.maximumf %145, %146 : vector<8x256xf32>
    %148 = arith.truncf %147 : vector<8x256xf32> to vector<8x256xbf16>
    %c3_90 = arith.constant 3 : index
    %c0_91 = arith.constant 0 : index
    %c0_92 = arith.constant 0 : index
    %149 = vector.load %arg6[%c3_90, %c0_91, %c0_92] : memref<4x256x500xbf16, #tpu.memory_space<vmem>>, vector<1x256x500xbf16>
    %150 = vector.shape_cast %149 : vector<1x256x500xbf16> to vector<256x500xbf16>
    %cst_93 = arith.constant dense<0.000000e+00> : vector<8x500xf32>
    %151 = tpu.matmul %148, %150, %cst_93 {dimension_numbers = #tpu.dot_dimension_numbers<[1], [0], [0], [1], [0, 0, 1, 1], [], []>} : vector<8x256xbf16>, vector<256x500xbf16>, vector<8x500xf32> -> vector<8x500xf32>
    %152 = arith.addf %144, %151 : vector<8x500xf32>
    %c0_94 = arith.constant 0 : index
    %c0_95 = arith.constant 0 : index
    %153 = vector.load %arg7[%c0_94, %c0_95] : memref<1x500xf32, #tpu.memory_space<vmem>>, vector<1x500xf32>
    %154 = vector.broadcast %153 : vector<1x500xf32> to vector<8x500xf32>
    %155 = arith.addf %152, %154 : vector<8x500xf32>
    %cst_96 = arith.constant 0.000000e+00 : f32
    %156 = vector.broadcast %cst_96 : f32 to vector<8x500xf32>
    %157 = arith.maximumf %155, %156 : vector<8x500xf32>
    %158 = arith.truncf %157 : vector<8x500xf32> to vector<8x500xbf16>
    %c0_97 = arith.constant 0 : index
    %c0_98 = arith.constant 0 : index
    %159 = vector.load %arg8[%c0_97, %c0_98] : memref<500x10xbf16, #tpu.memory_space<vmem>>, vector<500x10xbf16>
    %cst_99 = arith.constant dense<0.000000e+00> : vector<8x10xf32>
    %160 = tpu.matmul %158, %159, %cst_99 {dimension_numbers = #tpu.dot_dimension_numbers<[1], [0], [0], [1], [0, 0, 1, 1], [], []>} : vector<8x500xbf16>, vector<500x10xbf16>, vector<8x10xf32> -> vector<8x10xf32>
    %c0_100 = arith.constant 0 : index
    %c0_101 = arith.constant 0 : index
    %161 = vector.load %arg9[%c0_100, %c0_101] : memref<1x10xf32, #tpu.memory_space<vmem>>, vector<1x10xf32>
    %162 = vector.broadcast %161 : vector<1x10xf32> to vector<8x10xf32>
    %163 = arith.addf %160, %162 : vector<8x10xf32>
    %cst_102 = arith.constant dense<0xFF800000> : vector<8xf32>
    %164 = vector.multi_reduction <maximumf>, %163, %cst_102 [1] : vector<8x10xf32> to vector<8xf32>
    %165 = vector.shape_cast %164 : vector<8xf32> to vector<8x1xf32>
    %166 = vector.broadcast %165 : vector<8x1xf32> to vector<8x10xf32>
    %167 = arith.subf %163, %166 : vector<8x10xf32>
    %168 = math.exp %167 : vector<8x10xf32>
    %cst_103 = arith.constant dense<0.000000e+00> : vector<8xf32>
    %169 = vector.multi_reduction <add>, %168, %cst_103 [1] : vector<8x10xf32> to vector<8xf32>
    %170 = vector.shape_cast %169 : vector<8xf32> to vector<8x1xf32>
    %171 = math.log %170 : vector<8x1xf32>
    %172 = arith.addf %165, %171 : vector<8x1xf32>
    %173 = vector.broadcast %172 : vector<8x1xf32> to vector<8x10xf32>
    %174 = arith.subf %163, %173 : vector<8x10xf32>
    %c0_104 = arith.constant 0 : index
    %c0_105 = arith.constant 0 : index
    %175 = vector.load %arg10[%c0_104, %c0_105] : memref<8x10xf32, #tpu.memory_space<vmem>>, vector<8x10xf32>
    tpu.vector_store %arg10[%c0_104, %c0_105], %174 {strides = array<i32>} : memref<8x10xf32, #tpu.memory_space<vmem>>, vector<8x10xf32>,
    return
  }
  func.func @transform_0(%arg0: i32) -> (i32, i32, i32) {
    %c0_i32 = arith.constant 0 : i32
    %c0_i32_0 = arith.constant 0 : i32
    %c0_i32_1 = arith.constant 0 : i32
    return %c0_i32, %arg0, %c0_i32_0 : i32, i32, i32
  }
  func.func @transform_1(%arg0: i32) -> (i32, i32, i32) {
    %c0_i32 = arith.constant 0 : i32
    %c0_i32_0 = arith.constant 0 : i32
    %c0_i32_1 = arith.constant 0 : i32
    %c0_i32_2 = arith.constant 0 : i32
    return %c0_i32, %c0_i32_0, %c0_i32_1 : i32, i32, i32
  }
  func.func @transform_2(%arg0: i32) -> (i32, i32) {
    %c0_i32 = arith.constant 0 : i32
    %c0_i32_0 = arith.constant 0 : i32
    %c0_i32_1 = arith.constant 0 : i32
    return %c0_i32, %c0_i32_0 : i32, i32
  }
  func.func @transform_3(%arg0: i32) -> (i32, i32, i32) {
    %c0_i32 = arith.constant 0 : i32
    %c0_i32_0 = arith.constant 0 : i32
    %c0_i32_1 = arith.constant 0 : i32
    %c0_i32_2 = arith.constant 0 : i32
    return %c0_i32, %c0_i32_0, %c0_i32_1 : i32, i32, i32
  }
  func.func @transform_4(%arg0: i32) -> (i32, i32) {
    %c0_i32 = arith.constant 0 : i32
    %c0_i32_0 = arith.constant 0 : i32
    %c0_i32_1 = arith.constant 0 : i32
    return %c0_i32, %c0_i32_0 : i32, i32
  }
  func.func @transform_5(%arg0: i32) -> (i32, i32, i32) {
    %c0_i32 = arith.constant 0 : i32
    %c0_i32_0 = arith.constant 0 : i32
    %c0_i32_1 = arith.constant 0 : i32
    %c0_i32_2 = arith.constant 0 : i32
    return %c0_i32, %c0_i32_0, %c0_i32_1 : i32, i32, i32
  }
  func.func @transform_6(%arg0: i32) -> (i32, i32) {
    %c0_i32 = arith.constant 0 : i32
    %c0_i32_0 = arith.constant 0 : i32
    %c0_i32_1 = arith.constant 0 : i32
    return %c0_i32, %c0_i32_0 : i32, i32
  }
  func.func @transform_7(%arg0: i32) -> (i32, i32) {
    %c0_i32 = arith.constant 0 : i32
    %c0_i32_0 = arith.constant 0 : i32
    %c0_i32_1 = arith.constant 0 : i32
    return %c0_i32, %c0_i32_0 : i32, i32
  }
  func.func @transform_8(%arg0: i32) -> (i32, i32) {
    %c0_i32 = arith.constant 0 : i32
    %c0_i32_0 = arith.constant 0 : i32
    %c0_i32_1 = arith.constant 0 : i32
    return %c0_i32, %c0_i32_0 : i32, i32
  }
  func.func @transform_9(%arg0: i32) -> (i32, i32) {
    %c0_i32 = arith.constant 0 : i32
    %c0_i32_0 = arith.constant 0 : i32
    return %arg0, %c0_i32 : i32, i32
  }
}

</mosaic_0001>

<llo_original>
// kernel: net_forward.1
$region0: #{net_forward.1}
  #allocation0 [shape = 'u32[]', space=smem, size = 0x4, offset = 0x4, fixed_abs, tag = 'smem constant byte address 0x4 - core index']
  #allocation1 [shape = 'u32[144,128]{1,0:T(1,128)}', space=vmem, size = 0x12000, scoped, tag = 'internal scratch']
  #allocation2 [shape = 'f32[96,256]{1,0:T(8,128)}', space=vmem, size = 0x18000, scoped, tag = 'scratch operand']
  %s0 = inlined_call_operand.vmem [shape: f32[28,16,28], index: 0, kind: input, shape index: {}]
  %s1 = inlined_call_operand.vmem [shape: f32[5,28,512], index: 1, kind: input, shape index: {}]
  %s2 = inlined_call_operand.vmem [shape: f32[1,512], index: 2, kind: input, shape index: {}]
  %s3 = inlined_call_operand.vmem [shape: bf16[5,256,512], index: 3, kind: input, shape index: {}]
  %s4 = inlined_call_operand.vmem [shape: f32[1,512], index: 4, kind: input, shape index: {}]
  %s5 = inlined_call_operand.vmem [shape: bf16[4,256,500], index: 5, kind: input, shape index: {}]
  %s6 = inlined_call_operand.vmem [shape: f32[1,500], index: 6, kind: input, shape index: {}]
  %s7 = inlined_call_operand.vmem [shape: bf16[500,10], index: 7, kind: input, shape index: {}]
  %s8 = inlined_call_operand.vmem [shape: f32[1,10], index: 8, kind: input, shape index: {}]
  %s9 = inlined_call_operand.hbm [shape: f32[16,10], index: 9, kind: output, shape index: {}]
  %s10 = sld [smem:[#allocation0]]
  $region107: #{net_forward.1} parent=0
    _
  %s12 = ssub.s32 1, %s10
  %s13 = scalar_select 0, %s12, %s10
  $region1: #{net_forward.1} parent=0
    #allocation3 [shape = 'u8[229376]{0}', space=vmem, size = 0x38000, scoped, tag = 'input window, operand 0']
    #allocation4 [shape = 'u8[8192]{0}', space=vmem, size = 0x2000, scoped, tag = 'output window, operand 0']
    #allocation5 [shape = 's32[2]{0}', space=sflag, size = 0x8, scoped, tag = 'scoped memory for net_forward.1']
    %14 = vsyncpa [#allocation5], 0
    %s15 = scalar_lea.sflag [#allocation5], 1
    %16 = vsyncpa %s15, 0
    loop: start=0, step=1, limit=4
    $region2: #{net_forward.1} parent=1 // loop_pre_header
      _
    $region3: #{net_forward.1} parent=1 // loop_header
      %s18 = sphi 0, %s22
      %p19 = scmp.ge.s32.totalorder %s18, 4
      %s28 = sphi 0, %s30
      %s31 = sphi 0, %s28
      %s32 = sphi 0, %s31
      %s48 = sphi 0, %s32
      %s52 = sphi 0, %s52
      %s54 = sphi 0, %s52
      %s55 = sphi 0, %s54
      %s69 = sphi 0, %s55
      %s73 = sphi 0, %s73
      %s75 = sphi 0, %s73
      %s76 = sphi 0, %s75
      %s90 = sphi 0, %s76
      %s94 = sphi 0, %s94
      %s96 = sphi 0, %s94
      %s97 = sphi 0, %s96
      %s111 = sphi 0, %s97
      %s115 = sphi 0, %s115
      %s117 = sphi 0, %s115
      %s118 = sphi 0, %s117
      %s132 = sphi 0, %s118
      %s136 = sphi 0, %s136
      %s138 = sphi 0, %s136
      %s139 = sphi 0, %s138
      %s153 = sphi 0, %s139
      %s157 = sphi 0, %s157
      %s159 = sphi 0, %s157
      %s160 = sphi 0, %s159
      %s174 = sphi 0, %s160
      %s178 = sphi 0, %s178
      %s180 = sphi 0, %s178
      %s181 = sphi 0, %s180
      %s195 = sphi 0, %s181
      %s199 = sphi 0, %s199
      %s201 = sphi 0, %s199
      %s202 = sphi 0, %s201
      %s216 = sphi 0, %s202
      %s222 = sphi 0, %s224
      %s225 = sphi 0, %s222
      %s226 = sphi 0, %s225
      %s242 = sphi 0, %s226
    $region4: #{net_forward.1} parent=1 // loop_header_branch
      %21 = sbr.rel (%p19) target = $region8
    $region5: #{net_forward.1} parent=1 // loop_body
      %s23 = ssub.s32 %s18, 1
      %s24 = ssub.s32 %s18, 2
      %s25 = sadd.s32 %s18, 1
      %s26 = ssub.s32 %s18, %s25
      %p27 = scmp.eq.s32.totalorder %s26, 0
      %s29 = sadd.s32 %s28, 1
      %s30 = scalar_select %p27, %s28, %s29
      %p33 = pneg %p27
      %p34 = scmp.eq.s32.totalorder %s18, 1
      %p35 = por %p33, %p34
      %p36 = scmp.ne.s32.totalorder %s28, %s31
      %p37 = scmp.eq.s32.totalorder %s18, 0
      %p38 = por %p36, %p37
      %p39 = scmp.ne.s32.totalorder %s28, %s31
      %p40 = scmp.eq.s32.totalorder %s23, 1
      %p41 = por %p39, %p40
      %p42 = scmp.ne.s32.totalorder %s31, %s32
      %p43 = scmp.eq.s32.totalorder %s23, 0
      %p44 = por %p42, %p43
      %p45 = scmp.ne.s32.totalorder %s31, %s32
      %p46 = scmp.eq.s32.totalorder %s24, 1
      %p47 = por %p45, %p46
      %p49 = scmp.ne.s32.totalorder %s32, %s48
      %p50 = scmp.eq.s32.totalorder %s24, 0
      %p51 = por %p49, %p50
      %s53 = sadd.s32 %s52, 1
      %p56 = scmp.eq.s32.totalorder %s18, 1
      %p57 = scmp.ne.s32.totalorder %s52, %s54
      %p58 = scmp.eq.s32.totalorder %s18, 0
      %p59 = por %p57, %p58
      %p60 = scmp.ne.s32.totalorder %s52, %s54
      %p61 = scmp.eq.s32.totalorder %s23, 1
      %p62 = por %p60, %p61
      %p63 = scmp.ne.s32.totalorder %s54, %s55
      %p64 = scmp.eq.s32.totalorder %s23, 0
      %p65 = por %p63, %p64
      %p66 = scmp.ne.s32.totalorder %s54, %s55
      %p67 = scmp.eq.s32.totalorder %s24, 1
      %p68 = por %p66, %p67
      %p70 = scmp.ne.s32.totalorder %s55, %s69
      %p71 = scmp.eq.s32.totalorder %s24, 0
      %p72 = por %p70, %p71
      %s74 = sadd.s32 %s73, 1
      %p77 = scmp.eq.s32.totalorder %s18, 1
      %p78 = scmp.ne.s32.totalorder %s73, %s75
      %p79 = scmp.eq.s32.totalorder %s18, 0
      %p80 = por %p78, %p79
      %p81 = scmp.ne.s32.totalorder %s73, %s75
      %p82 = scmp.eq.s32.totalorder %s23, 1
      %p83 = por %p81, %p82
      %p84 = scmp.ne.s32.totalorder %s75, %s76
      %p85 = scmp.eq.s32.totalorder %s23, 0
      %p86 = por %p84, %p85
      %p87 = scmp.ne.s32.totalorder %s75, %s76
      %p88 = scmp.eq.s32.totalorder %s24, 1
      %p89 = por %p87, %p88
      %p91 = scmp.ne.s32.totalorder %s76, %s90
      %p92 = scmp.eq.s32.totalorder %s24, 0
      %p93 = por %p91, %p92
      %s95 = sadd.s32 %s94, 1
      %p98 = scmp.eq.s32.totalorder %s18, 1
      %p99 = scmp.ne.s32.totalorder %s94, %s96
      %p100 = scmp.eq.s32.totalorder %s18, 0
      %p101 = por %p99, %p100
      %p102 = scmp.ne.s32.totalorder %s94, %s96
      %p103 = scmp.eq.s32.totalorder %s23, 1
      %p104 = por %p102, %p103
      %p105 = scmp.ne.s32.totalorder %s96, %s97
      %p106 = scmp.eq.s32.totalorder %s23, 0
      %p107 = por %p105, %p106
      %p108 = scmp.ne.s32.totalorder %s96, %s97
      %p109 = scmp.eq.s32.totalorder %s24, 1
      %p110 = por %p108, %p109
      %p112 = scmp.ne.s32.totalorder %s97, %s111
      %p113 = scmp.eq.s32.totalorder %s24, 0
      %p114 = por %p112, %p113
      %s116 = sadd.s32 %s115, 1
      %p119 = scmp.eq.s32.totalorder %s18, 1
      %p120 = scmp.ne.s32.totalorder %s115, %s117
      %p121 = scmp.eq.s32.totalorder %s18, 0
      %p122 = por %p120, %p121
      %p123 = scmp.ne.s32.totalorder %s115, %s117
      %p124 = scmp.eq.s32.totalorder %s23, 1
      %p125 = por %p123, %p124
      %p126 = scmp.ne.s32.totalorder %s117, %s118
      %p127 = scmp.eq.s32.totalorder %s23, 0
      %p128 = por %p126, %p127
      %p129 = scmp.ne.s32.totalorder %s117, %s118
      %p130 = scmp.eq.s32.totalorder %s24, 1
      %p131 = por %p129, %p130
      %p133 = scmp.ne.s32.totalorder %s118, %s132
      %p134 = scmp.eq.s32.totalorder %s24, 0
      %p135 = por %p133, %p134
      %s137 = sadd.s32 %s136, 1
      %p140 = scmp.eq.s32.totalorder %s18, 1
      %p141 = scmp.ne.s32.totalorder %s136, %s138
      %p142 = scmp.eq.s32.totalorder %s18, 0
      %p143 = por %p141, %p142
      %p144 = scmp.ne.s32.totalorder %s136, %s138
      %p145 = scmp.eq.s32.totalorder %s23, 1
      %p146 = por %p144, %p145
      %p147 = scmp.ne.s32.totalorder %s138, %s139
      %p148 = scmp.eq.s32.totalorder %s23, 0
      %p149 = por %p147, %p148
      %p150 = scmp.ne.s32.totalorder %s138, %s139
      %p151 = scmp.eq.s32.totalorder %s24, 1
      %p152 = por %p150, %p151
      %p154 = scmp.ne.s32.totalorder %s139, %s153
      %p155 = scmp.eq.s32.totalorder %s24, 0
      %p156 = por %p154, %p155
      %s158 = sadd.s32 %s157, 1
      %p161 = scmp.eq.s32.totalorder %s18, 1
      %p162 = scmp.ne.s32.totalorder %s157, %s159
      %p163 = scmp.eq.s32.totalorder %s18, 0
      %p164 = por %p162, %p163
      %p165 = scmp.ne.s32.totalorder %s157, %s159
      %p166 = scmp.eq.s32.totalorder %s23, 1
      %p167 = por %p165, %p166
      %p168 = scmp.ne.s32.totalorder %s159, %s160
      %p169 = scmp.eq.s32.totalorder %s23, 0
      %p170 = por %p168, %p169
      %p171 = scmp.ne.s32.totalorder %s159, %s160
      %p172 = scmp.eq.s32.totalorder %s24, 1
      %p173 = por %p171, %p172
      %p175 = scmp.ne.s32.totalorder %s160, %s174
      %p176 = scmp.eq.s32.totalorder %s24, 0
      %p177 = por %p175, %p176
      %s179 = sadd.s32 %s178, 1
      %p182 = scmp.eq.s32.totalorder %s18, 1
      %p183 = scmp.ne.s32.totalorder %s178, %s180
      %p184 = scmp.eq.s32.totalorder %s18, 0
      %p185 = por %p183, %p184
      %p186 = scmp.ne.s32.totalorder %s178, %s180
      %p187 = scmp.eq.s32.totalorder %s23, 1
      %p188 = por %p186, %p187
      %p189 = scmp.ne.s32.totalorder %s180, %s181
      %p190 = scmp.eq.s32.totalorder %s23, 0
      %p191 = por %p189, %p190
      %p192 = scmp.ne.s32.totalorder %s180, %s181
      %p193 = scmp.eq.s32.totalorder %s24, 1
      %p194 = por %p192, %p193
      %p196 = scmp.ne.s32.totalorder %s181, %s195
      %p197 = scmp.eq.s32.totalorder %s24, 0
      %p198 = por %p196, %p197
      %s200 = sadd.s32 %s199, 1
      %p203 = scmp.eq.s32.totalorder %s18, 1
      %p204 = scmp.ne.s32.totalorder %s199, %s201
      %p205 = scmp.eq.s32.totalorder %s18, 0
      %p206 = por %p204, %p205
      %p207 = scmp.ne.s32.totalorder %s199, %s201
      %p208 = scmp.eq.s32.totalorder %s23, 1
      %p209 = por %p207, %p208
      %p210 = scmp.ne.s32.totalorder %s201, %s202
      %p211 = scmp.eq.s32.totalorder %s23, 0
      %p212 = por %p210, %p211
      %p213 = scmp.ne.s32.totalorder %s201, %s202
      %p214 = scmp.eq.s32.totalorder %s24, 1
      %p215 = por %p213, %p214
      %p217 = scmp.ne.s32.totalorder %s202, %s216
      %p218 = scmp.eq.s32.totalorder %s24, 0
      %p219 = por %p217, %p218
      %s220 = ssub.s32 %s18, %s25
      %p221 = scmp.eq.s32.totalorder %s220, 0
      %s223 = sadd.s32 %s222, 1
      %s224 = scalar_select %p221, %s222, %s223
      %p227 = pneg %p221
      %p228 = scmp.eq.s32.totalorder %s18, 1
      %p229 = por %p227, %p228
      %p230 = scmp.ne.s32.totalorder %s222, %s225
      %p231 = scmp.eq.s32.totalorder %s18, 0
      %p232 = por %p230, %p231
      %p233 = scmp.ne.s32.totalorder %s222, %s225
      %p234 = scmp.eq.s32.totalorder %s23, 1
      %p235 = por %p233, %p234
      %p236 = scmp.ne.s32.totalorder %s225, %s226
      %p237 = scmp.eq.s32.totalorder %s23, 0
      %p238 = por %p236, %p237
      %p239 = scmp.ne.s32.totalorder %s225, %s226
      %p240 = scmp.eq.s32.totalorder %s24, 1
      %p241 = por %p239, %p240
      %p243 = scmp.ne.s32.totalorder %s226, %s242
      %p244 = scmp.eq.s32.totalorder %s24, 0
      %p245 = por %p243, %p244
      %p246 = scmp.le.s32.totalorder 1, %s18
      %p247 = scmp.lt.s32.totalorder %s18, 3
      %p248 = pnand %p246, %p247
      %p249 = pneg %p248
      // Predicated region
      $region9: #{net_forward.1} parent=5 // pred_check
        _
      $region10: #{net_forward.1} parent=5 // pred_check_branch
        %251 = sbr.rel (%p248) target = $region12
      $region11: #{net_forward.1} parent=5 // pred_region
        %s252 = ssub.s32 %s18, 1
        // Predicated region
        $region13: #{net_forward.1} parent=11 // pred_check
          %p253 = pneg %p65
        $region14: #{net_forward.1} parent=11 // pred_check_branch
          %255 = sbr.rel (%p253) target = $region16
        $region15: #{net_forward.1} parent=11 // pred_region
          _
        $region16: #{net_forward.1} parent=11 // pred_fallthru
          _
        // Predicated region
        $region17: #{net_forward.1} parent=11 // pred_check
          %p256 = pneg %p86
        $region18: #{net_forward.1} parent=11 // pred_check_branch
          %258 = sbr.rel (%p256) target = $region20
        $region19: #{net_forward.1} parent=11 // pred_region
          _
        $region20: #{net_forward.1} parent=11 // pred_fallthru
          _
        // Predicated region
        $region21: #{net_forward.1} parent=11 // pred_check
          %p259 = pneg %p107
        $region22: #{net_forward.1} parent=11 // pred_check_branch
          %261 = sbr.rel (%p259) target = $region24
        $region23: #{net_forward.1} parent=11 // pred_region
          _
        $region24: #{net_forward.1} parent=11 // pred_fallthru
          _
        // Predicated region
        $region25: #{net_forward.1} parent=11 // pred_check
          %p262 = pneg %p128
        $region26: #{net_forward.1} parent=11 // pred_check_branch
          %264 = sbr.rel (%p262) target = $region28
        $region27: #{net_forward.1} parent=11 // pred_region
          _
        $region28: #{net_forward.1} parent=11 // pred_fallthru
          _
        // Predicated region
        $region29: #{net_forward.1} parent=11 // pred_check
          %p265 = pneg %p149
        $region30: #{net_forward.1} parent=11 // pred_check_branch
          %267 = sbr.rel (%p265) target = $region32
        $region31: #{net_forward.1} parent=11 // pred_region
          _
        $region32: #{net_forward.1} parent=11 // pred_fallthru
          _
        // Predicated region
        $region33: #{net_forward.1} parent=11 // pred_check
          %p268 = pneg %p170
        $region34: #{net_forward.1} parent=11 // pred_check_branch
          %270 = sbr.rel (%p268) target = $region36
        $region35: #{net_forward.1} parent=11 // pred_region
          _
        $region36: #{net_forward.1} parent=11 // pred_fallthru
          _
        // Predicated region
        $region37: #{net_forward.1} parent=11 // pred_check
          %p271 = pneg %p191
        $region38: #{net_forward.1} parent=11 // pred_check_branch
          %273 = sbr.rel (%p271) target = $region40
        $region39: #{net_forward.1} parent=11 // pred_region
          _
        $region40: #{net_forward.1} parent=11 // pred_fallthru
          _
        // Predicated region
        $region41: #{net_forward.1} parent=11 // pred_check
          %p274 = pneg %p212
        $region42: #{net_forward.1} parent=11 // pred_check_branch
          %276 = sbr.rel (%p274) target = $region44
        $region43: #{net_forward.1} parent=11 // pred_region
          _
        $region44: #{net_forward.1} parent=11 // pred_fallthru
          _
      $region12: #{net_forward.1} parent=5 // pred_fallthru
        _
      %p277 = scmp.lt.s32.totalorder %s18, 2
      // Predicated region
      $region45: #{net_forward.1} parent=5 // pred_check
        %p278 = pneg %p277
      $region46: #{net_forward.1} parent=5 // pred_check_branch
        %280 = sbr.rel (%p278) target = $region48
      $region47: #{net_forward.1} parent=5 // pred_region
        // Predicated region
        $region49: #{net_forward.1} parent=47 // pred_check
          %p281 = pneg %p38
        $region50: #{net_forward.1} parent=47 // pred_check_branch
          %283 = sbr.rel (%p281) target = $region52
        $region51: #{net_forward.1} parent=47 // pred_region
          %s284 = sand.u32 %s28, 1
          %s285 = sand.u32 %s28, 1
          %s286 = smul.addr %s285, 224
          %s287 = scalar_lea.vmem [#allocation3], %s286
          %s288 = smul.addr %s18, 8
          %s289 = scalar_lea.vmem %s0, %s288
          // Predicated region
          $region53: #{net_forward.1} parent=51 // pred_check
            _
          $region54: #{net_forward.1} parent=51 // pred_check_branch
            %291 = sbr.rel (0) target = $region56
          $region55: #{net_forward.1} parent=51 // pred_region
            // Predicated region
            $region57: #{net_forward.1} parent=55 // pred_check
              _
            $region58: #{net_forward.1} parent=55 // pred_check_branch
              %293 = sbr.rel (0) target = $region60
            $region59: #{net_forward.1} parent=55 // pred_region
              // Predicated region
              $region72: #{net_forward.1} parent=59 // pred_check
                _
              $region73: #{net_forward.1} parent=59 // pred_check_branch
                %363 = sbr.rel (0) target = $region75
              $region74: #{net_forward.1} parent=59 // pred_region
                loop: start=0, step=1, limit=1
                $region76: #{net_forward.1} parent=74 // loop_pre_header
                  _
                $region77: #{net_forward.1} parent=74 // loop_header
                  %s365 = sphi 0, %s369
                  %p366 = scmp.ge.s32.totalorder %s365, 1
                  %s370 = sphi %s289, %s289
                  %s371 = sphi %s287, %s287
                $region78: #{net_forward.1} parent=74 // loop_header_branch
                  %368 = sbr.rel (%p366) target = $region82
                $region79: #{net_forward.1} parent=74 // loop_body
                  %v372 = vld [vmem:[%s370] sm:$0xff]
                  %373 = vst [vmem:[%s371] sm:$0xff] %v372
                  %v374 = vld [vmem:[%s370 + $0x10] sm:$0xff]
                  %375 = vst [vmem:[%s371 + $0x8] sm:$0xff] %v374
                  %v376 = vld [vmem:[%s370 + $0x20] sm:$0xff]
                  %377 = vst [vmem:[%s371 + $0x10] sm:$0xff] %v376
                  %v378 = vld [vmem:[%s370 + $0x30] sm:$0xff]
                  %379 = vst [vmem:[%s371 + $0x18] sm:$0xff] %v378
                  %v380 = vld [vmem:[%s370 + $0x40] sm:$0xff]
                  %381 = vst [vmem:[%s371 + $0x20] sm:$0xff] %v380
                  %v382 = vld [vmem:[%s370 + $0x50] sm:$0xff]
                  %383 = vst [vmem:[%s371 + $0x28] sm:$0xff] %v382
                  %v384 = vld [vmem:[%s370 + $0x60] sm:$0xff]
                  %385 = vst [vmem:[%s371 + $0x30] sm:$0xff] %v384
                  %v386 = vld [vmem:[%s370 + $0x70] sm:$0xff]
                  %387 = vst [vmem:[%s371 + $0x38] sm:$0xff] %v386
                  %v388 = vld [vmem:[%s370 + $0x80] sm:$0xff]
                  %389 = vst [vmem:[%s371 + $0x40] sm:$0xff] %v388
                  %v390 = vld [vmem:[%s370 + $0x90] sm:$0xff]
                  %391 = vst [vmem:[%s371 + $0x48] sm:$0xff] %v390
                  %v392 = vld [vmem:[%s370 + $0xa0] sm:$0xff]
                  %393 = vst [vmem:[%s371 + $0x50] sm:$0xff] %v392
                  %v394 = vld [vmem:[%s370 + $0xb0] sm:$0xff]
                  %395 = vst [vmem:[%s371 + $0x58] sm:$0xff] %v394
                  %v396 = vld [vmem:[%s370 + $0xc0] sm:$0xff]
                  %397 = vst [vmem:[%s371 + $0x60] sm:$0xff] %v396
                  %v398 = vld [vmem:[%s370 + $0xd0] sm:$0xff]
                  %399 = vst [vmem:[%s371 + $0x68] sm:$0xff] %v398
                  %v400 = vld [vmem:[%s370 + $0xe0] sm:$0xff]
                  %401 = vst [vmem:[%s371 + $0x70] sm:$0xff] %v400
                  %v402 = vld [vmem:[%s370 + $0xf0] sm:$0xff]
                  %403 = vst [vmem:[%s371 + $0x78] sm:$0xff] %v402
                  %v404 = vld [vmem:[%s370 + $0x100] sm:$0xff]
                  %405 = vst [vmem:[%s371 + $0x80] sm:$0xff] %v404
                  %v406 = vld [vmem:[%s370 + $0x110] sm:$0xff]
                  %407 = vst [vmem:[%s371 + $0x88] sm:$0xff] %v406
                  %v408 = vld [vmem:[%s370 + $0x120] sm:$0xff]
                  %409 = vst [vmem:[%s371 + $0x90] sm:$0xff] %v408
                  %v410 = vld [vmem:[%s370 + $0x130] sm:$0xff]
                  %411 = vst [vmem:[%s371 + $0x98] sm:$0xff] %v410
                  %v412 = vld [vmem:[%s370 + $0x140] sm:$0xff]
                  %413 = vst [vmem:[%s371 + $0xa0] sm:$0xff] %v412
                  %v414 = vld [vmem:[%s370 + $0x150] sm:$0xff]
                  %415 = vst [vmem:[%s371 + $0xa8] sm:$0xff] %v414
                  %v416 = vld [vmem:[%s370 + $0x160] sm:$0xff]
                  %417 = vst [vmem:[%s371 + $0xb0] sm:$0xff] %v416
                  %v418 = vld [vmem:[%s370 + $0x170] sm:$0xff]
                  %419 = vst [vmem:[%s371 + $0xb8] sm:$0xff] %v418
                  %v420 = vld [vmem:[%s370 + $0x180] sm:$0xff]
                  %421 = vst [vmem:[%s371 + $0xc0] sm:$0xff] %v420
                  %v422 = vld [vmem:[%s370 + $0x190] sm:$0xff]
                  %423 = vst [vmem:[%s371 + $0xc8] sm:$0xff] %v422
                  %v424 = vld [vmem:[%s370 + $0x1a0] sm:$0xff]
                  %425 = vst [vmem:[%s371 + $0xd0] sm:$0xff] %v424
                  %v426 = vld [vmem:[%s370 + $0x1b0] sm:$0xff]
                  %427 = vst [vmem:[%s371 + $0xd8] sm:$0xff] %v426
                $region80: #{net_forward.1} parent=74 // loop_footer
                  %s369 = sadd.s32 1, %s365
                $region81: #{net_forward.1} parent=74 // loop_footer_branch
                  %364 = sbr.rel target = $region77
                $region82: #{net_forward.1} parent=74 // loop_exit
                  _
              $region75: #{net_forward.1} parent=59 // pred_fallthru
                _
              // Predicated region
              $region83: #{net_forward.1} parent=59 // pred_check
                _
              $region84: #{net_forward.1} parent=59 // pred_check_branch
                %429 = sbr.rel target = $region86
              $region85: #{net_forward.1} parent=59 // pred_region
                _
              $region86: #{net_forward.1} parent=59 // pred_fallthru
                _
            $region60: #{net_forward.1} parent=55 // pred_fallthru
              _
            // Predicated region
            $region61: #{net_forward.1} parent=55 // pred_check
              _
            $region62: #{net_forward.1} parent=55 // pred_check_branch
              %295 = sbr.rel target = $region64
            $region63: #{net_forward.1} parent=55 // pred_region
              %s297 = ssub.s32 256, 1
              loop: start=0, step=1, limit=1
              $region65: #{net_forward.1} parent=63 // loop_pre_header
                _
              $region66: #{net_forward.1} parent=63 // loop_header
                %s299 = sphi 0, %s303
                %p300 = scmp.ge.s32.totalorder %s299, 1
                %s304 = sphi %s289, %s289
                %s305 = sphi %s287, %s287
              $region67: #{net_forward.1} parent=63 // loop_header_branch
                %302 = sbr.rel (%p300) target = $region71
              $region68: #{net_forward.1} parent=63 // loop_body
                %v306 = vld [vmem:[%s304] sm:%s297]
                %307 = vst [vmem:[%s305] sm:%s297] %v306
                %v308 = vld [vmem:[%s304 + $0x10] sm:%s297]
                %309 = vst [vmem:[%s305 + $0x8] sm:%s297] %v308
                %v310 = vld [vmem:[%s304 + $0x20] sm:%s297]
                %311 = vst [vmem:[%s305 + $0x10] sm:%s297] %v310
                %v312 = vld [vmem:[%s304 + $0x30] sm:%s297]
                %313 = vst [vmem:[%s305 + $0x18] sm:%s297] %v312
                %v314 = vld [vmem:[%s304 + $0x40] sm:%s297]
                %315 = vst [vmem:[%s305 + $0x20] sm:%s297] %v314
                %v316 = vld [vmem:[%s304 + $0x50] sm:%s297]
                %317 = vst [vmem:[%s305 + $0x28] sm:%s297] %v316
                %v318 = vld [vmem:[%s304 + $0x60] sm:%s297]
                %319 = vst [vmem:[%s305 + $0x30] sm:%s297] %v318
                %v320 = vld [vmem:[%s304 + $0x70] sm:%s297]
                %321 = vst [vmem:[%s305 + $0x38] sm:%s297] %v320
                %v322 = vld [vmem:[%s304 + $0x80] sm:%s297]
                %323 = vst [vmem:[%s305 + $0x40] sm:%s297] %v322
                %v324 = vld [vmem:[%s304 + $0x90] sm:%s297]
                %325 = vst [vmem:[%s305 + $0x48] sm:%s297] %v324
                %v326 = vld [vmem:[%s304 + $0xa0] sm:%s297]
                %327 = vst [vmem:[%s305 + $0x50] sm:%s297] %v326
                %v328 = vld [vmem:[%s304 + $0xb0] sm:%s297]
                %329 = vst [vmem:[%s305 + $0x58] sm:%s297] %v328
                %v330 = vld [vmem:[%s304 + $0xc0] sm:%s297]
                %331 = vst [vmem:[%s305 + $0x60] sm:%s297] %v330
                %v332 = vld [vmem:[%s304 + $0xd0] sm:%s297]
                %333 = vst [vmem:[%s305 + $0x68] sm:%s297] %v332
                %v334 = vld [vmem:[%s304 + $0xe0] sm:%s297]
                %335 = vst [vmem:[%s305 + $0x70] sm:%s297] %v334
                %v336 = vld [vmem:[%s304 + $0xf0] sm:%s297]
                %337 = vst [vmem:[%s305 + $0x78] sm:%s297] %v336
                %v338 = vld [vmem:[%s304 + $0x100] sm:%s297]
                %339 = vst [vmem:[%s305 + $0x80] sm:%s297] %v338
                %v340 = vld [vmem:[%s304 + $0x110] sm:%s297]
                %341 = vst [vmem:[%s305 + $0x88] sm:%s297] %v340
                %v342 = vld [vmem:[%s304 + $0x120] sm:%s297]
                %343 = vst [vmem:[%s305 + $0x90] sm:%s297] %v342
                %v344 = vld [vmem:[%s304 + $0x130] sm:%s297]
                %345 = vst [vmem:[%s305 + $0x98] sm:%s297] %v344
                %v346 = vld [vmem:[%s304 + $0x140] sm:%s297]
                %347 = vst [vmem:[%s305 + $0xa0] sm:%s297] %v346
                %v348 = vld [vmem:[%s304 + $0x150] sm:%s297]
                %349 = vst [vmem:[%s305 + $0xa8] sm:%s297] %v348
                %v350 = vld [vmem:[%s304 + $0x160] sm:%s297]
                %351 = vst [vmem:[%s305 + $0xb0] sm:%s297] %v350
                %v352 = vld [vmem:[%s304 + $0x170] sm:%s297]
                %353 = vst [vmem:[%s305 + $0xb8] sm:%s297] %v352
                %v354 = vld [vmem:[%s304 + $0x180] sm:%s297]
                %355 = vst [vmem:[%s305 + $0xc0] sm:%s297] %v354
                %v356 = vld [vmem:[%s304 + $0x190] sm:%s297]
                %357 = vst [vmem:[%s305 + $0xc8] sm:%s297] %v356
                %v358 = vld [vmem:[%s304 + $0x1a0] sm:%s297]
                %359 = vst [vmem:[%s305 + $0xd0] sm:%s297] %v358
                %v360 = vld [vmem:[%s304 + $0x1b0] sm:%s297]
                %361 = vst [vmem:[%s305 + $0xd8] sm:%s297] %v360
              $region69: #{net_forward.1} parent=63 // loop_footer
                %s303 = sadd.s32 1, %s299
              $region70: #{net_forward.1} parent=63 // loop_footer_branch
                %298 = sbr.rel target = $region66
              $region71: #{net_forward.1} parent=63 // loop_exit
                _
            $region64: #{net_forward.1} parent=55 // pred_fallthru
              _
          $region56: #{net_forward.1} parent=51 // pred_fallthru
            _
          %430 = vnop
        $region52: #{net_forward.1} parent=47 // pred_fallthru
          _
      $region48: #{net_forward.1} parent=5 // pred_fallthru
        _
      %p431 = scmp.le.s32.totalorder 1, %s18
      %p432 = scmp.lt.s32.totalorder %s18, 3
      %p433 = pnand %p431, %p432
      %p434 = pneg %p433
      // Predicated region
      $region87: #{net_forward.1} parent=5 // pred_check
        _
      $region88: #{net_forward.1} parent=5 // pred_check_branch
        %436 = sbr.rel (%p433) target = $region90
      $region89: #{net_forward.1} parent=5 // pred_region
        %s437 = ssub.s32 %s18, 1
        %s438 = sand.u32 %s31, 1
        %s439 = sand.u32 %s31, 1
        %s440 = smul.addr %s439, 224
        %s441 = scalar_lea.vmem [#allocation3], %s440
        // Predicated region
        $region91: #{net_forward.1} parent=89 // pred_check
          %p442 = pneg %p44
        $region92: #{net_forward.1} parent=89 // pred_check_branch
          %444 = sbr.rel (%p442) target = $region94
        $region93: #{net_forward.1} parent=89 // pred_region
          _
        $region94: #{net_forward.1} parent=89 // pred_fallthru
          _
        %s445 = sand.u32 %s31, 1
        %s446 = sand.u32 %s31, 1
        %s447 = smul.addr %s446, 224
        %s448 = scalar_lea.vmem [#allocation3], %s447
        %p449 = pneg %p44
        %p450 = pneg %p41
        %p451 = pneg %p65
        %p452 = pneg %p62
        %p453 = pneg %p86
        %p454 = pneg %p83
        %p455 = pneg %p107
        %p456 = pneg %p104
        %p457 = pneg %p128
        %p458 = pneg %p125
        %p459 = pneg %p149
        %p460 = pneg %p146
        %p461 = pneg %p170
        %p462 = pneg %p167
        %p463 = pneg %p191
        %p464 = pneg %p188
        %p465 = pneg %p212
        %p466 = pneg %p209
        %p467 = pneg %p238
        %p468 = pneg %p235
        %s469 = sand.u32 %s225, 1
        %s470 = scalar_lea.sflag [#allocation5], %s469
        %s471 = sand.u32 %s225, 1
        %s472 = smul.addr %s471, 8
        %s473 = scalar_lea.vmem [#allocation4], %s472
        %v475 = vld [vmem:[%s441] sm:$0xff]
        %v476 = vld [vmem:[%s441 + $0x8] sm:$0xff]
        %v477 = vld [vmem:[%s441 + $0x10] sm:$0xff]
        %v478 = vld [vmem:[%s441 + $0x18] sm:$0xff]
        %v479 = vld [vmem:[%s441 + $0x20] sm:$0xff]
        %v480 = vld [vmem:[%s441 + $0x28] sm:$0xff]
        %v481 = vld [vmem:[%s441 + $0x30] sm:$0xff]
        %v482 = vld [vmem:[%s441 + $0x38] sm:$0xff]
        %v483 = vld [vmem:[%s441 + $0x40] sm:$0xff]
        %v484 = vld [vmem:[%s441 + $0x48] sm:$0xff]
        %v485 = vld [vmem:[%s441 + $0x50] sm:$0xff]
        %v486 = vld [vmem:[%s441 + $0x58] sm:$0xff]
        %v487 = vld [vmem:[%s441 + $0x60] sm:$0xff]
        %v488 = vld [vmem:[%s441 + $0x68] sm:$0xff]
        %v489 = vld [vmem:[%s441 + $0x70] sm:$0xff]
        %v490 = vld [vmem:[%s441 + $0x78] sm:$0xff]
        %v491 = vld [vmem:[%s441 + $0x80] sm:$0xff]
        %v492 = vld [vmem:[%s441 + $0x88] sm:$0xff]
        %v493 = vld [vmem:[%s441 + $0x90] sm:$0xff]
        %v494 = vld [vmem:[%s441 + $0x98] sm:$0xff]
        %v495 = vld [vmem:[%s441 + $0xa0] sm:$0xff]
        %v496 = vld [vmem:[%s441 + $0xa8] sm:$0xff]
        %v497 = vld [vmem:[%s441 + $0xb0] sm:$0xff]
        %v498 = vld [vmem:[%s441 + $0xb8] sm:$0xff]
        %v499 = vld [vmem:[%s1] sm:$0xff]
        %v500 = vld [vmem:[%s1 + $0x8] sm:$0xff]
        %v501 = vld [vmem:[%s1 + $0x10] sm:$0xff]
        %v502 = vld [vmem:[%s1 + $0x18] sm:$0xff]
        %v503 = vld [vmem:[%s1 + $0x20] sm:$0xff]
        %v504 = vld [vmem:[%s1 + $0x28] sm:$0xff]
        %v505 = vld [vmem:[%s1 + $0x30] sm:$0xff]
        %v506 = vld [vmem:[%s1 + $0x38] sm:$0xff]
        %v507 = vld [vmem:[%s1 + $0x40] sm:$0xff]
        %v508 = vld [vmem:[%s1 + $0x48] sm:$0xff]
        %v509 = vld [vmem:[%s1 + $0x50] sm:$0xff]
        %v510 = vld [vmem:[%s1 + $0x58] sm:$0xff]
        %v511 = vld [vmem:[%s1 + $0x60] sm:$0xf]
        %v512 = vld [vmem:[%s1 + $0x68] sm:$0xf]
        %v513 = vld [vmem:[%s1 + $0x70] sm:$0xf]
        %v514 = vld [vmem:[%s1 + $0x78] sm:$0xf]
        %s515 = scalar_lea.vmem %s441, 8 [#allocation3]
        %v516 = vld [vmem:[%s515] sm:$0xff]
        %v517 = vld [vmem:[%s515 + $0x8] sm:$0xff]
        %v518 = vld [vmem:[%s515 + $0x10] sm:$0xff]
        %v519 = vld [vmem:[%s515 + $0x18] sm:$0xff]
        %v520 = vld [vmem:[%s515 + $0x20] sm:$0xff]
        %v521 = vld [vmem:[%s515 + $0x28] sm:$0xff]
        %v522 = vld [vmem:[%s515 + $0x30] sm:$0xff]
        %v523 = vld [vmem:[%s515 + $0x38] sm:$0xff]
        %v524 = vld [vmem:[%s515 + $0x40] sm:$0xff]
        %v525 = vld [vmem:[%s515 + $0x48] sm:$0xff]
        %v526 = vld [vmem:[%s515 + $0x50] sm:$0xff]
        %v527 = vld [vmem:[%s515 + $0x58] sm:$0xff]
        %v528 = vld [vmem:[%s515 + $0x60] sm:$0xff]
        %v529 = vld [vmem:[%s515 + $0x68] sm:$0xff]
        %v530 = vld [vmem:[%s515 + $0x70] sm:$0xff]
        %v531 = vld [vmem:[%s515 + $0x78] sm:$0xff]
        %v532 = vld [vmem:[%s515 + $0x80] sm:$0xff]
        %v533 = vld [vmem:[%s515 + $0x88] sm:$0xff]
        %v534 = vld [vmem:[%s515 + $0x90] sm:$0xff]
        %v535 = vld [vmem:[%s515 + $0x98] sm:$0xff]
        %v536 = vld [vmem:[%s515 + $0xa0] sm:$0xff]
        %v537 = vld [vmem:[%s515 + $0xa8] sm:$0xff]
        %v538 = vld [vmem:[%s515 + $0xb0] sm:$0xff]
        %v539 = vld [vmem:[%s515 + $0xb8] sm:$0xff]
        %s540 = scalar_lea.vmem %s1, 128
        %v541 = vld [vmem:[%s540] sm:$0xff]
        %v542 = vld [vmem:[%s540 + $0x8] sm:$0xff]
        %v543 = vld [vmem:[%s540 + $0x10] sm:$0xff]
        %v544 = vld [vmem:[%s540 + $0x18] sm:$0xff]
        %v545 = vld [vmem:[%s540 + $0x20] sm:$0xff]
        %v546 = vld [vmem:[%s540 + $0x28] sm:$0xff]
        %v547 = vld [vmem:[%s540 + $0x30] sm:$0xff]
        %v548 = vld [vmem:[%s540 + $0x38] sm:$0xff]
        %v549 = vld [vmem:[%s540 + $0x40] sm:$0xff]
        %v550 = vld [vmem:[%s540 + $0x48] sm:$0xff]
        %v551 = vld [vmem:[%s540 + $0x50] sm:$0xff]
        %v552 = vld [vmem:[%s540 + $0x58] sm:$0xff]
        %v553 = vld [vmem:[%s540 + $0x60] sm:$0xf]
        %v554 = vld [vmem:[%s540 + $0x68] sm:$0xf]
        %v555 = vld [vmem:[%s540 + $0x70] sm:$0xf]
        %v556 = vld [vmem:[%s540 + $0x78] sm:$0xf]
        %vm557 = vcmask 228352
        %v559 = vsel %vm557, %v516, 0
        %v562 = vsel %vm557, %v517, 0
        %v565 = vsel %vm557, %v518, 0
        %v568 = vsel %vm557, %v519, 0
        %v571 = vsel %vm557, %v520, 0
        %v574 = vsel %vm557, %v521, 0
        %v577 = vsel %vm557, %v522, 0
        %v580 = vsel %vm557, %v523, 0
        %v583 = vsel %vm557, %v524, 0
        %v586 = vsel %vm557, %v525, 0
        %v589 = vsel %vm557, %v526, 0
        %v592 = vsel %vm557, %v527, 0
        %v595 = vsel %vm557, %v528, 0
        %v598 = vsel %vm557, %v529, 0
        %v601 = vsel %vm557, %v530, 0
        %v604 = vsel %vm557, %v531, 0
        %v607 = vsel %vm557, %v532, 0
        %v610 = vsel %vm557, %v533, 0
        %v613 = vsel %vm557, %v534, 0
        %v616 = vsel %vm557, %v535, 0
        %v619 = vsel %vm557, %v536, 0
        %v622 = vsel %vm557, %v537, 0
        %v625 = vsel %vm557, %v538, 0
        %v628 = vsel %vm557, %v539, 0
        %vm630 = vcmask 1043456
        %v632 = vsel %vm630, %v553, 0
        %v635 = vsel %vm630, %v554, 0
        %v638 = vsel %vm630, %v555, 0
        %v641 = vsel %vm630, %v556, 0
        %643 = vmatprep.subr.mxu0 0.0
        %644 = vmatpush1.msra.mxu0 0.0
        %645 = vmatprep.subr.mxu0 0.0
        %646 = vmatpush1.msra.mxu0 0.0
        %647 = vmatprep.subr.mxu0 0.0
        %648 = vmatpush1.msra.mxu0 0.0
        %649 = vmatprep.subr.mxu0 0.0
        %650 = vmatpush1.msra.mxu0 0.0
        %651 = vmatprep.subr.mxu0 0.0
        %652 = vmatpush1.msra.mxu0 0.0
        %653 = vmatprep.subr.mxu0 0.0
        %654 = vmatpush1.msra.mxu0 0.0
        %655 = vmatprep.subr.mxu0 0.0
        %656 = vmatpush1.msra.mxu0 0.0
        %657 = vmatprep.subr.mxu0 0.0
        %658 = vmatpush1.msra.mxu0 0.0
        %659 = vmatprep.subr.mxu0 0.0
        %660 = vmatpush1.msra.mxu0 0.0
        %661 = vmatprep.subr.mxu0 0.0
        %662 = vmatpush1.msra.mxu0 0.0
        %663 = vmatprep.subr.mxu0 0.0
        %664 = vmatpush1.msra.mxu0 0.0
        %665 = vmatprep.subr.mxu0 0.0
        %666 = vmatpush1.msra.mxu0 0.0
        %667 = vmatprep.subr.mxu0 %v635
        %668 = vmatpush1.msra.mxu0 %v632
        %669 = vmatprep.subr.mxu0 %v550
        %670 = vmatpush1.msra.mxu0 %v549
        %671 = vmatprep.subr.mxu0 %v546
        %672 = vmatpush1.msra.mxu0 %v545
        %673 = vmatprep.subr.mxu0 %v542
        %674 = vmatpush1.msra.mxu0 %v541
        %675 = vmatprep.subr.mxu0 0.0
        %676 = vmatpush2.msra.mxu0 0.0
        %677 = vmatprep.subr.mxu0 0.0
        %678 = vmatpush2.msra.mxu0 0.0
        %679 = vmatprep.subr.mxu0 0.0
        %680 = vmatpush2.msra.mxu0 0.0
        %681 = vmatprep.subr.mxu0 0.0
        %682 = vmatpush2.msra.mxu0 0.0
        %683 = vmatprep.subr.mxu0 0.0
        %684 = vmatpush2.msra.mxu0 0.0
        %685 = vmatprep.subr.mxu0 0.0
        %686 = vmatpush2.msra.mxu0 0.0
        %687 = vmatprep.subr.mxu0 0.0
        %688 = vmatpush2.msra.mxu0 0.0
        %689 = vmatprep.subr.mxu0 0.0
        %690 = vmatpush2.msra.mxu0 0.0
        %691 = vmatprep.subr.mxu0 0.0
        %692 = vmatpush2.msra.mxu0 0.0
        %693 = vmatprep.subr.mxu0 0.0
        %694 = vmatpush2.msra.mxu0 0.0
        %695 = vmatprep.subr.mxu0 0.0
        %696 = vmatpush2.msra.mxu0 0.0
        %697 = vmatprep.subr.mxu0 0.0
        %698 = vmatpush2.msra.mxu0 0.0
        %699 = vmatprep.subr.mxu0 0.0
        %700 = vmatpush2.msra.mxu0 0.0
        %701 = vmatprep.subr.mxu0 0.0
        %702 = vmatpush2.msra.mxu0 0.0
        %703 = vmatprep.subr.mxu0 0.0
        %704 = vmatpush2.msra.mxu0 0.0
        %705 = vmatprep.subr.mxu0 0.0
        %706 = vmatpush2.msra.mxu0 0.0
        %707 = vmatprep.mubr.f32.mxu0 0.0
        %708 = vmatmul.mubr.f32.gmra.mxu0 %v559
        %v709 = vpop.f32.mrf.mxu0
        %v710 = vadd.f32 0.0, %v709
        %v711 = vpop.f32.mrf.mxu0
        %v712 = vadd.f32 0.0, %v711
        %713 = vmatprep.mubr.f32.mxu0 0.0
        %714 = vmatmul.mubr.f32.gmra.mxu0 %v562
        %v715 = vpop.f32.mrf.mxu0
        %v716 = vadd.f32 0.0, %v715
        %v717 = vpop.f32.mrf.mxu0
        %v718 = vadd.f32 0.0, %v717
        %719 = vmatprep.mubr.f32.mxu0 0.0
        %720 = vmatmul.mubr.f32.gmra.mxu0 %v565
        %v721 = vpop.f32.mrf.mxu0
        %v722 = vadd.f32 0.0, %v721
        %v723 = vpop.f32.mrf.mxu0
        %v724 = vadd.f32 0.0, %v723
        %725 = vmatprep.mubr.f32.mxu0 0.0
        %726 = vmatmul.mubr.f32.gmra.mxu0 %v568
        %v727 = vpop.f32.mrf.mxu0
        %v728 = vadd.f32 0.0, %v727
        %v729 = vpop.f32.mrf.mxu0
        %v730 = vadd.f32 0.0, %v729
        %731 = vmatprep.mubr.f32.mxu0 0.0
        %732 = vmatmul.mubr.f32.gmra.mxu0 %v571
        %v733 = vpop.f32.mrf.mxu0
        %v734 = vadd.f32 0.0, %v733
        %v735 = vpop.f32.mrf.mxu0
        %v736 = vadd.f32 0.0, %v735
        %737 = vmatprep.mubr.f32.mxu0 0.0
        %738 = vmatmul.mubr.f32.gmra.mxu0 %v574
        %v739 = vpop.f32.mrf.mxu0
        %v740 = vadd.f32 0.0, %v739
        %v741 = vpop.f32.mrf.mxu0
        %v742 = vadd.f32 0.0, %v741
        %743 = vmatprep.mubr.f32.mxu0 0.0
        %744 = vmatmul.mubr.f32.gmra.mxu0 %v577
        %v745 = vpop.f32.mrf.mxu0
        %v746 = vadd.f32 0.0, %v745
        %v747 = vpop.f32.mrf.mxu0
        %v748 = vadd.f32 0.0, %v747
        %749 = vmatprep.mubr.f32.mxu0 0.0
        %750 = vmatmul.mubr.f32.gmra.mxu0 %v580
        %v751 = vpop.f32.mrf.mxu0
        %v752 = vadd.f32 0.0, %v751
        %v753 = vpop.f32.mrf.mxu0
        %v754 = vadd.f32 0.0, %v753
        %755 = vmatprep.mubr.f32.mxu0 0.0
        %756 = vmatmul.mubr.f32.gmra.mxu0 %v583
        %v757 = vpop.f32.mrf.mxu0
        %v758 = vadd.f32 0.0, %v757
        %v759 = vpop.f32.mrf.mxu0
        %v760 = vadd.f32 0.0, %v759
        %761 = vmatprep.mubr.f32.mxu0 0.0
        %762 = vmatmul.mubr.f32.gmra.mxu0 %v586
        %v763 = vpop.f32.mrf.mxu0
        %v764 = vadd.f32 0.0, %v763
        %v765 = vpop.f32.mrf.mxu0
        %v766 = vadd.f32 0.0, %v765
        %767 = vmatprep.mubr.f32.mxu0 0.0
        %768 = vmatmul.mubr.f32.gmra.mxu0 %v589
        %v769 = vpop.f32.mrf.mxu0
        %v770 = vadd.f32 0.0, %v769
        %v771 = vpop.f32.mrf.mxu0
        %v772 = vadd.f32 0.0, %v771
        %773 = vmatprep.mubr.f32.mxu0 0.0
        %774 = vmatmul.mubr.f32.gmra.mxu0 %v592
        %v775 = vpop.f32.mrf.mxu0
        %v776 = vadd.f32 0.0, %v775
        %v777 = vpop.f32.mrf.mxu0
        %v778 = vadd.f32 0.0, %v777
        %779 = vmatprep.mubr.f32.mxu0 0.0
        %780 = vmatmul.mubr.f32.gmra.mxu0 %v595
        %v781 = vpop.f32.mrf.mxu0
        %v782 = vadd.f32 0.0, %v781
        %v783 = vpop.f32.mrf.mxu0
        %v784 = vadd.f32 0.0, %v783
        %785 = vmatprep.mubr.f32.mxu0 0.0
        %786 = vmatmul.mubr.f32.gmra.mxu0 %v598
        %v787 = vpop.f32.mrf.mxu0
        %v788 = vadd.f32 0.0, %v787
        %v789 = vpop.f32.mrf.mxu0
        %v790 = vadd.f32 0.0, %v789
        %791 = vmatprep.mubr.f32.mxu0 0.0
        %792 = vmatmul.mubr.f32.gmra.mxu0 %v601
        %v793 = vpop.f32.mrf.mxu0
        %v794 = vadd.f32 0.0, %v793
        %v795 = vpop.f32.mrf.mxu0
        %v796 = vadd.f32 0.0, %v795
        %797 = vmatprep.mubr.f32.mxu0 0.0
        %798 = vmatmul.mubr.f32.gmra.mxu0 %v604
        %v799 = vpop.f32.mrf.mxu0
        %v800 = vadd.f32 0.0, %v799
        %v801 = vpop.f32.mrf.mxu0
        %v802 = vadd.f32 0.0, %v801
        %803 = vmatprep.mubr.f32.mxu0 0.0
        %804 = vmatmul.mubr.f32.gmra.mxu0 %v607
        %v805 = vpop.f32.mrf.mxu0
        %v806 = vadd.f32 0.0, %v805
        %v807 = vpop.f32.mrf.mxu0
        %v808 = vadd.f32 0.0, %v807
        %809 = vmatprep.mubr.f32.mxu0 0.0
        %810 = vmatmul.mubr.f32.gmra.mxu0 %v610
        %v811 = vpop.f32.mrf.mxu0
        %v812 = vadd.f32 0.0, %v811
        %v813 = vpop.f32.mrf.mxu0
        %v814 = vadd.f32 0.0, %v813
        %815 = vmatprep.mubr.f32.mxu0 0.0
        %816 = vmatmul.mubr.f32.gmra.mxu0 %v613
        %v817 = vpop.f32.mrf.mxu0
        %v818 = vadd.f32 0.0, %v817
        %v819 = vpop.f32.mrf.mxu0
        %v820 = vadd.f32 0.0, %v819
        %821 = vmatprep.mubr.f32.mxu0 0.0
        %822 = vmatmul.mubr.f32.gmra.mxu0 %v616
        %v823 = vpop.f32.mrf.mxu0
        %v824 = vadd.f32 0.0, %v823
        %v825 = vpop.f32.mrf.mxu0
        %v826 = vadd.f32 0.0, %v825
        %827 = vmatprep.mubr.f32.mxu0 0.0
        %828 = vmatmul.mubr.f32.gmra.mxu0 %v619
        %v829 = vpop.f32.mrf.mxu0
        %v830 = vadd.f32 0.0, %v829
        %v831 = vpop.f32.mrf.mxu0
        %v832 = vadd.f32 0.0, %v831
        %833 = vmatprep.mubr.f32.mxu0 0.0
        %834 = vmatmul.mubr.f32.gmra.mxu0 %v622
        %v835 = vpop.f32.mrf.mxu0
        %v836 = vadd.f32 0.0, %v835
        %v837 = vpop.f32.mrf.mxu0
        %v838 = vadd.f32 0.0, %v837
        %839 = vmatprep.mubr.f32.mxu0 0.0
        %840 = vmatmul.mubr.f32.gmra.mxu0 %v625
        %v841 = vpop.f32.mrf.mxu0
        %v842 = vadd.f32 0.0, %v841
        %v843 = vpop.f32.mrf.mxu0
        %v844 = vadd.f32 0.0, %v843
        %845 = vmatprep.mubr.f32.mxu0 0.0
        %846 = vmatmul.mubr.f32.gmra.mxu0 %v628
        %v847 = vpop.f32.mrf.mxu0
        %v848 = vadd.f32 0.0, %v847
        %v849 = vpop.f32.mrf.mxu0
        %v850 = vadd.f32 0.0, %v849
        %851 = vdwg.mxu0
        %852 = vmatprep.subr.mxu0 0.0
        %853 = vmatpush1.msra.mxu0 0.0
        %854 = vmatprep.subr.mxu0 0.0
        %855 = vmatpush1.msra.mxu0 0.0
        %856 = vmatprep.subr.mxu0 0.0
        %857 = vmatpush1.msra.mxu0 0.0
        %858 = vmatprep.subr.mxu0 0.0
        %859 = vmatpush1.msra.mxu0 0.0
        %860 = vmatprep.subr.mxu0 0.0
        %861 = vmatpush1.msra.mxu0 0.0
        %862 = vmatprep.subr.mxu0 0.0
        %863 = vmatpush1.msra.mxu0 0.0
        %864 = vmatprep.subr.mxu0 0.0
        %865 = vmatpush1.msra.mxu0 0.0
        %866 = vmatprep.subr.mxu0 0.0
        %867 = vmatpush1.msra.mxu0 0.0
        %868 = vmatprep.subr.mxu0 0.0
        %869 = vmatpush1.msra.mxu0 0.0
        %870 = vmatprep.subr.mxu0 0.0
        %871 = vmatpush1.msra.mxu0 0.0
        %872 = vmatprep.subr.mxu0 0.0
        %873 = vmatpush1.msra.mxu0 0.0
        %874 = vmatprep.subr.mxu0 0.0
        %875 = vmatpush1.msra.mxu0 0.0
        %876 = vmatprep.subr.mxu0 %v641
        %877 = vmatpush1.msra.mxu0 %v638
        %878 = vmatprep.subr.mxu0 %v552
        %879 = vmatpush1.msra.mxu0 %v551
        %880 = vmatprep.subr.mxu0 %v548
        %881 = vmatpush1.msra.mxu0 %v547
        %882 = vmatprep.subr.mxu0 %v544
        %883 = vmatpush1.msra.mxu0 %v543
        %884 = vmatprep.subr.mxu0 0.0
        %885 = vmatpush2.msra.mxu0 0.0
        %886 = vmatprep.subr.mxu0 0.0
        %887 = vmatpush2.msra.mxu0 0.0
        %888 = vmatprep.subr.mxu0 0.0
        %889 = vmatpush2.msra.mxu0 0.0
        %890 = vmatprep.subr.mxu0 0.0
        %891 = vmatpush2.msra.mxu0 0.0
        %892 = vmatprep.subr.mxu0 0.0
        %893 = vmatpush2.msra.mxu0 0.0
        %894 = vmatprep.subr.mxu0 0.0
        %895 = vmatpush2.msra.mxu0 0.0
        %896 = vmatprep.subr.mxu0 0.0
        %897 = vmatpush2.msra.mxu0 0.0
        %898 = vmatprep.subr.mxu0 0.0
        %899 = vmatpush2.msra.mxu0 0.0
        %900 = vmatprep.subr.mxu0 0.0
        %901 = vmatpush2.msra.mxu0 0.0
        %902 = vmatprep.subr.mxu0 0.0
        %903 = vmatpush2.msra.mxu0 0.0
        %904 = vmatprep.subr.mxu0 0.0
        %905 = vmatpush2.msra.mxu0 0.0
        %906 = vmatprep.subr.mxu0 0.0
        %907 = vmatpush2.msra.mxu0 0.0
        %908 = vmatprep.subr.mxu0 0.0
        %909 = vmatpush2.msra.mxu0 0.0
        %910 = vmatprep.subr.mxu0 0.0
        %911 = vmatpush2.msra.mxu0 0.0
        %912 = vmatprep.subr.mxu0 0.0
        %913 = vmatpush2.msra.mxu0 0.0
        %914 = vmatprep.subr.mxu0 0.0
        %915 = vmatpush2.msra.mxu0 0.0
        %916 = vmatprep.mubr.f32.mxu0 0.0
        %917 = vmatmul.mubr.f32.gmra.mxu0 %v559
        %v918 = vpop.f32.mrf.mxu0
        %v919 = vadd.f32 0.0, %v918
        %v920 = vpop.f32.mrf.mxu0
        %v921 = vadd.f32 0.0, %v920
        %922 = vmatprep.mubr.f32.mxu0 0.0
        %923 = vmatmul.mubr.f32.gmra.mxu0 %v562
        %v924 = vpop.f32.mrf.mxu0
        %v925 = vadd.f32 0.0, %v924
        %v926 = vpop.f32.mrf.mxu0
        %v927 = vadd.f32 0.0, %v926
        %928 = vmatprep.mubr.f32.mxu0 0.0
        %929 = vmatmul.mubr.f32.gmra.mxu0 %v565
        %v930 = vpop.f32.mrf.mxu0
        %v931 = vadd.f32 0.0, %v930
        %v932 = vpop.f32.mrf.mxu0
        %v933 = vadd.f32 0.0, %v932
        %934 = vmatprep.mubr.f32.mxu0 0.0
        %935 = vmatmul.mubr.f32.gmra.mxu0 %v568
        %v936 = vpop.f32.mrf.mxu0
        %v937 = vadd.f32 0.0, %v936
        %v938 = vpop.f32.mrf.mxu0
        %v939 = vadd.f32 0.0, %v938
        %940 = vmatprep.mubr.f32.mxu0 0.0
        %941 = vmatmul.mubr.f32.gmra.mxu0 %v571
        %v942 = vpop.f32.mrf.mxu0
        %v943 = vadd.f32 0.0, %v942
        %v944 = vpop.f32.mrf.mxu0
        %v945 = vadd.f32 0.0, %v944
        %946 = vmatprep.mubr.f32.mxu0 0.0
        %947 = vmatmul.mubr.f32.gmra.mxu0 %v574
        %v948 = vpop.f32.mrf.mxu0
        %v949 = vadd.f32 0.0, %v948
        %v950 = vpop.f32.mrf.mxu0
        %v951 = vadd.f32 0.0, %v950
        %952 = vmatprep.mubr.f32.mxu0 0.0
        %953 = vmatmul.mubr.f32.gmra.mxu0 %v577
        %v954 = vpop.f32.mrf.mxu0
        %v955 = vadd.f32 0.0, %v954
        %v956 = vpop.f32.mrf.mxu0
        %v957 = vadd.f32 0.0, %v956
        %958 = vmatprep.mubr.f32.mxu0 0.0
        %959 = vmatmul.mubr.f32.gmra.mxu0 %v580
        %v960 = vpop.f32.mrf.mxu0
        %v961 = vadd.f32 0.0, %v960
        %v962 = vpop.f32.mrf.mxu0
        %v963 = vadd.f32 0.0, %v962
        %964 = vmatprep.mubr.f32.mxu0 0.0
        %965 = vmatmul.mubr.f32.gmra.mxu0 %v583
        %v966 = vpop.f32.mrf.mxu0
        %v967 = vadd.f32 0.0, %v966
        %v968 = vpop.f32.mrf.mxu0
        %v969 = vadd.f32 0.0, %v968
        %970 = vmatprep.mubr.f32.mxu0 0.0
        %971 = vmatmul.mubr.f32.gmra.mxu0 %v586
        %v972 = vpop.f32.mrf.mxu0
        %v973 = vadd.f32 0.0, %v972
        %v974 = vpop.f32.mrf.mxu0
        %v975 = vadd.f32 0.0, %v974
        %976 = vmatprep.mubr.f32.mxu0 0.0
        %977 = vmatmul.mubr.f32.gmra.mxu0 %v589
        %v978 = vpop.f32.mrf.mxu0
        %v979 = vadd.f32 0.0, %v978
        %v980 = vpop.f32.mrf.mxu0
        %v981 = vadd.f32 0.0, %v980
        %982 = vmatprep.mubr.f32.mxu0 0.0
        %983 = vmatmul.mubr.f32.gmra.mxu0 %v592
        %v984 = vpop.f32.mrf.mxu0
        %v985 = vadd.f32 0.0, %v984
        %v986 = vpop.f32.mrf.mxu0
        %v987 = vadd.f32 0.0, %v986
        %988 = vmatprep.mubr.f32.mxu0 0.0
        %989 = vmatmul.mubr.f32.gmra.mxu0 %v595
        %v990 = vpop.f32.mrf.mxu0
        %v991 = vadd.f32 0.0, %v990
        %v992 = vpop.f32.mrf.mxu0
        %v993 = vadd.f32 0.0, %v992
        %994 = vmatprep.mubr.f32.mxu0 0.0
        %995 = vmatmul.mubr.f32.gmra.mxu0 %v598
        %v996 = vpop.f32.mrf.mxu0
        %v997 = vadd.f32 0.0, %v996
        %v998 = vpop.f32.mrf.mxu0
        %v999 = vadd.f32 0.0, %v998
        %1000 = vmatprep.mubr.f32.mxu0 0.0
        %1001 = vmatmul.mubr.f32.gmra.mxu0 %v601
        %v1002 = vpop.f32.mrf.mxu0
        %v1003 = vadd.f32 0.0, %v1002
        %v1004 = vpop.f32.mrf.mxu0
        %v1005 = vadd.f32 0.0, %v1004
        %1006 = vmatprep.mubr.f32.mxu0 0.0
        %1007 = vmatmul.mubr.f32.gmra.mxu0 %v604
        %v1008 = vpop.f32.mrf.mxu0
        %v1009 = vadd.f32 0.0, %v1008
        %v1010 = vpop.f32.mrf.mxu0
        %v1011 = vadd.f32 0.0, %v1010
        %1012 = vmatprep.mubr.f32.mxu0 0.0
        %1013 = vmatmul.mubr.f32.gmra.mxu0 %v607
        %v1014 = vpop.f32.mrf.mxu0
        %v1015 = vadd.f32 0.0, %v1014
        %v1016 = vpop.f32.mrf.mxu0
        %v1017 = vadd.f32 0.0, %v1016
        %1018 = vmatprep.mubr.f32.mxu0 0.0
        %1019 = vmatmul.mubr.f32.gmra.mxu0 %v610
        %v1020 = vpop.f32.mrf.mxu0
        %v1021 = vadd.f32 0.0, %v1020
        %v1022 = vpop.f32.mrf.mxu0
        %v1023 = vadd.f32 0.0, %v1022
        %1024 = vmatprep.mubr.f32.mxu0 0.0
        %1025 = vmatmul.mubr.f32.gmra.mxu0 %v613
        %v1026 = vpop.f32.mrf.mxu0
        %v1027 = vadd.f32 0.0, %v1026
        %v1028 = vpop.f32.mrf.mxu0
        %v1029 = vadd.f32 0.0, %v1028
        %1030 = vmatprep.mubr.f32.mxu0 0.0
        %1031 = vmatmul.mubr.f32.gmra.mxu0 %v616
        %v1032 = vpop.f32.mrf.mxu0
        %v1033 = vadd.f32 0.0, %v1032
        %v1034 = vpop.f32.mrf.mxu0
        %v1035 = vadd.f32 0.0, %v1034
        %1036 = vmatprep.mubr.f32.mxu0 0.0
        %1037 = vmatmul.mubr.f32.gmra.mxu0 %v619
        %v1038 = vpop.f32.mrf.mxu0
        %v1039 = vadd.f32 0.0, %v1038
        %v1040 = vpop.f32.mrf.mxu0
        %v1041 = vadd.f32 0.0, %v1040
        %1042 = vmatprep.mubr.f32.mxu0 0.0
        %1043 = vmatmul.mubr.f32.gmra.mxu0 %v622
        %v1044 = vpop.f32.mrf.mxu0
        %v1045 = vadd.f32 0.0, %v1044
        %v1046 = vpop.f32.mrf.mxu0
        %v1047 = vadd.f32 0.0, %v1046
        %1048 = vmatprep.mubr.f32.mxu0 0.0
        %1049 = vmatmul.mubr.f32.gmra.mxu0 %v625
        %v1050 = vpop.f32.mrf.mxu0
        %v1051 = vadd.f32 0.0, %v1050
        %v1052 = vpop.f32.mrf.mxu0
        %v1053 = vadd.f32 0.0, %v1052
        %1054 = vmatprep.mubr.f32.mxu0 0.0
        %1055 = vmatmul.mubr.f32.gmra.mxu0 %v628
        %v1056 = vpop.f32.mrf.mxu0
        %v1057 = vadd.f32 0.0, %v1056
        %v1058 = vpop.f32.mrf.mxu0
        %v1059 = vadd.f32 0.0, %v1058
        %1060 = vdwg.mxu0
        %v1062 = vsel %vm557, %v475, 0
        %v1065 = vsel %vm557, %v476, 0
        %v1068 = vsel %vm557, %v477, 0
        %v1071 = vsel %vm557, %v478, 0
        %v1074 = vsel %vm557, %v479, 0
        %v1077 = vsel %vm557, %v480, 0
        %v1080 = vsel %vm557, %v481, 0
        %v1083 = vsel %vm557, %v482, 0
        %v1086 = vsel %vm557, %v483, 0
        %v1089 = vsel %vm557, %v484, 0
        %v1092 = vsel %vm557, %v485, 0
        %v1095 = vsel %vm557, %v486, 0
        %v1098 = vsel %vm557, %v487, 0
        %v1101 = vsel %vm557, %v488, 0
        %v1104 = vsel %vm557, %v489, 0
        %v1107 = vsel %vm557, %v490, 0
        %v1110 = vsel %vm557, %v491, 0
        %v1113 = vsel %vm557, %v492, 0
        %v1116 = vsel %vm557, %v493, 0
        %v1119 = vsel %vm557, %v494, 0
        %v1122 = vsel %vm557, %v495, 0
        %v1125 = vsel %vm557, %v496, 0
        %v1128 = vsel %vm557, %v497, 0
        %v1131 = vsel %vm557, %v498, 0
        %v1134 = vsel %vm630, %v511, 0
        %v1137 = vsel %vm630, %v512, 0
        %v1140 = vsel %vm630, %v513, 0
        %v1143 = vsel %vm630, %v514, 0
        %1145 = vmatprep.subr.mxu0 0.0
        %1146 = vmatpush1.msra.mxu0 0.0
        %1147 = vmatprep.subr.mxu0 0.0
        %1148 = vmatpush1.msra.mxu0 0.0
        %1149 = vmatprep.subr.mxu0 0.0
        %1150 = vmatpush1.msra.mxu0 0.0
        %1151 = vmatprep.subr.mxu0 0.0
        %1152 = vmatpush1.msra.mxu0 0.0
        %1153 = vmatprep.subr.mxu0 0.0
        %1154 = vmatpush1.msra.mxu0 0.0
        %1155 = vmatprep.subr.mxu0 0.0
        %1156 = vmatpush1.msra.mxu0 0.0
        %1157 = vmatprep.subr.mxu0 0.0
        %1158 = vmatpush1.msra.mxu0 0.0
        %1159 = vmatprep.subr.mxu0 0.0
        %1160 = vmatpush1.msra.mxu0 0.0
        %1161 = vmatprep.subr.mxu0 0.0
        %1162 = vmatpush1.msra.mxu0 0.0
        %1163 = vmatprep.subr.mxu0 0.0
        %1164 = vmatpush1.msra.mxu0 0.0
        %1165 = vmatprep.subr.mxu0 0.0
        %1166 = vmatpush1.msra.mxu0 0.0
        %1167 = vmatprep.subr.mxu0 0.0
        %1168 = vmatpush1.msra.mxu0 0.0
        %1169 = vmatprep.subr.mxu0 %v1137
        %1170 = vmatpush1.msra.mxu0 %v1134
        %1171 = vmatprep.subr.mxu0 %v508
        %1172 = vmatpush1.msra.mxu0 %v507
        %1173 = vmatprep.subr.mxu0 %v504
        %1174 = vmatpush1.msra.mxu0 %v503
        %1175 = vmatprep.subr.mxu0 %v500
        %1176 = vmatpush1.msra.mxu0 %v499
        %1177 = vmatprep.subr.mxu0 0.0
        %1178 = vmatpush2.msra.mxu0 0.0
        %1179 = vmatprep.subr.mxu0 0.0
        %1180 = vmatpush2.msra.mxu0 0.0
        %1181 = vmatprep.subr.mxu0 0.0
        %1182 = vmatpush2.msra.mxu0 0.0
        %1183 = vmatprep.subr.mxu0 0.0
        %1184 = vmatpush2.msra.mxu0 0.0
        %1185 = vmatprep.subr.mxu0 0.0
        %1186 = vmatpush2.msra.mxu0 0.0
        %1187 = vmatprep.subr.mxu0 0.0
        %1188 = vmatpush2.msra.mxu0 0.0
        %1189 = vmatprep.subr.mxu0 0.0
        %1190 = vmatpush2.msra.mxu0 0.0
        %1191 = vmatprep.subr.mxu0 0.0
        %1192 = vmatpush2.msra.mxu0 0.0
        %1193 = vmatprep.subr.mxu0 0.0
        %1194 = vmatpush2.msra.mxu0 0.0
        %1195 = vmatprep.subr.mxu0 0.0
        %1196 = vmatpush2.msra.mxu0 0.0
        %1197 = vmatprep.subr.mxu0 0.0
        %1198 = vmatpush2.msra.mxu0 0.0
        %1199 = vmatprep.subr.mxu0 0.0
        %1200 = vmatpush2.msra.mxu0 0.0
        %1201 = vmatprep.subr.mxu0 0.0
        %1202 = vmatpush2.msra.mxu0 0.0
        %1203 = vmatprep.subr.mxu0 0.0
        %1204 = vmatpush2.msra.mxu0 0.0
        %1205 = vmatprep.subr.mxu0 0.0
        %1206 = vmatpush2.msra.mxu0 0.0
        %1207 = vmatprep.subr.mxu0 0.0
        %1208 = vmatpush2.msra.mxu0 0.0
        %1209 = vmatprep.mubr.f32.mxu0 0.0
        %1210 = vmatmul.mubr.f32.gmra.mxu0 %v1062
        %v1211 = vpop.f32.mrf.mxu0
        %v1212 = vadd.f32 %v710, %v1211
        %v1213 = vpop.f32.mrf.mxu0
        %v1214 = vadd.f32 %v712, %v1213
        %1215 = vmatprep.mubr.f32.mxu0 0.0
        %1216 = vmatmul.mubr.f32.gmra.mxu0 %v1065
        %v1217 = vpop.f32.mrf.mxu0
        %v1218 = vadd.f32 %v716, %v1217
        %v1219 = vpop.f32.mrf.mxu0
        %v1220 = vadd.f32 %v718, %v1219
        %1221 = vmatprep.mubr.f32.mxu0 0.0
        %1222 = vmatmul.mubr.f32.gmra.mxu0 %v1068
        %v1223 = vpop.f32.mrf.mxu0
        %v1224 = vadd.f32 %v722, %v1223
        %v1225 = vpop.f32.mrf.mxu0
        %v1226 = vadd.f32 %v724, %v1225
        %1227 = vmatprep.mubr.f32.mxu0 0.0
        %1228 = vmatmul.mubr.f32.gmra.mxu0 %v1071
        %v1229 = vpop.f32.mrf.mxu0
        %v1230 = vadd.f32 %v728, %v1229
        %v1231 = vpop.f32.mrf.mxu0
        %v1232 = vadd.f32 %v730, %v1231
        %1233 = vmatprep.mubr.f32.mxu0 0.0
        %1234 = vmatmul.mubr.f32.gmra.mxu0 %v1074
        %v1235 = vpop.f32.mrf.mxu0
        %v1236 = vadd.f32 %v734, %v1235
        %v1237 = vpop.f32.mrf.mxu0
        %v1238 = vadd.f32 %v736, %v1237
        %1239 = vmatprep.mubr.f32.mxu0 0.0
        %1240 = vmatmul.mubr.f32.gmra.mxu0 %v1077
        %v1241 = vpop.f32.mrf.mxu0
        %v1242 = vadd.f32 %v740, %v1241
        %v1243 = vpop.f32.mrf.mxu0
        %v1244 = vadd.f32 %v742, %v1243
        %1245 = vmatprep.mubr.f32.mxu0 0.0
        %1246 = vmatmul.mubr.f32.gmra.mxu0 %v1080
        %v1247 = vpop.f32.mrf.mxu0
        %v1248 = vadd.f32 %v746, %v1247
        %v1249 = vpop.f32.mrf.mxu0
        %v1250 = vadd.f32 %v748, %v1249
        %1251 = vmatprep.mubr.f32.mxu0 0.0
        %1252 = vmatmul.mubr.f32.gmra.mxu0 %v1083
        %v1253 = vpop.f32.mrf.mxu0
        %v1254 = vadd.f32 %v752, %v1253
        %v1255 = vpop.f32.mrf.mxu0
        %v1256 = vadd.f32 %v754, %v1255
        %1257 = vmatprep.mubr.f32.mxu0 0.0
        %1258 = vmatmul.mubr.f32.gmra.mxu0 %v1086
        %v1259 = vpop.f32.mrf.mxu0
        %v1260 = vadd.f32 %v758, %v1259
        %v1261 = vpop.f32.mrf.mxu0
        %v1262 = vadd.f32 %v760, %v1261
        %1263 = vmatprep.mubr.f32.mxu0 0.0
        %1264 = vmatmul.mubr.f32.gmra.mxu0 %v1089
        %v1265 = vpop.f32.mrf.mxu0
        %v1266 = vadd.f32 %v764, %v1265
        %v1267 = vpop.f32.mrf.mxu0
        %v1268 = vadd.f32 %v766, %v1267
        %1269 = vmatprep.mubr.f32.mxu0 0.0
        %1270 = vmatmul.mubr.f32.gmra.mxu0 %v1092
        %v1271 = vpop.f32.mrf.mxu0
        %v1272 = vadd.f32 %v770, %v1271
        %v1273 = vpop.f32.mrf.mxu0
        %v1274 = vadd.f32 %v772, %v1273
        %1275 = vmatprep.mubr.f32.mxu0 0.0
        %1276 = vmatmul.mubr.f32.gmra.mxu0 %v1095
        %v1277 = vpop.f32.mrf.mxu0
        %v1278 = vadd.f32 %v776, %v1277
        %v1279 = vpop.f32.mrf.mxu0
        %v1280 = vadd.f32 %v778, %v1279
        %1281 = vmatprep.mubr.f32.mxu0 0.0
        %1282 = vmatmul.mubr.f32.gmra.mxu0 %v1098
        %v1283 = vpop.f32.mrf.mxu0
        %v1284 = vadd.f32 %v782, %v1283
        %v1285 = vpop.f32.mrf.mxu0
        %v1286 = vadd.f32 %v784, %v1285
        %1287 = vmatprep.mubr.f32.mxu0 0.0
        %1288 = vmatmul.mubr.f32.gmra.mxu0 %v1101
        %v1289 = vpop.f32.mrf.mxu0
        %v1290 = vadd.f32 %v788, %v1289
        %v1291 = vpop.f32.mrf.mxu0
        %v1292 = vadd.f32 %v790, %v1291
        %1293 = vmatprep.mubr.f32.mxu0 0.0
        %1294 = vmatmul.mubr.f32.gmra.mxu0 %v1104
        %v1295 = vpop.f32.mrf.mxu0
        %v1296 = vadd.f32 %v794, %v1295
        %v1297 = vpop.f32.mrf.mxu0
        %v1298 = vadd.f32 %v796, %v1297
        %1299 = vmatprep.mubr.f32.mxu0 0.0
        %1300 = vmatmul.mubr.f32.gmra.mxu0 %v1107
        %v1301 = vpop.f32.mrf.mxu0
        %v1302 = vadd.f32 %v800, %v1301
        %v1303 = vpop.f32.mrf.mxu0
        %v1304 = vadd.f32 %v802, %v1303
        %1305 = vmatprep.mubr.f32.mxu0 0.0
        %1306 = vmatmul.mubr.f32.gmra.mxu0 %v1110
        %v1307 = vpop.f32.mrf.mxu0
        %v1308 = vadd.f32 %v806, %v1307
        %v1309 = vpop.f32.mrf.mxu0
        %v1310 = vadd.f32 %v808, %v1309
        %1311 = vmatprep.mubr.f32.mxu0 0.0
        %1312 = vmatmul.mubr.f32.gmra.mxu0 %v1113
        %v1313 = vpop.f32.mrf.mxu0
        %v1314 = vadd.f32 %v812, %v1313
        %v1315 = vpop.f32.mrf.mxu0
        %v1316 = vadd.f32 %v814, %v1315
        %1317 = vmatprep.mubr.f32.mxu0 0.0
        %1318 = vmatmul.mubr.f32.gmra.mxu0 %v1116
        %v1319 = vpop.f32.mrf.mxu0
        %v1320 = vadd.f32 %v818, %v1319
        %v1321 = vpop.f32.mrf.mxu0
        %v1322 = vadd.f32 %v820, %v1321
        %1323 = vmatprep.mubr.f32.mxu0 0.0
        %1324 = vmatmul.mubr.f32.gmra.mxu0 %v1119
        %v1325 = vpop.f32.mrf.mxu0
        %v1326 = vadd.f32 %v824, %v1325
        %v1327 = vpop.f32.mrf.mxu0
        %v1328 = vadd.f32 %v826, %v1327
        %1329 = vmatprep.mubr.f32.mxu0 0.0
        %1330 = vmatmul.mubr.f32.gmra.mxu0 %v1122
        %v1331 = vpop.f32.mrf.mxu0
        %v1332 = vadd.f32 %v830, %v1331
        %v1333 = vpop.f32.mrf.mxu0
        %v1334 = vadd.f32 %v832, %v1333
        %1335 = vmatprep.mubr.f32.mxu0 0.0
        %1336 = vmatmul.mubr.f32.gmra.mxu0 %v1125
        %v1337 = vpop.f32.mrf.mxu0
        %v1338 = vadd.f32 %v836, %v1337
        %v1339 = vpop.f32.mrf.mxu0
        %v1340 = vadd.f32 %v838, %v1339
        %1341 = vmatprep.mubr.f32.mxu0 0.0
        %1342 = vmatmul.mubr.f32.gmra.mxu0 %v1128
        %v1343 = vpop.f32.mrf.mxu0
        %v1344 = vadd.f32 %v842, %v1343
        %v1345 = vpop.f32.mrf.mxu0
        %v1346 = vadd.f32 %v844, %v1345
        %1347 = vmatprep.mubr.f32.mxu0 0.0
        %1348 = vmatmul.mubr.f32.gmra.mxu0 %v1131
        %v1349 = vpop.f32.mrf.mxu0
        %v1350 = vadd.f32 %v848, %v1349
        %v1351 = vpop.f32.mrf.mxu0
        %v1352 = vadd.f32 %v850, %v1351
        %1353 = vdwg.mxu0
        %1354 = vmatprep.subr.mxu0 0.0
        %1355 = vmatpush1.msra.mxu0 0.0
        %1356 = vmatprep.subr.mxu0 0.0
        %1357 = vmatpush1.msra.mxu0 0.0
        %1358 = vmatprep.subr.mxu0 0.0
        %1359 = vmatpush1.msra.mxu0 0.0
        %1360 = vmatprep.subr.mxu0 0.0
        %1361 = vmatpush1.msra.mxu0 0.0
        %1362 = vmatprep.subr.mxu0 0.0
        %1363 = vmatpush1.msra.mxu0 0.0
        %1364 = vmatprep.subr.mxu0 0.0
        %1365 = vmatpush1.msra.mxu0 0.0
        %1366 = vmatprep.subr.mxu0 0.0
        %1367 = vmatpush1.msra.mxu0 0.0
        %1368 = vmatprep.subr.mxu0 0.0
        %1369 = vmatpush1.msra.mxu0 0.0
        %1370 = vmatprep.subr.mxu0 0.0
        %1371 = vmatpush1.msra.mxu0 0.0
        %1372 = vmatprep.subr.mxu0 0.0
        %1373 = vmatpush1.msra.mxu0 0.0
        %1374 = vmatprep.subr.mxu0 0.0
        %1375 = vmatpush1.msra.mxu0 0.0
        %1376 = vmatprep.subr.mxu0 0.0
        %1377 = vmatpush1.msra.mxu0 0.0
        %1378 = vmatprep.subr.mxu0 %v1143
        %1379 = vmatpush1.msra.mxu0 %v1140
        %1380 = vmatprep.subr.mxu0 %v510
        %1381 = vmatpush1.msra.mxu0 %v509
        %1382 = vmatprep.subr.mxu0 %v506
        %1383 = vmatpush1.msra.mxu0 %v505
        %1384 = vmatprep.subr.mxu0 %v502
        %1385 = vmatpush1.msra.mxu0 %v501
        %1386 = vmatprep.subr.mxu0 0.0
        %1387 = vmatpush2.msra.mxu0 0.0
        %1388 = vmatprep.subr.mxu0 0.0
        %1389 = vmatpush2.msra.mxu0 0.0
        %1390 = vmatprep.subr.mxu0 0.0
        %1391 = vmatpush2.msra.mxu0 0.0
        %1392 = vmatprep.subr.mxu0 0.0
        %1393 = vmatpush2.msra.mxu0 0.0
        %1394 = vmatprep.subr.mxu0 0.0
        %1395 = vmatpush2.msra.mxu0 0.0
        %1396 = vmatprep.subr.mxu0 0.0
        %1397 = vmatpush2.msra.mxu0 0.0
        %1398 = vmatprep.subr.mxu0 0.0
        %1399 = vmatpush2.msra.mxu0 0.0
        %1400 = vmatprep.subr.mxu0 0.0
        %1401 = vmatpush2.msra.mxu0 0.0
        %1402 = vmatprep.subr.mxu0 0.0
        %1403 = vmatpush2.msra.mxu0 0.0
        %1404 = vmatprep.subr.mxu0 0.0
        %1405 = vmatpush2.msra.mxu0 0.0
        %1406 = vmatprep.subr.mxu0 0.0
        %1407 = vmatpush2.msra.mxu0 0.0
        %1408 = vmatprep.subr.mxu0 0.0
        %1409 = vmatpush2.msra.mxu0 0.0
        %1410 = vmatprep.subr.mxu0 0.0
        %1411 = vmatpush2.msra.mxu0 0.0
        %1412 = vmatprep.subr.mxu0 0.0
        %1413 = vmatpush2.msra.mxu0 0.0
        %1414 = vmatprep.subr.mxu0 0.0
        %1415 = vmatpush2.msra.mxu0 0.0
        %1416 = vmatprep.subr.mxu0 0.0
        %1417 = vmatpush2.msra.mxu0 0.0
        %1418 = vmatprep.mubr.f32.mxu0 0.0
        %1419 = vmatmul.mubr.f32.gmra.mxu0 %v1062
        %v1420 = vpop.f32.mrf.mxu0
        %v1421 = vadd.f32 %v919, %v1420
        %v1422 = vpop.f32.mrf.mxu0
        %v1423 = vadd.f32 %v921, %v1422
        %1424 = vmatprep.mubr.f32.mxu0 0.0
        %1425 = vmatmul.mubr.f32.gmra.mxu0 %v1065
        %v1426 = vpop.f32.mrf.mxu0
        %v1427 = vadd.f32 %v925, %v1426
        %v1428 = vpop.f32.mrf.mxu0
        %v1429 = vadd.f32 %v927, %v1428
        %1430 = vmatprep.mubr.f32.mxu0 0.0
        %1431 = vmatmul.mubr.f32.gmra.mxu0 %v1068
        %v1432 = vpop.f32.mrf.mxu0
        %v1433 = vadd.f32 %v931, %v1432
        %v1434 = vpop.f32.mrf.mxu0
        %v1435 = vadd.f32 %v933, %v1434
        %1436 = vmatprep.mubr.f32.mxu0 0.0
        %1437 = vmatmul.mubr.f32.gmra.mxu0 %v1071
        %v1438 = vpop.f32.mrf.mxu0
        %v1439 = vadd.f32 %v937, %v1438
        %v1440 = vpop.f32.mrf.mxu0
        %v1441 = vadd.f32 %v939, %v1440
        %1442 = vmatprep.mubr.f32.mxu0 0.0
        %1443 = vmatmul.mubr.f32.gmra.mxu0 %v1074
        %v1444 = vpop.f32.mrf.mxu0
        %v1445 = vadd.f32 %v943, %v1444
        %v1446 = vpop.f32.mrf.mxu0
        %v1447 = vadd.f32 %v945, %v1446
        %1448 = vmatprep.mubr.f32.mxu0 0.0
        %1449 = vmatmul.mubr.f32.gmra.mxu0 %v1077
        %v1450 = vpop.f32.mrf.mxu0
        %v1451 = vadd.f32 %v949, %v1450
        %v1452 = vpop.f32.mrf.mxu0
        %v1453 = vadd.f32 %v951, %v1452
        %1454 = vmatprep.mubr.f32.mxu0 0.0
        %1455 = vmatmul.mubr.f32.gmra.mxu0 %v1080
        %v1456 = vpop.f32.mrf.mxu0
        %v1457 = vadd.f32 %v955, %v1456
        %v1458 = vpop.f32.mrf.mxu0
        %v1459 = vadd.f32 %v957, %v1458
        %1460 = vmatprep.mubr.f32.mxu0 0.0
        %1461 = vmatmul.mubr.f32.gmra.mxu0 %v1083
        %v1462 = vpop.f32.mrf.mxu0
        %v1463 = vadd.f32 %v961, %v1462
        %v1464 = vpop.f32.mrf.mxu0
        %v1465 = vadd.f32 %v963, %v1464
        %1466 = vmatprep.mubr.f32.mxu0 0.0
        %1467 = vmatmul.mubr.f32.gmra.mxu0 %v1086
        %v1468 = vpop.f32.mrf.mxu0
        %v1469 = vadd.f32 %v967, %v1468
        %v1470 = vpop.f32.mrf.mxu0
        %v1471 = vadd.f32 %v969, %v1470
        %1472 = vmatprep.mubr.f32.mxu0 0.0
        %1473 = vmatmul.mubr.f32.gmra.mxu0 %v1089
        %v1474 = vpop.f32.mrf.mxu0
        %v1475 = vadd.f32 %v973, %v1474
        %v1476 = vpop.f32.mrf.mxu0
        %v1477 = vadd.f32 %v975, %v1476
        %1478 = vmatprep.mubr.f32.mxu0 0.0
        %1479 = vmatmul.mubr.f32.gmra.mxu0 %v1092
        %v1480 = vpop.f32.mrf.mxu0
        %v1481 = vadd.f32 %v979, %v1480
        %v1482 = vpop.f32.mrf.mxu0
        %v1483 = vadd.f32 %v981, %v1482
        %1484 = vmatprep.mubr.f32.mxu0 0.0
        %1485 = vmatmul.mubr.f32.gmra.mxu0 %v1095
        %v1486 = vpop.f32.mrf.mxu0
        %v1487 = vadd.f32 %v985, %v1486
        %v1488 = vpop.f32.mrf.mxu0
        %v1489 = vadd.f32 %v987, %v1488
        %1490 = vmatprep.mubr.f32.mxu0 0.0
        %1491 = vmatmul.mubr.f32.gmra.mxu0 %v1098
        %v1492 = vpop.f32.mrf.mxu0
        %v1493 = vadd.f32 %v991, %v1492
        %v1494 = vpop.f32.mrf.mxu0
        %v1495 = vadd.f32 %v993, %v1494
        %1496 = vmatprep.mubr.f32.mxu0 0.0
        %1497 = vmatmul.mubr.f32.gmra.mxu0 %v1101
        %v1498 = vpop.f32.mrf.mxu0
        %v1499 = vadd.f32 %v997, %v1498
        %v1500 = vpop.f32.mrf.mxu0
        %v1501 = vadd.f32 %v999, %v1500
        %1502 = vmatprep.mubr.f32.mxu0 0.0
        %1503 = vmatmul.mubr.f32.gmra.mxu0 %v1104
        %v1504 = vpop.f32.mrf.mxu0
        %v1505 = vadd.f32 %v1003, %v1504
        %v1506 = vpop.f32.mrf.mxu0
        %v1507 = vadd.f32 %v1005, %v1506
        %1508 = vmatprep.mubr.f32.mxu0 0.0
        %1509 = vmatmul.mubr.f32.gmra.mxu0 %v1107
        %v1510 = vpop.f32.mrf.mxu0
        %v1511 = vadd.f32 %v1009, %v1510
        %v1512 = vpop.f32.mrf.mxu0
        %v1513 = vadd.f32 %v1011, %v1512
        %1514 = vmatprep.mubr.f32.mxu0 0.0
        %1515 = vmatmul.mubr.f32.gmra.mxu0 %v1110
        %v1516 = vpop.f32.mrf.mxu0
        %v1517 = vadd.f32 %v1015, %v1516
        %v1518 = vpop.f32.mrf.mxu0
        %v1519 = vadd.f32 %v1017, %v1518
        %1520 = vmatprep.mubr.f32.mxu0 0.0
        %1521 = vmatmul.mubr.f32.gmra.mxu0 %v1113
        %v1522 = vpop.f32.mrf.mxu0
        %v1523 = vadd.f32 %v1021, %v1522
        %v1524 = vpop.f32.mrf.mxu0
        %v1525 = vadd.f32 %v1023, %v1524
        %1526 = vmatprep.mubr.f32.mxu0 0.0
        %1527 = vmatmul.mubr.f32.gmra.mxu0 %v1116
        %v1528 = vpop.f32.mrf.mxu0
        %v1529 = vadd.f32 %v1027, %v1528
        %v1530 = vpop.f32.mrf.mxu0
        %v1531 = vadd.f32 %v1029, %v1530
        %1532 = vmatprep.mubr.f32.mxu0 0.0
        %1533 = vmatmul.mubr.f32.gmra.mxu0 %v1119
        %v1534 = vpop.f32.mrf.mxu0
        %v1535 = vadd.f32 %v1033, %v1534
        %v1536 = vpop.f32.mrf.mxu0
        %v1537 = vadd.f32 %v1035, %v1536
        %1538 = vmatprep.mubr.f32.mxu0 0.0
        %1539 = vmatmul.mubr.f32.gmra.mxu0 %v1122
        %v1540 = vpop.f32.mrf.mxu0
        %v1541 = vadd.f32 %v1039, %v1540
        %v1542 = vpop.f32.mrf.mxu0
        %v1543 = vadd.f32 %v1041, %v1542
        %1544 = vmatprep.mubr.f32.mxu0 0.0
        %1545 = vmatmul.mubr.f32.gmra.mxu0 %v1125
        %v1546 = vpop.f32.mrf.mxu0
        %v1547 = vadd.f32 %v1045, %v1546
        %v1548 = vpop.f32.mrf.mxu0
        %v1549 = vadd.f32 %v1047, %v1548
        %1550 = vmatprep.mubr.f32.mxu0 0.0
        %1551 = vmatmul.mubr.f32.gmra.mxu0 %v1128
        %v1552 = vpop.f32.mrf.mxu0
        %v1553 = vadd.f32 %v1051, %v1552
        %v1554 = vpop.f32.mrf.mxu0
        %v1555 = vadd.f32 %v1053, %v1554
        %1556 = vmatprep.mubr.f32.mxu0 0.0
        %1557 = vmatmul.mubr.f32.gmra.mxu0 %v1131
        %v1558 = vpop.f32.mrf.mxu0
        %v1559 = vadd.f32 %v1057, %v1558
        %v1560 = vpop.f32.mrf.mxu0
        %v1561 = vadd.f32 %v1059, %v1560
        %1562 = vdwg.mxu0
        %s1563 = scalar_lea.vmem %s441, 16 [#allocation3]
        %v1564 = vld [vmem:[%s1563] sm:$0xff]
        %v1565 = vld [vmem:[%s1563 + $0x8] sm:$0xff]
        %v1566 = vld [vmem:[%s1563 + $0x10] sm:$0xff]
        %v1567 = vld [vmem:[%s1563 + $0x18] sm:$0xff]
        %v1568 = vld [vmem:[%s1563 + $0x20] sm:$0xff]
        %v1569 = vld [vmem:[%s1563 + $0x28] sm:$0xff]
        %v1570 = vld [vmem:[%s1563 + $0x30] sm:$0xff]
        %v1571 = vld [vmem:[%s1563 + $0x38] sm:$0xff]
        %v1572 = vld [vmem:[%s1563 + $0x40] sm:$0xff]
        %v1573 = vld [vmem:[%s1563 + $0x48] sm:$0xff]
        %v1574 = vld [vmem:[%s1563 + $0x50] sm:$0xff]
        %v1575 = vld [vmem:[%s1563 + $0x58] sm:$0xff]
        %v1576 = vld [vmem:[%s1563 + $0x60] sm:$0xff]
        %v1577 = vld [vmem:[%s1563 + $0x68] sm:$0xff]
        %v1578 = vld [vmem:[%s1563 + $0x70] sm:$0xff]
        %v1579 = vld [vmem:[%s1563 + $0x78] sm:$0xff]
        %v1580 = vld [vmem:[%s1563 + $0x80] sm:$0xff]
        %v1581 = vld [vmem:[%s1563 + $0x88] sm:$0xff]
        %v1582 = vld [vmem:[%s1563 + $0x90] sm:$0xff]
        %v1583 = vld [vmem:[%s1563 + $0x98] sm:$0xff]
        %v1584 = vld [vmem:[%s1563 + $0xa0] sm:$0xff]
        %v1585 = vld [vmem:[%s1563 + $0xa8] sm:$0xff]
        %v1586 = vld [vmem:[%s1563 + $0xb0] sm:$0xff]
        %v1587 = vld [vmem:[%s1563 + $0xb8] sm:$0xff]
        %s1588 = scalar_lea.vmem %s1, 256
        %v1589 = vld [vmem:[%s1588] sm:$0xff]
        %v1590 = vld [vmem:[%s1588 + $0x8] sm:$0xff]
        %v1591 = vld [vmem:[%s1588 + $0x10] sm:$0xff]
        %v1592 = vld [vmem:[%s1588 + $0x18] sm:$0xff]
        %v1593 = vld [vmem:[%s1588 + $0x20] sm:$0xff]
        %v1594 = vld [vmem:[%s1588 + $0x28] sm:$0xff]
        %v1595 = vld [vmem:[%s1588 + $0x30] sm:$0xff]
        %v1596 = vld [vmem:[%s1588 + $0x38] sm:$0xff]
        %v1597 = vld [vmem:[%s1588 + $0x40] sm:$0xff]
        %v1598 = vld [vmem:[%s1588 + $0x48] sm:$0xff]
        %v1599 = vld [vmem:[%s1588 + $0x50] sm:$0xff]
        %v1600 = vld [vmem:[%s1588 + $0x58] sm:$0xff]
        %v1601 = vld [vmem:[%s1588 + $0x60] sm:$0xf]
        %v1602 = vld [vmem:[%s1588 + $0x68] sm:$0xf]
        %v1603 = vld [vmem:[%s1588 + $0x70] sm:$0xf]
        %v1604 = vld [vmem:[%s1588 + $0x78] sm:$0xf]
        %v1606 = vsel %vm557, %v1564, 0
        %v1609 = vsel %vm557, %v1565, 0
        %v1612 = vsel %vm557, %v1566, 0
        %v1615 = vsel %vm557, %v1567, 0
        %v1618 = vsel %vm557, %v1568, 0
        %v1621 = vsel %vm557, %v1569, 0
        %v1624 = vsel %vm557, %v1570, 0
        %v1627 = vsel %vm557, %v1571, 0
        %v1630 = vsel %vm557, %v1572, 0
        %v1633 = vsel %vm557, %v1573, 0
        %v1636 = vsel %vm557, %v1574, 0
        %v1639 = vsel %vm557, %v1575, 0
        %v1642 = vsel %vm557, %v1576, 0
        %v1645 = vsel %vm557, %v1577, 0
        %v1648 = vsel %vm557, %v1578, 0
        %v1651 = vsel %vm557, %v1579, 0
        %v1654 = vsel %vm557, %v1580, 0
        %v1657 = vsel %vm557, %v1581, 0
        %v1660 = vsel %vm557, %v1582, 0
        %v1663 = vsel %vm557, %v1583, 0
        %v1666 = vsel %vm557, %v1584, 0
        %v1669 = vsel %vm557, %v1585, 0
        %v1672 = vsel %vm557, %v1586, 0
        %v1675 = vsel %vm557, %v1587, 0
        %v1678 = vsel %vm630, %v1601, 0
        %v1681 = vsel %vm630, %v1602, 0
        %v1684 = vsel %vm630, %v1603, 0
        %v1687 = vsel %vm630, %v1604, 0
        %1689 = vmatprep.subr.mxu0 0.0
        %1690 = vmatpush1.msra.mxu0 0.0
        %1691 = vmatprep.subr.mxu0 0.0
        %1692 = vmatpush1.msra.mxu0 0.0
        %1693 = vmatprep.subr.mxu0 0.0
        %1694 = vmatpush1.msra.mxu0 0.0
        %1695 = vmatprep.subr.mxu0 0.0
        %1696 = vmatpush1.msra.mxu0 0.0
        %1697 = vmatprep.subr.mxu0 0.0
        %1698 = vmatpush1.msra.mxu0 0.0
        %1699 = vmatprep.subr.mxu0 0.0
        %1700 = vmatpush1.msra.mxu0 0.0
        %1701 = vmatprep.subr.mxu0 0.0
        %1702 = vmatpush1.msra.mxu0 0.0
        %1703 = vmatprep.subr.mxu0 0.0
        %1704 = vmatpush1.msra.mxu0 0.0
        %1705 = vmatprep.subr.mxu0 0.0
        %1706 = vmatpush1.msra.mxu0 0.0
        %1707 = vmatprep.subr.mxu0 0.0
        %1708 = vmatpush1.msra.mxu0 0.0
        %1709 = vmatprep.subr.mxu0 0.0
        %1710 = vmatpush1.msra.mxu0 0.0
        %1711 = vmatprep.subr.mxu0 0.0
        %1712 = vmatpush1.msra.mxu0 0.0
        %1713 = vmatprep.subr.mxu0 %v1681
        %1714 = vmatpush1.msra.mxu0 %v1678
        %1715 = vmatprep.subr.mxu0 %v1598
        %1716 = vmatpush1.msra.mxu0 %v1597
        %1717 = vmatprep.subr.mxu0 %v1594
        %1718 = vmatpush1.msra.mxu0 %v1593
        %1719 = vmatprep.subr.mxu0 %v1590
        %1720 = vmatpush1.msra.mxu0 %v1589
        %1721 = vmatprep.subr.mxu0 0.0
        %1722 = vmatpush2.msra.mxu0 0.0
        %1723 = vmatprep.subr.mxu0 0.0
        %1724 = vmatpush2.msra.mxu0 0.0
        %1725 = vmatprep.subr.mxu0 0.0
        %1726 = vmatpush2.msra.mxu0 0.0
        %1727 = vmatprep.subr.mxu0 0.0
        %1728 = vmatpush2.msra.mxu0 0.0
        %1729 = vmatprep.subr.mxu0 0.0
        %1730 = vmatpush2.msra.mxu0 0.0
        %1731 = vmatprep.subr.mxu0 0.0
        %1732 = vmatpush2.msra.mxu0 0.0
        %1733 = vmatprep.subr.mxu0 0.0
        %1734 = vmatpush2.msra.mxu0 0.0
        %1735 = vmatprep.subr.mxu0 0.0
        %1736 = vmatpush2.msra.mxu0 0.0
        %1737 = vmatprep.subr.mxu0 0.0
        %1738 = vmatpush2.msra.mxu0 0.0
        %1739 = vmatprep.subr.mxu0 0.0
        %1740 = vmatpush2.msra.mxu0 0.0
        %1741 = vmatprep.subr.mxu0 0.0
        %1742 = vmatpush2.msra.mxu0 0.0
        %1743 = vmatprep.subr.mxu0 0.0
        %1744 = vmatpush2.msra.mxu0 0.0
        %1745 = vmatprep.subr.mxu0 0.0
        %1746 = vmatpush2.msra.mxu0 0.0
        %1747 = vmatprep.subr.mxu0 0.0
        %1748 = vmatpush2.msra.mxu0 0.0
        %1749 = vmatprep.subr.mxu0 0.0
        %1750 = vmatpush2.msra.mxu0 0.0
        %1751 = vmatprep.subr.mxu0 0.0
        %1752 = vmatpush2.msra.mxu0 0.0
        %1753 = vmatprep.mubr.f32.mxu0 0.0
        %1754 = vmatmul.mubr.f32.gmra.mxu0 %v1606
        %v1755 = vpop.f32.mrf.mxu0
        %v1756 = vadd.f32 0.0, %v1755
        %v1757 = vpop.f32.mrf.mxu0
        %v1758 = vadd.f32 0.0, %v1757
        %1759 = vmatprep.mubr.f32.mxu0 0.0
        %1760 = vmatmul.mubr.f32.gmra.mxu0 %v1609
        %v1761 = vpop.f32.mrf.mxu0
        %v1762 = vadd.f32 0.0, %v1761
        %v1763 = vpop.f32.mrf.mxu0
        %v1764 = vadd.f32 0.0, %v1763
        %1765 = vmatprep.mubr.f32.mxu0 0.0
        %1766 = vmatmul.mubr.f32.gmra.mxu0 %v1612
        %v1767 = vpop.f32.mrf.mxu0
        %v1768 = vadd.f32 0.0, %v1767
        %v1769 = vpop.f32.mrf.mxu0
        %v1770 = vadd.f32 0.0, %v1769
        %1771 = vmatprep.mubr.f32.mxu0 0.0
        %1772 = vmatmul.mubr.f32.gmra.mxu0 %v1615
        %v1773 = vpop.f32.mrf.mxu0
        %v1774 = vadd.f32 0.0, %v1773
        %v1775 = vpop.f32.mrf.mxu0
        %v1776 = vadd.f32 0.0, %v1775
        %1777 = vmatprep.mubr.f32.mxu0 0.0
        %1778 = vmatmul.mubr.f32.gmra.mxu0 %v1618
        %v1779 = vpop.f32.mrf.mxu0
        %v1780 = vadd.f32 0.0, %v1779
        %v1781 = vpop.f32.mrf.mxu0
        %v1782 = vadd.f32 0.0, %v1781
        %1783 = vmatprep.mubr.f32.mxu0 0.0
        %1784 = vmatmul.mubr.f32.gmra.mxu0 %v1621
        %v1785 = vpop.f32.mrf.mxu0
        %v1786 = vadd.f32 0.0, %v1785
        %v1787 = vpop.f32.mrf.mxu0
        %v1788 = vadd.f32 0.0, %v1787
        %1789 = vmatprep.mubr.f32.mxu0 0.0
        %1790 = vmatmul.mubr.f32.gmra.mxu0 %v1624
        %v1791 = vpop.f32.mrf.mxu0
        %v1792 = vadd.f32 0.0, %v1791
        %v1793 = vpop.f32.mrf.mxu0
        %v1794 = vadd.f32 0.0, %v1793
        %1795 = vmatprep.mubr.f32.mxu0 0.0
        %1796 = vmatmul.mubr.f32.gmra.mxu0 %v1627
        %v1797 = vpop.f32.mrf.mxu0
        %v1798 = vadd.f32 0.0, %v1797
        %v1799 = vpop.f32.mrf.mxu0
        %v1800 = vadd.f32 0.0, %v1799
        %1801 = vmatprep.mubr.f32.mxu0 0.0
        %1802 = vmatmul.mubr.f32.gmra.mxu0 %v1630
        %v1803 = vpop.f32.mrf.mxu0
        %v1804 = vadd.f32 0.0, %v1803
        %v1805 = vpop.f32.mrf.mxu0
        %v1806 = vadd.f32 0.0, %v1805
        %1807 = vmatprep.mubr.f32.mxu0 0.0
        %1808 = vmatmul.mubr.f32.gmra.mxu0 %v1633
        %v1809 = vpop.f32.mrf.mxu0
        %v1810 = vadd.f32 0.0, %v1809
        %v1811 = vpop.f32.mrf.mxu0
        %v1812 = vadd.f32 0.0, %v1811
        %1813 = vmatprep.mubr.f32.mxu0 0.0
        %1814 = vmatmul.mubr.f32.gmra.mxu0 %v1636
        %v1815 = vpop.f32.mrf.mxu0
        %v1816 = vadd.f32 0.0, %v1815
        %v1817 = vpop.f32.mrf.mxu0
        %v1818 = vadd.f32 0.0, %v1817
        %1819 = vmatprep.mubr.f32.mxu0 0.0
        %1820 = vmatmul.mubr.f32.gmra.mxu0 %v1639
        %v1821 = vpop.f32.mrf.mxu0
        %v1822 = vadd.f32 0.0, %v1821
        %v1823 = vpop.f32.mrf.mxu0
        %v1824 = vadd.f32 0.0, %v1823
        %1825 = vmatprep.mubr.f32.mxu0 0.0
        %1826 = vmatmul.mubr.f32.gmra.mxu0 %v1642
        %v1827 = vpop.f32.mrf.mxu0
        %v1828 = vadd.f32 0.0, %v1827
        %v1829 = vpop.f32.mrf.mxu0
        %v1830 = vadd.f32 0.0, %v1829
        %1831 = vmatprep.mubr.f32.mxu0 0.0
        %1832 = vmatmul.mubr.f32.gmra.mxu0 %v1645
        %v1833 = vpop.f32.mrf.mxu0
        %v1834 = vadd.f32 0.0, %v1833
        %v1835 = vpop.f32.mrf.mxu0
        %v1836 = vadd.f32 0.0, %v1835
        %1837 = vmatprep.mubr.f32.mxu0 0.0
        %1838 = vmatmul.mubr.f32.gmra.mxu0 %v1648
        %v1839 = vpop.f32.mrf.mxu0
        %v1840 = vadd.f32 0.0, %v1839
        %v1841 = vpop.f32.mrf.mxu0
        %v1842 = vadd.f32 0.0, %v1841
        %1843 = vmatprep.mubr.f32.mxu0 0.0
        %1844 = vmatmul.mubr.f32.gmra.mxu0 %v1651
        %v1845 = vpop.f32.mrf.mxu0
        %v1846 = vadd.f32 0.0, %v1845
        %v1847 = vpop.f32.mrf.mxu0
        %v1848 = vadd.f32 0.0, %v1847
        %1849 = vmatprep.mubr.f32.mxu0 0.0
        %1850 = vmatmul.mubr.f32.gmra.mxu0 %v1654
        %v1851 = vpop.f32.mrf.mxu0
        %v1852 = vadd.f32 0.0, %v1851
        %v1853 = vpop.f32.mrf.mxu0
        %v1854 = vadd.f32 0.0, %v1853
        %1855 = vmatprep.mubr.f32.mxu0 0.0
        %1856 = vmatmul.mubr.f32.gmra.mxu0 %v1657
        %v1857 = vpop.f32.mrf.mxu0
        %v1858 = vadd.f32 0.0, %v1857
        %v1859 = vpop.f32.mrf.mxu0
        %v1860 = vadd.f32 0.0, %v1859
        %1861 = vmatprep.mubr.f32.mxu0 0.0
        %1862 = vmatmul.mubr.f32.gmra.mxu0 %v1660
        %v1863 = vpop.f32.mrf.mxu0
        %v1864 = vadd.f32 0.0, %v1863
        %v1865 = vpop.f32.mrf.mxu0
        %v1866 = vadd.f32 0.0, %v1865
        %1867 = vmatprep.mubr.f32.mxu0 0.0
        %1868 = vmatmul.mubr.f32.gmra.mxu0 %v1663
        %v1869 = vpop.f32.mrf.mxu0
        %v1870 = vadd.f32 0.0, %v1869
        %v1871 = vpop.f32.mrf.mxu0
        %v1872 = vadd.f32 0.0, %v1871
        %1873 = vmatprep.mubr.f32.mxu0 0.0
        %1874 = vmatmul.mubr.f32.gmra.mxu0 %v1666
        %v1875 = vpop.f32.mrf.mxu0
        %v1876 = vadd.f32 0.0, %v1875
        %v1877 = vpop.f32.mrf.mxu0
        %v1878 = vadd.f32 0.0, %v1877
        %1879 = vmatprep.mubr.f32.mxu0 0.0
        %1880 = vmatmul.mubr.f32.gmra.mxu0 %v1669
        %v1881 = vpop.f32.mrf.mxu0
        %v1882 = vadd.f32 0.0, %v1881
        %v1883 = vpop.f32.mrf.mxu0
        %v1884 = vadd.f32 0.0, %v1883
        %1885 = vmatprep.mubr.f32.mxu0 0.0
        %1886 = vmatmul.mubr.f32.gmra.mxu0 %v1672
        %v1887 = vpop.f32.mrf.mxu0
        %v1888 = vadd.f32 0.0, %v1887
        %v1889 = vpop.f32.mrf.mxu0
        %v1890 = vadd.f32 0.0, %v1889
        %1891 = vmatprep.mubr.f32.mxu0 0.0
        %1892 = vmatmul.mubr.f32.gmra.mxu0 %v1675
        %v1893 = vpop.f32.mrf.mxu0
        %v1894 = vadd.f32 0.0, %v1893
        %v1895 = vpop.f32.mrf.mxu0
        %v1896 = vadd.f32 0.0, %v1895
        %1897 = vdwg.mxu0
        %1898 = vmatprep.subr.mxu0 0.0
        %1899 = vmatpush1.msra.mxu0 0.0
        %1900 = vmatprep.subr.mxu0 0.0
        %1901 = vmatpush1.msra.mxu0 0.0
        %1902 = vmatprep.subr.mxu0 0.0
        %1903 = vmatpush1.msra.mxu0 0.0
        %1904 = vmatprep.subr.mxu0 0.0
        %1905 = vmatpush1.msra.mxu0 0.0
        %1906 = vmatprep.subr.mxu0 0.0
        %1907 = vmatpush1.msra.mxu0 0.0
        %1908 = vmatprep.subr.mxu0 0.0
        %1909 = vmatpush1.msra.mxu0 0.0
        %1910 = vmatprep.subr.mxu0 0.0
        %1911 = vmatpush1.msra.mxu0 0.0
        %1912 = vmatprep.subr.mxu0 0.0
        %1913 = vmatpush1.msra.mxu0 0.0
        %1914 = vmatprep.subr.mxu0 0.0
        %1915 = vmatpush1.msra.mxu0 0.0
        %1916 = vmatprep.subr.mxu0 0.0
        %1917 = vmatpush1.msra.mxu0 0.0
        %1918 = vmatprep.subr.mxu0 0.0
        %1919 = vmatpush1.msra.mxu0 0.0
        %1920 = vmatprep.subr.mxu0 0.0
        %1921 = vmatpush1.msra.mxu0 0.0
        %1922 = vmatprep.subr.mxu0 %v1687
        %1923 = vmatpush1.msra.mxu0 %v1684
        %1924 = vmatprep.subr.mxu0 %v1600
        %1925 = vmatpush1.msra.mxu0 %v1599
        %1926 = vmatprep.subr.mxu0 %v1596
        %1927 = vmatpush1.msra.mxu0 %v1595
        %1928 = vmatprep.subr.mxu0 %v1592
        %1929 = vmatpush1.msra.mxu0 %v1591
        %1930 = vmatprep.subr.mxu0 0.0
        %1931 = vmatpush2.msra.mxu0 0.0
        %1932 = vmatprep.subr.mxu0 0.0
        %1933 = vmatpush2.msra.mxu0 0.0
        %1934 = vmatprep.subr.mxu0 0.0
        %1935 = vmatpush2.msra.mxu0 0.0
        %1936 = vmatprep.subr.mxu0 0.0
        %1937 = vmatpush2.msra.mxu0 0.0
        %1938 = vmatprep.subr.mxu0 0.0
        %1939 = vmatpush2.msra.mxu0 0.0
        %1940 = vmatprep.subr.mxu0 0.0
        %1941 = vmatpush2.msra.mxu0 0.0
        %1942 = vmatprep.subr.mxu0 0.0
        %1943 = vmatpush2.msra.mxu0 0.0
        %1944 = vmatprep.subr.mxu0 0.0
        %1945 = vmatpush2.msra.mxu0 0.0
        %1946 = vmatprep.subr.mxu0 0.0
        %1947 = vmatpush2.msra.mxu0 0.0
        %1948 = vmatprep.subr.mxu0 0.0
        %1949 = vmatpush2.msra.mxu0 0.0
        %1950 = vmatprep.subr.mxu0 0.0
        %1951 = vmatpush2.msra.mxu0 0.0
        %1952 = vmatprep.subr.mxu0 0.0
        %1953 = vmatpush2.msra.mxu0 0.0
        %1954 = vmatprep.subr.mxu0 0.0
        %1955 = vmatpush2.msra.mxu0 0.0
        %1956 = vmatprep.subr.mxu0 0.0
        %1957 = vmatpush2.msra.mxu0 0.0
        %1958 = vmatprep.subr.mxu0 0.0
        %1959 = vmatpush2.msra.mxu0 0.0
        %1960 = vmatprep.subr.mxu0 0.0
        %1961 = vmatpush2.msra.mxu0 0.0
        %1962 = vmatprep.mubr.f32.mxu0 0.0
        %1963 = vmatmul.mubr.f32.gmra.mxu0 %v1606
        %v1964 = vpop.f32.mrf.mxu0
        %v1965 = vadd.f32 0.0, %v1964
        %v1966 = vpop.f32.mrf.mxu0
        %v1967 = vadd.f32 0.0, %v1966
        %1968 = vmatprep.mubr.f32.mxu0 0.0
        %1969 = vmatmul.mubr.f32.gmra.mxu0 %v1609
        %v1970 = vpop.f32.mrf.mxu0
        %v1971 = vadd.f32 0.0, %v1970
        %v1972 = vpop.f32.mrf.mxu0
        %v1973 = vadd.f32 0.0, %v1972
        %1974 = vmatprep.mubr.f32.mxu0 0.0
        %1975 = vmatmul.mubr.f32.gmra.mxu0 %v1612
        %v1976 = vpop.f32.mrf.mxu0
        %v1977 = vadd.f32 0.0, %v1976
        %v1978 = vpop.f32.mrf.mxu0
        %v1979 = vadd.f32 0.0, %v1978
        %1980 = vmatprep.mubr.f32.mxu0 0.0
        %1981 = vmatmul.mubr.f32.gmra.mxu0 %v1615
        %v1982 = vpop.f32.mrf.mxu0
        %v1983 = vadd.f32 0.0, %v1982
        %v1984 = vpop.f32.mrf.mxu0
        %v1985 = vadd.f32 0.0, %v1984
        %1986 = vmatprep.mubr.f32.mxu0 0.0
        %1987 = vmatmul.mubr.f32.gmra.mxu0 %v1618
        %v1988 = vpop.f32.mrf.mxu0
        %v1989 = vadd.f32 0.0, %v1988
        %v1990 = vpop.f32.mrf.mxu0
        %v1991 = vadd.f32 0.0, %v1990
        %1992 = vmatprep.mubr.f32.mxu0 0.0
        %1993 = vmatmul.mubr.f32.gmra.mxu0 %v1621
        %v1994 = vpop.f32.mrf.mxu0
        %v1995 = vadd.f32 0.0, %v1994
        %v1996 = vpop.f32.mrf.mxu0
        %v1997 = vadd.f32 0.0, %v1996
        %1998 = vmatprep.mubr.f32.mxu0 0.0
        %1999 = vmatmul.mubr.f32.gmra.mxu0 %v1624
        %v2000 = vpop.f32.mrf.mxu0
        %v2001 = vadd.f32 0.0, %v2000
        %v2002 = vpop.f32.mrf.mxu0
        %v2003 = vadd.f32 0.0, %v2002
        %2004 = vmatprep.mubr.f32.mxu0 0.0
        %2005 = vmatmul.mubr.f32.gmra.mxu0 %v1627
        %v2006 = vpop.f32.mrf.mxu0
        %v2007 = vadd.f32 0.0, %v2006
        %v2008 = vpop.f32.mrf.mxu0
        %v2009 = vadd.f32 0.0, %v2008
        %2010 = vmatprep.mubr.f32.mxu0 0.0
        %2011 = vmatmul.mubr.f32.gmra.mxu0 %v1630
        %v2012 = vpop.f32.mrf.mxu0
        %v2013 = vadd.f32 0.0, %v2012
        %v2014 = vpop.f32.mrf.mxu0
        %v2015 = vadd.f32 0.0, %v2014
        %2016 = vmatprep.mubr.f32.mxu0 0.0
        %2017 = vmatmul.mubr.f32.gmra.mxu0 %v1633
        %v2018 = vpop.f32.mrf.mxu0
        %v2019 = vadd.f32 0.0, %v2018
        %v2020 = vpop.f32.mrf.mxu0
        %v2021 = vadd.f32 0.0, %v2020
        %2022 = vmatprep.mubr.f32.mxu0 0.0
        %2023 = vmatmul.mubr.f32.gmra.mxu0 %v1636
        %v2024 = vpop.f32.mrf.mxu0
        %v2025 = vadd.f32 0.0, %v2024
        %v2026 = vpop.f32.mrf.mxu0
        %v2027 = vadd.f32 0.0, %v2026
        %2028 = vmatprep.mubr.f32.mxu0 0.0
        %2029 = vmatmul.mubr.f32.gmra.mxu0 %v1639
        %v2030 = vpop.f32.mrf.mxu0
        %v2031 = vadd.f32 0.0, %v2030
        %v2032 = vpop.f32.mrf.mxu0
        %v2033 = vadd.f32 0.0, %v2032
        %2034 = vmatprep.mubr.f32.mxu0 0.0
        %2035 = vmatmul.mubr.f32.gmra.mxu0 %v1642
        %v2036 = vpop.f32.mrf.mxu0
        %v2037 = vadd.f32 0.0, %v2036
        %v2038 = vpop.f32.mrf.mxu0
        %v2039 = vadd.f32 0.0, %v2038
        %2040 = vmatprep.mubr.f32.mxu0 0.0
        %2041 = vmatmul.mubr.f32.gmra.mxu0 %v1645
        %v2042 = vpop.f32.mrf.mxu0
        %v2043 = vadd.f32 0.0, %v2042
        %v2044 = vpop.f32.mrf.mxu0
        %v2045 = vadd.f32 0.0, %v2044
        %2046 = vmatprep.mubr.f32.mxu0 0.0
        %2047 = vmatmul.mubr.f32.gmra.mxu0 %v1648
        %v2048 = vpop.f32.mrf.mxu0
        %v2049 = vadd.f32 0.0, %v2048
        %v2050 = vpop.f32.mrf.mxu0
        %v2051 = vadd.f32 0.0, %v2050
        %2052 = vmatprep.mubr.f32.mxu0 0.0
        %2053 = vmatmul.mubr.f32.gmra.mxu0 %v1651
        %v2054 = vpop.f32.mrf.mxu0
        %v2055 = vadd.f32 0.0, %v2054
        %v2056 = vpop.f32.mrf.mxu0
        %v2057 = vadd.f32 0.0, %v2056
        %2058 = vmatprep.mubr.f32.mxu0 0.0
        %2059 = vmatmul.mubr.f32.gmra.mxu0 %v1654
        %v2060 = vpop.f32.mrf.mxu0
        %v2061 = vadd.f32 0.0, %v2060
        %v2062 = vpop.f32.mrf.mxu0
        %v2063 = vadd.f32 0.0, %v2062
        %2064 = vmatprep.mubr.f32.mxu0 0.0
        %2065 = vmatmul.mubr.f32.gmra.mxu0 %v1657
        %v2066 = vpop.f32.mrf.mxu0
        %v2067 = vadd.f32 0.0, %v2066
        %v2068 = vpop.f32.mrf.mxu0
        %v2069 = vadd.f32 0.0, %v2068
        %2070 = vmatprep.mubr.f32.mxu0 0.0
        %2071 = vmatmul.mubr.f32.gmra.mxu0 %v1660
        %v2072 = vpop.f32.mrf.mxu0
        %v2073 = vadd.f32 0.0, %v2072
        %v2074 = vpop.f32.mrf.mxu0
        %v2075 = vadd.f32 0.0, %v2074
        %2076 = vmatprep.mubr.f32.mxu0 0.0
        %2077 = vmatmul.mubr.f32.gmra.mxu0 %v1663
        %v2078 = vpop.f32.mrf.mxu0
        %v2079 = vadd.f32 0.0, %v2078
        %v2080 = vpop.f32.mrf.mxu0
        %v2081 = vadd.f32 0.0, %v2080
        %2082 = vmatprep.mubr.f32.mxu0 0.0
        %2083 = vmatmul.mubr.f32.gmra.mxu0 %v1666
        %v2084 = vpop.f32.mrf.mxu0
        %v2085 = vadd.f32 0.0, %v2084
        %v2086 = vpop.f32.mrf.mxu0
        %v2087 = vadd.f32 0.0, %v2086
        %2088 = vmatprep.mubr.f32.mxu0 0.0
        %2089 = vmatmul.mubr.f32.gmra.mxu0 %v1669
        %v2090 = vpop.f32.mrf.mxu0
        %v2091 = vadd.f32 0.0, %v2090
        %v2092 = vpop.f32.mrf.mxu0
        %v2093 = vadd.f32 0.0, %v2092
        %2094 = vmatprep.mubr.f32.mxu0 0.0
        %2095 = vmatmul.mubr.f32.gmra.mxu0 %v1672
        %v2096 = vpop.f32.mrf.mxu0
        %v2097 = vadd.f32 0.0, %v2096
        %v2098 = vpop.f32.mrf.mxu0
        %v2099 = vadd.f32 0.0, %v2098
        %2100 = vmatprep.mubr.f32.mxu0 0.0
        %2101 = vmatmul.mubr.f32.gmra.mxu0 %v1675
        %v2102 = vpop.f32.mrf.mxu0
        %v2103 = vadd.f32 0.0, %v2102
        %v2104 = vpop.f32.mrf.mxu0
        %v2105 = vadd.f32 0.0, %v2104
        %2106 = vdwg.mxu0
        %v2107 = vadd.f32 %v1212, %v1756
        %v2108 = vadd.f32 %v1214, %v1758
        %v2109 = vadd.f32 %v1421, %v1965
        %v2110 = vadd.f32 %v1423, %v1967
        %v2111 = vadd.f32 %v1218, %v1762
        %v2112 = vadd.f32 %v1220, %v1764
        %v2113 = vadd.f32 %v1427, %v1971
        %v2114 = vadd.f32 %v1429, %v1973
        %v2115 = vadd.f32 %v1224, %v1768
        %v2116 = vadd.f32 %v1226, %v1770
        %v2117 = vadd.f32 %v1433, %v1977
        %v2118 = vadd.f32 %v1435, %v1979
        %v2119 = vadd.f32 %v1230, %v1774
        %v2120 = vadd.f32 %v1232, %v1776
        %v2121 = vadd.f32 %v1439, %v1983
        %v2122 = vadd.f32 %v1441, %v1985
        %v2123 = vadd.f32 %v1236, %v1780
        %v2124 = vadd.f32 %v1238, %v1782
        %v2125 = vadd.f32 %v1445, %v1989
        %v2126 = vadd.f32 %v1447, %v1991
        %v2127 = vadd.f32 %v1242, %v1786
        %v2128 = vadd.f32 %v1244, %v1788
        %v2129 = vadd.f32 %v1451, %v1995
        %v2130 = vadd.f32 %v1453, %v1997
        %v2131 = vadd.f32 %v1248, %v1792
        %v2132 = vadd.f32 %v1250, %v1794
        %v2133 = vadd.f32 %v1457, %v2001
        %v2134 = vadd.f32 %v1459, %v2003
        %v2135 = vadd.f32 %v1254, %v1798
        %v2136 = vadd.f32 %v1256, %v1800
        %v2137 = vadd.f32 %v1463, %v2007
        %v2138 = vadd.f32 %v1465, %v2009
        %v2139 = vadd.f32 %v1260, %v1804
        %v2140 = vadd.f32 %v1262, %v1806
        %v2141 = vadd.f32 %v1469, %v2013
        %v2142 = vadd.f32 %v1471, %v2015
        %v2143 = vadd.f32 %v1266, %v1810
        %v2144 = vadd.f32 %v1268, %v1812
        %v2145 = vadd.f32 %v1475, %v2019
        %v2146 = vadd.f32 %v1477, %v2021
        %v2147 = vadd.f32 %v1272, %v1816
        %v2148 = vadd.f32 %v1274, %v1818
        %v2149 = vadd.f32 %v1481, %v2025
        %v2150 = vadd.f32 %v1483, %v2027
        %v2151 = vadd.f32 %v1278, %v1822
        %v2152 = vadd.f32 %v1280, %v1824
        %v2153 = vadd.f32 %v1487, %v2031
        %v2154 = vadd.f32 %v1489, %v2033
        %v2155 = vadd.f32 %v1284, %v1828
        %v2156 = vadd.f32 %v1286, %v1830
        %v2157 = vadd.f32 %v1493, %v2037
        %v2158 = vadd.f32 %v1495, %v2039
        %v2159 = vadd.f32 %v1290, %v1834
        %v2160 = vadd.f32 %v1292, %v1836
        %v2161 = vadd.f32 %v1499, %v2043
        %v2162 = vadd.f32 %v1501, %v2045
        %v2163 = vadd.f32 %v1296, %v1840
        %v2164 = vadd.f32 %v1298, %v1842
        %v2165 = vadd.f32 %v1505, %v2049
        %v2166 = vadd.f32 %v1507, %v2051
        %v2167 = vadd.f32 %v1302, %v1846
        %v2168 = vadd.f32 %v1304, %v1848
        %v2169 = vadd.f32 %v1511, %v2055
        %v2170 = vadd.f32 %v1513, %v2057
        %v2171 = vadd.f32 %v1308, %v1852
        %v2172 = vadd.f32 %v1310, %v1854
        %v2173 = vadd.f32 %v1517, %v2061
        %v2174 = vadd.f32 %v1519, %v2063
        %v2175 = vadd.f32 %v1314, %v1858
        %v2176 = vadd.f32 %v1316, %v1860
        %v2177 = vadd.f32 %v1523, %v2067
        %v2178 = vadd.f32 %v1525, %v2069
        %v2179 = vadd.f32 %v1320, %v1864
        %v2180 = vadd.f32 %v1322, %v1866
        %v2181 = vadd.f32 %v1529, %v2073
        %v2182 = vadd.f32 %v1531, %v2075
        %v2183 = vadd.f32 %v1326, %v1870
        %v2184 = vadd.f32 %v1328, %v1872
        %v2185 = vadd.f32 %v1535, %v2079
        %v2186 = vadd.f32 %v1537, %v2081
        %v2187 = vadd.f32 %v1332, %v1876
        %v2188 = vadd.f32 %v1334, %v1878
        %v2189 = vadd.f32 %v1541, %v2085
        %v2190 = vadd.f32 %v1543, %v2087
        %v2191 = vadd.f32 %v1338, %v1882
        %v2192 = vadd.f32 %v1340, %v1884
        %v2193 = vadd.f32 %v1547, %v2091
        %v2194 = vadd.f32 %v1549, %v2093
        %v2195 = vadd.f32 %v1344, %v1888
        %v2196 = vadd.f32 %v1346, %v1890
        %v2197 = vadd.f32 %v1553, %v2097
        %v2198 = vadd.f32 %v1555, %v2099
        %v2199 = vadd.f32 %v1350, %v1894
        %v2200 = vadd.f32 %v1352, %v1896
        %v2201 = vadd.f32 %v1559, %v2103
        %v2202 = vadd.f32 %v1561, %v2105
        %s2203 = scalar_lea.vmem %s441, 24 [#allocation3]
        %v2204 = vld [vmem:[%s2203] sm:$0xff]
        %v2205 = vld [vmem:[%s2203 + $0x8] sm:$0xff]
        %v2206 = vld [vmem:[%s2203 + $0x10] sm:$0xff]
        %v2207 = vld [vmem:[%s2203 + $0x18] sm:$0xff]
        %v2208 = vld [vmem:[%s2203 + $0x20] sm:$0xff]
        %v2209 = vld [vmem:[%s2203 + $0x28] sm:$0xff]
        %v2210 = vld [vmem:[%s2203 + $0x30] sm:$0xff]
        %v2211 = vld [vmem:[%s2203 + $0x38] sm:$0xff]
        %v2212 = vld [vmem:[%s2203 + $0x40] sm:$0xff]
        %v2213 = vld [vmem:[%s2203 + $0x48] sm:$0xff]
        %v2214 = vld [vmem:[%s2203 + $0x50] sm:$0xff]
        %v2215 = vld [vmem:[%s2203 + $0x58] sm:$0xff]
        %v2216 = vld [vmem:[%s2203 + $0x60] sm:$0xff]
        %v2217 = vld [vmem:[%s2203 + $0x68] sm:$0xff]
        %v2218 = vld [vmem:[%s2203 + $0x70] sm:$0xff]
        %v2219 = vld [vmem:[%s2203 + $0x78] sm:$0xff]
        %v2220 = vld [vmem:[%s2203 + $0x80] sm:$0xff]
        %v2221 = vld [vmem:[%s2203 + $0x88] sm:$0xff]
        %v2222 = vld [vmem:[%s2203 + $0x90] sm:$0xff]
        %v2223 = vld [vmem:[%s2203 + $0x98] sm:$0xff]
        %v2224 = vld [vmem:[%s2203 + $0xa0] sm:$0xff]
        %v2225 = vld [vmem:[%s2203 + $0xa8] sm:$0xff]
        %v2226 = vld [vmem:[%s2203 + $0xb0] sm:$0xff]
        %v2227 = vld [vmem:[%s2203 + $0xb8] sm:$0xff]
        %s2228 = scalar_lea.vmem %s1, 384
        %v2229 = vld [vmem:[%s2228] sm:$0xff]
        %v2230 = vld [vmem:[%s2228 + $0x8] sm:$0xff]
        %v2231 = vld [vmem:[%s2228 + $0x10] sm:$0xff]
        %v2232 = vld [vmem:[%s2228 + $0x18] sm:$0xff]
        %v2233 = vld [vmem:[%s2228 + $0x20] sm:$0xff]
        %v2234 = vld [vmem:[%s2228 + $0x28] sm:$0xff]
        %v2235 = vld [vmem:[%s2228 + $0x30] sm:$0xff]
        %v2236 = vld [vmem:[%s2228 + $0x38] sm:$0xff]
        %v2237 = vld [vmem:[%s2228 + $0x40] sm:$0xff]
        %v2238 = vld [vmem:[%s2228 + $0x48] sm:$0xff]
        %v2239 = vld [vmem:[%s2228 + $0x50] sm:$0xff]
        %v2240 = vld [vmem:[%s2228 + $0x58] sm:$0xff]
        %v2241 = vld [vmem:[%s2228 + $0x60] sm:$0xf]
        %v2242 = vld [vmem:[%s2228 + $0x68] sm:$0xf]
        %v2243 = vld [vmem:[%s2228 + $0x70] sm:$0xf]
        %v2244 = vld [vmem:[%s2228 + $0x78] sm:$0xf]
        %v2246 = vsel %vm557, %v2204, 0
        %v2249 = vsel %vm557, %v2205, 0
        %v2252 = vsel %vm557, %v2206, 0
        %v2255 = vsel %vm557, %v2207, 0
        %v2258 = vsel %vm557, %v2208, 0
        %v2261 = vsel %vm557, %v2209, 0
        %v2264 = vsel %vm557, %v2210, 0
        %v2267 = vsel %vm557, %v2211, 0
        %v2270 = vsel %vm557, %v2212, 0
        %v2273 = vsel %vm557, %v2213, 0
        %v2276 = vsel %vm557, %v2214, 0
        %v2279 = vsel %vm557, %v2215, 0
        %v2282 = vsel %vm557, %v2216, 0
        %v2285 = vsel %vm557, %v2217, 0
        %v2288 = vsel %vm557, %v2218, 0
        %v2291 = vsel %vm557, %v2219, 0
        %v2294 = vsel %vm557, %v2220, 0
        %v2297 = vsel %vm557, %v2221, 0
        %v2300 = vsel %vm557, %v2222, 0
        %v2303 = vsel %vm557, %v2223, 0
        %v2306 = vsel %vm557, %v2224, 0
        %v2309 = vsel %vm557, %v2225, 0
        %v2312 = vsel %vm557, %v2226, 0
        %v2315 = vsel %vm557, %v2227, 0
        %v2318 = vsel %vm630, %v2241, 0
        %v2321 = vsel %vm630, %v2242, 0
        %v2324 = vsel %vm630, %v2243, 0
        %v2327 = vsel %vm630, %v2244, 0
        %2329 = vmatprep.subr.mxu0 0.0
        %2330 = vmatpush1.msra.mxu0 0.0
        %2331 = vmatprep.subr.mxu0 0.0
        %2332 = vmatpush1.msra.mxu0 0.0
        %2333 = vmatprep.subr.mxu0 0.0
        %2334 = vmatpush1.msra.mxu0 0.0
        %2335 = vmatprep.subr.mxu0 0.0
        %2336 = vmatpush1.msra.mxu0 0.0
        %2337 = vmatprep.subr.mxu0 0.0
        %2338 = vmatpush1.msra.mxu0 0.0
        %2339 = vmatprep.subr.mxu0 0.0
        %2340 = vmatpush1.msra.mxu0 0.0
        %2341 = vmatprep.subr.mxu0 0.0
        %2342 = vmatpush1.msra.mxu0 0.0
        %2343 = vmatprep.subr.mxu0 0.0
        %2344 = vmatpush1.msra.mxu0 0.0
        %2345 = vmatprep.subr.mxu0 0.0
        %2346 = vmatpush1.msra.mxu0 0.0
        %2347 = vmatprep.subr.mxu0 0.0
        %2348 = vmatpush1.msra.mxu0 0.0
        %2349 = vmatprep.subr.mxu0 0.0
        %2350 = vmatpush1.msra.mxu0 0.0
        %2351 = vmatprep.subr.mxu0 0.0
        %2352 = vmatpush1.msra.mxu0 0.0
        %2353 = vmatprep.subr.mxu0 %v2321
        %2354 = vmatpush1.msra.mxu0 %v2318
        %2355 = vmatprep.subr.mxu0 %v2238
        %2356 = vmatpush1.msra.mxu0 %v2237
        %2357 = vmatprep.subr.mxu0 %v2234
        %2358 = vmatpush1.msra.mxu0 %v2233
        %2359 = vmatprep.subr.mxu0 %v2230
        %2360 = vmatpush1.msra.mxu0 %v2229
        %2361 = vmatprep.subr.mxu0 0.0
        %2362 = vmatpush2.msra.mxu0 0.0
        %2363 = vmatprep.subr.mxu0 0.0
        %2364 = vmatpush2.msra.mxu0 0.0
        %2365 = vmatprep.subr.mxu0 0.0
        %2366 = vmatpush2.msra.mxu0 0.0
        %2367 = vmatprep.subr.mxu0 0.0
        %2368 = vmatpush2.msra.mxu0 0.0
        %2369 = vmatprep.subr.mxu0 0.0
        %2370 = vmatpush2.msra.mxu0 0.0
        %2371 = vmatprep.subr.mxu0 0.0
        %2372 = vmatpush2.msra.mxu0 0.0
        %2373 = vmatprep.subr.mxu0 0.0
        %2374 = vmatpush2.msra.mxu0 0.0
        %2375 = vmatprep.subr.mxu0 0.0
        %2376 = vmatpush2.msra.mxu0 0.0
        %2377 = vmatprep.subr.mxu0 0.0
        %2378 = vmatpush2.msra.mxu0 0.0
        %2379 = vmatprep.subr.mxu0 0.0
        %2380 = vmatpush2.msra.mxu0 0.0
        %2381 = vmatprep.subr.mxu0 0.0
        %2382 = vmatpush2.msra.mxu0 0.0
        %2383 = vmatprep.subr.mxu0 0.0
        %2384 = vmatpush2.msra.mxu0 0.0
        %2385 = vmatprep.subr.mxu0 0.0
        %2386 = vmatpush2.msra.mxu0 0.0
        %2387 = vmatprep.subr.mxu0 0.0
        %2388 = vmatpush2.msra.mxu0 0.0
        %2389 = vmatprep.subr.mxu0 0.0
        %2390 = vmatpush2.msra.mxu0 0.0
        %2391 = vmatprep.subr.mxu0 0.0
        %2392 = vmatpush2.msra.mxu0 0.0
        %2393 = vmatprep.mubr.f32.mxu0 0.0
        %2394 = vmatmul.mubr.f32.gmra.mxu0 %v2246
        %v2395 = vpop.f32.mrf.mxu0
        %v2396 = vadd.f32 0.0, %v2395
        %v2397 = vpop.f32.mrf.mxu0
        %v2398 = vadd.f32 0.0, %v2397
        %2399 = vmatprep.mubr.f32.mxu0 0.0
        %2400 = vmatmul.mubr.f32.gmra.mxu0 %v2249
        %v2401 = vpop.f32.mrf.mxu0
        %v2402 = vadd.f32 0.0, %v2401
        %v2403 = vpop.f32.mrf.mxu0
        %v2404 = vadd.f32 0.0, %v2403
        %2405 = vmatprep.mubr.f32.mxu0 0.0
        %2406 = vmatmul.mubr.f32.gmra.mxu0 %v2252
        %v2407 = vpop.f32.mrf.mxu0
        %v2408 = vadd.f32 0.0, %v2407
        %v2409 = vpop.f32.mrf.mxu0
        %v2410 = vadd.f32 0.0, %v2409
        %2411 = vmatprep.mubr.f32.mxu0 0.0
        %2412 = vmatmul.mubr.f32.gmra.mxu0 %v2255
        %v2413 = vpop.f32.mrf.mxu0
        %v2414 = vadd.f32 0.0, %v2413
        %v2415 = vpop.f32.mrf.mxu0
        %v2416 = vadd.f32 0.0, %v2415
        %2417 = vmatprep.mubr.f32.mxu0 0.0
        %2418 = vmatmul.mubr.f32.gmra.mxu0 %v2258
        %v2419 = vpop.f32.mrf.mxu0
        %v2420 = vadd.f32 0.0, %v2419
        %v2421 = vpop.f32.mrf.mxu0
        %v2422 = vadd.f32 0.0, %v2421
        %2423 = vmatprep.mubr.f32.mxu0 0.0
        %2424 = vmatmul.mubr.f32.gmra.mxu0 %v2261
        %v2425 = vpop.f32.mrf.mxu0
        %v2426 = vadd.f32 0.0, %v2425
        %v2427 = vpop.f32.mrf.mxu0
        %v2428 = vadd.f32 0.0, %v2427
        %2429 = vmatprep.mubr.f32.mxu0 0.0
        %2430 = vmatmul.mubr.f32.gmra.mxu0 %v2264
        %v2431 = vpop.f32.mrf.mxu0
        %v2432 = vadd.f32 0.0, %v2431
        %v2433 = vpop.f32.mrf.mxu0
        %v2434 = vadd.f32 0.0, %v2433
        %2435 = vmatprep.mubr.f32.mxu0 0.0
        %2436 = vmatmul.mubr.f32.gmra.mxu0 %v2267
        %v2437 = vpop.f32.mrf.mxu0
        %v2438 = vadd.f32 0.0, %v2437
        %v2439 = vpop.f32.mrf.mxu0
        %v2440 = vadd.f32 0.0, %v2439
        %2441 = vmatprep.mubr.f32.mxu0 0.0
        %2442 = vmatmul.mubr.f32.gmra.mxu0 %v2270
        %v2443 = vpop.f32.mrf.mxu0
        %v2444 = vadd.f32 0.0, %v2443
        %v2445 = vpop.f32.mrf.mxu0
        %v2446 = vadd.f32 0.0, %v2445
        %2447 = vmatprep.mubr.f32.mxu0 0.0
        %2448 = vmatmul.mubr.f32.gmra.mxu0 %v2273
        %v2449 = vpop.f32.mrf.mxu0
        %v2450 = vadd.f32 0.0, %v2449
        %v2451 = vpop.f32.mrf.mxu0
        %v2452 = vadd.f32 0.0, %v2451
        %2453 = vmatprep.mubr.f32.mxu0 0.0
        %2454 = vmatmul.mubr.f32.gmra.mxu0 %v2276
        %v2455 = vpop.f32.mrf.mxu0
        %v2456 = vadd.f32 0.0, %v2455
        %v2457 = vpop.f32.mrf.mxu0
        %v2458 = vadd.f32 0.0, %v2457
        %2459 = vmatprep.mubr.f32.mxu0 0.0
        %2460 = vmatmul.mubr.f32.gmra.mxu0 %v2279
        %v2461 = vpop.f32.mrf.mxu0
        %v2462 = vadd.f32 0.0, %v2461
        %v2463 = vpop.f32.mrf.mxu0
        %v2464 = vadd.f32 0.0, %v2463
        %2465 = vmatprep.mubr.f32.mxu0 0.0
        %2466 = vmatmul.mubr.f32.gmra.mxu0 %v2282
        %v2467 = vpop.f32.mrf.mxu0
        %v2468 = vadd.f32 0.0, %v2467
        %v2469 = vpop.f32.mrf.mxu0
        %v2470 = vadd.f32 0.0, %v2469
        %2471 = vmatprep.mubr.f32.mxu0 0.0
        %2472 = vmatmul.mubr.f32.gmra.mxu0 %v2285
        %v2473 = vpop.f32.mrf.mxu0
        %v2474 = vadd.f32 0.0, %v2473
        %v2475 = vpop.f32.mrf.mxu0
        %v2476 = vadd.f32 0.0, %v2475
        %2477 = vmatprep.mubr.f32.mxu0 0.0
        %2478 = vmatmul.mubr.f32.gmra.mxu0 %v2288
        %v2479 = vpop.f32.mrf.mxu0
        %v2480 = vadd.f32 0.0, %v2479
        %v2481 = vpop.f32.mrf.mxu0
        %v2482 = vadd.f32 0.0, %v2481
        %2483 = vmatprep.mubr.f32.mxu0 0.0
        %2484 = vmatmul.mubr.f32.gmra.mxu0 %v2291
        %v2485 = vpop.f32.mrf.mxu0
        %v2486 = vadd.f32 0.0, %v2485
        %v2487 = vpop.f32.mrf.mxu0
        %v2488 = vadd.f32 0.0, %v2487
        %2489 = vmatprep.mubr.f32.mxu0 0.0
        %2490 = vmatmul.mubr.f32.gmra.mxu0 %v2294
        %v2491 = vpop.f32.mrf.mxu0
        %v2492 = vadd.f32 0.0, %v2491
        %v2493 = vpop.f32.mrf.mxu0
        %v2494 = vadd.f32 0.0, %v2493
        %2495 = vmatprep.mubr.f32.mxu0 0.0
        %2496 = vmatmul.mubr.f32.gmra.mxu0 %v2297
        %v2497 = vpop.f32.mrf.mxu0
        %v2498 = vadd.f32 0.0, %v2497
        %v2499 = vpop.f32.mrf.mxu0
        %v2500 = vadd.f32 0.0, %v2499
        %2501 = vmatprep.mubr.f32.mxu0 0.0
        %2502 = vmatmul.mubr.f32.gmra.mxu0 %v2300
        %v2503 = vpop.f32.mrf.mxu0
        %v2504 = vadd.f32 0.0, %v2503
        %v2505 = vpop.f32.mrf.mxu0
        %v2506 = vadd.f32 0.0, %v2505
        %2507 = vmatprep.mubr.f32.mxu0 0.0
        %2508 = vmatmul.mubr.f32.gmra.mxu0 %v2303
        %v2509 = vpop.f32.mrf.mxu0
        %v2510 = vadd.f32 0.0, %v2509
        %v2511 = vpop.f32.mrf.mxu0
        %v2512 = vadd.f32 0.0, %v2511
        %2513 = vmatprep.mubr.f32.mxu0 0.0
        %2514 = vmatmul.mubr.f32.gmra.mxu0 %v2306
        %v2515 = vpop.f32.mrf.mxu0
        %v2516 = vadd.f32 0.0, %v2515
        %v2517 = vpop.f32.mrf.mxu0
        %v2518 = vadd.f32 0.0, %v2517
        %2519 = vmatprep.mubr.f32.mxu0 0.0
        %2520 = vmatmul.mubr.f32.gmra.mxu0 %v2309
        %v2521 = vpop.f32.mrf.mxu0
        %v2522 = vadd.f32 0.0, %v2521
        %v2523 = vpop.f32.mrf.mxu0
        %v2524 = vadd.f32 0.0, %v2523
        %2525 = vmatprep.mubr.f32.mxu0 0.0
        %2526 = vmatmul.mubr.f32.gmra.mxu0 %v2312
        %v2527 = vpop.f32.mrf.mxu0
        %v2528 = vadd.f32 0.0, %v2527
        %v2529 = vpop.f32.mrf.mxu0
        %v2530 = vadd.f32 0.0, %v2529
        %2531 = vmatprep.mubr.f32.mxu0 0.0
        %2532 = vmatmul.mubr.f32.gmra.mxu0 %v2315
        %v2533 = vpop.f32.mrf.mxu0
        %v2534 = vadd.f32 0.0, %v2533
        %v2535 = vpop.f32.mrf.mxu0
        %v2536 = vadd.f32 0.0, %v2535
        %2537 = vdwg.mxu0
        %2538 = vmatprep.subr.mxu0 0.0
        %2539 = vmatpush1.msra.mxu0 0.0
        %2540 = vmatprep.subr.mxu0 0.0
        %2541 = vmatpush1.msra.mxu0 0.0
        %2542 = vmatprep.subr.mxu0 0.0
        %2543 = vmatpush1.msra.mxu0 0.0
        %2544 = vmatprep.subr.mxu0 0.0
        %2545 = vmatpush1.msra.mxu0 0.0
        %2546 = vmatprep.subr.mxu0 0.0
        %2547 = vmatpush1.msra.mxu0 0.0
        %2548 = vmatprep.subr.mxu0 0.0
        %2549 = vmatpush1.msra.mxu0 0.0
        %2550 = vmatprep.subr.mxu0 0.0
        %2551 = vmatpush1.msra.mxu0 0.0
        %2552 = vmatprep.subr.mxu0 0.0
        %2553 = vmatpush1.msra.mxu0 0.0
        %2554 = vmatprep.subr.mxu0 0.0
        %2555 = vmatpush1.msra.mxu0 0.0
        %2556 = vmatprep.subr.mxu0 0.0
        %2557 = vmatpush1.msra.mxu0 0.0
        %2558 = vmatprep.subr.mxu0 0.0
        %2559 = vmatpush1.msra.mxu0 0.0
        %2560 = vmatprep.subr.mxu0 0.0
        %2561 = vmatpush1.msra.mxu0 0.0
        %2562 = vmatprep.subr.mxu0 %v2327
        %2563 = vmatpush1.msra.mxu0 %v2324
        %2564 = vmatprep.subr.mxu0 %v2240
        %2565 = vmatpush1.msra.mxu0 %v2239
        %2566 = vmatprep.subr.mxu0 %v2236
        %2567 = vmatpush1.msra.mxu0 %v2235
        %2568 = vmatprep.subr.mxu0 %v2232
        %2569 = vmatpush1.msra.mxu0 %v2231
        %2570 = vmatprep.subr.mxu0 0.0
        %2571 = vmatpush2.msra.mxu0 0.0
        %2572 = vmatprep.subr.mxu0 0.0
        %2573 = vmatpush2.msra.mxu0 0.0
        %2574 = vmatprep.subr.mxu0 0.0
        %2575 = vmatpush2.msra.mxu0 0.0
        %2576 = vmatprep.subr.mxu0 0.0
        %2577 = vmatpush2.msra.mxu0 0.0
        %2578 = vmatprep.subr.mxu0 0.0
        %2579 = vmatpush2.msra.mxu0 0.0
        %2580 = vmatprep.subr.mxu0 0.0
        %2581 = vmatpush2.msra.mxu0 0.0
        %2582 = vmatprep.subr.mxu0 0.0
        %2583 = vmatpush2.msra.mxu0 0.0
        %2584 = vmatprep.subr.mxu0 0.0
        %2585 = vmatpush2.msra.mxu0 0.0
        %2586 = vmatprep.subr.mxu0 0.0
        %2587 = vmatpush2.msra.mxu0 0.0
        %2588 = vmatprep.subr.mxu0 0.0
        %2589 = vmatpush2.msra.mxu0 0.0
        %2590 = vmatprep.subr.mxu0 0.0
        %2591 = vmatpush2.msra.mxu0 0.0
        %2592 = vmatprep.subr.mxu0 0.0
        %2593 = vmatpush2.msra.mxu0 0.0
        %2594 = vmatprep.subr.mxu0 0.0
        %2595 = vmatpush2.msra.mxu0 0.0
        %2596 = vmatprep.subr.mxu0 0.0
        %2597 = vmatpush2.msra.mxu0 0.0
        %2598 = vmatprep.subr.mxu0 0.0
        %2599 = vmatpush2.msra.mxu0 0.0
        %2600 = vmatprep.subr.mxu0 0.0
        %2601 = vmatpush2.msra.mxu0 0.0
        %2602 = vmatprep.mubr.f32.mxu0 0.0
        %2603 = vmatmul.mubr.f32.gmra.mxu0 %v2246
        %v2604 = vpop.f32.mrf.mxu0
        %v2605 = vadd.f32 0.0, %v2604
        %v2606 = vpop.f32.mrf.mxu0
        %v2607 = vadd.f32 0.0, %v2606
        %2608 = vmatprep.mubr.f32.mxu0 0.0
        %2609 = vmatmul.mubr.f32.gmra.mxu0 %v2249
        %v2610 = vpop.f32.mrf.mxu0
        %v2611 = vadd.f32 0.0, %v2610
        %v2612 = vpop.f32.mrf.mxu0
        %v2613 = vadd.f32 0.0, %v2612
        %2614 = vmatprep.mubr.f32.mxu0 0.0
        %2615 = vmatmul.mubr.f32.gmra.mxu0 %v2252
        %v2616 = vpop.f32.mrf.mxu0
        %v2617 = vadd.f32 0.0, %v2616
        %v2618 = vpop.f32.mrf.mxu0
        %v2619 = vadd.f32 0.0, %v2618
        %2620 = vmatprep.mubr.f32.mxu0 0.0
        %2621 = vmatmul.mubr.f32.gmra.mxu0 %v2255
        %v2622 = vpop.f32.mrf.mxu0
        %v2623 = vadd.f32 0.0, %v2622
        %v2624 = vpop.f32.mrf.mxu0
        %v2625 = vadd.f32 0.0, %v2624
        %2626 = vmatprep.mubr.f32.mxu0 0.0
        %2627 = vmatmul.mubr.f32.gmra.mxu0 %v2258
        %v2628 = vpop.f32.mrf.mxu0
        %v2629 = vadd.f32 0.0, %v2628
        %v2630 = vpop.f32.mrf.mxu0
        %v2631 = vadd.f32 0.0, %v2630
        %2632 = vmatprep.mubr.f32.mxu0 0.0
        %2633 = vmatmul.mubr.f32.gmra.mxu0 %v2261
        %v2634 = vpop.f32.mrf.mxu0
        %v2635 = vadd.f32 0.0, %v2634
        %v2636 = vpop.f32.mrf.mxu0
        %v2637 = vadd.f32 0.0, %v2636
        %2638 = vmatprep.mubr.f32.mxu0 0.0
        %2639 = vmatmul.mubr.f32.gmra.mxu0 %v2264
        %v2640 = vpop.f32.mrf.mxu0
        %v2641 = vadd.f32 0.0, %v2640
        %v2642 = vpop.f32.mrf.mxu0
        %v2643 = vadd.f32 0.0, %v2642
        %2644 = vmatprep.mubr.f32.mxu0 0.0
        %2645 = vmatmul.mubr.f32.gmra.mxu0 %v2267
        %v2646 = vpop.f32.mrf.mxu0
        %v2647 = vadd.f32 0.0, %v2646
        %v2648 = vpop.f32.mrf.mxu0
        %v2649 = vadd.f32 0.0, %v2648
        %2650 = vmatprep.mubr.f32.mxu0 0.0
        %2651 = vmatmul.mubr.f32.gmra.mxu0 %v2270
        %v2652 = vpop.f32.mrf.mxu0
        %v2653 = vadd.f32 0.0, %v2652
        %v2654 = vpop.f32.mrf.mxu0
        %v2655 = vadd.f32 0.0, %v2654
        %2656 = vmatprep.mubr.f32.mxu0 0.0
        %2657 = vmatmul.mubr.f32.gmra.mxu0 %v2273
        %v2658 = vpop.f32.mrf.mxu0
        %v2659 = vadd.f32 0.0, %v2658
        %v2660 = vpop.f32.mrf.mxu0
        %v2661 = vadd.f32 0.0, %v2660
        %2662 = vmatprep.mubr.f32.mxu0 0.0
        %2663 = vmatmul.mubr.f32.gmra.mxu0 %v2276
        %v2664 = vpop.f32.mrf.mxu0
        %v2665 = vadd.f32 0.0, %v2664
        %v2666 = vpop.f32.mrf.mxu0
        %v2667 = vadd.f32 0.0, %v2666
        %2668 = vmatprep.mubr.f32.mxu0 0.0
        %2669 = vmatmul.mubr.f32.gmra.mxu0 %v2279
        %v2670 = vpop.f32.mrf.mxu0
        %v2671 = vadd.f32 0.0, %v2670
        %v2672 = vpop.f32.mrf.mxu0
        %v2673 = vadd.f32 0.0, %v2672
        %2674 = vmatprep.mubr.f32.mxu0 0.0
        %2675 = vmatmul.mubr.f32.gmra.mxu0 %v2282
        %v2676 = vpop.f32.mrf.mxu0
        %v2677 = vadd.f32 0.0, %v2676
        %v2678 = vpop.f32.mrf.mxu0
        %v2679 = vadd.f32 0.0, %v2678
        %2680 = vmatprep.mubr.f32.mxu0 0.0
        %2681 = vmatmul.mubr.f32.gmra.mxu0 %v2285
        %v2682 = vpop.f32.mrf.mxu0
        %v2683 = vadd.f32 0.0, %v2682
        %v2684 = vpop.f32.mrf.mxu0
        %v2685 = vadd.f32 0.0, %v2684
        %2686 = vmatprep.mubr.f32.mxu0 0.0
        %2687 = vmatmul.mubr.f32.gmra.mxu0 %v2288
        %v2688 = vpop.f32.mrf.mxu0
        %v2689 = vadd.f32 0.0, %v2688
        %v2690 = vpop.f32.mrf.mxu0
        %v2691 = vadd.f32 0.0, %v2690
        %2692 = vmatprep.mubr.f32.mxu0 0.0
        %2693 = vmatmul.mubr.f32.gmra.mxu0 %v2291
        %v2694 = vpop.f32.mrf.mxu0
        %v2695 = vadd.f32 0.0, %v2694
        %v2696 = vpop.f32.mrf.mxu0
        %v2697 = vadd.f32 0.0, %v2696
        %2698 = vmatprep.mubr.f32.mxu0 0.0
        %2699 = vmatmul.mubr.f32.gmra.mxu0 %v2294
        %v2700 = vpop.f32.mrf.mxu0
        %v2701 = vadd.f32 0.0, %v2700
        %v2702 = vpop.f32.mrf.mxu0
        %v2703 = vadd.f32 0.0, %v2702
        %2704 = vmatprep.mubr.f32.mxu0 0.0
        %2705 = vmatmul.mubr.f32.gmra.mxu0 %v2297
        %v2706 = vpop.f32.mrf.mxu0
        %v2707 = vadd.f32 0.0, %v2706
        %v2708 = vpop.f32.mrf.mxu0
        %v2709 = vadd.f32 0.0, %v2708
        %2710 = vmatprep.mubr.f32.mxu0 0.0
        %2711 = vmatmul.mubr.f32.gmra.mxu0 %v2300
        %v2712 = vpop.f32.mrf.mxu0
        %v2713 = vadd.f32 0.0, %v2712
        %v2714 = vpop.f32.mrf.mxu0
        %v2715 = vadd.f32 0.0, %v2714
        %2716 = vmatprep.mubr.f32.mxu0 0.0
        %2717 = vmatmul.mubr.f32.gmra.mxu0 %v2303
        %v2718 = vpop.f32.mrf.mxu0
        %v2719 = vadd.f32 0.0, %v2718
        %v2720 = vpop.f32.mrf.mxu0
        %v2721 = vadd.f32 0.0, %v2720
        %2722 = vmatprep.mubr.f32.mxu0 0.0
        %2723 = vmatmul.mubr.f32.gmra.mxu0 %v2306
        %v2724 = vpop.f32.mrf.mxu0
        %v2725 = vadd.f32 0.0, %v2724
        %v2726 = vpop.f32.mrf.mxu0
        %v2727 = vadd.f32 0.0, %v2726
        %2728 = vmatprep.mubr.f32.mxu0 0.0
        %2729 = vmatmul.mubr.f32.gmra.mxu0 %v2309
        %v2730 = vpop.f32.mrf.mxu0
        %v2731 = vadd.f32 0.0, %v2730
        %v2732 = vpop.f32.mrf.mxu0
        %v2733 = vadd.f32 0.0, %v2732
        %2734 = vmatprep.mubr.f32.mxu0 0.0
        %2735 = vmatmul.mubr.f32.gmra.mxu0 %v2312
        %v2736 = vpop.f32.mrf.mxu0
        %v2737 = vadd.f32 0.0, %v2736
        %v2738 = vpop.f32.mrf.mxu0
        %v2739 = vadd.f32 0.0, %v2738
        %2740 = vmatprep.mubr.f32.mxu0 0.0
        %2741 = vmatmul.mubr.f32.gmra.mxu0 %v2315
        %v2742 = vpop.f32.mrf.mxu0
        %v2743 = vadd.f32 0.0, %v2742
        %v2744 = vpop.f32.mrf.mxu0
        %v2745 = vadd.f32 0.0, %v2744
        %2746 = vdwg.mxu0
        %v2747 = vadd.f32 %v2107, %v2396
        %v2748 = vadd.f32 %v2108, %v2398
        %v2749 = vadd.f32 %v2109, %v2605
        %v2750 = vadd.f32 %v2110, %v2607
        %v2751 = vadd.f32 %v2111, %v2402
        %v2752 = vadd.f32 %v2112, %v2404
        %v2753 = vadd.f32 %v2113, %v2611
        %v2754 = vadd.f32 %v2114, %v2613
        %v2755 = vadd.f32 %v2115, %v2408
        %v2756 = vadd.f32 %v2116, %v2410
        %v2757 = vadd.f32 %v2117, %v2617
        %v2758 = vadd.f32 %v2118, %v2619
        %v2759 = vadd.f32 %v2119, %v2414
        %v2760 = vadd.f32 %v2120, %v2416
        %v2761 = vadd.f32 %v2121, %v2623
        %v2762 = vadd.f32 %v2122, %v2625
        %v2763 = vadd.f32 %v2123, %v2420
        %v2764 = vadd.f32 %v2124, %v2422
        %v2765 = vadd.f32 %v2125, %v2629
        %v2766 = vadd.f32 %v2126, %v2631
        %v2767 = vadd.f32 %v2127, %v2426
        %v2768 = vadd.f32 %v2128, %v2428
        %v2769 = vadd.f32 %v2129, %v2635
        %v2770 = vadd.f32 %v2130, %v2637
        %v2771 = vadd.f32 %v2131, %v2432
        %v2772 = vadd.f32 %v2132, %v2434
        %v2773 = vadd.f32 %v2133, %v2641
        %v2774 = vadd.f32 %v2134, %v2643
        %v2775 = vadd.f32 %v2135, %v2438
        %v2776 = vadd.f32 %v2136, %v2440
        %v2777 = vadd.f32 %v2137, %v2647
        %v2778 = vadd.f32 %v2138, %v2649
        %v2779 = vadd.f32 %v2139, %v2444
        %v2780 = vadd.f32 %v2140, %v2446
        %v2781 = vadd.f32 %v2141, %v2653
        %v2782 = vadd.f32 %v2142, %v2655
        %v2783 = vadd.f32 %v2143, %v2450
        %v2784 = vadd.f32 %v2144, %v2452
        %v2785 = vadd.f32 %v2145, %v2659
        %v2786 = vadd.f32 %v2146, %v2661
        %v2787 = vadd.f32 %v2147, %v2456
        %v2788 = vadd.f32 %v2148, %v2458
        %v2789 = vadd.f32 %v2149, %v2665
        %v2790 = vadd.f32 %v2150, %v2667
        %v2791 = vadd.f32 %v2151, %v2462
        %v2792 = vadd.f32 %v2152, %v2464
        %v2793 = vadd.f32 %v2153, %v2671
        %v2794 = vadd.f32 %v2154, %v2673
        %v2795 = vadd.f32 %v2155, %v2468
        %v2796 = vadd.f32 %v2156, %v2470
        %v2797 = vadd.f32 %v2157, %v2677
        %v2798 = vadd.f32 %v2158, %v2679
        %v2799 = vadd.f32 %v2159, %v2474
        %v2800 = vadd.f32 %v2160, %v2476
        %v2801 = vadd.f32 %v2161, %v2683
        %v2802 = vadd.f32 %v2162, %v2685
        %v2803 = vadd.f32 %v2163, %v2480
        %v2804 = vadd.f32 %v2164, %v2482
        %v2805 = vadd.f32 %v2165, %v2689
        %v2806 = vadd.f32 %v2166, %v2691
        %v2807 = vadd.f32 %v2167, %v2486
        %v2808 = vadd.f32 %v2168, %v2488
        %v2809 = vadd.f32 %v2169, %v2695
        %v2810 = vadd.f32 %v2170, %v2697
        %v2811 = vadd.f32 %v2171, %v2492
        %v2812 = vadd.f32 %v2172, %v2494
        %v2813 = vadd.f32 %v2173, %v2701
        %v2814 = vadd.f32 %v2174, %v2703
        %v2815 = vadd.f32 %v2175, %v2498
        %v2816 = vadd.f32 %v2176, %v2500
        %v2817 = vadd.f32 %v2177, %v2707
        %v2818 = vadd.f32 %v2178, %v2709
        %v2819 = vadd.f32 %v2179, %v2504
        %v2820 = vadd.f32 %v2180, %v2506
        %v2821 = vadd.f32 %v2181, %v2713
        %v2822 = vadd.f32 %v2182, %v2715
        %v2823 = vadd.f32 %v2183, %v2510
        %v2824 = vadd.f32 %v2184, %v2512
        %v2825 = vadd.f32 %v2185, %v2719
        %v2826 = vadd.f32 %v2186, %v2721
        %v2827 = vadd.f32 %v2187, %v2516
        %v2828 = vadd.f32 %v2188, %v2518
        %v2829 = vadd.f32 %v2189, %v2725
        %v2830 = vadd.f32 %v2190, %v2727
        %v2831 = vadd.f32 %v2191, %v2522
        %v2832 = vadd.f32 %v2192, %v2524
        %v2833 = vadd.f32 %v2193, %v2731
        %v2834 = vadd.f32 %v2194, %v2733
        %v2835 = vadd.f32 %v2195, %v2528
        %v2836 = vadd.f32 %v2196, %v2530
        %v2837 = vadd.f32 %v2197, %v2737
        %v2838 = vadd.f32 %v2198, %v2739
        %v2839 = vadd.f32 %v2199, %v2534
        %v2840 = vadd.f32 %v2200, %v2536
        %v2841 = vadd.f32 %v2201, %v2743
        %v2842 = vadd.f32 %v2202, %v2745
        %s2843 = scalar_lea.vmem %s441, 32 [#allocation3]
        %v2844 = vld [vmem:[%s2843] sm:$0xff]
        %v2845 = vld [vmem:[%s2843 + $0x8] sm:$0xff]
        %v2846 = vld [vmem:[%s2843 + $0x10] sm:$0xff]
        %v2847 = vld [vmem:[%s2843 + $0x18] sm:$0xff]
        %v2848 = vld [vmem:[%s2843 + $0x20] sm:$0xff]
        %v2849 = vld [vmem:[%s2843 + $0x28] sm:$0xff]
        %v2850 = vld [vmem:[%s2843 + $0x30] sm:$0xff]
        %v2851 = vld [vmem:[%s2843 + $0x38] sm:$0xff]
        %v2852 = vld [vmem:[%s2843 + $0x40] sm:$0xff]
        %v2853 = vld [vmem:[%s2843 + $0x48] sm:$0xff]
        %v2854 = vld [vmem:[%s2843 + $0x50] sm:$0xff]
        %v2855 = vld [vmem:[%s2843 + $0x58] sm:$0xff]
        %v2856 = vld [vmem:[%s2843 + $0x60] sm:$0xff]
        %v2857 = vld [vmem:[%s2843 + $0x68] sm:$0xff]
        %v2858 = vld [vmem:[%s2843 + $0x70] sm:$0xff]
        %v2859 = vld [vmem:[%s2843 + $0x78] sm:$0xff]
        %v2860 = vld [vmem:[%s2843 + $0x80] sm:$0xff]
        %v2861 = vld [vmem:[%s2843 + $0x88] sm:$0xff]
        %v2862 = vld [vmem:[%s2843 + $0x90] sm:$0xff]
        %v2863 = vld [vmem:[%s2843 + $0x98] sm:$0xff]
        %v2864 = vld [vmem:[%s2843 + $0xa0] sm:$0xff]
        %v2865 = vld [vmem:[%s2843 + $0xa8] sm:$0xff]
        %v2866 = vld [vmem:[%s2843 + $0xb0] sm:$0xff]
        %v2867 = vld [vmem:[%s2843 + $0xb8] sm:$0xff]
        %s2868 = scalar_lea.vmem %s1, 512
        %v2869 = vld [vmem:[%s2868] sm:$0xff]
        %v2870 = vld [vmem:[%s2868 + $0x8] sm:$0xff]
        %v2871 = vld [vmem:[%s2868 + $0x10] sm:$0xff]
        %v2872 = vld [vmem:[%s2868 + $0x18] sm:$0xff]
        %v2873 = vld [vmem:[%s2868 + $0x20] sm:$0xff]
        %v2874 = vld [vmem:[%s2868 + $0x28] sm:$0xff]
        %v2875 = vld [vmem:[%s2868 + $0x30] sm:$0xff]
        %v2876 = vld [vmem:[%s2868 + $0x38] sm:$0xff]
        %v2877 = vld [vmem:[%s2868 + $0x40] sm:$0xff]
        %v2878 = vld [vmem:[%s2868 + $0x48] sm:$0xff]
        %v2879 = vld [vmem:[%s2868 + $0x50] sm:$0xff]
        %v2880 = vld [vmem:[%s2868 + $0x58] sm:$0xff]
        %v2881 = vld [vmem:[%s2868 + $0x60] sm:$0xf]
        %v2882 = vld [vmem:[%s2868 + $0x68] sm:$0xf]
        %v2883 = vld [vmem:[%s2868 + $0x70] sm:$0xf]
        %v2884 = vld [vmem:[%s2868 + $0x78] sm:$0xf]
        %v2886 = vsel %vm557, %v2844, 0
        %v2889 = vsel %vm557, %v2845, 0
        %v2892 = vsel %vm557, %v2846, 0
        %v2895 = vsel %vm557, %v2847, 0
        %v2898 = vsel %vm557, %v2848, 0
        %v2901 = vsel %vm557, %v2849, 0
        %v2904 = vsel %vm557, %v2850, 0
        %v2907 = vsel %vm557, %v2851, 0
        %v2910 = vsel %vm557, %v2852, 0
        %v2913 = vsel %vm557, %v2853, 0
        %v2916 = vsel %vm557, %v2854, 0
        %v2919 = vsel %vm557, %v2855, 0
        %v2922 = vsel %vm557, %v2856, 0
        %v2925 = vsel %vm557, %v2857, 0
        %v2928 = vsel %vm557, %v2858, 0
        %v2931 = vsel %vm557, %v2859, 0
        %v2934 = vsel %vm557, %v2860, 0
        %v2937 = vsel %vm557, %v2861, 0
        %v2940 = vsel %vm557, %v2862, 0
        %v2943 = vsel %vm557, %v2863, 0
        %v2946 = vsel %vm557, %v2864, 0
        %v2949 = vsel %vm557, %v2865, 0
        %v2952 = vsel %vm557, %v2866, 0
        %v2955 = vsel %vm557, %v2867, 0
        %v2958 = vsel %vm630, %v2881, 0
        %v2961 = vsel %vm630, %v2882, 0
        %v2964 = vsel %vm630, %v2883, 0
        %v2967 = vsel %vm630, %v2884, 0
        %2969 = vmatprep.subr.mxu0 0.0
        %2970 = vmatpush1.msra.mxu0 0.0
        %2971 = vmatprep.subr.mxu0 0.0
        %2972 = vmatpush1.msra.mxu0 0.0
        %2973 = vmatprep.subr.mxu0 0.0
        %2974 = vmatpush1.msra.mxu0 0.0
        %2975 = vmatprep.subr.mxu0 0.0
        %2976 = vmatpush1.msra.mxu0 0.0
        %2977 = vmatprep.subr.mxu0 0.0
        %2978 = vmatpush1.msra.mxu0 0.0
        %2979 = vmatprep.subr.mxu0 0.0
        %2980 = vmatpush1.msra.mxu0 0.0
        %2981 = vmatprep.subr.mxu0 0.0
        %2982 = vmatpush1.msra.mxu0 0.0
        %2983 = vmatprep.subr.mxu0 0.0
        %2984 = vmatpush1.msra.mxu0 0.0
        %2985 = vmatprep.subr.mxu0 0.0
        %2986 = vmatpush1.msra.mxu0 0.0
        %2987 = vmatprep.subr.mxu0 0.0
        %2988 = vmatpush1.msra.mxu0 0.0
        %2989 = vmatprep.subr.mxu0 0.0
        %2990 = vmatpush1.msra.mxu0 0.0
        %2991 = vmatprep.subr.mxu0 0.0
        %2992 = vmatpush1.msra.mxu0 0.0
        %2993 = vmatprep.subr.mxu0 %v2961
        %2994 = vmatpush1.msra.mxu0 %v2958
        %2995 = vmatprep.subr.mxu0 %v2878
        %2996 = vmatpush1.msra.mxu0 %v2877
        %2997 = vmatprep.subr.mxu0 %v2874
        %2998 = vmatpush1.msra.mxu0 %v2873
        %2999 = vmatprep.subr.mxu0 %v2870
        %3000 = vmatpush1.msra.mxu0 %v2869
        %3001 = vmatprep.subr.mxu0 0.0
        %3002 = vmatpush2.msra.mxu0 0.0
        %3003 = vmatprep.subr.mxu0 0.0
        %3004 = vmatpush2.msra.mxu0 0.0
        %3005 = vmatprep.subr.mxu0 0.0
        %3006 = vmatpush2.msra.mxu0 0.0
        %3007 = vmatprep.subr.mxu0 0.0
        %3008 = vmatpush2.msra.mxu0 0.0
        %3009 = vmatprep.subr.mxu0 0.0
        %3010 = vmatpush2.msra.mxu0 0.0
        %3011 = vmatprep.subr.mxu0 0.0
        %3012 = vmatpush2.msra.mxu0 0.0
        %3013 = vmatprep.subr.mxu0 0.0
        %3014 = vmatpush2.msra.mxu0 0.0
        %3015 = vmatprep.subr.mxu0 0.0
        %3016 = vmatpush2.msra.mxu0 0.0
        %3017 = vmatprep.subr.mxu0 0.0
        %3018 = vmatpush2.msra.mxu0 0.0
        %3019 = vmatprep.subr.mxu0 0.0
        %3020 = vmatpush2.msra.mxu0 0.0
        %3021 = vmatprep.subr.mxu0 0.0
        %3022 = vmatpush2.msra.mxu0 0.0
        %3023 = vmatprep.subr.mxu0 0.0
        %3024 = vmatpush2.msra.mxu0 0.0
        %3025 = vmatprep.subr.mxu0 0.0
        %3026 = vmatpush2.msra.mxu0 0.0
        %3027 = vmatprep.subr.mxu0 0.0
        %3028 = vmatpush2.msra.mxu0 0.0
        %3029 = vmatprep.subr.mxu0 0.0
        %3030 = vmatpush2.msra.mxu0 0.0
        %3031 = vmatprep.subr.mxu0 0.0
        %3032 = vmatpush2.msra.mxu0 0.0
        %3033 = vmatprep.mubr.f32.mxu0 0.0
        %3034 = vmatmul.mubr.f32.gmra.mxu0 %v2886
        %v3035 = vpop.f32.mrf.mxu0
        %v3036 = vadd.f32 0.0, %v3035
        %v3037 = vpop.f32.mrf.mxu0
        %v3038 = vadd.f32 0.0, %v3037
        %3039 = vmatprep.mubr.f32.mxu0 0.0
        %3040 = vmatmul.mubr.f32.gmra.mxu0 %v2889
        %v3041 = vpop.f32.mrf.mxu0
        %v3042 = vadd.f32 0.0, %v3041
        %v3043 = vpop.f32.mrf.mxu0
        %v3044 = vadd.f32 0.0, %v3043
        %3045 = vmatprep.mubr.f32.mxu0 0.0
        %3046 = vmatmul.mubr.f32.gmra.mxu0 %v2892
        %v3047 = vpop.f32.mrf.mxu0
        %v3048 = vadd.f32 0.0, %v3047
        %v3049 = vpop.f32.mrf.mxu0
        %v3050 = vadd.f32 0.0, %v3049
        %3051 = vmatprep.mubr.f32.mxu0 0.0
        %3052 = vmatmul.mubr.f32.gmra.mxu0 %v2895
        %v3053 = vpop.f32.mrf.mxu0
        %v3054 = vadd.f32 0.0, %v3053
        %v3055 = vpop.f32.mrf.mxu0
        %v3056 = vadd.f32 0.0, %v3055
        %3057 = vmatprep.mubr.f32.mxu0 0.0
        %3058 = vmatmul.mubr.f32.gmra.mxu0 %v2898
        %v3059 = vpop.f32.mrf.mxu0
        %v3060 = vadd.f32 0.0, %v3059
        %v3061 = vpop.f32.mrf.mxu0
        %v3062 = vadd.f32 0.0, %v3061
        %3063 = vmatprep.mubr.f32.mxu0 0.0
        %3064 = vmatmul.mubr.f32.gmra.mxu0 %v2901
        %v3065 = vpop.f32.mrf.mxu0
        %v3066 = vadd.f32 0.0, %v3065
        %v3067 = vpop.f32.mrf.mxu0
        %v3068 = vadd.f32 0.0, %v3067
        %3069 = vmatprep.mubr.f32.mxu0 0.0
        %3070 = vmatmul.mubr.f32.gmra.mxu0 %v2904
        %v3071 = vpop.f32.mrf.mxu0
        %v3072 = vadd.f32 0.0, %v3071
        %v3073 = vpop.f32.mrf.mxu0
        %v3074 = vadd.f32 0.0, %v3073
        %3075 = vmatprep.mubr.f32.mxu0 0.0
        %3076 = vmatmul.mubr.f32.gmra.mxu0 %v2907
        %v3077 = vpop.f32.mrf.mxu0
        %v3078 = vadd.f32 0.0, %v3077
        %v3079 = vpop.f32.mrf.mxu0
        %v3080 = vadd.f32 0.0, %v3079
        %3081 = vmatprep.mubr.f32.mxu0 0.0
        %3082 = vmatmul.mubr.f32.gmra.mxu0 %v2910
        %v3083 = vpop.f32.mrf.mxu0
        %v3084 = vadd.f32 0.0, %v3083
        %v3085 = vpop.f32.mrf.mxu0
        %v3086 = vadd.f32 0.0, %v3085
        %3087 = vmatprep.mubr.f32.mxu0 0.0
        %3088 = vmatmul.mubr.f32.gmra.mxu0 %v2913
        %v3089 = vpop.f32.mrf.mxu0
        %v3090 = vadd.f32 0.0, %v3089
        %v3091 = vpop.f32.mrf.mxu0
        %v3092 = vadd.f32 0.0, %v3091
        %3093 = vmatprep.mubr.f32.mxu0 0.0
        %3094 = vmatmul.mubr.f32.gmra.mxu0 %v2916
        %v3095 = vpop.f32.mrf.mxu0
        %v3096 = vadd.f32 0.0, %v3095
        %v3097 = vpop.f32.mrf.mxu0
        %v3098 = vadd.f32 0.0, %v3097
        %3099 = vmatprep.mubr.f32.mxu0 0.0
        %3100 = vmatmul.mubr.f32.gmra.mxu0 %v2919
        %v3101 = vpop.f32.mrf.mxu0
        %v3102 = vadd.f32 0.0, %v3101
        %v3103 = vpop.f32.mrf.mxu0
        %v3104 = vadd.f32 0.0, %v3103
        %3105 = vmatprep.mubr.f32.mxu0 0.0
        %3106 = vmatmul.mubr.f32.gmra.mxu0 %v2922
        %v3107 = vpop.f32.mrf.mxu0
        %v3108 = vadd.f32 0.0, %v3107
        %v3109 = vpop.f32.mrf.mxu0
        %v3110 = vadd.f32 0.0, %v3109
        %3111 = vmatprep.mubr.f32.mxu0 0.0
        %3112 = vmatmul.mubr.f32.gmra.mxu0 %v2925
        %v3113 = vpop.f32.mrf.mxu0
        %v3114 = vadd.f32 0.0, %v3113
        %v3115 = vpop.f32.mrf.mxu0
        %v3116 = vadd.f32 0.0, %v3115
        %3117 = vmatprep.mubr.f32.mxu0 0.0
        %3118 = vmatmul.mubr.f32.gmra.mxu0 %v2928
        %v3119 = vpop.f32.mrf.mxu0
        %v3120 = vadd.f32 0.0, %v3119
        %v3121 = vpop.f32.mrf.mxu0
        %v3122 = vadd.f32 0.0, %v3121
        %3123 = vmatprep.mubr.f32.mxu0 0.0
        %3124 = vmatmul.mubr.f32.gmra.mxu0 %v2931
        %v3125 = vpop.f32.mrf.mxu0
        %v3126 = vadd.f32 0.0, %v3125
        %v3127 = vpop.f32.mrf.mxu0
        %v3128 = vadd.f32 0.0, %v3127
        %3129 = vmatprep.mubr.f32.mxu0 0.0
        %3130 = vmatmul.mubr.f32.gmra.mxu0 %v2934
        %v3131 = vpop.f32.mrf.mxu0
        %v3132 = vadd.f32 0.0, %v3131
        %v3133 = vpop.f32.mrf.mxu0
        %v3134 = vadd.f32 0.0, %v3133
        %3135 = vmatprep.mubr.f32.mxu0 0.0
        %3136 = vmatmul.mubr.f32.gmra.mxu0 %v2937
        %v3137 = vpop.f32.mrf.mxu0
        %v3138 = vadd.f32 0.0, %v3137
        %v3139 = vpop.f32.mrf.mxu0
        %v3140 = vadd.f32 0.0, %v3139
        %3141 = vmatprep.mubr.f32.mxu0 0.0
        %3142 = vmatmul.mubr.f32.gmra.mxu0 %v2940
        %v3143 = vpop.f32.mrf.mxu0
        %v3144 = vadd.f32 0.0, %v3143
        %v3145 = vpop.f32.mrf.mxu0
        %v3146 = vadd.f32 0.0, %v3145
        %3147 = vmatprep.mubr.f32.mxu0 0.0
        %3148 = vmatmul.mubr.f32.gmra.mxu0 %v2943
        %v3149 = vpop.f32.mrf.mxu0
        %v3150 = vadd.f32 0.0, %v3149
        %v3151 = vpop.f32.mrf.mxu0
        %v3152 = vadd.f32 0.0, %v3151
        %3153 = vmatprep.mubr.f32.mxu0 0.0
        %3154 = vmatmul.mubr.f32.gmra.mxu0 %v2946
        %v3155 = vpop.f32.mrf.mxu0
        %v3156 = vadd.f32 0.0, %v3155
        %v3157 = vpop.f32.mrf.mxu0
        %v3158 = vadd.f32 0.0, %v3157
        %3159 = vmatprep.mubr.f32.mxu0 0.0
        %3160 = vmatmul.mubr.f32.gmra.mxu0 %v2949
        %v3161 = vpop.f32.mrf.mxu0
        %v3162 = vadd.f32 0.0, %v3161
        %v3163 = vpop.f32.mrf.mxu0
        %v3164 = vadd.f32 0.0, %v3163
        %3165 = vmatprep.mubr.f32.mxu0 0.0
        %3166 = vmatmul.mubr.f32.gmra.mxu0 %v2952
        %v3167 = vpop.f32.mrf.mxu0
        %v3168 = vadd.f32 0.0, %v3167
        %v3169 = vpop.f32.mrf.mxu0
        %v3170 = vadd.f32 0.0, %v3169
        %3171 = vmatprep.mubr.f32.mxu0 0.0
        %3172 = vmatmul.mubr.f32.gmra.mxu0 %v2955
        %v3173 = vpop.f32.mrf.mxu0
        %v3174 = vadd.f32 0.0, %v3173
        %v3175 = vpop.f32.mrf.mxu0
        %v3176 = vadd.f32 0.0, %v3175
        %3177 = vdwg.mxu0
        %3178 = vmatprep.subr.mxu0 0.0
        %3179 = vmatpush1.msra.mxu0 0.0
        %3180 = vmatprep.subr.mxu0 0.0
        %3181 = vmatpush1.msra.mxu0 0.0
        %3182 = vmatprep.subr.mxu0 0.0
        %3183 = vmatpush1.msra.mxu0 0.0
        %3184 = vmatprep.subr.mxu0 0.0
        %3185 = vmatpush1.msra.mxu0 0.0
        %3186 = vmatprep.subr.mxu0 0.0
        %3187 = vmatpush1.msra.mxu0 0.0
        %3188 = vmatprep.subr.mxu0 0.0
        %3189 = vmatpush1.msra.mxu0 0.0
        %3190 = vmatprep.subr.mxu0 0.0
        %3191 = vmatpush1.msra.mxu0 0.0
        %3192 = vmatprep.subr.mxu0 0.0
        %3193 = vmatpush1.msra.mxu0 0.0
        %3194 = vmatprep.subr.mxu0 0.0
        %3195 = vmatpush1.msra.mxu0 0.0
        %3196 = vmatprep.subr.mxu0 0.0
        %3197 = vmatpush1.msra.mxu0 0.0
        %3198 = vmatprep.subr.mxu0 0.0
        %3199 = vmatpush1.msra.mxu0 0.0
        %3200 = vmatprep.subr.mxu0 0.0
        %3201 = vmatpush1.msra.mxu0 0.0
        %3202 = vmatprep.subr.mxu0 %v2967
        %3203 = vmatpush1.msra.mxu0 %v2964
        %3204 = vmatprep.subr.mxu0 %v2880
        %3205 = vmatpush1.msra.mxu0 %v2879
        %3206 = vmatprep.subr.mxu0 %v2876
        %3207 = vmatpush1.msra.mxu0 %v2875
        %3208 = vmatprep.subr.mxu0 %v2872
        %3209 = vmatpush1.msra.mxu0 %v2871
        %3210 = vmatprep.subr.mxu0 0.0
        %3211 = vmatpush2.msra.mxu0 0.0
        %3212 = vmatprep.subr.mxu0 0.0
        %3213 = vmatpush2.msra.mxu0 0.0
        %3214 = vmatprep.subr.mxu0 0.0
        %3215 = vmatpush2.msra.mxu0 0.0
        %3216 = vmatprep.subr.mxu0 0.0
        %3217 = vmatpush2.msra.mxu0 0.0
        %3218 = vmatprep.subr.mxu0 0.0
        %3219 = vmatpush2.msra.mxu0 0.0
        %3220 = vmatprep.subr.mxu0 0.0
        %3221 = vmatpush2.msra.mxu0 0.0
        %3222 = vmatprep.subr.mxu0 0.0
        %3223 = vmatpush2.msra.mxu0 0.0
        %3224 = vmatprep.subr.mxu0 0.0
        %3225 = vmatpush2.msra.mxu0 0.0
        %3226 = vmatprep.subr.mxu0 0.0
        %3227 = vmatpush2.msra.mxu0 0.0
        %3228 = vmatprep.subr.mxu0 0.0
        %3229 = vmatpush2.msra.mxu0 0.0
        %3230 = vmatprep.subr.mxu0 0.0
        %3231 = vmatpush2.msra.mxu0 0.0
        %3232 = vmatprep.subr.mxu0 0.0
        %3233 = vmatpush2.msra.mxu0 0.0
        %3234 = vmatprep.subr.mxu0 0.0
        %3235 = vmatpush2.msra.mxu0 0.0
        %3236 = vmatprep.subr.mxu0 0.0
        %3237 = vmatpush2.msra.mxu0 0.0
        %3238 = vmatprep.subr.mxu0 0.0
        %3239 = vmatpush2.msra.mxu0 0.0
        %3240 = vmatprep.subr.mxu0 0.0
        %3241 = vmatpush2.msra.mxu0 0.0
        %3242 = vmatprep.mubr.f32.mxu0 0.0
        %3243 = vmatmul.mubr.f32.gmra.mxu0 %v2886
        %v3244 = vpop.f32.mrf.mxu0
        %v3245 = vadd.f32 0.0, %v3244
        %v3246 = vpop.f32.mrf.mxu0
        %v3247 = vadd.f32 0.0, %v3246
        %3248 = vmatprep.mubr.f32.mxu0 0.0
        %3249 = vmatmul.mubr.f32.gmra.mxu0 %v2889
        %v3250 = vpop.f32.mrf.mxu0
        %v3251 = vadd.f32 0.0, %v3250
        %v3252 = vpop.f32.mrf.mxu0
        %v3253 = vadd.f32 0.0, %v3252
        %3254 = vmatprep.mubr.f32.mxu0 0.0
        %3255 = vmatmul.mubr.f32.gmra.mxu0 %v2892
        %v3256 = vpop.f32.mrf.mxu0
        %v3257 = vadd.f32 0.0, %v3256
        %v3258 = vpop.f32.mrf.mxu0
        %v3259 = vadd.f32 0.0, %v3258
        %3260 = vmatprep.mubr.f32.mxu0 0.0
        %3261 = vmatmul.mubr.f32.gmra.mxu0 %v2895
        %v3262 = vpop.f32.mrf.mxu0
        %v3263 = vadd.f32 0.0, %v3262
        %v3264 = vpop.f32.mrf.mxu0
        %v3265 = vadd.f32 0.0, %v3264
        %3266 = vmatprep.mubr.f32.mxu0 0.0
        %3267 = vmatmul.mubr.f32.gmra.mxu0 %v2898
        %v3268 = vpop.f32.mrf.mxu0
        %v3269 = vadd.f32 0.0, %v3268
        %v3270 = vpop.f32.mrf.mxu0
        %v3271 = vadd.f32 0.0, %v3270
        %3272 = vmatprep.mubr.f32.mxu0 0.0
        %3273 = vmatmul.mubr.f32.gmra.mxu0 %v2901
        %v3274 = vpop.f32.mrf.mxu0
        %v3275 = vadd.f32 0.0, %v3274
        %v3276 = vpop.f32.mrf.mxu0
        %v3277 = vadd.f32 0.0, %v3276
        %3278 = vmatprep.mubr.f32.mxu0 0.0
        %3279 = vmatmul.mubr.f32.gmra.mxu0 %v2904
        %v3280 = vpop.f32.mrf.mxu0
        %v3281 = vadd.f32 0.0, %v3280
        %v3282 = vpop.f32.mrf.mxu0
        %v3283 = vadd.f32 0.0, %v3282
        %3284 = vmatprep.mubr.f32.mxu0 0.0
        %3285 = vmatmul.mubr.f32.gmra.mxu0 %v2907
        %v3286 = vpop.f32.mrf.mxu0
        %v3287 = vadd.f32 0.0, %v3286
        %v3288 = vpop.f32.mrf.mxu0
        %v3289 = vadd.f32 0.0, %v3288
        %3290 = vmatprep.mubr.f32.mxu0 0.0
        %3291 = vmatmul.mubr.f32.gmra.mxu0 %v2910
        %v3292 = vpop.f32.mrf.mxu0
        %v3293 = vadd.f32 0.0, %v3292
        %v3294 = vpop.f32.mrf.mxu0
        %v3295 = vadd.f32 0.0, %v3294
        %3296 = vmatprep.mubr.f32.mxu0 0.0
        %3297 = vmatmul.mubr.f32.gmra.mxu0 %v2913
        %v3298 = vpop.f32.mrf.mxu0
        %v3299 = vadd.f32 0.0, %v3298
        %v3300 = vpop.f32.mrf.mxu0
        %v3301 = vadd.f32 0.0, %v3300
        %3302 = vmatprep.mubr.f32.mxu0 0.0
        %3303 = vmatmul.mubr.f32.gmra.mxu0 %v2916
        %v3304 = vpop.f32.mrf.mxu0
        %v3305 = vadd.f32 0.0, %v3304
        %v3306 = vpop.f32.mrf.mxu0
        %v3307 = vadd.f32 0.0, %v3306
        %3308 = vmatprep.mubr.f32.mxu0 0.0
        %3309 = vmatmul.mubr.f32.gmra.mxu0 %v2919
        %v3310 = vpop.f32.mrf.mxu0
        %v3311 = vadd.f32 0.0, %v3310
        %v3312 = vpop.f32.mrf.mxu0
        %v3313 = vadd.f32 0.0, %v3312
        %3314 = vmatprep.mubr.f32.mxu0 0.0
        %3315 = vmatmul.mubr.f32.gmra.mxu0 %v2922
        %v3316 = vpop.f32.mrf.mxu0
        %v3317 = vadd.f32 0.0, %v3316
        %v3318 = vpop.f32.mrf.mxu0
        %v3319 = vadd.f32 0.0, %v3318
        %3320 = vmatprep.mubr.f32.mxu0 0.0
        %3321 = vmatmul.mubr.f32.gmra.mxu0 %v2925
        %v3322 = vpop.f32.mrf.mxu0
        %v3323 = vadd.f32 0.0, %v3322
        %v3324 = vpop.f32.mrf.mxu0
        %v3325 = vadd.f32 0.0, %v3324
        %3326 = vmatprep.mubr.f32.mxu0 0.0
        %3327 = vmatmul.mubr.f32.gmra.mxu0 %v2928
        %v3328 = vpop.f32.mrf.mxu0
        %v3329 = vadd.f32 0.0, %v3328
        %v3330 = vpop.f32.mrf.mxu0
        %v3331 = vadd.f32 0.0, %v3330
        %3332 = vmatprep.mubr.f32.mxu0 0.0
        %3333 = vmatmul.mubr.f32.gmra.mxu0 %v2931
        %v3334 = vpop.f32.mrf.mxu0
        %v3335 = vadd.f32 0.0, %v3334
        %v3336 = vpop.f32.mrf.mxu0
        %v3337 = vadd.f32 0.0, %v3336
        %3338 = vmatprep.mubr.f32.mxu0 0.0
        %3339 = vmatmul.mubr.f32.gmra.mxu0 %v2934
        %v3340 = vpop.f32.mrf.mxu0
        %v3341 = vadd.f32 0.0, %v3340
        %v3342 = vpop.f32.mrf.mxu0
        %v3343 = vadd.f32 0.0, %v3342
        %3344 = vmatprep.mubr.f32.mxu0 0.0
        %3345 = vmatmul.mubr.f32.gmra.mxu0 %v2937
        %v3346 = vpop.f32.mrf.mxu0
        %v3347 = vadd.f32 0.0, %v3346
        %v3348 = vpop.f32.mrf.mxu0
        %v3349 = vadd.f32 0.0, %v3348
        %3350 = vmatprep.mubr.f32.mxu0 0.0
        %3351 = vmatmul.mubr.f32.gmra.mxu0 %v2940
        %v3352 = vpop.f32.mrf.mxu0
        %v3353 = vadd.f32 0.0, %v3352
        %v3354 = vpop.f32.mrf.mxu0
        %v3355 = vadd.f32 0.0, %v3354
        %3356 = vmatprep.mubr.f32.mxu0 0.0
        %3357 = vmatmul.mubr.f32.gmra.mxu0 %v2943
        %v3358 = vpop.f32.mrf.mxu0
        %v3359 = vadd.f32 0.0, %v3358
        %v3360 = vpop.f32.mrf.mxu0
        %v3361 = vadd.f32 0.0, %v3360
        %3362 = vmatprep.mubr.f32.mxu0 0.0
        %3363 = vmatmul.mubr.f32.gmra.mxu0 %v2946
        %v3364 = vpop.f32.mrf.mxu0
        %v3365 = vadd.f32 0.0, %v3364
        %v3366 = vpop.f32.mrf.mxu0
        %v3367 = vadd.f32 0.0, %v3366
        %3368 = vmatprep.mubr.f32.mxu0 0.0
        %3369 = vmatmul.mubr.f32.gmra.mxu0 %v2949
        %v3370 = vpop.f32.mrf.mxu0
        %v3371 = vadd.f32 0.0, %v3370
        %v3372 = vpop.f32.mrf.mxu0
        %v3373 = vadd.f32 0.0, %v3372
        %3374 = vmatprep.mubr.f32.mxu0 0.0
        %3375 = vmatmul.mubr.f32.gmra.mxu0 %v2952
        %v3376 = vpop.f32.mrf.mxu0
        %v3377 = vadd.f32 0.0, %v3376
        %v3378 = vpop.f32.mrf.mxu0
        %v3379 = vadd.f32 0.0, %v3378
        %3380 = vmatprep.mubr.f32.mxu0 0.0
        %3381 = vmatmul.mubr.f32.gmra.mxu0 %v2955
        %v3382 = vpop.f32.mrf.mxu0
        %v3383 = vadd.f32 0.0, %v3382
        %v3384 = vpop.f32.mrf.mxu0
        %v3385 = vadd.f32 0.0, %v3384
        %3386 = vdwg.mxu0
        %v3387 = vadd.f32 %v2747, %v3036
        %v3388 = vadd.f32 %v2748, %v3038
        %v3389 = vadd.f32 %v2749, %v3245
        %v3390 = vadd.f32 %v2750, %v3247
        %v3391 = vadd.f32 %v2751, %v3042
        %v3392 = vadd.f32 %v2752, %v3044
        %v3393 = vadd.f32 %v2753, %v3251
        %v3394 = vadd.f32 %v2754, %v3253
        %v3395 = vadd.f32 %v2755, %v3048
        %v3396 = vadd.f32 %v2756, %v3050
        %v3397 = vadd.f32 %v2757, %v3257
        %v3398 = vadd.f32 %v2758, %v3259
        %v3399 = vadd.f32 %v2759, %v3054
        %v3400 = vadd.f32 %v2760, %v3056
        %v3401 = vadd.f32 %v2761, %v3263
        %v3402 = vadd.f32 %v2762, %v3265
        %v3403 = vadd.f32 %v2763, %v3060
        %v3404 = vadd.f32 %v2764, %v3062
        %v3405 = vadd.f32 %v2765, %v3269
        %v3406 = vadd.f32 %v2766, %v3271
        %v3407 = vadd.f32 %v2767, %v3066
        %v3408 = vadd.f32 %v2768, %v3068
        %v3409 = vadd.f32 %v2769, %v3275
        %v3410 = vadd.f32 %v2770, %v3277
        %v3411 = vadd.f32 %v2771, %v3072
        %v3412 = vadd.f32 %v2772, %v3074
        %v3413 = vadd.f32 %v2773, %v3281
        %v3414 = vadd.f32 %v2774, %v3283
        %v3415 = vadd.f32 %v2775, %v3078
        %v3416 = vadd.f32 %v2776, %v3080
        %v3417 = vadd.f32 %v2777, %v3287
        %v3418 = vadd.f32 %v2778, %v3289
        %v3419 = vadd.f32 %v2779, %v3084
        %v3420 = vadd.f32 %v2780, %v3086
        %v3421 = vadd.f32 %v2781, %v3293
        %v3422 = vadd.f32 %v2782, %v3295
        %v3423 = vadd.f32 %v2783, %v3090
        %v3424 = vadd.f32 %v2784, %v3092
        %v3425 = vadd.f32 %v2785, %v3299
        %v3426 = vadd.f32 %v2786, %v3301
        %v3427 = vadd.f32 %v2787, %v3096
        %v3428 = vadd.f32 %v2788, %v3098
        %v3429 = vadd.f32 %v2789, %v3305
        %v3430 = vadd.f32 %v2790, %v3307
        %v3431 = vadd.f32 %v2791, %v3102
        %v3432 = vadd.f32 %v2792, %v3104
        %v3433 = vadd.f32 %v2793, %v3311
        %v3434 = vadd.f32 %v2794, %v3313
        %v3435 = vadd.f32 %v2795, %v3108
        %v3436 = vadd.f32 %v2796, %v3110
        %v3437 = vadd.f32 %v2797, %v3317
        %v3438 = vadd.f32 %v2798, %v3319
        %v3439 = vadd.f32 %v2799, %v3114
        %v3440 = vadd.f32 %v2800, %v3116
        %v3441 = vadd.f32 %v2801, %v3323
        %v3442 = vadd.f32 %v2802, %v3325
        %v3443 = vadd.f32 %v2803, %v3120
        %v3444 = vadd.f32 %v2804, %v3122
        %v3445 = vadd.f32 %v2805, %v3329
        %v3446 = vadd.f32 %v2806, %v3331
        %v3447 = vadd.f32 %v2807, %v3126
        %v3448 = vadd.f32 %v2808, %v3128
        %v3449 = vadd.f32 %v2809, %v3335
        %v3450 = vadd.f32 %v2810, %v3337
        %v3451 = vadd.f32 %v2811, %v3132
        %v3452 = vadd.f32 %v2812, %v3134
        %v3453 = vadd.f32 %v2813, %v3341
        %v3454 = vadd.f32 %v2814, %v3343
        %v3455 = vadd.f32 %v2815, %v3138
        %v3456 = vadd.f32 %v2816, %v3140
        %v3457 = vadd.f32 %v2817, %v3347
        %v3458 = vadd.f32 %v2818, %v3349
        %v3459 = vadd.f32 %v2819, %v3144
        %v3460 = vadd.f32 %v2820, %v3146
        %v3461 = vadd.f32 %v2821, %v3353
        %v3462 = vadd.f32 %v2822, %v3355
        %v3463 = vadd.f32 %v2823, %v3150
        %v3464 = vadd.f32 %v2824, %v3152
        %v3465 = vadd.f32 %v2825, %v3359
        %v3466 = vadd.f32 %v2826, %v3361
        %v3467 = vadd.f32 %v2827, %v3156
        %v3468 = vadd.f32 %v2828, %v3158
        %v3469 = vadd.f32 %v2829, %v3365
        %v3470 = vadd.f32 %v2830, %v3367
        %v3471 = vadd.f32 %v2831, %v3162
        %v3472 = vadd.f32 %v2832, %v3164
        %v3473 = vadd.f32 %v2833, %v3371
        %v3474 = vadd.f32 %v2834, %v3373
        %v3475 = vadd.f32 %v2835, %v3168
        %v3476 = vadd.f32 %v2836, %v3170
        %v3477 = vadd.f32 %v2837, %v3377
        %v3478 = vadd.f32 %v2838, %v3379
        %v3479 = vadd.f32 %v2839, %v3174
        %v3480 = vadd.f32 %v2840, %v3176
        %v3481 = vadd.f32 %v2841, %v3383
        %v3482 = vadd.f32 %v2842, %v3385
        %v3483 = vld [vmem:[%s2] sm:$0xf]
        %v3485 = vlaneseq
        %v3486 = vshrl.u32 %v3485, 7
        %v3487 = vsub.s32 0, %v3486
        %v3488 = vrot.slane %v3483, %v3487
        %v3489 = vlaneseq
        %v3490 = vshrl.u32 %v3489, 7
        %v3491 = vsub.s32 1, %v3490
        %v3492 = vrot.slane %v3483, %v3491
        %v3493 = vlaneseq
        %v3494 = vshrl.u32 %v3493, 7
        %v3495 = vsub.s32 2, %v3494
        %v3496 = vrot.slane %v3483, %v3495
        %v3497 = vlaneseq
        %v3498 = vshrl.u32 %v3497, 7
        %v3499 = vsub.s32 3, %v3498
        %v3500 = vrot.slane %v3483, %v3499
        %v3505 = vadd.f32 %v3387, %v3488
        %v3506 = vadd.f32 %v3388, %v3492
        %v3507 = vadd.f32 %v3389, %v3496
        %v3508 = vadd.f32 %v3390, %v3500
        %v3509 = vadd.f32 %v3391, %v3488
        %v3510 = vadd.f32 %v3392, %v3492
        %v3511 = vadd.f32 %v3393, %v3496
        %v3512 = vadd.f32 %v3394, %v3500
        %v3513 = vadd.f32 %v3395, %v3488
        %v3514 = vadd.f32 %v3396, %v3492
        %v3515 = vadd.f32 %v3397, %v3496
        %v3516 = vadd.f32 %v3398, %v3500
        %v3517 = vadd.f32 %v3399, %v3488
        %v3518 = vadd.f32 %v3400, %v3492
        %v3519 = vadd.f32 %v3401, %v3496
        %v3520 = vadd.f32 %v3402, %v3500
        %v3521 = vadd.f32 %v3403, %v3488
        %v3522 = vadd.f32 %v3404, %v3492
        %v3523 = vadd.f32 %v3405, %v3496
        %v3524 = vadd.f32 %v3406, %v3500
        %v3525 = vadd.f32 %v3407, %v3488
        %v3526 = vadd.f32 %v3408, %v3492
        %v3527 = vadd.f32 %v3409, %v3496
        %v3528 = vadd.f32 %v3410, %v3500
        %v3529 = vadd.f32 %v3411, %v3488
        %v3530 = vadd.f32 %v3412, %v3492
        %v3531 = vadd.f32 %v3413, %v3496
        %v3532 = vadd.f32 %v3414, %v3500
        %v3533 = vadd.f32 %v3415, %v3488
        %v3534 = vadd.f32 %v3416, %v3492
        %v3535 = vadd.f32 %v3417, %v3496
        %v3536 = vadd.f32 %v3418, %v3500
        %v3537 = vadd.f32 %v3419, %v3488
        %v3538 = vadd.f32 %v3420, %v3492
        %v3539 = vadd.f32 %v3421, %v3496
        %v3540 = vadd.f32 %v3422, %v3500
        %v3541 = vadd.f32 %v3423, %v3488
        %v3542 = vadd.f32 %v3424, %v3492
        %v3543 = vadd.f32 %v3425, %v3496
        %v3544 = vadd.f32 %v3426, %v3500
        %v3545 = vadd.f32 %v3427, %v3488
        %v3546 = vadd.f32 %v3428, %v3492
        %v3547 = vadd.f32 %v3429, %v3496
        %v3548 = vadd.f32 %v3430, %v3500
        %v3549 = vadd.f32 %v3431, %v3488
        %v3550 = vadd.f32 %v3432, %v3492
        %v3551 = vadd.f32 %v3433, %v3496
        %v3552 = vadd.f32 %v3434, %v3500
        %v3553 = vadd.f32 %v3435, %v3488
        %v3554 = vadd.f32 %v3436, %v3492
        %v3555 = vadd.f32 %v3437, %v3496
        %v3556 = vadd.f32 %v3438, %v3500
        %v3557 = vadd.f32 %v3439, %v3488
        %v3558 = vadd.f32 %v3440, %v3492
        %v3559 = vadd.f32 %v3441, %v3496
        %v3560 = vadd.f32 %v3442, %v3500
        %v3561 = vadd.f32 %v3443, %v3488
        %v3562 = vadd.f32 %v3444, %v3492
        %v3563 = vadd.f32 %v3445, %v3496
        %v3564 = vadd.f32 %v3446, %v3500
        %v3565 = vadd.f32 %v3447, %v3488
        %v3566 = vadd.f32 %v3448, %v3492
        %v3567 = vadd.f32 %v3449, %v3496
        %v3568 = vadd.f32 %v3450, %v3500
        %v3569 = vadd.f32 %v3451, %v3488
        %v3570 = vadd.f32 %v3452, %v3492
        %v3571 = vadd.f32 %v3453, %v3496
        %v3572 = vadd.f32 %v3454, %v3500
        %v3573 = vadd.f32 %v3455, %v3488
        %v3574 = vadd.f32 %v3456, %v3492
        %v3575 = vadd.f32 %v3457, %v3496
        %v3576 = vadd.f32 %v3458, %v3500
        %v3577 = vadd.f32 %v3459, %v3488
        %v3578 = vadd.f32 %v3460, %v3492
        %v3579 = vadd.f32 %v3461, %v3496
        %v3580 = vadd.f32 %v3462, %v3500
        %v3581 = vadd.f32 %v3463, %v3488
        %v3582 = vadd.f32 %v3464, %v3492
        %v3583 = vadd.f32 %v3465, %v3496
        %v3584 = vadd.f32 %v3466, %v3500
        %v3585 = vadd.f32 %v3467, %v3488
        %v3586 = vadd.f32 %v3468, %v3492
        %v3587 = vadd.f32 %v3469, %v3496
        %v3588 = vadd.f32 %v3470, %v3500
        %v3589 = vadd.f32 %v3471, %v3488
        %v3590 = vadd.f32 %v3472, %v3492
        %v3591 = vadd.f32 %v3473, %v3496
        %v3592 = vadd.f32 %v3474, %v3500
        %v3593 = vadd.f32 %v3475, %v3488
        %v3594 = vadd.f32 %v3476, %v3492
        %v3595 = vadd.f32 %v3477, %v3496
        %v3596 = vadd.f32 %v3478, %v3500
        %v3597 = vadd.f32 %v3479, %v3488
        %v3598 = vadd.f32 %v3480, %v3492
        %v3599 = vadd.f32 %v3481, %v3496
        %v3600 = vadd.f32 %v3482, %v3500
        %v3601 = vmax.f32 %v3505, 0.0
        %v3602 = vmax.f32 %v3506, 0.0
        %v3603 = vmax.f32 %v3507, 0.0
        %v3604 = vmax.f32 %v3508, 0.0
        %v3605 = vmax.f32 %v3509, 0.0
        %v3606 = vmax.f32 %v3510, 0.0
        %v3607 = vmax.f32 %v3511, 0.0
        %v3608 = vmax.f32 %v3512, 0.0
        %v3609 = vmax.f32 %v3513, 0.0
        %v3610 = vmax.f32 %v3514, 0.0
        %v3611 = vmax.f32 %v3515, 0.0
        %v3612 = vmax.f32 %v3516, 0.0
        %v3613 = vmax.f32 %v3517, 0.0
        %v3614 = vmax.f32 %v3518, 0.0
        %v3615 = vmax.f32 %v3519, 0.0
        %v3616 = vmax.f32 %v3520, 0.0
        %v3617 = vmax.f32 %v3521, 0.0
        %v3618 = vmax.f32 %v3522, 0.0
        %v3619 = vmax.f32 %v3523, 0.0
        %v3620 = vmax.f32 %v3524, 0.0
        %v3621 = vmax.f32 %v3525, 0.0
        %v3622 = vmax.f32 %v3526, 0.0
        %v3623 = vmax.f32 %v3527, 0.0
        %v3624 = vmax.f32 %v3528, 0.0
        %v3625 = vmax.f32 %v3529, 0.0
        %v3626 = vmax.f32 %v3530, 0.0
        %v3627 = vmax.f32 %v3531, 0.0
        %v3628 = vmax.f32 %v3532, 0.0
        %v3629 = vmax.f32 %v3533, 0.0
        %v3630 = vmax.f32 %v3534, 0.0
        %v3631 = vmax.f32 %v3535, 0.0
        %v3632 = vmax.f32 %v3536, 0.0
        %v3633 = vmax.f32 %v3537, 0.0
        %v3634 = vmax.f32 %v3538, 0.0
        %v3635 = vmax.f32 %v3539, 0.0
        %v3636 = vmax.f32 %v3540, 0.0
        %v3637 = vmax.f32 %v3541, 0.0
        %v3638 = vmax.f32 %v3542, 0.0
        %v3639 = vmax.f32 %v3543, 0.0
        %v3640 = vmax.f32 %v3544, 0.0
        %v3641 = vmax.f32 %v3545, 0.0
        %v3642 = vmax.f32 %v3546, 0.0
        %v3643 = vmax.f32 %v3547, 0.0
        %v3644 = vmax.f32 %v3548, 0.0
        %v3645 = vmax.f32 %v3549, 0.0
        %v3646 = vmax.f32 %v3550, 0.0
        %v3647 = vmax.f32 %v3551, 0.0
        %v3648 = vmax.f32 %v3552, 0.0
        %v3649 = vmax.f32 %v3553, 0.0
        %v3650 = vmax.f32 %v3554, 0.0
        %v3651 = vmax.f32 %v3555, 0.0
        %v3652 = vmax.f32 %v3556, 0.0
        %v3653 = vmax.f32 %v3557, 0.0
        %v3654 = vmax.f32 %v3558, 0.0
        %v3655 = vmax.f32 %v3559, 0.0
        %v3656 = vmax.f32 %v3560, 0.0
        %v3657 = vmax.f32 %v3561, 0.0
        %v3658 = vmax.f32 %v3562, 0.0
        %v3659 = vmax.f32 %v3563, 0.0
        %v3660 = vmax.f32 %v3564, 0.0
        %v3661 = vmax.f32 %v3565, 0.0
        %v3662 = vmax.f32 %v3566, 0.0
        %v3663 = vmax.f32 %v3567, 0.0
        %v3664 = vmax.f32 %v3568, 0.0
        %v3665 = vmax.f32 %v3569, 0.0
        %v3666 = vmax.f32 %v3570, 0.0
        %v3667 = vmax.f32 %v3571, 0.0
        %v3668 = vmax.f32 %v3572, 0.0
        %v3669 = vmax.f32 %v3573, 0.0
        %v3670 = vmax.f32 %v3574, 0.0
        %v3671 = vmax.f32 %v3575, 0.0
        %v3672 = vmax.f32 %v3576, 0.0
        %v3673 = vmax.f32 %v3577, 0.0
        %v3674 = vmax.f32 %v3578, 0.0
        %v3675 = vmax.f32 %v3579, 0.0
        %v3676 = vmax.f32 %v3580, 0.0
        %v3677 = vmax.f32 %v3581, 0.0
        %v3678 = vmax.f32 %v3582, 0.0
        %v3679 = vmax.f32 %v3583, 0.0
        %v3680 = vmax.f32 %v3584, 0.0
        %v3681 = vmax.f32 %v3585, 0.0
        %v3682 = vmax.f32 %v3586, 0.0
        %v3683 = vmax.f32 %v3587, 0.0
        %v3684 = vmax.f32 %v3588, 0.0
        %v3685 = vmax.f32 %v3589, 0.0
        %v3686 = vmax.f32 %v3590, 0.0
        %v3687 = vmax.f32 %v3591, 0.0
        %v3688 = vmax.f32 %v3592, 0.0
        %v3689 = vmax.f32 %v3593, 0.0
        %v3690 = vmax.f32 %v3594, 0.0
        %v3691 = vmax.f32 %v3595, 0.0
        %v3692 = vmax.f32 %v3596, 0.0
        %v3693 = vmax.f32 %v3597, 0.0
        %v3694 = vmax.f32 %v3598, 0.0
        %v3695 = vmax.f32 %v3599, 0.0
        %v3696 = vmax.f32 %v3600, 0.0
        %v3697 = vmax.f32 %v3601, %v3603
        %v3698 = vmax.f32 %v3602, %v3604
        %v3699 = vmax.f32 %v3605, %v3607
        %v3700 = vmax.f32 %v3606, %v3608
        %v3701 = vmax.f32 %v3609, %v3611
        %v3702 = vmax.f32 %v3610, %v3612
        %v3703 = vmax.f32 %v3613, %v3615
        %v3704 = vmax.f32 %v3614, %v3616
        %v3705 = vmax.f32 %v3617, %v3619
        %v3706 = vmax.f32 %v3618, %v3620
        %v3707 = vmax.f32 %v3621, %v3623
        %v3708 = vmax.f32 %v3622, %v3624
        %v3709 = vmax.f32 %v3625, %v3627
        %v3710 = vmax.f32 %v3626, %v3628
        %v3711 = vmax.f32 %v3629, %v3631
        %v3712 = vmax.f32 %v3630, %v3632
        %v3713 = vmax.f32 %v3633, %v3635
        %v3714 = vmax.f32 %v3634, %v3636
        %v3715 = vmax.f32 %v3637, %v3639
        %v3716 = vmax.f32 %v3638, %v3640
        %v3717 = vmax.f32 %v3641, %v3643
        %v3718 = vmax.f32 %v3642, %v3644
        %v3719 = vmax.f32 %v3645, %v3647
        %v3720 = vmax.f32 %v3646, %v3648
        %v3721 = vmax.f32 %v3649, %v3651
        %v3722 = vmax.f32 %v3650, %v3652
        %v3723 = vmax.f32 %v3653, %v3655
        %v3724 = vmax.f32 %v3654, %v3656
        %v3725 = vmax.f32 %v3657, %v3659
        %v3726 = vmax.f32 %v3658, %v3660
        %v3727 = vmax.f32 %v3661, %v3663
        %v3728 = vmax.f32 %v3662, %v3664
        %v3729 = vmax.f32 %v3665, %v3667
        %v3730 = vmax.f32 %v3666, %v3668
        %v3731 = vmax.f32 %v3669, %v3671
        %v3732 = vmax.f32 %v3670, %v3672
        %v3733 = vmax.f32 %v3673, %v3675
        %v3734 = vmax.f32 %v3674, %v3676
        %v3735 = vmax.f32 %v3677, %v3679
        %v3736 = vmax.f32 %v3678, %v3680
        %v3737 = vmax.f32 %v3681, %v3683
        %v3738 = vmax.f32 %v3682, %v3684
        %v3739 = vmax.f32 %v3685, %v3687
        %v3740 = vmax.f32 %v3686, %v3688
        %v3741 = vmax.f32 %v3689, %v3691
        %v3742 = vmax.f32 %v3690, %v3692
        %v3743 = vmax.f32 %v3693, %v3695
        %v3744 = vmax.f32 %v3694, %v3696
        %v3745 = vmax.f32 %v3697, %v3699
        %v3746 = vmax.f32 %v3698, %v3700
        %3747 = vst [vmem:[#allocation2] sm:$0xff] %v3745
        %3748 = vst [vmem:[#allocation2 + $0x8] sm:$0xff] %v3746
        %v3749 = vmax.f32 %v3701, %v3703
        %v3750 = vmax.f32 %v3702, %v3704
        %3751 = vst [vmem:[#allocation2 + $0x10] sm:$0xff] %v3749
        %3752 = vst [vmem:[#allocation2 + $0x18] sm:$0xff] %v3750
        %v3753 = vmax.f32 %v3705, %v3707
        %v3754 = vmax.f32 %v3706, %v3708
        %3755 = vst [vmem:[#allocation2 + $0x20] sm:$0xff] %v3753
        %3756 = vst [vmem:[#allocation2 + $0x28] sm:$0xff] %v3754
        %v3757 = vmax.f32 %v3709, %v3711
        %v3758 = vmax.f32 %v3710, %v3712
        %3759 = vst [vmem:[#allocation2 + $0x30] sm:$0xff] %v3757
        %3760 = vst [vmem:[#allocation2 + $0x38] sm:$0xff] %v3758
        %v3761 = vmax.f32 %v3713, %v3715
        %v3762 = vmax.f32 %v3714, %v3716
        %3763 = vst [vmem:[#allocation2 + $0x40] sm:$0xff] %v3761
        %3764 = vst [vmem:[#allocation2 + $0x48] sm:$0xff] %v3762
        %v3765 = vmax.f32 %v3717, %v3719
        %v3766 = vmax.f32 %v3718, %v3720
        %3767 = vst [vmem:[#allocation2 + $0x50] sm:$0xff] %v3765
        %3768 = vst [vmem:[#allocation2 + $0x58] sm:$0xff] %v3766
        %v3769 = vmax.f32 %v3721, %v3723
        %v3770 = vmax.f32 %v3722, %v3724
        %3771 = vst [vmem:[#allocation2 + $0x60] sm:$0xff] %v3769
        %3772 = vst [vmem:[#allocation2 + $0x68] sm:$0xff] %v3770
        %v3773 = vmax.f32 %v3725, %v3727
        %v3774 = vmax.f32 %v3726, %v3728
        %3775 = vst [vmem:[#allocation2 + $0x70] sm:$0xff] %v3773
        %3776 = vst [vmem:[#allocation2 + $0x78] sm:$0xff] %v3774
        %v3777 = vmax.f32 %v3729, %v3731
        %v3778 = vmax.f32 %v3730, %v3732
        %3779 = vst [vmem:[#allocation2 + $0x80] sm:$0xff] %v3777
        %3780 = vst [vmem:[#allocation2 + $0x88] sm:$0xff] %v3778
        %v3781 = vmax.f32 %v3733, %v3735
        %v3782 = vmax.f32 %v3734, %v3736
        %3783 = vst [vmem:[#allocation2 + $0x90] sm:$0xff] %v3781
        %3784 = vst [vmem:[#allocation2 + $0x98] sm:$0xff] %v3782
        %v3785 = vmax.f32 %v3737, %v3739
        %v3786 = vmax.f32 %v3738, %v3740
        %3787 = vst [vmem:[#allocation2 + $0xa0] sm:$0xff] %v3785
        %3788 = vst [vmem:[#allocation2 + $0xa8] sm:$0xff] %v3786
        %v3789 = vmax.f32 %v3741, %v3743
        %v3790 = vmax.f32 %v3742, %v3744
        %3791 = vst [vmem:[#allocation2 + $0xb0] sm:$0xff] %v3789
        %3792 = vst [vmem:[#allocation2 + $0xb8] sm:$0xff] %v3790
        %v3793 = vld [vmem:[#allocation2] sm:$0xff]
        %v3794 = vld [vmem:[#allocation2 + $0x8] sm:$0xff]
        %v3795 = vld [vmem:[#allocation2 + $0x10] sm:$0xff]
        %v3796 = vld [vmem:[#allocation2 + $0x18] sm:$0xff]
        %v3797 = vld [vmem:[#allocation2 + $0x20] sm:$0xff]
        %v3798 = vld [vmem:[#allocation2 + $0x28] sm:$0xff]
        %v3799 = vld [vmem:[#allocation2 + $0x30] sm:$0xff]
        %v3800 = vld [vmem:[#allocation2 + $0x38] sm:$0xff]
        %v3801 = vld [vmem:[#allocation2 + $0x40] sm:$0xff]
        %v3802 = vld [vmem:[#allocation2 + $0x48] sm:$0xff]
        %v3803 = vld [vmem:[#allocation2 + $0x50] sm:$0xff]
        %v3804 = vld [vmem:[#allocation2 + $0x58] sm:$0xff]
        %v3805 = vld [vmem:[#allocation2 + $0x60] sm:$0xff]
        %v3806 = vld [vmem:[#allocation2 + $0x68] sm:$0xff]
        %v3807 = vld [vmem:[#allocation2 + $0x70] sm:$0xff]
        %v3808 = vld [vmem:[#allocation2 + $0x78] sm:$0xff]
        %v3809 = vpack.c.bf16 %v3795, %v3793
        %v3810 = vpack.c.bf16 %v3796, %v3794
        %v3811 = vpack.c.bf16 %v3799, %v3797
        %v3812 = vpack.c.bf16 %v3800, %v3798
        %v3813 = vpack.c.bf16 %v3803, %v3801
        %v3814 = vpack.c.bf16 %v3804, %v3802
        %v3815 = vpack.c.bf16 %v3807, %v3805
        %v3816 = vpack.c.bf16 %v3808, %v3806
        %v3817 = vld [vmem:[%s3] sm:$0xff]
        %v3818 = vld [vmem:[%s3 + $0x8] sm:$0xff]
        %v3819 = vld [vmem:[%s3 + $0x10] sm:$0xff]
        %v3820 = vld [vmem:[%s3 + $0x18] sm:$0xff]
        %v3821 = vld [vmem:[%s3 + $0x20] sm:$0xff]
        %v3822 = vld [vmem:[%s3 + $0x28] sm:$0xff]
        %v3823 = vld [vmem:[%s3 + $0x30] sm:$0xff]
        %v3824 = vld [vmem:[%s3 + $0x38] sm:$0xff]
        %v3825 = vld [vmem:[%s3 + $0x40] sm:$0xff]
        %v3826 = vld [vmem:[%s3 + $0x48] sm:$0xff]
        %v3827 = vld [vmem:[%s3 + $0x50] sm:$0xff]
        %v3828 = vld [vmem:[%s3 + $0x58] sm:$0xff]
        %v3829 = vld [vmem:[%s3 + $0x60] sm:$0xff]
        %v3830 = vld [vmem:[%s3 + $0x68] sm:$0xff]
        %v3831 = vld [vmem:[%s3 + $0x70] sm:$0xff]
        %v3832 = vld [vmem:[%s3 + $0x78] sm:$0xff]
        %v3833 = vld [vmem:[%s3 + $0x80] sm:$0xff]
        %v3834 = vld [vmem:[%s3 + $0x88] sm:$0xff]
        %v3835 = vld [vmem:[%s3 + $0x90] sm:$0xff]
        %v3836 = vld [vmem:[%s3 + $0x98] sm:$0xff]
        %v3837 = vld [vmem:[%s3 + $0xa0] sm:$0xff]
        %v3838 = vld [vmem:[%s3 + $0xa8] sm:$0xff]
        %v3839 = vld [vmem:[%s3 + $0xb0] sm:$0xff]
        %v3840 = vld [vmem:[%s3 + $0xb8] sm:$0xff]
        %v3841 = vld [vmem:[%s3 + $0xc0] sm:$0xff]
        %v3842 = vld [vmem:[%s3 + $0xc8] sm:$0xff]
        %v3843 = vld [vmem:[%s3 + $0xd0] sm:$0xff]
        %v3844 = vld [vmem:[%s3 + $0xd8] sm:$0xff]
        %v3845 = vld [vmem:[%s3 + $0xe0] sm:$0xff]
        %v3846 = vld [vmem:[%s3 + $0xe8] sm:$0xff]
        %v3847 = vld [vmem:[%s3 + $0xf0] sm:$0xff]
        %v3848 = vld [vmem:[%s3 + $0xf8] sm:$0xff]
        %v3849 = vld [vmem:[%s3 + $0x100] sm:$0xff]
        %v3850 = vld [vmem:[%s3 + $0x108] sm:$0xff]
        %v3851 = vld [vmem:[%s3 + $0x110] sm:$0xff]
        %v3852 = vld [vmem:[%s3 + $0x118] sm:$0xff]
        %v3853 = vld [vmem:[%s3 + $0x120] sm:$0xff]
        %v3854 = vld [vmem:[%s3 + $0x128] sm:$0xff]
        %v3855 = vld [vmem:[%s3 + $0x130] sm:$0xff]
        %v3856 = vld [vmem:[%s3 + $0x138] sm:$0xff]
        %v3857 = vld [vmem:[%s3 + $0x140] sm:$0xff]
        %v3858 = vld [vmem:[%s3 + $0x148] sm:$0xff]
        %v3859 = vld [vmem:[%s3 + $0x150] sm:$0xff]
        %v3860 = vld [vmem:[%s3 + $0x158] sm:$0xff]
        %v3861 = vld [vmem:[%s3 + $0x160] sm:$0xff]
        %v3862 = vld [vmem:[%s3 + $0x168] sm:$0xff]
        %v3863 = vld [vmem:[%s3 + $0x170] sm:$0xff]
        %v3864 = vld [vmem:[%s3 + $0x178] sm:$0xff]
        %v3865 = vld [vmem:[%s3 + $0x180] sm:$0xff]
        %v3866 = vld [vmem:[%s3 + $0x188] sm:$0xff]
        %v3867 = vld [vmem:[%s3 + $0x190] sm:$0xff]
        %v3868 = vld [vmem:[%s3 + $0x198] sm:$0xff]
        %v3869 = vld [vmem:[%s3 + $0x1a0] sm:$0xff]
        %v3870 = vld [vmem:[%s3 + $0x1a8] sm:$0xff]
        %v3871 = vld [vmem:[%s3 + $0x1b0] sm:$0xff]
        %v3872 = vld [vmem:[%s3 + $0x1b8] sm:$0xff]
        %v3873 = vld [vmem:[%s3 + $0x1c0] sm:$0xff]
        %v3874 = vld [vmem:[%s3 + $0x1c8] sm:$0xff]
        %v3875 = vld [vmem:[%s3 + $0x1d0] sm:$0xff]
        %v3876 = vld [vmem:[%s3 + $0x1d8] sm:$0xff]
        %v3877 = vld [vmem:[%s3 + $0x1e0] sm:$0xff]
        %v3878 = vld [vmem:[%s3 + $0x1e8] sm:$0xff]
        %v3879 = vld [vmem:[%s3 + $0x1f0] sm:$0xff]
        %v3880 = vld [vmem:[%s3 + $0x1f8] sm:$0xff]
        %v3881 = vld [vmem:[#allocation2 + $0x80] sm:$0xff]
        %v3882 = vld [vmem:[#allocation2 + $0x88] sm:$0xff]
        %v3883 = vpack.c.bf16 %v3797, %v3795
        %v3884 = vpack.c.bf16 %v3798, %v3796
        %v3885 = vpack.c.bf16 %v3801, %v3799
        %v3886 = vpack.c.bf16 %v3802, %v3800
        %v3887 = vpack.c.bf16 %v3805, %v3803
        %v3888 = vpack.c.bf16 %v3806, %v3804
        %v3889 = vpack.c.bf16 %v3881, %v3807
        %v3890 = vpack.c.bf16 %v3882, %v3808
        %s3891 = scalar_lea.vmem %s3, 512
        %v3892 = vld [vmem:[%s3891] sm:$0xff]
        %v3893 = vld [vmem:[%s3891 + $0x8] sm:$0xff]
        %v3894 = vld [vmem:[%s3891 + $0x10] sm:$0xff]
        %v3895 = vld [vmem:[%s3891 + $0x18] sm:$0xff]
        %v3896 = vld [vmem:[%s3891 + $0x20] sm:$0xff]
        %v3897 = vld [vmem:[%s3891 + $0x28] sm:$0xff]
        %v3898 = vld [vmem:[%s3891 + $0x30] sm:$0xff]
        %v3899 = vld [vmem:[%s3891 + $0x38] sm:$0xff]
        %v3900 = vld [vmem:[%s3891 + $0x40] sm:$0xff]
        %v3901 = vld [vmem:[%s3891 + $0x48] sm:$0xff]
        %v3902 = vld [vmem:[%s3891 + $0x50] sm:$0xff]
        %v3903 = vld [vmem:[%s3891 + $0x58] sm:$0xff]
        %v3904 = vld [vmem:[%s3891 + $0x60] sm:$0xff]
        %v3905 = vld [vmem:[%s3891 + $0x68] sm:$0xff]
        %v3906 = vld [vmem:[%s3891 + $0x70] sm:$0xff]
        %v3907 = vld [vmem:[%s3891 + $0x78] sm:$0xff]
        %v3908 = vld [vmem:[%s3891 + $0x80] sm:$0xff]
        %v3909 = vld [vmem:[%s3891 + $0x88] sm:$0xff]
        %v3910 = vld [vmem:[%s3891 + $0x90] sm:$0xff]
        %v3911 = vld [vmem:[%s3891 + $0x98] sm:$0xff]
        %v3912 = vld [vmem:[%s3891 + $0xa0] sm:$0xff]
        %v3913 = vld [vmem:[%s3891 + $0xa8] sm:$0xff]
        %v3914 = vld [vmem:[%s3891 + $0xb0] sm:$0xff]
        %v3915 = vld [vmem:[%s3891 + $0xb8] sm:$0xff]
        %v3916 = vld [vmem:[%s3891 + $0xc0] sm:$0xff]
        %v3917 = vld [vmem:[%s3891 + $0xc8] sm:$0xff]
        %v3918 = vld [vmem:[%s3891 + $0xd0] sm:$0xff]
        %v3919 = vld [vmem:[%s3891 + $0xd8] sm:$0xff]
        %v3920 = vld [vmem:[%s3891 + $0xe0] sm:$0xff]
        %v3921 = vld [vmem:[%s3891 + $0xe8] sm:$0xff]
        %v3922 = vld [vmem:[%s3891 + $0xf0] sm:$0xff]
        %v3923 = vld [vmem:[%s3891 + $0xf8] sm:$0xff]
        %v3924 = vld [vmem:[%s3891 + $0x100] sm:$0xff]
        %v3925 = vld [vmem:[%s3891 + $0x108] sm:$0xff]
        %v3926 = vld [vmem:[%s3891 + $0x110] sm:$0xff]
        %v3927 = vld [vmem:[%s3891 + $0x118] sm:$0xff]
        %v3928 = vld [vmem:[%s3891 + $0x120] sm:$0xff]
        %v3929 = vld [vmem:[%s3891 + $0x128] sm:$0xff]
        %v3930 = vld [vmem:[%s3891 + $0x130] sm:$0xff]
        %v3931 = vld [vmem:[%s3891 + $0x138] sm:$0xff]
        %v3932 = vld [vmem:[%s3891 + $0x140] sm:$0xff]
        %v3933 = vld [vmem:[%s3891 + $0x148] sm:$0xff]
        %v3934 = vld [vmem:[%s3891 + $0x150] sm:$0xff]
        %v3935 = vld [vmem:[%s3891 + $0x158] sm:$0xff]
        %v3936 = vld [vmem:[%s3891 + $0x160] sm:$0xff]
        %v3937 = vld [vmem:[%s3891 + $0x168] sm:$0xff]
        %v3938 = vld [vmem:[%s3891 + $0x170] sm:$0xff]
        %v3939 = vld [vmem:[%s3891 + $0x178] sm:$0xff]
        %v3940 = vld [vmem:[%s3891 + $0x180] sm:$0xff]
        %v3941 = vld [vmem:[%s3891 + $0x188] sm:$0xff]
        %v3942 = vld [vmem:[%s3891 + $0x190] sm:$0xff]
        %v3943 = vld [vmem:[%s3891 + $0x198] sm:$0xff]
        %v3944 = vld [vmem:[%s3891 + $0x1a0] sm:$0xff]
        %v3945 = vld [vmem:[%s3891 + $0x1a8] sm:$0xff]
        %v3946 = vld [vmem:[%s3891 + $0x1b0] sm:$0xff]
        %v3947 = vld [vmem:[%s3891 + $0x1b8] sm:$0xff]
        %v3948 = vld [vmem:[%s3891 + $0x1c0] sm:$0xff]
        %v3949 = vld [vmem:[%s3891 + $0x1c8] sm:$0xff]
        %v3950 = vld [vmem:[%s3891 + $0x1d0] sm:$0xff]
        %v3951 = vld [vmem:[%s3891 + $0x1d8] sm:$0xff]
        %v3952 = vld [vmem:[%s3891 + $0x1e0] sm:$0xff]
        %v3953 = vld [vmem:[%s3891 + $0x1e8] sm:$0xff]
        %v3954 = vld [vmem:[%s3891 + $0x1f0] sm:$0xff]
        %v3955 = vld [vmem:[%s3891 + $0x1f8] sm:$0xff]
        %v4020 = vunpack.c.l.b16 %v3892
        %v4021 = vunpack.c.h.b16 %v3892
        %v4022 = vunpack.c.l.b16 %v3893
        %v4023 = vunpack.c.h.b16 %v3893
        %v4024 = vunpack.c.l.b16 %v3894
        %v4025 = vunpack.c.h.b16 %v3894
        %v4026 = vunpack.c.l.b16 %v3895
        %v4027 = vunpack.c.h.b16 %v3895
        %v4028 = vunpack.c.l.b16 %v3896
        %v4029 = vunpack.c.h.b16 %v3896
        %v4030 = vunpack.c.l.b16 %v3897
        %v4031 = vunpack.c.h.b16 %v3897
        %v4032 = vunpack.c.l.b16 %v3898
        %v4033 = vunpack.c.h.b16 %v3898
        %v4034 = vunpack.c.l.b16 %v3899
        %v4035 = vunpack.c.h.b16 %v3899
        %v4036 = vunpack.c.l.b16 %v3900
        %v4037 = vunpack.c.h.b16 %v3900
        %v4038 = vunpack.c.l.b16 %v3901
        %v4039 = vunpack.c.h.b16 %v3901
        %v4040 = vunpack.c.l.b16 %v3902
        %v4041 = vunpack.c.h.b16 %v3902
        %v4042 = vunpack.c.l.b16 %v3903
        %v4043 = vunpack.c.h.b16 %v3903
        %v4044 = vunpack.c.l.b16 %v3904
        %v4045 = vunpack.c.h.b16 %v3904
        %v4046 = vunpack.c.l.b16 %v3905
        %v4047 = vunpack.c.h.b16 %v3905
        %v4048 = vunpack.c.l.b16 %v3906
        %v4049 = vunpack.c.h.b16 %v3906
        %v4050 = vunpack.c.l.b16 %v3907
        %v4051 = vunpack.c.h.b16 %v3907
        %v4052 = vunpack.c.l.b16 %v3908
        %v4053 = vunpack.c.h.b16 %v3908
        %v4054 = vunpack.c.l.b16 %v3909
        %v4055 = vunpack.c.h.b16 %v3909
        %v4056 = vunpack.c.l.b16 %v3910
        %v4057 = vunpack.c.h.b16 %v3910
        %v4058 = vunpack.c.l.b16 %v3911
        %v4059 = vunpack.c.h.b16 %v3911
        %v4060 = vunpack.c.l.b16 %v3912
        %v4061 = vunpack.c.h.b16 %v3912
        %v4062 = vunpack.c.l.b16 %v3913
        %v4063 = vunpack.c.h.b16 %v3913
        %v4064 = vunpack.c.l.b16 %v3914
        %v4065 = vunpack.c.h.b16 %v3914
        %v4066 = vunpack.c.l.b16 %v3915
        %v4067 = vunpack.c.h.b16 %v3915
        %v4068 = vunpack.c.l.b16 %v3916
        %v4069 = vunpack.c.h.b16 %v3916
        %v4070 = vunpack.c.l.b16 %v3917
        %v4071 = vunpack.c.h.b16 %v3917
        %v4072 = vunpack.c.l.b16 %v3918
        %v4073 = vunpack.c.h.b16 %v3918
        %v4074 = vunpack.c.l.b16 %v3919
        %v4075 = vunpack.c.h.b16 %v3919
        %v4076 = vunpack.c.l.b16 %v3920
        %v4077 = vunpack.c.h.b16 %v3920
        %v4078 = vunpack.c.l.b16 %v3921
        %v4079 = vunpack.c.h.b16 %v3921
        %v4080 = vunpack.c.l.b16 %v3922
        %v4081 = vunpack.c.h.b16 %v3922
        %v4082 = vunpack.c.l.b16 %v3923
        %v4083 = vunpack.c.h.b16 %v3923
        %v4084 = vunpack.c.l.b16 %v3924
        %v4085 = vunpack.c.h.b16 %v3924
        %v4086 = vunpack.c.l.b16 %v3925
        %v4087 = vunpack.c.h.b16 %v3925
        %v4088 = vunpack.c.l.b16 %v3926
        %v4089 = vunpack.c.h.b16 %v3926
        %v4090 = vunpack.c.l.b16 %v3927
        %v4091 = vunpack.c.h.b16 %v3927
        %v4092 = vunpack.c.l.b16 %v3928
        %v4093 = vunpack.c.h.b16 %v3928
        %v4094 = vunpack.c.l.b16 %v3929
        %v4095 = vunpack.c.h.b16 %v3929
        %v4096 = vunpack.c.l.b16 %v3930
        %v4097 = vunpack.c.h.b16 %v3930
        %v4098 = vunpack.c.l.b16 %v3931
        %v4099 = vunpack.c.h.b16 %v3931
        %v4100 = vunpack.c.l.b16 %v3932
        %v4101 = vunpack.c.h.b16 %v3932
        %v4102 = vunpack.c.l.b16 %v3933
        %v4103 = vunpack.c.h.b16 %v3933
        %v4104 = vunpack.c.l.b16 %v3934
        %v4105 = vunpack.c.h.b16 %v3934
        %v4106 = vunpack.c.l.b16 %v3935
        %v4107 = vunpack.c.h.b16 %v3935
        %v4108 = vunpack.c.l.b16 %v3936
        %v4109 = vunpack.c.h.b16 %v3936
        %v4110 = vunpack.c.l.b16 %v3937
        %v4111 = vunpack.c.h.b16 %v3937
        %v4112 = vunpack.c.l.b16 %v3938
        %v4113 = vunpack.c.h.b16 %v3938
        %v4114 = vunpack.c.l.b16 %v3939
        %v4115 = vunpack.c.h.b16 %v3939
        %v4116 = vunpack.c.l.b16 %v3940
        %v4117 = vunpack.c.h.b16 %v3940
        %v4118 = vunpack.c.l.b16 %v3941
        %v4119 = vunpack.c.h.b16 %v3941
        %v4120 = vunpack.c.l.b16 %v3942
        %v4121 = vunpack.c.h.b16 %v3942
        %v4122 = vunpack.c.l.b16 %v3943
        %v4123 = vunpack.c.h.b16 %v3943
        %v4124 = vunpack.c.l.b16 %v3944
        %v4125 = vunpack.c.h.b16 %v3944
        %v4126 = vunpack.c.l.b16 %v3945
        %v4127 = vunpack.c.h.b16 %v3945
        %v4128 = vunpack.c.l.b16 %v3946
        %v4129 = vunpack.c.h.b16 %v3946
        %v4130 = vunpack.c.l.b16 %v3947
        %v4131 = vunpack.c.h.b16 %v3947
        %v4132 = vunpack.c.l.b16 %v3948
        %v4133 = vunpack.c.h.b16 %v3948
        %v4134 = vunpack.c.l.b16 %v3949
        %v4135 = vunpack.c.h.b16 %v3949
        %v4136 = vunpack.c.l.b16 %v3950
        %v4137 = vunpack.c.h.b16 %v3950
        %v4138 = vunpack.c.l.b16 %v3951
        %v4139 = vunpack.c.h.b16 %v3951
        %v4140 = vunpack.c.l.b16 %v3952
        %v4141 = vunpack.c.h.b16 %v3952
        %v4142 = vunpack.c.l.b16 %v3953
        %v4143 = vunpack.c.h.b16 %v3953
        %v4144 = vunpack.c.l.b16 %v3954
        %v4145 = vunpack.c.h.b16 %v3954
        %v4146 = vunpack.c.l.b16 %v3955
        %v4147 = vunpack.c.h.b16 %v3955
        %v4148 = vpack.c.b16 %v4024, %v4020
        %v4149 = vpack.c.b16 %v4025, %v4021
        %v4150 = vpack.c.b16 %v4026, %v4022
        %v4151 = vpack.c.b16 %v4027, %v4023
        %v4152 = vpack.c.b16 %v4032, %v4028
        %v4153 = vpack.c.b16 %v4033, %v4029
        %v4154 = vpack.c.b16 %v4034, %v4030
        %v4155 = vpack.c.b16 %v4035, %v4031
        %v4156 = vpack.c.b16 %v4040, %v4036
        %v4157 = vpack.c.b16 %v4041, %v4037
        %v4158 = vpack.c.b16 %v4042, %v4038
        %v4159 = vpack.c.b16 %v4043, %v4039
        %v4160 = vpack.c.b16 %v4048, %v4044
        %v4161 = vpack.c.b16 %v4049, %v4045
        %v4162 = vpack.c.b16 %v4050, %v4046
        %v4163 = vpack.c.b16 %v4051, %v4047
        %v4164 = vpack.c.b16 %v4056, %v4052
        %v4165 = vpack.c.b16 %v4057, %v4053
        %v4166 = vpack.c.b16 %v4058, %v4054
        %v4167 = vpack.c.b16 %v4059, %v4055
        %v4168 = vpack.c.b16 %v4064, %v4060
        %v4169 = vpack.c.b16 %v4065, %v4061
        %v4170 = vpack.c.b16 %v4066, %v4062
        %v4171 = vpack.c.b16 %v4067, %v4063
        %v4172 = vpack.c.b16 %v4072, %v4068
        %v4173 = vpack.c.b16 %v4073, %v4069
        %v4174 = vpack.c.b16 %v4074, %v4070
        %v4175 = vpack.c.b16 %v4075, %v4071
        %v4176 = vpack.c.b16 %v4080, %v4076
        %v4177 = vpack.c.b16 %v4081, %v4077
        %v4178 = vpack.c.b16 %v4082, %v4078
        %v4179 = vpack.c.b16 %v4083, %v4079
        %v4180 = vpack.c.b16 %v4088, %v4084
        %v4181 = vpack.c.b16 %v4089, %v4085
        %v4182 = vpack.c.b16 %v4090, %v4086
        %v4183 = vpack.c.b16 %v4091, %v4087
        %v4184 = vpack.c.b16 %v4096, %v4092
        %v4185 = vpack.c.b16 %v4097, %v4093
        %v4186 = vpack.c.b16 %v4098, %v4094
        %v4187 = vpack.c.b16 %v4099, %v4095
        %v4188 = vpack.c.b16 %v4104, %v4100
        %v4189 = vpack.c.b16 %v4105, %v4101
        %v4190 = vpack.c.b16 %v4106, %v4102
        %v4191 = vpack.c.b16 %v4107, %v4103
        %v4192 = vpack.c.b16 %v4112, %v4108
        %v4193 = vpack.c.b16 %v4113, %v4109
        %v4194 = vpack.c.b16 %v4114, %v4110
        %v4195 = vpack.c.b16 %v4115, %v4111
        %v4196 = vpack.c.b16 %v4120, %v4116
        %v4197 = vpack.c.b16 %v4121, %v4117
        %v4198 = vpack.c.b16 %v4122, %v4118
        %v4199 = vpack.c.b16 %v4123, %v4119
        %v4200 = vpack.c.b16 %v4128, %v4124
        %v4201 = vpack.c.b16 %v4129, %v4125
        %v4202 = vpack.c.b16 %v4130, %v4126
        %v4203 = vpack.c.b16 %v4131, %v4127
        %v4204 = vpack.c.b16 %v4136, %v4132
        %v4205 = vpack.c.b16 %v4137, %v4133
        %v4206 = vpack.c.b16 %v4138, %v4134
        %v4207 = vpack.c.b16 %v4139, %v4135
        %v4208 = vpack.c.b16 %v4144, %v4140
        %v4209 = vpack.c.b16 %v4145, %v4141
        %v4210 = vpack.c.b16 %v4146, %v4142
        %v4211 = vpack.c.b16 %v4147, %v4143
        %4276 = vmatprep.subr.bf16.mxu0 %v4177
        %4277 = vmatpush1.bf16.msra.mxu0 %v4176
        %4278 = vmatprep.subr.bf16.mxu0 %v4173
        %4279 = vmatpush1.bf16.msra.mxu0 %v4172
        %4280 = vmatprep.subr.bf16.mxu0 %v4169
        %4281 = vmatpush1.bf16.msra.mxu0 %v4168
        %4282 = vmatprep.subr.bf16.mxu0 %v4165
        %4283 = vmatpush1.bf16.msra.mxu0 %v4164
        %4284 = vmatprep.subr.bf16.mxu0 %v4161
        %4285 = vmatpush1.bf16.msra.mxu0 %v4160
        %4286 = vmatprep.subr.bf16.mxu0 %v4157
        %4287 = vmatpush1.bf16.msra.mxu0 %v4156
        %4288 = vmatprep.subr.bf16.mxu0 %v4153
        %4289 = vmatpush1.bf16.msra.mxu0 %v4152
        %4290 = vmatprep.subr.bf16.mxu0 %v4149
        %4291 = vmatpush1.bf16.msra.mxu0 %v4148
        %4292 = vmatprep.subr.bf16.mxu0 %v4209
        %4293 = vmatpush2.bf16.msra.mxu0 %v4208
        %4294 = vmatprep.subr.bf16.mxu0 %v4205
        %4295 = vmatpush2.bf16.msra.mxu0 %v4204
        %4296 = vmatprep.subr.bf16.mxu0 %v4201
        %4297 = vmatpush2.bf16.msra.mxu0 %v4200
        %4298 = vmatprep.subr.bf16.mxu0 %v4197
        %4299 = vmatpush2.bf16.msra.mxu0 %v4196
        %4300 = vmatprep.subr.bf16.mxu0 %v4193
        %4301 = vmatpush2.bf16.msra.mxu0 %v4192
        %4302 = vmatprep.subr.bf16.mxu0 %v4189
        %4303 = vmatpush2.bf16.msra.mxu0 %v4188
        %4304 = vmatprep.subr.bf16.mxu0 %v4185
        %4305 = vmatpush2.bf16.msra.mxu0 %v4184
        %4306 = vmatprep.subr.bf16.mxu0 %v4181
        %4307 = vmatpush2.bf16.msra.mxu0 %v4180
        %4308 = vmatprep.mubr.bf16.mxu0 %v3884
        %4309 = vmatmul.mubr.bf16.gmra.mxu0 %v3883
        %v4310 = vpop.f32.mrf.mxu0
        %v4311 = vadd.f32 0.0, %v4310
        %v4312 = vpop.f32.mrf.mxu0
        %v4313 = vadd.f32 0.0, %v4312
        %v4314 = vpop.f32.mrf.mxu0
        %v4315 = vadd.f32 0.0, %v4314
        %v4316 = vpop.f32.mrf.mxu0
        %v4317 = vadd.f32 0.0, %v4316
        %4318 = vmatprep.mubr.bf16.mxu0 %v3886
        %4319 = vmatmul.mubr.bf16.gmra.mxu0 %v3885
        %v4320 = vpop.f32.mrf.mxu0
        %v4321 = vadd.f32 0.0, %v4320
        %v4322 = vpop.f32.mrf.mxu0
        %v4323 = vadd.f32 0.0, %v4322
        %v4324 = vpop.f32.mrf.mxu0
        %v4325 = vadd.f32 0.0, %v4324
        %v4326 = vpop.f32.mrf.mxu0
        %v4327 = vadd.f32 0.0, %v4326
        %4328 = vmatprep.mubr.bf16.mxu0 %v3888
        %4329 = vmatmul.mubr.bf16.gmra.mxu0 %v3887
        %v4330 = vpop.f32.mrf.mxu0
        %v4331 = vadd.f32 0.0, %v4330
        %v4332 = vpop.f32.mrf.mxu0
        %v4333 = vadd.f32 0.0, %v4332
        %v4334 = vpop.f32.mrf.mxu0
        %v4335 = vadd.f32 0.0, %v4334
        %v4336 = vpop.f32.mrf.mxu0
        %v4337 = vadd.f32 0.0, %v4336
        %4338 = vmatprep.mubr.bf16.mxu0 %v3890
        %4339 = vmatmul.mubr.bf16.gmra.mxu0 %v3889
        %v4340 = vpop.f32.mrf.mxu0
        %v4341 = vadd.f32 0.0, %v4340
        %v4342 = vpop.f32.mrf.mxu0
        %v4343 = vadd.f32 0.0, %v4342
        %v4344 = vpop.f32.mrf.mxu0
        %v4345 = vadd.f32 0.0, %v4344
        %v4346 = vpop.f32.mrf.mxu0
        %v4347 = vadd.f32 0.0, %v4346
        %4348 = vdwg.mxu0
        %4349 = vmatprep.subr.bf16.mxu0 %v4179
        %4350 = vmatpush1.bf16.msra.mxu0 %v4178
        %4351 = vmatprep.subr.bf16.mxu0 %v4175
        %4352 = vmatpush1.bf16.msra.mxu0 %v4174
        %4353 = vmatprep.subr.bf16.mxu0 %v4171
        %4354 = vmatpush1.bf16.msra.mxu0 %v4170
        %4355 = vmatprep.subr.bf16.mxu0 %v4167
        %4356 = vmatpush1.bf16.msra.mxu0 %v4166
        %4357 = vmatprep.subr.bf16.mxu0 %v4163
        %4358 = vmatpush1.bf16.msra.mxu0 %v4162
        %4359 = vmatprep.subr.bf16.mxu0 %v4159
        %4360 = vmatpush1.bf16.msra.mxu0 %v4158
        %4361 = vmatprep.subr.bf16.mxu0 %v4155
        %4362 = vmatpush1.bf16.msra.mxu0 %v4154
        %4363 = vmatprep.subr.bf16.mxu0 %v4151
        %4364 = vmatpush1.bf16.msra.mxu0 %v4150
        %4365 = vmatprep.subr.bf16.mxu0 %v4211
        %4366 = vmatpush2.bf16.msra.mxu0 %v4210
        %4367 = vmatprep.subr.bf16.mxu0 %v4207
        %4368 = vmatpush2.bf16.msra.mxu0 %v4206
        %4369 = vmatprep.subr.bf16.mxu0 %v4203
        %4370 = vmatpush2.bf16.msra.mxu0 %v4202
        %4371 = vmatprep.subr.bf16.mxu0 %v4199
        %4372 = vmatpush2.bf16.msra.mxu0 %v4198
        %4373 = vmatprep.subr.bf16.mxu0 %v4195
        %4374 = vmatpush2.bf16.msra.mxu0 %v4194
        %4375 = vmatprep.subr.bf16.mxu0 %v4191
        %4376 = vmatpush2.bf16.msra.mxu0 %v4190
        %4377 = vmatprep.subr.bf16.mxu0 %v4187
        %4378 = vmatpush2.bf16.msra.mxu0 %v4186
        %4379 = vmatprep.subr.bf16.mxu0 %v4183
        %4380 = vmatpush2.bf16.msra.mxu0 %v4182
        %4381 = vmatprep.mubr.bf16.mxu0 %v3884
        %4382 = vmatmul.mubr.bf16.gmra.mxu0 %v3883
        %v4383 = vpop.f32.mrf.mxu0
        %v4384 = vadd.f32 0.0, %v4383
        %v4385 = vpop.f32.mrf.mxu0
        %v4386 = vadd.f32 0.0, %v4385
        %v4387 = vpop.f32.mrf.mxu0
        %v4388 = vadd.f32 0.0, %v4387
        %v4389 = vpop.f32.mrf.mxu0
        %v4390 = vadd.f32 0.0, %v4389
        %4391 = vmatprep.mubr.bf16.mxu0 %v3886
        %4392 = vmatmul.mubr.bf16.gmra.mxu0 %v3885
        %v4393 = vpop.f32.mrf.mxu0
        %v4394 = vadd.f32 0.0, %v4393
        %v4395 = vpop.f32.mrf.mxu0
        %v4396 = vadd.f32 0.0, %v4395
        %v4397 = vpop.f32.mrf.mxu0
        %v4398 = vadd.f32 0.0, %v4397
        %v4399 = vpop.f32.mrf.mxu0
        %v4400 = vadd.f32 0.0, %v4399
        %4401 = vmatprep.mubr.bf16.mxu0 %v3888
        %4402 = vmatmul.mubr.bf16.gmra.mxu0 %v3887
        %v4403 = vpop.f32.mrf.mxu0
        %v4404 = vadd.f32 0.0, %v4403
        %v4405 = vpop.f32.mrf.mxu0
        %v4406 = vadd.f32 0.0, %v4405
        %v4407 = vpop.f32.mrf.mxu0
        %v4408 = vadd.f32 0.0, %v4407
        %v4409 = vpop.f32.mrf.mxu0
        %v4410 = vadd.f32 0.0, %v4409
        %4411 = vmatprep.mubr.bf16.mxu0 %v3890
        %4412 = vmatmul.mubr.bf16.gmra.mxu0 %v3889
        %v4413 = vpop.f32.mrf.mxu0
        %v4414 = vadd.f32 0.0, %v4413
        %v4415 = vpop.f32.mrf.mxu0
        %v4416 = vadd.f32 0.0, %v4415
        %v4417 = vpop.f32.mrf.mxu0
        %v4418 = vadd.f32 0.0, %v4417
        %v4419 = vpop.f32.mrf.mxu0
        %v4420 = vadd.f32 0.0, %v4419
        %4421 = vdwg.mxu0
        %v4486 = vunpack.c.l.b16 %v3817
        %v4487 = vunpack.c.h.b16 %v3817
        %v4488 = vunpack.c.l.b16 %v3818
        %v4489 = vunpack.c.h.b16 %v3818
        %v4490 = vunpack.c.l.b16 %v3819
        %v4491 = vunpack.c.h.b16 %v3819
        %v4492 = vunpack.c.l.b16 %v3820
        %v4493 = vunpack.c.h.b16 %v3820
        %v4494 = vunpack.c.l.b16 %v3821
        %v4495 = vunpack.c.h.b16 %v3821
        %v4496 = vunpack.c.l.b16 %v3822
        %v4497 = vunpack.c.h.b16 %v3822
        %v4498 = vunpack.c.l.b16 %v3823
        %v4499 = vunpack.c.h.b16 %v3823
        %v4500 = vunpack.c.l.b16 %v3824
        %v4501 = vunpack.c.h.b16 %v3824
        %v4502 = vunpack.c.l.b16 %v3825
        %v4503 = vunpack.c.h.b16 %v3825
        %v4504 = vunpack.c.l.b16 %v3826
        %v4505 = vunpack.c.h.b16 %v3826
        %v4506 = vunpack.c.l.b16 %v3827
        %v4507 = vunpack.c.h.b16 %v3827
        %v4508 = vunpack.c.l.b16 %v3828
        %v4509 = vunpack.c.h.b16 %v3828
        %v4510 = vunpack.c.l.b16 %v3829
        %v4511 = vunpack.c.h.b16 %v3829
        %v4512 = vunpack.c.l.b16 %v3830
        %v4513 = vunpack.c.h.b16 %v3830
        %v4514 = vunpack.c.l.b16 %v3831
        %v4515 = vunpack.c.h.b16 %v3831
        %v4516 = vunpack.c.l.b16 %v3832
        %v4517 = vunpack.c.h.b16 %v3832
        %v4518 = vunpack.c.l.b16 %v3833
        %v4519 = vunpack.c.h.b16 %v3833
        %v4520 = vunpack.c.l.b16 %v3834
        %v4521 = vunpack.c.h.b16 %v3834
        %v4522 = vunpack.c.l.b16 %v3835
        %v4523 = vunpack.c.h.b16 %v3835
        %v4524 = vunpack.c.l.b16 %v3836
        %v4525 = vunpack.c.h.b16 %v3836
        %v4526 = vunpack.c.l.b16 %v3837
        %v4527 = vunpack.c.h.b16 %v3837
        %v4528 = vunpack.c.l.b16 %v3838
        %v4529 = vunpack.c.h.b16 %v3838
        %v4530 = vunpack.c.l.b16 %v3839
        %v4531 = vunpack.c.h.b16 %v3839
        %v4532 = vunpack.c.l.b16 %v3840
        %v4533 = vunpack.c.h.b16 %v3840
        %v4534 = vunpack.c.l.b16 %v3841
        %v4535 = vunpack.c.h.b16 %v3841
        %v4536 = vunpack.c.l.b16 %v3842
        %v4537 = vunpack.c.h.b16 %v3842
        %v4538 = vunpack.c.l.b16 %v3843
        %v4539 = vunpack.c.h.b16 %v3843
        %v4540 = vunpack.c.l.b16 %v3844
        %v4541 = vunpack.c.h.b16 %v3844
        %v4542 = vunpack.c.l.b16 %v3845
        %v4543 = vunpack.c.h.b16 %v3845
        %v4544 = vunpack.c.l.b16 %v3846
        %v4545 = vunpack.c.h.b16 %v3846
        %v4546 = vunpack.c.l.b16 %v3847
        %v4547 = vunpack.c.h.b16 %v3847
        %v4548 = vunpack.c.l.b16 %v3848
        %v4549 = vunpack.c.h.b16 %v3848
        %v4550 = vunpack.c.l.b16 %v3849
        %v4551 = vunpack.c.h.b16 %v3849
        %v4552 = vunpack.c.l.b16 %v3850
        %v4553 = vunpack.c.h.b16 %v3850
        %v4554 = vunpack.c.l.b16 %v3851
        %v4555 = vunpack.c.h.b16 %v3851
        %v4556 = vunpack.c.l.b16 %v3852
        %v4557 = vunpack.c.h.b16 %v3852
        %v4558 = vunpack.c.l.b16 %v3853
        %v4559 = vunpack.c.h.b16 %v3853
        %v4560 = vunpack.c.l.b16 %v3854
        %v4561 = vunpack.c.h.b16 %v3854
        %v4562 = vunpack.c.l.b16 %v3855
        %v4563 = vunpack.c.h.b16 %v3855
        %v4564 = vunpack.c.l.b16 %v3856
        %v4565 = vunpack.c.h.b16 %v3856
        %v4566 = vunpack.c.l.b16 %v3857
        %v4567 = vunpack.c.h.b16 %v3857
        %v4568 = vunpack.c.l.b16 %v3858
        %v4569 = vunpack.c.h.b16 %v3858
        %v4570 = vunpack.c.l.b16 %v3859
        %v4571 = vunpack.c.h.b16 %v3859
        %v4572 = vunpack.c.l.b16 %v3860
        %v4573 = vunpack.c.h.b16 %v3860
        %v4574 = vunpack.c.l.b16 %v3861
        %v4575 = vunpack.c.h.b16 %v3861
        %v4576 = vunpack.c.l.b16 %v3862
        %v4577 = vunpack.c.h.b16 %v3862
        %v4578 = vunpack.c.l.b16 %v3863
        %v4579 = vunpack.c.h.b16 %v3863
        %v4580 = vunpack.c.l.b16 %v3864
        %v4581 = vunpack.c.h.b16 %v3864
        %v4582 = vunpack.c.l.b16 %v3865
        %v4583 = vunpack.c.h.b16 %v3865
        %v4584 = vunpack.c.l.b16 %v3866
        %v4585 = vunpack.c.h.b16 %v3866
        %v4586 = vunpack.c.l.b16 %v3867
        %v4587 = vunpack.c.h.b16 %v3867
        %v4588 = vunpack.c.l.b16 %v3868
        %v4589 = vunpack.c.h.b16 %v3868
        %v4590 = vunpack.c.l.b16 %v3869
        %v4591 = vunpack.c.h.b16 %v3869
        %v4592 = vunpack.c.l.b16 %v3870
        %v4593 = vunpack.c.h.b16 %v3870
        %v4594 = vunpack.c.l.b16 %v3871
        %v4595 = vunpack.c.h.b16 %v3871
        %v4596 = vunpack.c.l.b16 %v3872
        %v4597 = vunpack.c.h.b16 %v3872
        %v4598 = vunpack.c.l.b16 %v3873
        %v4599 = vunpack.c.h.b16 %v3873
        %v4600 = vunpack.c.l.b16 %v3874
        %v4601 = vunpack.c.h.b16 %v3874
        %v4602 = vunpack.c.l.b16 %v3875
        %v4603 = vunpack.c.h.b16 %v3875
        %v4604 = vunpack.c.l.b16 %v3876
        %v4605 = vunpack.c.h.b16 %v3876
        %v4606 = vunpack.c.l.b16 %v3877
        %v4607 = vunpack.c.h.b16 %v3877
        %v4608 = vunpack.c.l.b16 %v3878
        %v4609 = vunpack.c.h.b16 %v3878
        %v4610 = vunpack.c.l.b16 %v3879
        %v4611 = vunpack.c.h.b16 %v3879
        %v4612 = vunpack.c.l.b16 %v3880
        %v4613 = vunpack.c.h.b16 %v3880
        %v4614 = vpack.c.b16 %v4490, %v4486
        %v4615 = vpack.c.b16 %v4491, %v4487
        %v4616 = vpack.c.b16 %v4492, %v4488
        %v4617 = vpack.c.b16 %v4493, %v4489
        %v4618 = vpack.c.b16 %v4498, %v4494
        %v4619 = vpack.c.b16 %v4499, %v4495
        %v4620 = vpack.c.b16 %v4500, %v4496
        %v4621 = vpack.c.b16 %v4501, %v4497
        %v4622 = vpack.c.b16 %v4506, %v4502
        %v4623 = vpack.c.b16 %v4507, %v4503
        %v4624 = vpack.c.b16 %v4508, %v4504
        %v4625 = vpack.c.b16 %v4509, %v4505
        %v4626 = vpack.c.b16 %v4514, %v4510
        %v4627 = vpack.c.b16 %v4515, %v4511
        %v4628 = vpack.c.b16 %v4516, %v4512
        %v4629 = vpack.c.b16 %v4517, %v4513
        %v4630 = vpack.c.b16 %v4522, %v4518
        %v4631 = vpack.c.b16 %v4523, %v4519
        %v4632 = vpack.c.b16 %v4524, %v4520
        %v4633 = vpack.c.b16 %v4525, %v4521
        %v4634 = vpack.c.b16 %v4530, %v4526
        %v4635 = vpack.c.b16 %v4531, %v4527
        %v4636 = vpack.c.b16 %v4532, %v4528
        %v4637 = vpack.c.b16 %v4533, %v4529
        %v4638 = vpack.c.b16 %v4538, %v4534
        %v4639 = vpack.c.b16 %v4539, %v4535
        %v4640 = vpack.c.b16 %v4540, %v4536
        %v4641 = vpack.c.b16 %v4541, %v4537
        %v4642 = vpack.c.b16 %v4546, %v4542
        %v4643 = vpack.c.b16 %v4547, %v4543
        %v4644 = vpack.c.b16 %v4548, %v4544
        %v4645 = vpack.c.b16 %v4549, %v4545
        %v4646 = vpack.c.b16 %v4554, %v4550
        %v4647 = vpack.c.b16 %v4555, %v4551
        %v4648 = vpack.c.b16 %v4556, %v4552
        %v4649 = vpack.c.b16 %v4557, %v4553
        %v4650 = vpack.c.b16 %v4562, %v4558
        %v4651 = vpack.c.b16 %v4563, %v4559
        %v4652 = vpack.c.b16 %v4564, %v4560
        %v4653 = vpack.c.b16 %v4565, %v4561
        %v4654 = vpack.c.b16 %v4570, %v4566
        %v4655 = vpack.c.b16 %v4571, %v4567
        %v4656 = vpack.c.b16 %v4572, %v4568
        %v4657 = vpack.c.b16 %v4573, %v4569
        %v4658 = vpack.c.b16 %v4578, %v4574
        %v4659 = vpack.c.b16 %v4579, %v4575
        %v4660 = vpack.c.b16 %v4580, %v4576
        %v4661 = vpack.c.b16 %v4581, %v4577
        %v4662 = vpack.c.b16 %v4586, %v4582
        %v4663 = vpack.c.b16 %v4587, %v4583
        %v4664 = vpack.c.b16 %v4588, %v4584
        %v4665 = vpack.c.b16 %v4589, %v4585
        %v4666 = vpack.c.b16 %v4594, %v4590
        %v4667 = vpack.c.b16 %v4595, %v4591
        %v4668 = vpack.c.b16 %v4596, %v4592
        %v4669 = vpack.c.b16 %v4597, %v4593
        %v4670 = vpack.c.b16 %v4602, %v4598
        %v4671 = vpack.c.b16 %v4603, %v4599
        %v4672 = vpack.c.b16 %v4604, %v4600
        %v4673 = vpack.c.b16 %v4605, %v4601
        %v4674 = vpack.c.b16 %v4610, %v4606
        %v4675 = vpack.c.b16 %v4611, %v4607
        %v4676 = vpack.c.b16 %v4612, %v4608
        %v4677 = vpack.c.b16 %v4613, %v4609
        %4742 = vmatprep.subr.bf16.mxu0 %v4643
        %4743 = vmatpush1.bf16.msra.mxu0 %v4642
        %4744 = vmatprep.subr.bf16.mxu0 %v4639
        %4745 = vmatpush1.bf16.msra.mxu0 %v4638
        %4746 = vmatprep.subr.bf16.mxu0 %v4635
        %4747 = vmatpush1.bf16.msra.mxu0 %v4634
        %4748 = vmatprep.subr.bf16.mxu0 %v4631
        %4749 = vmatpush1.bf16.msra.mxu0 %v4630
        %4750 = vmatprep.subr.bf16.mxu0 %v4627
        %4751 = vmatpush1.bf16.msra.mxu0 %v4626
        %4752 = vmatprep.subr.bf16.mxu0 %v4623
        %4753 = vmatpush1.bf16.msra.mxu0 %v4622
        %4754 = vmatprep.subr.bf16.mxu0 %v4619
        %4755 = vmatpush1.bf16.msra.mxu0 %v4618
        %4756 = vmatprep.subr.bf16.mxu0 %v4615
        %4757 = vmatpush1.bf16.msra.mxu0 %v4614
        %4758 = vmatprep.subr.bf16.mxu0 %v4675
        %4759 = vmatpush2.bf16.msra.mxu0 %v4674
        %4760 = vmatprep.subr.bf16.mxu0 %v4671
        %4761 = vmatpush2.bf16.msra.mxu0 %v4670
        %4762 = vmatprep.subr.bf16.mxu0 %v4667
        %4763 = vmatpush2.bf16.msra.mxu0 %v4666
        %4764 = vmatprep.subr.bf16.mxu0 %v4663
        %4765 = vmatpush2.bf16.msra.mxu0 %v4662
        %4766 = vmatprep.subr.bf16.mxu0 %v4659
        %4767 = vmatpush2.bf16.msra.mxu0 %v4658
        %4768 = vmatprep.subr.bf16.mxu0 %v4655
        %4769 = vmatpush2.bf16.msra.mxu0 %v4654
        %4770 = vmatprep.subr.bf16.mxu0 %v4651
        %4771 = vmatpush2.bf16.msra.mxu0 %v4650
        %4772 = vmatprep.subr.bf16.mxu0 %v4647
        %4773 = vmatpush2.bf16.msra.mxu0 %v4646
        %4774 = vmatprep.mubr.bf16.mxu0 %v3810
        %4775 = vmatmul.mubr.bf16.gmra.mxu0 %v3809
        %v4776 = vpop.f32.mrf.mxu0
        %v4777 = vadd.f32 %v4311, %v4776
        %v4778 = vpop.f32.mrf.mxu0
        %v4779 = vadd.f32 %v4313, %v4778
        %v4780 = vpop.f32.mrf.mxu0
        %v4781 = vadd.f32 %v4315, %v4780
        %v4782 = vpop.f32.mrf.mxu0
        %v4783 = vadd.f32 %v4317, %v4782
        %4784 = vmatprep.mubr.bf16.mxu0 %v3812
        %4785 = vmatmul.mubr.bf16.gmra.mxu0 %v3811
        %v4786 = vpop.f32.mrf.mxu0
        %v4787 = vadd.f32 %v4321, %v4786
        %v4788 = vpop.f32.mrf.mxu0
        %v4789 = vadd.f32 %v4323, %v4788
        %v4790 = vpop.f32.mrf.mxu0
        %v4791 = vadd.f32 %v4325, %v4790
        %v4792 = vpop.f32.mrf.mxu0
        %v4793 = vadd.f32 %v4327, %v4792
        %4794 = vmatprep.mubr.bf16.mxu0 %v3814
        %4795 = vmatmul.mubr.bf16.gmra.mxu0 %v3813
        %v4796 = vpop.f32.mrf.mxu0
        %v4797 = vadd.f32 %v4331, %v4796
        %v4798 = vpop.f32.mrf.mxu0
        %v4799 = vadd.f32 %v4333, %v4798
        %v4800 = vpop.f32.mrf.mxu0
        %v4801 = vadd.f32 %v4335, %v4800
        %v4802 = vpop.f32.mrf.mxu0
        %v4803 = vadd.f32 %v4337, %v4802
        %4804 = vmatprep.mubr.bf16.mxu0 %v3816
        %4805 = vmatmul.mubr.bf16.gmra.mxu0 %v3815
        %v4806 = vpop.f32.mrf.mxu0
        %v4807 = vadd.f32 %v4341, %v4806
        %v4808 = vpop.f32.mrf.mxu0
        %v4809 = vadd.f32 %v4343, %v4808
        %v4810 = vpop.f32.mrf.mxu0
        %v4811 = vadd.f32 %v4345, %v4810
        %v4812 = vpop.f32.mrf.mxu0
        %v4813 = vadd.f32 %v4347, %v4812
        %4814 = vdwg.mxu0
        %4815 = vmatprep.subr.bf16.mxu0 %v4645
        %4816 = vmatpush1.bf16.msra.mxu0 %v4644
        %4817 = vmatprep.subr.bf16.mxu0 %v4641
        %4818 = vmatpush1.bf16.msra.mxu0 %v4640
        %4819 = vmatprep.subr.bf16.mxu0 %v4637
        %4820 = vmatpush1.bf16.msra.mxu0 %v4636
        %4821 = vmatprep.subr.bf16.mxu0 %v4633
        %4822 = vmatpush1.bf16.msra.mxu0 %v4632
        %4823 = vmatprep.subr.bf16.mxu0 %v4629
        %4824 = vmatpush1.bf16.msra.mxu0 %v4628
        %4825 = vmatprep.subr.bf16.mxu0 %v4625
        %4826 = vmatpush1.bf16.msra.mxu0 %v4624
        %4827 = vmatprep.subr.bf16.mxu0 %v4621
        %4828 = vmatpush1.bf16.msra.mxu0 %v4620
        %4829 = vmatprep.subr.bf16.mxu0 %v4617
        %4830 = vmatpush1.bf16.msra.mxu0 %v4616
        %4831 = vmatprep.subr.bf16.mxu0 %v4677
        %4832 = vmatpush2.bf16.msra.mxu0 %v4676
        %4833 = vmatprep.subr.bf16.mxu0 %v4673
        %4834 = vmatpush2.bf16.msra.mxu0 %v4672
        %4835 = vmatprep.subr.bf16.mxu0 %v4669
        %4836 = vmatpush2.bf16.msra.mxu0 %v4668
        %4837 = vmatprep.subr.bf16.mxu0 %v4665
        %4838 = vmatpush2.bf16.msra.mxu0 %v4664
        %4839 = vmatprep.subr.bf16.mxu0 %v4661
        %4840 = vmatpush2.bf16.msra.mxu0 %v4660
        %4841 = vmatprep.subr.bf16.mxu0 %v4657
        %4842 = vmatpush2.bf16.msra.mxu0 %v4656
        %4843 = vmatprep.subr.bf16.mxu0 %v4653
        %4844 = vmatpush2.bf16.msra.mxu0 %v4652
        %4845 = vmatprep.subr.bf16.mxu0 %v4649
        %4846 = vmatpush2.bf16.msra.mxu0 %v4648
        %4847 = vmatprep.mubr.bf16.mxu0 %v3810
        %4848 = vmatmul.mubr.bf16.gmra.mxu0 %v3809
        %v4849 = vpop.f32.mrf.mxu0
        %v4850 = vadd.f32 %v4384, %v4849
        %v4851 = vpop.f32.mrf.mxu0
        %v4852 = vadd.f32 %v4386, %v4851
        %v4853 = vpop.f32.mrf.mxu0
        %v4854 = vadd.f32 %v4388, %v4853
        %v4855 = vpop.f32.mrf.mxu0
        %v4856 = vadd.f32 %v4390, %v4855
        %4857 = vmatprep.mubr.bf16.mxu0 %v3812
        %4858 = vmatmul.mubr.bf16.gmra.mxu0 %v3811
        %v4859 = vpop.f32.mrf.mxu0
        %v4860 = vadd.f32 %v4394, %v4859
        %v4861 = vpop.f32.mrf.mxu0
        %v4862 = vadd.f32 %v4396, %v4861
        %v4863 = vpop.f32.mrf.mxu0
        %v4864 = vadd.f32 %v4398, %v4863
        %v4865 = vpop.f32.mrf.mxu0
        %v4866 = vadd.f32 %v4400, %v4865
        %4867 = vmatprep.mubr.bf16.mxu0 %v3814
        %4868 = vmatmul.mubr.bf16.gmra.mxu0 %v3813
        %v4869 = vpop.f32.mrf.mxu0
        %v4870 = vadd.f32 %v4404, %v4869
        %v4871 = vpop.f32.mrf.mxu0
        %v4872 = vadd.f32 %v4406, %v4871
        %v4873 = vpop.f32.mrf.mxu0
        %v4874 = vadd.f32 %v4408, %v4873
        %v4875 = vpop.f32.mrf.mxu0
        %v4876 = vadd.f32 %v4410, %v4875
        %4877 = vmatprep.mubr.bf16.mxu0 %v3816
        %4878 = vmatmul.mubr.bf16.gmra.mxu0 %v3815
        %v4879 = vpop.f32.mrf.mxu0
        %v4880 = vadd.f32 %v4414, %v4879
        %v4881 = vpop.f32.mrf.mxu0
        %v4882 = vadd.f32 %v4416, %v4881
        %v4883 = vpop.f32.mrf.mxu0
        %v4884 = vadd.f32 %v4418, %v4883
        %v4885 = vpop.f32.mrf.mxu0
        %v4886 = vadd.f32 %v4420, %v4885
        %4887 = vdwg.mxu0
        %v4888 = vld [vmem:[#allocation2 + $0x20] sm:$0xff]
        %v4889 = vld [vmem:[#allocation2 + $0x28] sm:$0xff]
        %v4890 = vld [vmem:[#allocation2 + $0x30] sm:$0xff]
        %v4891 = vld [vmem:[#allocation2 + $0x38] sm:$0xff]
        %v4892 = vld [vmem:[#allocation2 + $0x40] sm:$0xff]
        %v4893 = vld [vmem:[#allocation2 + $0x48] sm:$0xff]
        %v4894 = vld [vmem:[#allocation2 + $0x50] sm:$0xff]
        %v4895 = vld [vmem:[#allocation2 + $0x58] sm:$0xff]
        %v4896 = vld [vmem:[#allocation2 + $0x60] sm:$0xff]
        %v4897 = vld [vmem:[#allocation2 + $0x68] sm:$0xff]
        %v4898 = vld [vmem:[#allocation2 + $0x70] sm:$0xff]
        %v4899 = vld [vmem:[#allocation2 + $0x78] sm:$0xff]
        %v4900 = vld [vmem:[#allocation2 + $0x80] sm:$0xff]
        %v4901 = vld [vmem:[#allocation2 + $0x88] sm:$0xff]
        %v4902 = vld [vmem:[#allocation2 + $0x90] sm:$0xff]
        %v4903 = vld [vmem:[#allocation2 + $0x98] sm:$0xff]
        %v4904 = vpack.c.bf16 %v4890, %v4888
        %v4905 = vpack.c.bf16 %v4891, %v4889
        %v4906 = vpack.c.bf16 %v4894, %v4892
        %v4907 = vpack.c.bf16 %v4895, %v4893
        %v4908 = vpack.c.bf16 %v4898, %v4896
        %v4909 = vpack.c.bf16 %v4899, %v4897
        %v4910 = vpack.c.bf16 %v4902, %v4900
        %v4911 = vpack.c.bf16 %v4903, %v4901
        %s4912 = scalar_lea.vmem %s3, 1024
        %v4913 = vld [vmem:[%s4912] sm:$0xff]
        %v4914 = vld [vmem:[%s4912 + $0x8] sm:$0xff]
        %v4915 = vld [vmem:[%s4912 + $0x10] sm:$0xff]
        %v4916 = vld [vmem:[%s4912 + $0x18] sm:$0xff]
        %v4917 = vld [vmem:[%s4912 + $0x20] sm:$0xff]
        %v4918 = vld [vmem:[%s4912 + $0x28] sm:$0xff]
        %v4919 = vld [vmem:[%s4912 + $0x30] sm:$0xff]
        %v4920 = vld [vmem:[%s4912 + $0x38] sm:$0xff]
        %v4921 = vld [vmem:[%s4912 + $0x40] sm:$0xff]
        %v4922 = vld [vmem:[%s4912 + $0x48] sm:$0xff]
        %v4923 = vld [vmem:[%s4912 + $0x50] sm:$0xff]
        %v4924 = vld [vmem:[%s4912 + $0x58] sm:$0xff]
        %v4925 = vld [vmem:[%s4912 + $0x60] sm:$0xff]
        %v4926 = vld [vmem:[%s4912 + $0x68] sm:$0xff]
        %v4927 = vld [vmem:[%s4912 + $0x70] sm:$0xff]
        %v4928 = vld [vmem:[%s4912 + $0x78] sm:$0xff]
        %v4929 = vld [vmem:[%s4912 + $0x80] sm:$0xff]
        %v4930 = vld [vmem:[%s4912 + $0x88] sm:$0xff]
        %v4931 = vld [vmem:[%s4912 + $0x90] sm:$0xff]
        %v4932 = vld [vmem:[%s4912 + $0x98] sm:$0xff]
        %v4933 = vld [vmem:[%s4912 + $0xa0] sm:$0xff]
        %v4934 = vld [vmem:[%s4912 + $0xa8] sm:$0xff]
        %v4935 = vld [vmem:[%s4912 + $0xb0] sm:$0xff]
        %v4936 = vld [vmem:[%s4912 + $0xb8] sm:$0xff]
        %v4937 = vld [vmem:[%s4912 + $0xc0] sm:$0xff]
        %v4938 = vld [vmem:[%s4912 + $0xc8] sm:$0xff]
        %v4939 = vld [vmem:[%s4912 + $0xd0] sm:$0xff]
        %v4940 = vld [vmem:[%s4912 + $0xd8] sm:$0xff]
        %v4941 = vld [vmem:[%s4912 + $0xe0] sm:$0xff]
        %v4942 = vld [vmem:[%s4912 + $0xe8] sm:$0xff]
        %v4943 = vld [vmem:[%s4912 + $0xf0] sm:$0xff]
        %v4944 = vld [vmem:[%s4912 + $0xf8] sm:$0xff]
        %v4945 = vld [vmem:[%s4912 + $0x100] sm:$0xff]
        %v4946 = vld [vmem:[%s4912 + $0x108] sm:$0xff]
        %v4947 = vld [vmem:[%s4912 + $0x110] sm:$0xff]
        %v4948 = vld [vmem:[%s4912 + $0x118] sm:$0xff]
        %v4949 = vld [vmem:[%s4912 + $0x120] sm:$0xff]
        %v4950 = vld [vmem:[%s4912 + $0x128] sm:$0xff]
        %v4951 = vld [vmem:[%s4912 + $0x130] sm:$0xff]
        %v4952 = vld [vmem:[%s4912 + $0x138] sm:$0xff]
        %v4953 = vld [vmem:[%s4912 + $0x140] sm:$0xff]
        %v4954 = vld [vmem:[%s4912 + $0x148] sm:$0xff]
        %v4955 = vld [vmem:[%s4912 + $0x150] sm:$0xff]
        %v4956 = vld [vmem:[%s4912 + $0x158] sm:$0xff]
        %v4957 = vld [vmem:[%s4912 + $0x160] sm:$0xff]
        %v4958 = vld [vmem:[%s4912 + $0x168] sm:$0xff]
        %v4959 = vld [vmem:[%s4912 + $0x170] sm:$0xff]
        %v4960 = vld [vmem:[%s4912 + $0x178] sm:$0xff]
        %v4961 = vld [vmem:[%s4912 + $0x180] sm:$0xff]
        %v4962 = vld [vmem:[%s4912 + $0x188] sm:$0xff]
        %v4963 = vld [vmem:[%s4912 + $0x190] sm:$0xff]
        %v4964 = vld [vmem:[%s4912 + $0x198] sm:$0xff]
        %v4965 = vld [vmem:[%s4912 + $0x1a0] sm:$0xff]
        %v4966 = vld [vmem:[%s4912 + $0x1a8] sm:$0xff]
        %v4967 = vld [vmem:[%s4912 + $0x1b0] sm:$0xff]
        %v4968 = vld [vmem:[%s4912 + $0x1b8] sm:$0xff]
        %v4969 = vld [vmem:[%s4912 + $0x1c0] sm:$0xff]
        %v4970 = vld [vmem:[%s4912 + $0x1c8] sm:$0xff]
        %v4971 = vld [vmem:[%s4912 + $0x1d0] sm:$0xff]
        %v4972 = vld [vmem:[%s4912 + $0x1d8] sm:$0xff]
        %v4973 = vld [vmem:[%s4912 + $0x1e0] sm:$0xff]
        %v4974 = vld [vmem:[%s4912 + $0x1e8] sm:$0xff]
        %v4975 = vld [vmem:[%s4912 + $0x1f0] sm:$0xff]
        %v4976 = vld [vmem:[%s4912 + $0x1f8] sm:$0xff]
        %v5041 = vunpack.c.l.b16 %v4913
        %v5042 = vunpack.c.h.b16 %v4913
        %v5043 = vunpack.c.l.b16 %v4914
        %v5044 = vunpack.c.h.b16 %v4914
        %v5045 = vunpack.c.l.b16 %v4915
        %v5046 = vunpack.c.h.b16 %v4915
        %v5047 = vunpack.c.l.b16 %v4916
        %v5048 = vunpack.c.h.b16 %v4916
        %v5049 = vunpack.c.l.b16 %v4917
        %v5050 = vunpack.c.h.b16 %v4917
        %v5051 = vunpack.c.l.b16 %v4918
        %v5052 = vunpack.c.h.b16 %v4918
        %v5053 = vunpack.c.l.b16 %v4919
        %v5054 = vunpack.c.h.b16 %v4919
        %v5055 = vunpack.c.l.b16 %v4920
        %v5056 = vunpack.c.h.b16 %v4920
        %v5057 = vunpack.c.l.b16 %v4921
        %v5058 = vunpack.c.h.b16 %v4921
        %v5059 = vunpack.c.l.b16 %v4922
        %v5060 = vunpack.c.h.b16 %v4922
        %v5061 = vunpack.c.l.b16 %v4923
        %v5062 = vunpack.c.h.b16 %v4923
        %v5063 = vunpack.c.l.b16 %v4924
        %v5064 = vunpack.c.h.b16 %v4924
        %v5065 = vunpack.c.l.b16 %v4925
        %v5066 = vunpack.c.h.b16 %v4925
        %v5067 = vunpack.c.l.b16 %v4926
        %v5068 = vunpack.c.h.b16 %v4926
        %v5069 = vunpack.c.l.b16 %v4927
        %v5070 = vunpack.c.h.b16 %v4927
        %v5071 = vunpack.c.l.b16 %v4928
        %v5072 = vunpack.c.h.b16 %v4928
        %v5073 = vunpack.c.l.b16 %v4929
        %v5074 = vunpack.c.h.b16 %v4929
        %v5075 = vunpack.c.l.b16 %v4930
        %v5076 = vunpack.c.h.b16 %v4930
        %v5077 = vunpack.c.l.b16 %v4931
        %v5078 = vunpack.c.h.b16 %v4931
        %v5079 = vunpack.c.l.b16 %v4932
        %v5080 = vunpack.c.h.b16 %v4932
        %v5081 = vunpack.c.l.b16 %v4933
        %v5082 = vunpack.c.h.b16 %v4933
        %v5083 = vunpack.c.l.b16 %v4934
        %v5084 = vunpack.c.h.b16 %v4934
        %v5085 = vunpack.c.l.b16 %v4935
        %v5086 = vunpack.c.h.b16 %v4935
        %v5087 = vunpack.c.l.b16 %v4936
        %v5088 = vunpack.c.h.b16 %v4936
        %v5089 = vunpack.c.l.b16 %v4937
        %v5090 = vunpack.c.h.b16 %v4937
        %v5091 = vunpack.c.l.b16 %v4938
        %v5092 = vunpack.c.h.b16 %v4938
        %v5093 = vunpack.c.l.b16 %v4939
        %v5094 = vunpack.c.h.b16 %v4939
        %v5095 = vunpack.c.l.b16 %v4940
        %v5096 = vunpack.c.h.b16 %v4940
        %v5097 = vunpack.c.l.b16 %v4941
        %v5098 = vunpack.c.h.b16 %v4941
        %v5099 = vunpack.c.l.b16 %v4942
        %v5100 = vunpack.c.h.b16 %v4942
        %v5101 = vunpack.c.l.b16 %v4943
        %v5102 = vunpack.c.h.b16 %v4943
        %v5103 = vunpack.c.l.b16 %v4944
        %v5104 = vunpack.c.h.b16 %v4944
        %v5105 = vunpack.c.l.b16 %v4945
        %v5106 = vunpack.c.h.b16 %v4945
        %v5107 = vunpack.c.l.b16 %v4946
        %v5108 = vunpack.c.h.b16 %v4946
        %v5109 = vunpack.c.l.b16 %v4947
        %v5110 = vunpack.c.h.b16 %v4947
        %v5111 = vunpack.c.l.b16 %v4948
        %v5112 = vunpack.c.h.b16 %v4948
        %v5113 = vunpack.c.l.b16 %v4949
        %v5114 = vunpack.c.h.b16 %v4949
        %v5115 = vunpack.c.l.b16 %v4950
        %v5116 = vunpack.c.h.b16 %v4950
        %v5117 = vunpack.c.l.b16 %v4951
        %v5118 = vunpack.c.h.b16 %v4951
        %v5119 = vunpack.c.l.b16 %v4952
        %v5120 = vunpack.c.h.b16 %v4952
        %v5121 = vunpack.c.l.b16 %v4953
        %v5122 = vunpack.c.h.b16 %v4953
        %v5123 = vunpack.c.l.b16 %v4954
        %v5124 = vunpack.c.h.b16 %v4954
        %v5125 = vunpack.c.l.b16 %v4955
        %v5126 = vunpack.c.h.b16 %v4955
        %v5127 = vunpack.c.l.b16 %v4956
        %v5128 = vunpack.c.h.b16 %v4956
        %v5129 = vunpack.c.l.b16 %v4957
        %v5130 = vunpack.c.h.b16 %v4957
        %v5131 = vunpack.c.l.b16 %v4958
        %v5132 = vunpack.c.h.b16 %v4958
        %v5133 = vunpack.c.l.b16 %v4959
        %v5134 = vunpack.c.h.b16 %v4959
        %v5135 = vunpack.c.l.b16 %v4960
        %v5136 = vunpack.c.h.b16 %v4960
        %v5137 = vunpack.c.l.b16 %v4961
        %v5138 = vunpack.c.h.b16 %v4961
        %v5139 = vunpack.c.l.b16 %v4962
        %v5140 = vunpack.c.h.b16 %v4962
        %v5141 = vunpack.c.l.b16 %v4963
        %v5142 = vunpack.c.h.b16 %v4963
        %v5143 = vunpack.c.l.b16 %v4964
        %v5144 = vunpack.c.h.b16 %v4964
        %v5145 = vunpack.c.l.b16 %v4965
        %v5146 = vunpack.c.h.b16 %v4965
        %v5147 = vunpack.c.l.b16 %v4966
        %v5148 = vunpack.c.h.b16 %v4966
        %v5149 = vunpack.c.l.b16 %v4967
        %v5150 = vunpack.c.h.b16 %v4967
        %v5151 = vunpack.c.l.b16 %v4968
        %v5152 = vunpack.c.h.b16 %v4968
        %v5153 = vunpack.c.l.b16 %v4969
        %v5154 = vunpack.c.h.b16 %v4969
        %v5155 = vunpack.c.l.b16 %v4970
        %v5156 = vunpack.c.h.b16 %v4970
        %v5157 = vunpack.c.l.b16 %v4971
        %v5158 = vunpack.c.h.b16 %v4971
        %v5159 = vunpack.c.l.b16 %v4972
        %v5160 = vunpack.c.h.b16 %v4972
        %v5161 = vunpack.c.l.b16 %v4973
        %v5162 = vunpack.c.h.b16 %v4973
        %v5163 = vunpack.c.l.b16 %v4974
        %v5164 = vunpack.c.h.b16 %v4974
        %v5165 = vunpack.c.l.b16 %v4975
        %v5166 = vunpack.c.h.b16 %v4975
        %v5167 = vunpack.c.l.b16 %v4976
        %v5168 = vunpack.c.h.b16 %v4976
        %v5169 = vpack.c.b16 %v5045, %v5041
        %v5170 = vpack.c.b16 %v5046, %v5042
        %v5171 = vpack.c.b16 %v5047, %v5043
        %v5172 = vpack.c.b16 %v5048, %v5044
        %v5173 = vpack.c.b16 %v5053, %v5049
        %v5174 = vpack.c.b16 %v5054, %v5050
        %v5175 = vpack.c.b16 %v5055, %v5051
        %v5176 = vpack.c.b16 %v5056, %v5052
        %v5177 = vpack.c.b16 %v5061, %v5057
        %v5178 = vpack.c.b16 %v5062, %v5058
        %v5179 = vpack.c.b16 %v5063, %v5059
        %v5180 = vpack.c.b16 %v5064, %v5060
        %v5181 = vpack.c.b16 %v5069, %v5065
        %v5182 = vpack.c.b16 %v5070, %v5066
        %v5183 = vpack.c.b16 %v5071, %v5067
        %v5184 = vpack.c.b16 %v5072, %v5068
        %v5185 = vpack.c.b16 %v5077, %v5073
        %v5186 = vpack.c.b16 %v5078, %v5074
        %v5187 = vpack.c.b16 %v5079, %v5075
        %v5188 = vpack.c.b16 %v5080, %v5076
        %v5189 = vpack.c.b16 %v5085, %v5081
        %v5190 = vpack.c.b16 %v5086, %v5082
        %v5191 = vpack.c.b16 %v5087, %v5083
        %v5192 = vpack.c.b16 %v5088, %v5084
        %v5193 = vpack.c.b16 %v5093, %v5089
        %v5194 = vpack.c.b16 %v5094, %v5090
        %v5195 = vpack.c.b16 %v5095, %v5091
        %v5196 = vpack.c.b16 %v5096, %v5092
        %v5197 = vpack.c.b16 %v5101, %v5097
        %v5198 = vpack.c.b16 %v5102, %v5098
        %v5199 = vpack.c.b16 %v5103, %v5099
        %v5200 = vpack.c.b16 %v5104, %v5100
        %v5201 = vpack.c.b16 %v5109, %v5105
        %v5202 = vpack.c.b16 %v5110, %v5106
        %v5203 = vpack.c.b16 %v5111, %v5107
        %v5204 = vpack.c.b16 %v5112, %v5108
        %v5205 = vpack.c.b16 %v5117, %v5113
        %v5206 = vpack.c.b16 %v5118, %v5114
        %v5207 = vpack.c.b16 %v5119, %v5115
        %v5208 = vpack.c.b16 %v5120, %v5116
        %v5209 = vpack.c.b16 %v5125, %v5121
        %v5210 = vpack.c.b16 %v5126, %v5122
        %v5211 = vpack.c.b16 %v5127, %v5123
        %v5212 = vpack.c.b16 %v5128, %v5124
        %v5213 = vpack.c.b16 %v5133, %v5129
        %v5214 = vpack.c.b16 %v5134, %v5130
        %v5215 = vpack.c.b16 %v5135, %v5131
        %v5216 = vpack.c.b16 %v5136, %v5132
        %v5217 = vpack.c.b16 %v5141, %v5137
        %v5218 = vpack.c.b16 %v5142, %v5138
        %v5219 = vpack.c.b16 %v5143, %v5139
        %v5220 = vpack.c.b16 %v5144, %v5140
        %v5221 = vpack.c.b16 %v5149, %v5145
        %v5222 = vpack.c.b16 %v5150, %v5146
        %v5223 = vpack.c.b16 %v5151, %v5147
        %v5224 = vpack.c.b16 %v5152, %v5148
        %v5225 = vpack.c.b16 %v5157, %v5153
        %v5226 = vpack.c.b16 %v5158, %v5154
        %v5227 = vpack.c.b16 %v5159, %v5155
        %v5228 = vpack.c.b16 %v5160, %v5156
        %v5229 = vpack.c.b16 %v5165, %v5161
        %v5230 = vpack.c.b16 %v5166, %v5162
        %v5231 = vpack.c.b16 %v5167, %v5163
        %v5232 = vpack.c.b16 %v5168, %v5164
        %5297 = vmatprep.subr.bf16.mxu0 %v5198
        %5298 = vmatpush1.bf16.msra.mxu0 %v5197
        %5299 = vmatprep.subr.bf16.mxu0 %v5194
        %5300 = vmatpush1.bf16.msra.mxu0 %v5193
        %5301 = vmatprep.subr.bf16.mxu0 %v5190
        %5302 = vmatpush1.bf16.msra.mxu0 %v5189
        %5303 = vmatprep.subr.bf16.mxu0 %v5186
        %5304 = vmatpush1.bf16.msra.mxu0 %v5185
        %5305 = vmatprep.subr.bf16.mxu0 %v5182
        %5306 = vmatpush1.bf16.msra.mxu0 %v5181
        %5307 = vmatprep.subr.bf16.mxu0 %v5178
        %5308 = vmatpush1.bf16.msra.mxu0 %v5177
        %5309 = vmatprep.subr.bf16.mxu0 %v5174
        %5310 = vmatpush1.bf16.msra.mxu0 %v5173
        %5311 = vmatprep.subr.bf16.mxu0 %v5170
        %5312 = vmatpush1.bf16.msra.mxu0 %v5169
        %5313 = vmatprep.subr.bf16.mxu0 %v5230
        %5314 = vmatpush2.bf16.msra.mxu0 %v5229
        %5315 = vmatprep.subr.bf16.mxu0 %v5226
        %5316 = vmatpush2.bf16.msra.mxu0 %v5225
        %5317 = vmatprep.subr.bf16.mxu0 %v5222
        %5318 = vmatpush2.bf16.msra.mxu0 %v5221
        %5319 = vmatprep.subr.bf16.mxu0 %v5218
        %5320 = vmatpush2.bf16.msra.mxu0 %v5217
        %5321 = vmatprep.subr.bf16.mxu0 %v5214
        %5322 = vmatpush2.bf16.msra.mxu0 %v5213
        %5323 = vmatprep.subr.bf16.mxu0 %v5210
        %5324 = vmatpush2.bf16.msra.mxu0 %v5209
        %5325 = vmatprep.subr.bf16.mxu0 %v5206
        %5326 = vmatpush2.bf16.msra.mxu0 %v5205
        %5327 = vmatprep.subr.bf16.mxu0 %v5202
        %5328 = vmatpush2.bf16.msra.mxu0 %v5201
        %5329 = vmatprep.mubr.bf16.mxu0 %v4905
        %5330 = vmatmul.mubr.bf16.gmra.mxu0 %v4904
        %v5331 = vpop.f32.mrf.mxu0
        %v5332 = vadd.f32 0.0, %v5331
        %v5333 = vpop.f32.mrf.mxu0
        %v5334 = vadd.f32 0.0, %v5333
        %v5335 = vpop.f32.mrf.mxu0
        %v5336 = vadd.f32 0.0, %v5335
        %v5337 = vpop.f32.mrf.mxu0
        %v5338 = vadd.f32 0.0, %v5337
        %5339 = vmatprep.mubr.bf16.mxu0 %v4907
        %5340 = vmatmul.mubr.bf16.gmra.mxu0 %v4906
        %v5341 = vpop.f32.mrf.mxu0
        %v5342 = vadd.f32 0.0, %v5341
        %v5343 = vpop.f32.mrf.mxu0
        %v5344 = vadd.f32 0.0, %v5343
        %v5345 = vpop.f32.mrf.mxu0
        %v5346 = vadd.f32 0.0, %v5345
        %v5347 = vpop.f32.mrf.mxu0
        %v5348 = vadd.f32 0.0, %v5347
        %5349 = vmatprep.mubr.bf16.mxu0 %v4909
        %5350 = vmatmul.mubr.bf16.gmra.mxu0 %v4908
        %v5351 = vpop.f32.mrf.mxu0
        %v5352 = vadd.f32 0.0, %v5351
        %v5353 = vpop.f32.mrf.mxu0
        %v5354 = vadd.f32 0.0, %v5353
        %v5355 = vpop.f32.mrf.mxu0
        %v5356 = vadd.f32 0.0, %v5355
        %v5357 = vpop.f32.mrf.mxu0
        %v5358 = vadd.f32 0.0, %v5357
        %5359 = vmatprep.mubr.bf16.mxu0 %v4911
        %5360 = vmatmul.mubr.bf16.gmra.mxu0 %v4910
        %v5361 = vpop.f32.mrf.mxu0
        %v5362 = vadd.f32 0.0, %v5361
        %v5363 = vpop.f32.mrf.mxu0
        %v5364 = vadd.f32 0.0, %v5363
        %v5365 = vpop.f32.mrf.mxu0
        %v5366 = vadd.f32 0.0, %v5365
        %v5367 = vpop.f32.mrf.mxu0
        %v5368 = vadd.f32 0.0, %v5367
        %5369 = vdwg.mxu0
        %5370 = vmatprep.subr.bf16.mxu0 %v5200
        %5371 = vmatpush1.bf16.msra.mxu0 %v5199
        %5372 = vmatprep.subr.bf16.mxu0 %v5196
        %5373 = vmatpush1.bf16.msra.mxu0 %v5195
        %5374 = vmatprep.subr.bf16.mxu0 %v5192
        %5375 = vmatpush1.bf16.msra.mxu0 %v5191
        %5376 = vmatprep.subr.bf16.mxu0 %v5188
        %5377 = vmatpush1.bf16.msra.mxu0 %v5187
        %5378 = vmatprep.subr.bf16.mxu0 %v5184
        %5379 = vmatpush1.bf16.msra.mxu0 %v5183
        %5380 = vmatprep.subr.bf16.mxu0 %v5180
        %5381 = vmatpush1.bf16.msra.mxu0 %v5179
        %5382 = vmatprep.subr.bf16.mxu0 %v5176
        %5383 = vmatpush1.bf16.msra.mxu0 %v5175
        %5384 = vmatprep.subr.bf16.mxu0 %v5172
        %5385 = vmatpush1.bf16.msra.mxu0 %v5171
        %5386 = vmatprep.subr.bf16.mxu0 %v5232
        %5387 = vmatpush2.bf16.msra.mxu0 %v5231
        %5388 = vmatprep.subr.bf16.mxu0 %v5228
        %5389 = vmatpush2.bf16.msra.mxu0 %v5227
        %5390 = vmatprep.subr.bf16.mxu0 %v5224
        %5391 = vmatpush2.bf16.msra.mxu0 %v5223
        %5392 = vmatprep.subr.bf16.mxu0 %v5220
        %5393 = vmatpush2.bf16.msra.mxu0 %v5219
        %5394 = vmatprep.subr.bf16.mxu0 %v5216
        %5395 = vmatpush2.bf16.msra.mxu0 %v5215
        %5396 = vmatprep.subr.bf16.mxu0 %v5212
        %5397 = vmatpush2.bf16.msra.mxu0 %v5211
        %5398 = vmatprep.subr.bf16.mxu0 %v5208
        %5399 = vmatpush2.bf16.msra.mxu0 %v5207
        %5400 = vmatprep.subr.bf16.mxu0 %v5204
        %5401 = vmatpush2.bf16.msra.mxu0 %v5203
        %5402 = vmatprep.mubr.bf16.mxu0 %v4905
        %5403 = vmatmul.mubr.bf16.gmra.mxu0 %v4904
        %v5404 = vpop.f32.mrf.mxu0
        %v5405 = vadd.f32 0.0, %v5404
        %v5406 = vpop.f32.mrf.mxu0
        %v5407 = vadd.f32 0.0, %v5406
        %v5408 = vpop.f32.mrf.mxu0
        %v5409 = vadd.f32 0.0, %v5408
        %v5410 = vpop.f32.mrf.mxu0
        %v5411 = vadd.f32 0.0, %v5410
        %5412 = vmatprep.mubr.bf16.mxu0 %v4907
        %5413 = vmatmul.mubr.bf16.gmra.mxu0 %v4906
        %v5414 = vpop.f32.mrf.mxu0
        %v5415 = vadd.f32 0.0, %v5414
        %v5416 = vpop.f32.mrf.mxu0
        %v5417 = vadd.f32 0.0, %v5416
        %v5418 = vpop.f32.mrf.mxu0
        %v5419 = vadd.f32 0.0, %v5418
        %v5420 = vpop.f32.mrf.mxu0
        %v5421 = vadd.f32 0.0, %v5420
        %5422 = vmatprep.mubr.bf16.mxu0 %v4909
        %5423 = vmatmul.mubr.bf16.gmra.mxu0 %v4908
        %v5424 = vpop.f32.mrf.mxu0
        %v5425 = vadd.f32 0.0, %v5424
        %v5426 = vpop.f32.mrf.mxu0
        %v5427 = vadd.f32 0.0, %v5426
        %v5428 = vpop.f32.mrf.mxu0
        %v5429 = vadd.f32 0.0, %v5428
        %v5430 = vpop.f32.mrf.mxu0
        %v5431 = vadd.f32 0.0, %v5430
        %5432 = vmatprep.mubr.bf16.mxu0 %v4911
        %5433 = vmatmul.mubr.bf16.gmra.mxu0 %v4910
        %v5434 = vpop.f32.mrf.mxu0
        %v5435 = vadd.f32 0.0, %v5434
        %v5436 = vpop.f32.mrf.mxu0
        %v5437 = vadd.f32 0.0, %v5436
        %v5438 = vpop.f32.mrf.mxu0
        %v5439 = vadd.f32 0.0, %v5438
        %v5440 = vpop.f32.mrf.mxu0
        %v5441 = vadd.f32 0.0, %v5440
        %5442 = vdwg.mxu0
        %v5443 = vadd.f32 %v4777, %v5332
        %v5444 = vadd.f32 %v4779, %v5334
        %v5445 = vadd.f32 %v4850, %v5405
        %v5446 = vadd.f32 %v4852, %v5407
        %v5447 = vadd.f32 %v4781, %v5336
        %v5448 = vadd.f32 %v4783, %v5338
        %v5449 = vadd.f32 %v4854, %v5409
        %v5450 = vadd.f32 %v4856, %v5411
        %v5451 = vadd.f32 %v4787, %v5342
        %v5452 = vadd.f32 %v4789, %v5344
        %v5453 = vadd.f32 %v4860, %v5415
        %v5454 = vadd.f32 %v4862, %v5417
        %v5455 = vadd.f32 %v4791, %v5346
        %v5456 = vadd.f32 %v4793, %v5348
        %v5457 = vadd.f32 %v4864, %v5419
        %v5458 = vadd.f32 %v4866, %v5421
        %v5459 = vadd.f32 %v4797, %v5352
        %v5460 = vadd.f32 %v4799, %v5354
        %v5461 = vadd.f32 %v4870, %v5425
        %v5462 = vadd.f32 %v4872, %v5427
        %v5463 = vadd.f32 %v4801, %v5356
        %v5464 = vadd.f32 %v4803, %v5358
        %v5465 = vadd.f32 %v4874, %v5429
        %v5466 = vadd.f32 %v4876, %v5431
        %v5467 = vadd.f32 %v4807, %v5362
        %v5468 = vadd.f32 %v4809, %v5364
        %v5469 = vadd.f32 %v4880, %v5435
        %v5470 = vadd.f32 %v4882, %v5437
        %v5471 = vadd.f32 %v4811, %v5366
        %v5472 = vadd.f32 %v4813, %v5368
        %v5473 = vadd.f32 %v4884, %v5439
        %v5474 = vadd.f32 %v4886, %v5441
        %v5475 = vld [vmem:[#allocation2 + $0x30] sm:$0xff]
        %v5476 = vld [vmem:[#allocation2 + $0x38] sm:$0xff]
        %v5477 = vld [vmem:[#allocation2 + $0x40] sm:$0xff]
        %v5478 = vld [vmem:[#allocation2 + $0x48] sm:$0xff]
        %v5479 = vld [vmem:[#allocation2 + $0x50] sm:$0xff]
        %v5480 = vld [vmem:[#allocation2 + $0x58] sm:$0xff]
        %v5481 = vld [vmem:[#allocation2 + $0x60] sm:$0xff]
        %v5482 = vld [vmem:[#allocation2 + $0x68] sm:$0xff]
        %v5483 = vld [vmem:[#allocation2 + $0x70] sm:$0xff]
        %v5484 = vld [vmem:[#allocation2 + $0x78] sm:$0xff]
        %v5485 = vld [vmem:[#allocation2 + $0x80] sm:$0xff]
        %v5486 = vld [vmem:[#allocation2 + $0x88] sm:$0xff]
        %v5487 = vld [vmem:[#allocation2 + $0x90] sm:$0xff]
        %v5488 = vld [vmem:[#allocation2 + $0x98] sm:$0xff]
        %v5489 = vld [vmem:[#allocation2 + $0xa0] sm:$0xff]
        %v5490 = vld [vmem:[#allocation2 + $0xa8] sm:$0xff]
        %v5491 = vpack.c.bf16 %v5477, %v5475
        %v5492 = vpack.c.bf16 %v5478, %v5476
        %v5493 = vpack.c.bf16 %v5481, %v5479
        %v5494 = vpack.c.bf16 %v5482, %v5480
        %v5495 = vpack.c.bf16 %v5485, %v5483
        %v5496 = vpack.c.bf16 %v5486, %v5484
        %v5497 = vpack.c.bf16 %v5489, %v5487
        %v5498 = vpack.c.bf16 %v5490, %v5488
        %s5499 = scalar_lea.vmem %s3, 1536
        %v5500 = vld [vmem:[%s5499] sm:$0xff]
        %v5501 = vld [vmem:[%s5499 + $0x8] sm:$0xff]
        %v5502 = vld [vmem:[%s5499 + $0x10] sm:$0xff]
        %v5503 = vld [vmem:[%s5499 + $0x18] sm:$0xff]
        %v5504 = vld [vmem:[%s5499 + $0x20] sm:$0xff]
        %v5505 = vld [vmem:[%s5499 + $0x28] sm:$0xff]
        %v5506 = vld [vmem:[%s5499 + $0x30] sm:$0xff]
        %v5507 = vld [vmem:[%s5499 + $0x38] sm:$0xff]
        %v5508 = vld [vmem:[%s5499 + $0x40] sm:$0xff]
        %v5509 = vld [vmem:[%s5499 + $0x48] sm:$0xff]
        %v5510 = vld [vmem:[%s5499 + $0x50] sm:$0xff]
        %v5511 = vld [vmem:[%s5499 + $0x58] sm:$0xff]
        %v5512 = vld [vmem:[%s5499 + $0x60] sm:$0xff]
        %v5513 = vld [vmem:[%s5499 + $0x68] sm:$0xff]
        %v5514 = vld [vmem:[%s5499 + $0x70] sm:$0xff]
        %v5515 = vld [vmem:[%s5499 + $0x78] sm:$0xff]
        %v5516 = vld [vmem:[%s5499 + $0x80] sm:$0xff]
        %v5517 = vld [vmem:[%s5499 + $0x88] sm:$0xff]
        %v5518 = vld [vmem:[%s5499 + $0x90] sm:$0xff]
        %v5519 = vld [vmem:[%s5499 + $0x98] sm:$0xff]
        %v5520 = vld [vmem:[%s5499 + $0xa0] sm:$0xff]
        %v5521 = vld [vmem:[%s5499 + $0xa8] sm:$0xff]
        %v5522 = vld [vmem:[%s5499 + $0xb0] sm:$0xff]
        %v5523 = vld [vmem:[%s5499 + $0xb8] sm:$0xff]
        %v5524 = vld [vmem:[%s5499 + $0xc0] sm:$0xff]
        %v5525 = vld [vmem:[%s5499 + $0xc8] sm:$0xff]
        %v5526 = vld [vmem:[%s5499 + $0xd0] sm:$0xff]
        %v5527 = vld [vmem:[%s5499 + $0xd8] sm:$0xff]
        %v5528 = vld [vmem:[%s5499 + $0xe0] sm:$0xff]
        %v5529 = vld [vmem:[%s5499 + $0xe8] sm:$0xff]
        %v5530 = vld [vmem:[%s5499 + $0xf0] sm:$0xff]
        %v5531 = vld [vmem:[%s5499 + $0xf8] sm:$0xff]
        %v5532 = vld [vmem:[%s5499 + $0x100] sm:$0xff]
        %v5533 = vld [vmem:[%s5499 + $0x108] sm:$0xff]
        %v5534 = vld [vmem:[%s5499 + $0x110] sm:$0xff]
        %v5535 = vld [vmem:[%s5499 + $0x118] sm:$0xff]
        %v5536 = vld [vmem:[%s5499 + $0x120] sm:$0xff]
        %v5537 = vld [vmem:[%s5499 + $0x128] sm:$0xff]
        %v5538 = vld [vmem:[%s5499 + $0x130] sm:$0xff]
        %v5539 = vld [vmem:[%s5499 + $0x138] sm:$0xff]
        %v5540 = vld [vmem:[%s5499 + $0x140] sm:$0xff]
        %v5541 = vld [vmem:[%s5499 + $0x148] sm:$0xff]
        %v5542 = vld [vmem:[%s5499 + $0x150] sm:$0xff]
        %v5543 = vld [vmem:[%s5499 + $0x158] sm:$0xff]
        %v5544 = vld [vmem:[%s5499 + $0x160] sm:$0xff]
        %v5545 = vld [vmem:[%s5499 + $0x168] sm:$0xff]
        %v5546 = vld [vmem:[%s5499 + $0x170] sm:$0xff]
        %v5547 = vld [vmem:[%s5499 + $0x178] sm:$0xff]
        %v5548 = vld [vmem:[%s5499 + $0x180] sm:$0xff]
        %v5549 = vld [vmem:[%s5499 + $0x188] sm:$0xff]
        %v5550 = vld [vmem:[%s5499 + $0x190] sm:$0xff]
        %v5551 = vld [vmem:[%s5499 + $0x198] sm:$0xff]
        %v5552 = vld [vmem:[%s5499 + $0x1a0] sm:$0xff]
        %v5553 = vld [vmem:[%s5499 + $0x1a8] sm:$0xff]
        %v5554 = vld [vmem:[%s5499 + $0x1b0] sm:$0xff]
        %v5555 = vld [vmem:[%s5499 + $0x1b8] sm:$0xff]
        %v5556 = vld [vmem:[%s5499 + $0x1c0] sm:$0xff]
        %v5557 = vld [vmem:[%s5499 + $0x1c8] sm:$0xff]
        %v5558 = vld [vmem:[%s5499 + $0x1d0] sm:$0xff]
        %v5559 = vld [vmem:[%s5499 + $0x1d8] sm:$0xff]
        %v5560 = vld [vmem:[%s5499 + $0x1e0] sm:$0xff]
        %v5561 = vld [vmem:[%s5499 + $0x1e8] sm:$0xff]
        %v5562 = vld [vmem:[%s5499 + $0x1f0] sm:$0xff]
        %v5563 = vld [vmem:[%s5499 + $0x1f8] sm:$0xff]
        %v5628 = vunpack.c.l.b16 %v5500
        %v5629 = vunpack.c.h.b16 %v5500
        %v5630 = vunpack.c.l.b16 %v5501
        %v5631 = vunpack.c.h.b16 %v5501
        %v5632 = vunpack.c.l.b16 %v5502
        %v5633 = vunpack.c.h.b16 %v5502
        %v5634 = vunpack.c.l.b16 %v5503
        %v5635 = vunpack.c.h.b16 %v5503
        %v5636 = vunpack.c.l.b16 %v5504
        %v5637 = vunpack.c.h.b16 %v5504
        %v5638 = vunpack.c.l.b16 %v5505
        %v5639 = vunpack.c.h.b16 %v5505
        %v5640 = vunpack.c.l.b16 %v5506
        %v5641 = vunpack.c.h.b16 %v5506
        %v5642 = vunpack.c.l.b16 %v5507
        %v5643 = vunpack.c.h.b16 %v5507
        %v5644 = vunpack.c.l.b16 %v5508
        %v5645 = vunpack.c.h.b16 %v5508
        %v5646 = vunpack.c.l.b16 %v5509
        %v5647 = vunpack.c.h.b16 %v5509
        %v5648 = vunpack.c.l.b16 %v5510
        %v5649 = vunpack.c.h.b16 %v5510
        %v5650 = vunpack.c.l.b16 %v5511
        %v5651 = vunpack.c.h.b16 %v5511
        %v5652 = vunpack.c.l.b16 %v5512
        %v5653 = vunpack.c.h.b16 %v5512
        %v5654 = vunpack.c.l.b16 %v5513
        %v5655 = vunpack.c.h.b16 %v5513
        %v5656 = vunpack.c.l.b16 %v5514
        %v5657 = vunpack.c.h.b16 %v5514
        %v5658 = vunpack.c.l.b16 %v5515
        %v5659 = vunpack.c.h.b16 %v5515
        %v5660 = vunpack.c.l.b16 %v5516
        %v5661 = vunpack.c.h.b16 %v5516
        %v5662 = vunpack.c.l.b16 %v5517
        %v5663 = vunpack.c.h.b16 %v5517
        %v5664 = vunpack.c.l.b16 %v5518
        %v5665 = vunpack.c.h.b16 %v5518
        %v5666 = vunpack.c.l.b16 %v5519
        %v5667 = vunpack.c.h.b16 %v5519
        %v5668 = vunpack.c.l.b16 %v5520
        %v5669 = vunpack.c.h.b16 %v5520
        %v5670 = vunpack.c.l.b16 %v5521
        %v5671 = vunpack.c.h.b16 %v5521
        %v5672 = vunpack.c.l.b16 %v5522
        %v5673 = vunpack.c.h.b16 %v5522
        %v5674 = vunpack.c.l.b16 %v5523
        %v5675 = vunpack.c.h.b16 %v5523
        %v5676 = vunpack.c.l.b16 %v5524
        %v5677 = vunpack.c.h.b16 %v5524
        %v5678 = vunpack.c.l.b16 %v5525
        %v5679 = vunpack.c.h.b16 %v5525
        %v5680 = vunpack.c.l.b16 %v5526
        %v5681 = vunpack.c.h.b16 %v5526
        %v5682 = vunpack.c.l.b16 %v5527
        %v5683 = vunpack.c.h.b16 %v5527
        %v5684 = vunpack.c.l.b16 %v5528
        %v5685 = vunpack.c.h.b16 %v5528
        %v5686 = vunpack.c.l.b16 %v5529
        %v5687 = vunpack.c.h.b16 %v5529
        %v5688 = vunpack.c.l.b16 %v5530
        %v5689 = vunpack.c.h.b16 %v5530
        %v5690 = vunpack.c.l.b16 %v5531
        %v5691 = vunpack.c.h.b16 %v5531
        %v5692 = vunpack.c.l.b16 %v5532
        %v5693 = vunpack.c.h.b16 %v5532
        %v5694 = vunpack.c.l.b16 %v5533
        %v5695 = vunpack.c.h.b16 %v5533
        %v5696 = vunpack.c.l.b16 %v5534
        %v5697 = vunpack.c.h.b16 %v5534
        %v5698 = vunpack.c.l.b16 %v5535
        %v5699 = vunpack.c.h.b16 %v5535
        %v5700 = vunpack.c.l.b16 %v5536
        %v5701 = vunpack.c.h.b16 %v5536
        %v5702 = vunpack.c.l.b16 %v5537
        %v5703 = vunpack.c.h.b16 %v5537
        %v5704 = vunpack.c.l.b16 %v5538
        %v5705 = vunpack.c.h.b16 %v5538
        %v5706 = vunpack.c.l.b16 %v5539
        %v5707 = vunpack.c.h.b16 %v5539
        %v5708 = vunpack.c.l.b16 %v5540
        %v5709 = vunpack.c.h.b16 %v5540
        %v5710 = vunpack.c.l.b16 %v5541
        %v5711 = vunpack.c.h.b16 %v5541
        %v5712 = vunpack.c.l.b16 %v5542
        %v5713 = vunpack.c.h.b16 %v5542
        %v5714 = vunpack.c.l.b16 %v5543
        %v5715 = vunpack.c.h.b16 %v5543
        %v5716 = vunpack.c.l.b16 %v5544
        %v5717 = vunpack.c.h.b16 %v5544
        %v5718 = vunpack.c.l.b16 %v5545
        %v5719 = vunpack.c.h.b16 %v5545
        %v5720 = vunpack.c.l.b16 %v5546
        %v5721 = vunpack.c.h.b16 %v5546
        %v5722 = vunpack.c.l.b16 %v5547
        %v5723 = vunpack.c.h.b16 %v5547
        %v5724 = vunpack.c.l.b16 %v5548
        %v5725 = vunpack.c.h.b16 %v5548
        %v5726 = vunpack.c.l.b16 %v5549
        %v5727 = vunpack.c.h.b16 %v5549
        %v5728 = vunpack.c.l.b16 %v5550
        %v5729 = vunpack.c.h.b16 %v5550
        %v5730 = vunpack.c.l.b16 %v5551
        %v5731 = vunpack.c.h.b16 %v5551
        %v5732 = vunpack.c.l.b16 %v5552
        %v5733 = vunpack.c.h.b16 %v5552
        %v5734 = vunpack.c.l.b16 %v5553
        %v5735 = vunpack.c.h.b16 %v5553
        %v5736 = vunpack.c.l.b16 %v5554
        %v5737 = vunpack.c.h.b16 %v5554
        %v5738 = vunpack.c.l.b16 %v5555
        %v5739 = vunpack.c.h.b16 %v5555
        %v5740 = vunpack.c.l.b16 %v5556
        %v5741 = vunpack.c.h.b16 %v5556
        %v5742 = vunpack.c.l.b16 %v5557
        %v5743 = vunpack.c.h.b16 %v5557
        %v5744 = vunpack.c.l.b16 %v5558
        %v5745 = vunpack.c.h.b16 %v5558
        %v5746 = vunpack.c.l.b16 %v5559
        %v5747 = vunpack.c.h.b16 %v5559
        %v5748 = vunpack.c.l.b16 %v5560
        %v5749 = vunpack.c.h.b16 %v5560
        %v5750 = vunpack.c.l.b16 %v5561
        %v5751 = vunpack.c.h.b16 %v5561
        %v5752 = vunpack.c.l.b16 %v5562
        %v5753 = vunpack.c.h.b16 %v5562
        %v5754 = vunpack.c.l.b16 %v5563
        %v5755 = vunpack.c.h.b16 %v5563
        %v5756 = vpack.c.b16 %v5632, %v5628
        %v5757 = vpack.c.b16 %v5633, %v5629
        %v5758 = vpack.c.b16 %v5634, %v5630
        %v5759 = vpack.c.b16 %v5635, %v5631
        %v5760 = vpack.c.b16 %v5640, %v5636
        %v5761 = vpack.c.b16 %v5641, %v5637
        %v5762 = vpack.c.b16 %v5642, %v5638
        %v5763 = vpack.c.b16 %v5643, %v5639
        %v5764 = vpack.c.b16 %v5648, %v5644
        %v5765 = vpack.c.b16 %v5649, %v5645
        %v5766 = vpack.c.b16 %v5650, %v5646
        %v5767 = vpack.c.b16 %v5651, %v5647
        %v5768 = vpack.c.b16 %v5656, %v5652
        %v5769 = vpack.c.b16 %v5657, %v5653
        %v5770 = vpack.c.b16 %v5658, %v5654
        %v5771 = vpack.c.b16 %v5659, %v5655
        %v5772 = vpack.c.b16 %v5664, %v5660
        %v5773 = vpack.c.b16 %v5665, %v5661
        %v5774 = vpack.c.b16 %v5666, %v5662
        %v5775 = vpack.c.b16 %v5667, %v5663
        %v5776 = vpack.c.b16 %v5672, %v5668
        %v5777 = vpack.c.b16 %v5673, %v5669
        %v5778 = vpack.c.b16 %v5674, %v5670
        %v5779 = vpack.c.b16 %v5675, %v5671
        %v5780 = vpack.c.b16 %v5680, %v5676
        %v5781 = vpack.c.b16 %v5681, %v5677
        %v5782 = vpack.c.b16 %v5682, %v5678
        %v5783 = vpack.c.b16 %v5683, %v5679
        %v5784 = vpack.c.b16 %v5688, %v5684
        %v5785 = vpack.c.b16 %v5689, %v5685
        %v5786 = vpack.c.b16 %v5690, %v5686
        %v5787 = vpack.c.b16 %v5691, %v5687
        %v5788 = vpack.c.b16 %v5696, %v5692
        %v5789 = vpack.c.b16 %v5697, %v5693
        %v5790 = vpack.c.b16 %v5698, %v5694
        %v5791 = vpack.c.b16 %v5699, %v5695
        %v5792 = vpack.c.b16 %v5704, %v5700
        %v5793 = vpack.c.b16 %v5705, %v5701
        %v5794 = vpack.c.b16 %v5706, %v5702
        %v5795 = vpack.c.b16 %v5707, %v5703
        %v5796 = vpack.c.b16 %v5712, %v5708
        %v5797 = vpack.c.b16 %v5713, %v5709
        %v5798 = vpack.c.b16 %v5714, %v5710
        %v5799 = vpack.c.b16 %v5715, %v5711
        %v5800 = vpack.c.b16 %v5720, %v5716
        %v5801 = vpack.c.b16 %v5721, %v5717
        %v5802 = vpack.c.b16 %v5722, %v5718
        %v5803 = vpack.c.b16 %v5723, %v5719
        %v5804 = vpack.c.b16 %v5728, %v5724
        %v5805 = vpack.c.b16 %v5729, %v5725
        %v5806 = vpack.c.b16 %v5730, %v5726
        %v5807 = vpack.c.b16 %v5731, %v5727
        %v5808 = vpack.c.b16 %v5736, %v5732
        %v5809 = vpack.c.b16 %v5737, %v5733
        %v5810 = vpack.c.b16 %v5738, %v5734
        %v5811 = vpack.c.b16 %v5739, %v5735
        %v5812 = vpack.c.b16 %v5744, %v5740
        %v5813 = vpack.c.b16 %v5745, %v5741
        %v5814 = vpack.c.b16 %v5746, %v5742
        %v5815 = vpack.c.b16 %v5747, %v5743
        %v5816 = vpack.c.b16 %v5752, %v5748
        %v5817 = vpack.c.b16 %v5753, %v5749
        %v5818 = vpack.c.b16 %v5754, %v5750
        %v5819 = vpack.c.b16 %v5755, %v5751
        %5884 = vmatprep.subr.bf16.mxu0 %v5785
        %5885 = vmatpush1.bf16.msra.mxu0 %v5784
        %5886 = vmatprep.subr.bf16.mxu0 %v5781
        %5887 = vmatpush1.bf16.msra.mxu0 %v5780
        %5888 = vmatprep.subr.bf16.mxu0 %v5777
        %5889 = vmatpush1.bf16.msra.mxu0 %v5776
        %5890 = vmatprep.subr.bf16.mxu0 %v5773
        %5891 = vmatpush1.bf16.msra.mxu0 %v5772
        %5892 = vmatprep.subr.bf16.mxu0 %v5769
        %5893 = vmatpush1.bf16.msra.mxu0 %v5768
        %5894 = vmatprep.subr.bf16.mxu0 %v5765
        %5895 = vmatpush1.bf16.msra.mxu0 %v5764
        %5896 = vmatprep.subr.bf16.mxu0 %v5761
        %5897 = vmatpush1.bf16.msra.mxu0 %v5760
        %5898 = vmatprep.subr.bf16.mxu0 %v5757
        %5899 = vmatpush1.bf16.msra.mxu0 %v5756
        %5900 = vmatprep.subr.bf16.mxu0 %v5817
        %5901 = vmatpush2.bf16.msra.mxu0 %v5816
        %5902 = vmatprep.subr.bf16.mxu0 %v5813
        %5903 = vmatpush2.bf16.msra.mxu0 %v5812
        %5904 = vmatprep.subr.bf16.mxu0 %v5809
        %5905 = vmatpush2.bf16.msra.mxu0 %v5808
        %5906 = vmatprep.subr.bf16.mxu0 %v5805
        %5907 = vmatpush2.bf16.msra.mxu0 %v5804
        %5908 = vmatprep.subr.bf16.mxu0 %v5801
        %5909 = vmatpush2.bf16.msra.mxu0 %v5800
        %5910 = vmatprep.subr.bf16.mxu0 %v5797
        %5911 = vmatpush2.bf16.msra.mxu0 %v5796
        %5912 = vmatprep.subr.bf16.mxu0 %v5793
        %5913 = vmatpush2.bf16.msra.mxu0 %v5792
        %5914 = vmatprep.subr.bf16.mxu0 %v5789
        %5915 = vmatpush2.bf16.msra.mxu0 %v5788
        %5916 = vmatprep.mubr.bf16.mxu0 %v5492
        %5917 = vmatmul.mubr.bf16.gmra.mxu0 %v5491
        %v5918 = vpop.f32.mrf.mxu0
        %v5919 = vadd.f32 0.0, %v5918
        %v5920 = vpop.f32.mrf.mxu0
        %v5921 = vadd.f32 0.0, %v5920
        %v5922 = vpop.f32.mrf.mxu0
        %v5923 = vadd.f32 0.0, %v5922
        %v5924 = vpop.f32.mrf.mxu0
        %v5925 = vadd.f32 0.0, %v5924
        %5926 = vmatprep.mubr.bf16.mxu0 %v5494
        %5927 = vmatmul.mubr.bf16.gmra.mxu0 %v5493
        %v5928 = vpop.f32.mrf.mxu0
        %v5929 = vadd.f32 0.0, %v5928
        %v5930 = vpop.f32.mrf.mxu0
        %v5931 = vadd.f32 0.0, %v5930
        %v5932 = vpop.f32.mrf.mxu0
        %v5933 = vadd.f32 0.0, %v5932
        %v5934 = vpop.f32.mrf.mxu0
        %v5935 = vadd.f32 0.0, %v5934
        %5936 = vmatprep.mubr.bf16.mxu0 %v5496
        %5937 = vmatmul.mubr.bf16.gmra.mxu0 %v5495
        %v5938 = vpop.f32.mrf.mxu0
        %v5939 = vadd.f32 0.0, %v5938
        %v5940 = vpop.f32.mrf.mxu0
        %v5941 = vadd.f32 0.0, %v5940
        %v5942 = vpop.f32.mrf.mxu0
        %v5943 = vadd.f32 0.0, %v5942
        %v5944 = vpop.f32.mrf.mxu0
        %v5945 = vadd.f32 0.0, %v5944
        %5946 = vmatprep.mubr.bf16.mxu0 %v5498
        %5947 = vmatmul.mubr.bf16.gmra.mxu0 %v5497
        %v5948 = vpop.f32.mrf.mxu0
        %v5949 = vadd.f32 0.0, %v5948
        %v5950 = vpop.f32.mrf.mxu0
        %v5951 = vadd.f32 0.0, %v5950
        %v5952 = vpop.f32.mrf.mxu0
        %v5953 = vadd.f32 0.0, %v5952
        %v5954 = vpop.f32.mrf.mxu0
        %v5955 = vadd.f32 0.0, %v5954
        %5956 = vdwg.mxu0
        %5957 = vmatprep.subr.bf16.mxu0 %v5787
        %5958 = vmatpush1.bf16.msra.mxu0 %v5786
        %5959 = vmatprep.subr.bf16.mxu0 %v5783
        %5960 = vmatpush1.bf16.msra.mxu0 %v5782
        %5961 = vmatprep.subr.bf16.mxu0 %v5779
        %5962 = vmatpush1.bf16.msra.mxu0 %v5778
        %5963 = vmatprep.subr.bf16.mxu0 %v5775
        %5964 = vmatpush1.bf16.msra.mxu0 %v5774
        %5965 = vmatprep.subr.bf16.mxu0 %v5771
        %5966 = vmatpush1.bf16.msra.mxu0 %v5770
        %5967 = vmatprep.subr.bf16.mxu0 %v5767
        %5968 = vmatpush1.bf16.msra.mxu0 %v5766
        %5969 = vmatprep.subr.bf16.mxu0 %v5763
        %5970 = vmatpush1.bf16.msra.mxu0 %v5762
        %5971 = vmatprep.subr.bf16.mxu0 %v5759
        %5972 = vmatpush1.bf16.msra.mxu0 %v5758
        %5973 = vmatprep.subr.bf16.mxu0 %v5819
        %5974 = vmatpush2.bf16.msra.mxu0 %v5818
        %5975 = vmatprep.subr.bf16.mxu0 %v5815
        %5976 = vmatpush2.bf16.msra.mxu0 %v5814
        %5977 = vmatprep.subr.bf16.mxu0 %v5811
        %5978 = vmatpush2.bf16.msra.mxu0 %v5810
        %5979 = vmatprep.subr.bf16.mxu0 %v5807
        %5980 = vmatpush2.bf16.msra.mxu0 %v5806
        %5981 = vmatprep.subr.bf16.mxu0 %v5803
        %5982 = vmatpush2.bf16.msra.mxu0 %v5802
        %5983 = vmatprep.subr.bf16.mxu0 %v5799
        %5984 = vmatpush2.bf16.msra.mxu0 %v5798
        %5985 = vmatprep.subr.bf16.mxu0 %v5795
        %5986 = vmatpush2.bf16.msra.mxu0 %v5794
        %5987 = vmatprep.subr.bf16.mxu0 %v5791
        %5988 = vmatpush2.bf16.msra.mxu0 %v5790
        %5989 = vmatprep.mubr.bf16.mxu0 %v5492
        %5990 = vmatmul.mubr.bf16.gmra.mxu0 %v5491
        %v5991 = vpop.f32.mrf.mxu0
        %v5992 = vadd.f32 0.0, %v5991
        %v5993 = vpop.f32.mrf.mxu0
        %v5994 = vadd.f32 0.0, %v5993
        %v5995 = vpop.f32.mrf.mxu0
        %v5996 = vadd.f32 0.0, %v5995
        %v5997 = vpop.f32.mrf.mxu0
        %v5998 = vadd.f32 0.0, %v5997
        %5999 = vmatprep.mubr.bf16.mxu0 %v5494
        %6000 = vmatmul.mubr.bf16.gmra.mxu0 %v5493
        %v6001 = vpop.f32.mrf.mxu0
        %v6002 = vadd.f32 0.0, %v6001
        %v6003 = vpop.f32.mrf.mxu0
        %v6004 = vadd.f32 0.0, %v6003
        %v6005 = vpop.f32.mrf.mxu0
        %v6006 = vadd.f32 0.0, %v6005
        %v6007 = vpop.f32.mrf.mxu0
        %v6008 = vadd.f32 0.0, %v6007
        %6009 = vmatprep.mubr.bf16.mxu0 %v5496
        %6010 = vmatmul.mubr.bf16.gmra.mxu0 %v5495
        %v6011 = vpop.f32.mrf.mxu0
        %v6012 = vadd.f32 0.0, %v6011
        %v6013 = vpop.f32.mrf.mxu0
        %v6014 = vadd.f32 0.0, %v6013
        %v6015 = vpop.f32.mrf.mxu0
        %v6016 = vadd.f32 0.0, %v6015
        %v6017 = vpop.f32.mrf.mxu0
        %v6018 = vadd.f32 0.0, %v6017
        %6019 = vmatprep.mubr.bf16.mxu0 %v5498
        %6020 = vmatmul.mubr.bf16.gmra.mxu0 %v5497
        %v6021 = vpop.f32.mrf.mxu0
        %v6022 = vadd.f32 0.0, %v6021
        %v6023 = vpop.f32.mrf.mxu0
        %v6024 = vadd.f32 0.0, %v6023
        %v6025 = vpop.f32.mrf.mxu0
        %v6026 = vadd.f32 0.0, %v6025
        %v6027 = vpop.f32.mrf.mxu0
        %v6028 = vadd.f32 0.0, %v6027
        %6029 = vdwg.mxu0
        %v6030 = vadd.f32 %v5443, %v5919
        %v6031 = vadd.f32 %v5444, %v5921
        %v6032 = vadd.f32 %v5445, %v5992
        %v6033 = vadd.f32 %v5446, %v5994
        %v6034 = vadd.f32 %v5447, %v5923
        %v6035 = vadd.f32 %v5448, %v5925
        %v6036 = vadd.f32 %v5449, %v5996
        %v6037 = vadd.f32 %v5450, %v5998
        %v6038 = vadd.f32 %v5451, %v5929
        %v6039 = vadd.f32 %v5452, %v5931
        %v6040 = vadd.f32 %v5453, %v6002
        %v6041 = vadd.f32 %v5454, %v6004
        %v6042 = vadd.f32 %v5455, %v5933
        %v6043 = vadd.f32 %v5456, %v5935
        %v6044 = vadd.f32 %v5457, %v6006
        %v6045 = vadd.f32 %v5458, %v6008
        %v6046 = vadd.f32 %v5459, %v5939
        %v6047 = vadd.f32 %v5460, %v5941
        %v6048 = vadd.f32 %v5461, %v6012
        %v6049 = vadd.f32 %v5462, %v6014
        %v6050 = vadd.f32 %v5463, %v5943
        %v6051 = vadd.f32 %v5464, %v5945
        %v6052 = vadd.f32 %v5465, %v6016
        %v6053 = vadd.f32 %v5466, %v6018
        %v6054 = vadd.f32 %v5467, %v5949
        %v6055 = vadd.f32 %v5468, %v5951
        %v6056 = vadd.f32 %v5469, %v6022
        %v6057 = vadd.f32 %v5470, %v6024
        %v6058 = vadd.f32 %v5471, %v5953
        %v6059 = vadd.f32 %v5472, %v5955
        %v6060 = vadd.f32 %v5473, %v6026
        %v6061 = vadd.f32 %v5474, %v6028
        %v6062 = vld [vmem:[#allocation2 + $0x40] sm:$0xff]
        %v6063 = vld [vmem:[#allocation2 + $0x48] sm:$0xff]
        %v6064 = vld [vmem:[#allocation2 + $0x50] sm:$0xff]
        %v6065 = vld [vmem:[#allocation2 + $0x58] sm:$0xff]
        %v6066 = vld [vmem:[#allocation2 + $0x60] sm:$0xff]
        %v6067 = vld [vmem:[#allocation2 + $0x68] sm:$0xff]
        %v6068 = vld [vmem:[#allocation2 + $0x70] sm:$0xff]
        %v6069 = vld [vmem:[#allocation2 + $0x78] sm:$0xff]
        %v6070 = vld [vmem:[#allocation2 + $0x80] sm:$0xff]
        %v6071 = vld [vmem:[#allocation2 + $0x88] sm:$0xff]
        %v6072 = vld [vmem:[#allocation2 + $0x90] sm:$0xff]
        %v6073 = vld [vmem:[#allocation2 + $0x98] sm:$0xff]
        %v6074 = vld [vmem:[#allocation2 + $0xa0] sm:$0xff]
        %v6075 = vld [vmem:[#allocation2 + $0xa8] sm:$0xff]
        %v6076 = vld [vmem:[#allocation2 + $0xb0] sm:$0xff]
        %v6077 = vld [vmem:[#allocation2 + $0xb8] sm:$0xff]
        %v6078 = vpack.c.bf16 %v6064, %v6062
        %v6079 = vpack.c.bf16 %v6065, %v6063
        %v6080 = vpack.c.bf16 %v6068, %v6066
        %v6081 = vpack.c.bf16 %v6069, %v6067
        %v6082 = vpack.c.bf16 %v6072, %v6070
        %v6083 = vpack.c.bf16 %v6073, %v6071
        %v6084 = vpack.c.bf16 %v6076, %v6074
        %v6085 = vpack.c.bf16 %v6077, %v6075
        %s6086 = scalar_lea.vmem %s3, 2048
        %v6087 = vld [vmem:[%s6086] sm:$0xff]
        %v6088 = vld [vmem:[%s6086 + $0x8] sm:$0xff]
        %v6089 = vld [vmem:[%s6086 + $0x10] sm:$0xff]
        %v6090 = vld [vmem:[%s6086 + $0x18] sm:$0xff]
        %v6091 = vld [vmem:[%s6086 + $0x20] sm:$0xff]
        %v6092 = vld [vmem:[%s6086 + $0x28] sm:$0xff]
        %v6093 = vld [vmem:[%s6086 + $0x30] sm:$0xff]
        %v6094 = vld [vmem:[%s6086 + $0x38] sm:$0xff]
        %v6095 = vld [vmem:[%s6086 + $0x40] sm:$0xff]
        %v6096 = vld [vmem:[%s6086 + $0x48] sm:$0xff]
        %v6097 = vld [vmem:[%s6086 + $0x50] sm:$0xff]
        %v6098 = vld [vmem:[%s6086 + $0x58] sm:$0xff]
        %v6099 = vld [vmem:[%s6086 + $0x60] sm:$0xff]
        %v6100 = vld [vmem:[%s6086 + $0x68] sm:$0xff]
        %v6101 = vld [vmem:[%s6086 + $0x70] sm:$0xff]
        %v6102 = vld [vmem:[%s6086 + $0x78] sm:$0xff]
        %v6103 = vld [vmem:[%s6086 + $0x80] sm:$0xff]
        %v6104 = vld [vmem:[%s6086 + $0x88] sm:$0xff]
        %v6105 = vld [vmem:[%s6086 + $0x90] sm:$0xff]
        %v6106 = vld [vmem:[%s6086 + $0x98] sm:$0xff]
        %v6107 = vld [vmem:[%s6086 + $0xa0] sm:$0xff]
        %v6108 = vld [vmem:[%s6086 + $0xa8] sm:$0xff]
        %v6109 = vld [vmem:[%s6086 + $0xb0] sm:$0xff]
        %v6110 = vld [vmem:[%s6086 + $0xb8] sm:$0xff]
        %v6111 = vld [vmem:[%s6086 + $0xc0] sm:$0xff]
        %v6112 = vld [vmem:[%s6086 + $0xc8] sm:$0xff]
        %v6113 = vld [vmem:[%s6086 + $0xd0] sm:$0xff]
        %v6114 = vld [vmem:[%s6086 + $0xd8] sm:$0xff]
        %v6115 = vld [vmem:[%s6086 + $0xe0] sm:$0xff]
        %v6116 = vld [vmem:[%s6086 + $0xe8] sm:$0xff]
        %v6117 = vld [vmem:[%s6086 + $0xf0] sm:$0xff]
        %v6118 = vld [vmem:[%s6086 + $0xf8] sm:$0xff]
        %v6119 = vld [vmem:[%s6086 + $0x100] sm:$0xff]
        %v6120 = vld [vmem:[%s6086 + $0x108] sm:$0xff]
        %v6121 = vld [vmem:[%s6086 + $0x110] sm:$0xff]
        %v6122 = vld [vmem:[%s6086 + $0x118] sm:$0xff]
        %v6123 = vld [vmem:[%s6086 + $0x120] sm:$0xff]
        %v6124 = vld [vmem:[%s6086 + $0x128] sm:$0xff]
        %v6125 = vld [vmem:[%s6086 + $0x130] sm:$0xff]
        %v6126 = vld [vmem:[%s6086 + $0x138] sm:$0xff]
        %v6127 = vld [vmem:[%s6086 + $0x140] sm:$0xff]
        %v6128 = vld [vmem:[%s6086 + $0x148] sm:$0xff]
        %v6129 = vld [vmem:[%s6086 + $0x150] sm:$0xff]
        %v6130 = vld [vmem:[%s6086 + $0x158] sm:$0xff]
        %v6131 = vld [vmem:[%s6086 + $0x160] sm:$0xff]
        %v6132 = vld [vmem:[%s6086 + $0x168] sm:$0xff]
        %v6133 = vld [vmem:[%s6086 + $0x170] sm:$0xff]
        %v6134 = vld [vmem:[%s6086 + $0x178] sm:$0xff]
        %v6135 = vld [vmem:[%s6086 + $0x180] sm:$0xff]
        %v6136 = vld [vmem:[%s6086 + $0x188] sm:$0xff]
        %v6137 = vld [vmem:[%s6086 + $0x190] sm:$0xff]
        %v6138 = vld [vmem:[%s6086 + $0x198] sm:$0xff]
        %v6139 = vld [vmem:[%s6086 + $0x1a0] sm:$0xff]
        %v6140 = vld [vmem:[%s6086 + $0x1a8] sm:$0xff]
        %v6141 = vld [vmem:[%s6086 + $0x1b0] sm:$0xff]
        %v6142 = vld [vmem:[%s6086 + $0x1b8] sm:$0xff]
        %v6143 = vld [vmem:[%s6086 + $0x1c0] sm:$0xff]
        %v6144 = vld [vmem:[%s6086 + $0x1c8] sm:$0xff]
        %v6145 = vld [vmem:[%s6086 + $0x1d0] sm:$0xff]
        %v6146 = vld [vmem:[%s6086 + $0x1d8] sm:$0xff]
        %v6147 = vld [vmem:[%s6086 + $0x1e0] sm:$0xff]
        %v6148 = vld [vmem:[%s6086 + $0x1e8] sm:$0xff]
        %v6149 = vld [vmem:[%s6086 + $0x1f0] sm:$0xff]
        %v6150 = vld [vmem:[%s6086 + $0x1f8] sm:$0xff]
        %v6215 = vunpack.c.l.b16 %v6087
        %v6216 = vunpack.c.h.b16 %v6087
        %v6217 = vunpack.c.l.b16 %v6088
        %v6218 = vunpack.c.h.b16 %v6088
        %v6219 = vunpack.c.l.b16 %v6089
        %v6220 = vunpack.c.h.b16 %v6089
        %v6221 = vunpack.c.l.b16 %v6090
        %v6222 = vunpack.c.h.b16 %v6090
        %v6223 = vunpack.c.l.b16 %v6091
        %v6224 = vunpack.c.h.b16 %v6091
        %v6225 = vunpack.c.l.b16 %v6092
        %v6226 = vunpack.c.h.b16 %v6092
        %v6227 = vunpack.c.l.b16 %v6093
        %v6228 = vunpack.c.h.b16 %v6093
        %v6229 = vunpack.c.l.b16 %v6094
        %v6230 = vunpack.c.h.b16 %v6094
        %v6231 = vunpack.c.l.b16 %v6095
        %v6232 = vunpack.c.h.b16 %v6095
        %v6233 = vunpack.c.l.b16 %v6096
        %v6234 = vunpack.c.h.b16 %v6096
        %v6235 = vunpack.c.l.b16 %v6097
        %v6236 = vunpack.c.h.b16 %v6097
        %v6237 = vunpack.c.l.b16 %v6098
        %v6238 = vunpack.c.h.b16 %v6098
        %v6239 = vunpack.c.l.b16 %v6099
        %v6240 = vunpack.c.h.b16 %v6099
        %v6241 = vunpack.c.l.b16 %v6100
        %v6242 = vunpack.c.h.b16 %v6100
        %v6243 = vunpack.c.l.b16 %v6101
        %v6244 = vunpack.c.h.b16 %v6101
        %v6245 = vunpack.c.l.b16 %v6102
        %v6246 = vunpack.c.h.b16 %v6102
        %v6247 = vunpack.c.l.b16 %v6103
        %v6248 = vunpack.c.h.b16 %v6103
        %v6249 = vunpack.c.l.b16 %v6104
        %v6250 = vunpack.c.h.b16 %v6104
        %v6251 = vunpack.c.l.b16 %v6105
        %v6252 = vunpack.c.h.b16 %v6105
        %v6253 = vunpack.c.l.b16 %v6106
        %v6254 = vunpack.c.h.b16 %v6106
        %v6255 = vunpack.c.l.b16 %v6107
        %v6256 = vunpack.c.h.b16 %v6107
        %v6257 = vunpack.c.l.b16 %v6108
        %v6258 = vunpack.c.h.b16 %v6108
        %v6259 = vunpack.c.l.b16 %v6109
        %v6260 = vunpack.c.h.b16 %v6109
        %v6261 = vunpack.c.l.b16 %v6110
        %v6262 = vunpack.c.h.b16 %v6110
        %v6263 = vunpack.c.l.b16 %v6111
        %v6264 = vunpack.c.h.b16 %v6111
        %v6265 = vunpack.c.l.b16 %v6112
        %v6266 = vunpack.c.h.b16 %v6112
        %v6267 = vunpack.c.l.b16 %v6113
        %v6268 = vunpack.c.h.b16 %v6113
        %v6269 = vunpack.c.l.b16 %v6114
        %v6270 = vunpack.c.h.b16 %v6114
        %v6271 = vunpack.c.l.b16 %v6115
        %v6272 = vunpack.c.h.b16 %v6115
        %v6273 = vunpack.c.l.b16 %v6116
        %v6274 = vunpack.c.h.b16 %v6116
        %v6275 = vunpack.c.l.b16 %v6117
        %v6276 = vunpack.c.h.b16 %v6117
        %v6277 = vunpack.c.l.b16 %v6118
        %v6278 = vunpack.c.h.b16 %v6118
        %v6279 = vunpack.c.l.b16 %v6119
        %v6280 = vunpack.c.h.b16 %v6119
        %v6281 = vunpack.c.l.b16 %v6120
        %v6282 = vunpack.c.h.b16 %v6120
        %v6283 = vunpack.c.l.b16 %v6121
        %v6284 = vunpack.c.h.b16 %v6121
        %v6285 = vunpack.c.l.b16 %v6122
        %v6286 = vunpack.c.h.b16 %v6122
        %v6287 = vunpack.c.l.b16 %v6123
        %v6288 = vunpack.c.h.b16 %v6123
        %v6289 = vunpack.c.l.b16 %v6124
        %v6290 = vunpack.c.h.b16 %v6124
        %v6291 = vunpack.c.l.b16 %v6125
        %v6292 = vunpack.c.h.b16 %v6125
        %v6293 = vunpack.c.l.b16 %v6126
        %v6294 = vunpack.c.h.b16 %v6126
        %v6295 = vunpack.c.l.b16 %v6127
        %v6296 = vunpack.c.h.b16 %v6127
        %v6297 = vunpack.c.l.b16 %v6128
        %v6298 = vunpack.c.h.b16 %v6128
        %v6299 = vunpack.c.l.b16 %v6129
        %v6300 = vunpack.c.h.b16 %v6129
        %v6301 = vunpack.c.l.b16 %v6130
        %v6302 = vunpack.c.h.b16 %v6130
        %v6303 = vunpack.c.l.b16 %v6131
        %v6304 = vunpack.c.h.b16 %v6131
        %v6305 = vunpack.c.l.b16 %v6132
        %v6306 = vunpack.c.h.b16 %v6132
        %v6307 = vunpack.c.l.b16 %v6133
        %v6308 = vunpack.c.h.b16 %v6133
        %v6309 = vunpack.c.l.b16 %v6134
        %v6310 = vunpack.c.h.b16 %v6134
        %v6311 = vunpack.c.l.b16 %v6135
        %v6312 = vunpack.c.h.b16 %v6135
        %v6313 = vunpack.c.l.b16 %v6136
        %v6314 = vunpack.c.h.b16 %v6136
        %v6315 = vunpack.c.l.b16 %v6137
        %v6316 = vunpack.c.h.b16 %v6137
        %v6317 = vunpack.c.l.b16 %v6138
        %v6318 = vunpack.c.h.b16 %v6138
        %v6319 = vunpack.c.l.b16 %v6139
        %v6320 = vunpack.c.h.b16 %v6139
        %v6321 = vunpack.c.l.b16 %v6140
        %v6322 = vunpack.c.h.b16 %v6140
        %v6323 = vunpack.c.l.b16 %v6141
        %v6324 = vunpack.c.h.b16 %v6141
        %v6325 = vunpack.c.l.b16 %v6142
        %v6326 = vunpack.c.h.b16 %v6142
        %v6327 = vunpack.c.l.b16 %v6143
        %v6328 = vunpack.c.h.b16 %v6143
        %v6329 = vunpack.c.l.b16 %v6144
        %v6330 = vunpack.c.h.b16 %v6144
        %v6331 = vunpack.c.l.b16 %v6145
        %v6332 = vunpack.c.h.b16 %v6145
        %v6333 = vunpack.c.l.b16 %v6146
        %v6334 = vunpack.c.h.b16 %v6146
        %v6335 = vunpack.c.l.b16 %v6147
        %v6336 = vunpack.c.h.b16 %v6147
        %v6337 = vunpack.c.l.b16 %v6148
        %v6338 = vunpack.c.h.b16 %v6148
        %v6339 = vunpack.c.l.b16 %v6149
        %v6340 = vunpack.c.h.b16 %v6149
        %v6341 = vunpack.c.l.b16 %v6150
        %v6342 = vunpack.c.h.b16 %v6150
        %v6343 = vpack.c.b16 %v6219, %v6215
        %v6344 = vpack.c.b16 %v6220, %v6216
        %v6345 = vpack.c.b16 %v6221, %v6217
        %v6346 = vpack.c.b16 %v6222, %v6218
        %v6347 = vpack.c.b16 %v6227, %v6223
        %v6348 = vpack.c.b16 %v6228, %v6224
        %v6349 = vpack.c.b16 %v6229, %v6225
        %v6350 = vpack.c.b16 %v6230, %v6226
        %v6351 = vpack.c.b16 %v6235, %v6231
        %v6352 = vpack.c.b16 %v6236, %v6232
        %v6353 = vpack.c.b16 %v6237, %v6233
        %v6354 = vpack.c.b16 %v6238, %v6234
        %v6355 = vpack.c.b16 %v6243, %v6239
        %v6356 = vpack.c.b16 %v6244, %v6240
        %v6357 = vpack.c.b16 %v6245, %v6241
        %v6358 = vpack.c.b16 %v6246, %v6242
        %v6359 = vpack.c.b16 %v6251, %v6247
        %v6360 = vpack.c.b16 %v6252, %v6248
        %v6361 = vpack.c.b16 %v6253, %v6249
        %v6362 = vpack.c.b16 %v6254, %v6250
        %v6363 = vpack.c.b16 %v6259, %v6255
        %v6364 = vpack.c.b16 %v6260, %v6256
        %v6365 = vpack.c.b16 %v6261, %v6257
        %v6366 = vpack.c.b16 %v6262, %v6258
        %v6367 = vpack.c.b16 %v6267, %v6263
        %v6368 = vpack.c.b16 %v6268, %v6264
        %v6369 = vpack.c.b16 %v6269, %v6265
        %v6370 = vpack.c.b16 %v6270, %v6266
        %v6371 = vpack.c.b16 %v6275, %v6271
        %v6372 = vpack.c.b16 %v6276, %v6272
        %v6373 = vpack.c.b16 %v6277, %v6273
        %v6374 = vpack.c.b16 %v6278, %v6274
        %v6375 = vpack.c.b16 %v6283, %v6279
        %v6376 = vpack.c.b16 %v6284, %v6280
        %v6377 = vpack.c.b16 %v6285, %v6281
        %v6378 = vpack.c.b16 %v6286, %v6282
        %v6379 = vpack.c.b16 %v6291, %v6287
        %v6380 = vpack.c.b16 %v6292, %v6288
        %v6381 = vpack.c.b16 %v6293, %v6289
        %v6382 = vpack.c.b16 %v6294, %v6290
        %v6383 = vpack.c.b16 %v6299, %v6295
        %v6384 = vpack.c.b16 %v6300, %v6296
        %v6385 = vpack.c.b16 %v6301, %v6297
        %v6386 = vpack.c.b16 %v6302, %v6298
        %v6387 = vpack.c.b16 %v6307, %v6303
        %v6388 = vpack.c.b16 %v6308, %v6304
        %v6389 = vpack.c.b16 %v6309, %v6305
        %v6390 = vpack.c.b16 %v6310, %v6306
        %v6391 = vpack.c.b16 %v6315, %v6311
        %v6392 = vpack.c.b16 %v6316, %v6312
        %v6393 = vpack.c.b16 %v6317, %v6313
        %v6394 = vpack.c.b16 %v6318, %v6314
        %v6395 = vpack.c.b16 %v6323, %v6319
        %v6396 = vpack.c.b16 %v6324, %v6320
        %v6397 = vpack.c.b16 %v6325, %v6321
        %v6398 = vpack.c.b16 %v6326, %v6322
        %v6399 = vpack.c.b16 %v6331, %v6327
        %v6400 = vpack.c.b16 %v6332, %v6328
        %v6401 = vpack.c.b16 %v6333, %v6329
        %v6402 = vpack.c.b16 %v6334, %v6330
        %v6403 = vpack.c.b16 %v6339, %v6335
        %v6404 = vpack.c.b16 %v6340, %v6336
        %v6405 = vpack.c.b16 %v6341, %v6337
        %v6406 = vpack.c.b16 %v6342, %v6338
        %6471 = vmatprep.subr.bf16.mxu0 %v6372
        %6472 = vmatpush1.bf16.msra.mxu0 %v6371
        %6473 = vmatprep.subr.bf16.mxu0 %v6368
        %6474 = vmatpush1.bf16.msra.mxu0 %v6367
        %6475 = vmatprep.subr.bf16.mxu0 %v6364
        %6476 = vmatpush1.bf16.msra.mxu0 %v6363
        %6477 = vmatprep.subr.bf16.mxu0 %v6360
        %6478 = vmatpush1.bf16.msra.mxu0 %v6359
        %6479 = vmatprep.subr.bf16.mxu0 %v6356
        %6480 = vmatpush1.bf16.msra.mxu0 %v6355
        %6481 = vmatprep.subr.bf16.mxu0 %v6352
        %6482 = vmatpush1.bf16.msra.mxu0 %v6351
        %6483 = vmatprep.subr.bf16.mxu0 %v6348
        %6484 = vmatpush1.bf16.msra.mxu0 %v6347
        %6485 = vmatprep.subr.bf16.mxu0 %v6344
        %6486 = vmatpush1.bf16.msra.mxu0 %v6343
        %6487 = vmatprep.subr.bf16.mxu0 %v6404
        %6488 = vmatpush2.bf16.msra.mxu0 %v6403
        %6489 = vmatprep.subr.bf16.mxu0 %v6400
        %6490 = vmatpush2.bf16.msra.mxu0 %v6399
        %6491 = vmatprep.subr.bf16.mxu0 %v6396
        %6492 = vmatpush2.bf16.msra.mxu0 %v6395
        %6493 = vmatprep.subr.bf16.mxu0 %v6392
        %6494 = vmatpush2.bf16.msra.mxu0 %v6391
        %6495 = vmatprep.subr.bf16.mxu0 %v6388
        %6496 = vmatpush2.bf16.msra.mxu0 %v6387
        %6497 = vmatprep.subr.bf16.mxu0 %v6384
        %6498 = vmatpush2.bf16.msra.mxu0 %v6383
        %6499 = vmatprep.subr.bf16.mxu0 %v6380
        %6500 = vmatpush2.bf16.msra.mxu0 %v6379
        %6501 = vmatprep.subr.bf16.mxu0 %v6376
        %6502 = vmatpush2.bf16.msra.mxu0 %v6375
        %6503 = vmatprep.mubr.bf16.mxu0 %v6079
        %6504 = vmatmul.mubr.bf16.gmra.mxu0 %v6078
        %v6505 = vpop.f32.mrf.mxu0
        %v6506 = vadd.f32 0.0, %v6505
        %v6507 = vpop.f32.mrf.mxu0
        %v6508 = vadd.f32 0.0, %v6507
        %v6509 = vpop.f32.mrf.mxu0
        %v6510 = vadd.f32 0.0, %v6509
        %v6511 = vpop.f32.mrf.mxu0
        %v6512 = vadd.f32 0.0, %v6511
        %6513 = vmatprep.mubr.bf16.mxu0 %v6081
        %6514 = vmatmul.mubr.bf16.gmra.mxu0 %v6080
        %v6515 = vpop.f32.mrf.mxu0
        %v6516 = vadd.f32 0.0, %v6515
        %v6517 = vpop.f32.mrf.mxu0
        %v6518 = vadd.f32 0.0, %v6517
        %v6519 = vpop.f32.mrf.mxu0
        %v6520 = vadd.f32 0.0, %v6519
        %v6521 = vpop.f32.mrf.mxu0
        %v6522 = vadd.f32 0.0, %v6521
        %6523 = vmatprep.mubr.bf16.mxu0 %v6083
        %6524 = vmatmul.mubr.bf16.gmra.mxu0 %v6082
        %v6525 = vpop.f32.mrf.mxu0
        %v6526 = vadd.f32 0.0, %v6525
        %v6527 = vpop.f32.mrf.mxu0
        %v6528 = vadd.f32 0.0, %v6527
        %v6529 = vpop.f32.mrf.mxu0
        %v6530 = vadd.f32 0.0, %v6529
        %v6531 = vpop.f32.mrf.mxu0
        %v6532 = vadd.f32 0.0, %v6531
        %6533 = vmatprep.mubr.bf16.mxu0 %v6085
        %6534 = vmatmul.mubr.bf16.gmra.mxu0 %v6084
        %v6535 = vpop.f32.mrf.mxu0
        %v6536 = vadd.f32 0.0, %v6535
        %v6537 = vpop.f32.mrf.mxu0
        %v6538 = vadd.f32 0.0, %v6537
        %v6539 = vpop.f32.mrf.mxu0
        %v6540 = vadd.f32 0.0, %v6539
        %v6541 = vpop.f32.mrf.mxu0
        %v6542 = vadd.f32 0.0, %v6541
        %6543 = vdwg.mxu0
        %6544 = vmatprep.subr.bf16.mxu0 %v6374
        %6545 = vmatpush1.bf16.msra.mxu0 %v6373
        %6546 = vmatprep.subr.bf16.mxu0 %v6370
        %6547 = vmatpush1.bf16.msra.mxu0 %v6369
        %6548 = vmatprep.subr.bf16.mxu0 %v6366
        %6549 = vmatpush1.bf16.msra.mxu0 %v6365
        %6550 = vmatprep.subr.bf16.mxu0 %v6362
        %6551 = vmatpush1.bf16.msra.mxu0 %v6361
        %6552 = vmatprep.subr.bf16.mxu0 %v6358
        %6553 = vmatpush1.bf16.msra.mxu0 %v6357
        %6554 = vmatprep.subr.bf16.mxu0 %v6354
        %6555 = vmatpush1.bf16.msra.mxu0 %v6353
        %6556 = vmatprep.subr.bf16.mxu0 %v6350
        %6557 = vmatpush1.bf16.msra.mxu0 %v6349
        %6558 = vmatprep.subr.bf16.mxu0 %v6346
        %6559 = vmatpush1.bf16.msra.mxu0 %v6345
        %6560 = vmatprep.subr.bf16.mxu0 %v6406
        %6561 = vmatpush2.bf16.msra.mxu0 %v6405
        %6562 = vmatprep.subr.bf16.mxu0 %v6402
        %6563 = vmatpush2.bf16.msra.mxu0 %v6401
        %6564 = vmatprep.subr.bf16.mxu0 %v6398
        %6565 = vmatpush2.bf16.msra.mxu0 %v6397
        %6566 = vmatprep.subr.bf16.mxu0 %v6394
        %6567 = vmatpush2.bf16.msra.mxu0 %v6393
        %6568 = vmatprep.subr.bf16.mxu0 %v6390
        %6569 = vmatpush2.bf16.msra.mxu0 %v6389
        %6570 = vmatprep.subr.bf16.mxu0 %v6386
        %6571 = vmatpush2.bf16.msra.mxu0 %v6385
        %6572 = vmatprep.subr.bf16.mxu0 %v6382
        %6573 = vmatpush2.bf16.msra.mxu0 %v6381
        %6574 = vmatprep.subr.bf16.mxu0 %v6378
        %6575 = vmatpush2.bf16.msra.mxu0 %v6377
        %6576 = vmatprep.mubr.bf16.mxu0 %v6079
        %6577 = vmatmul.mubr.bf16.gmra.mxu0 %v6078
        %v6578 = vpop.f32.mrf.mxu0
        %v6579 = vadd.f32 0.0, %v6578
        %v6580 = vpop.f32.mrf.mxu0
        %v6581 = vadd.f32 0.0, %v6580
        %v6582 = vpop.f32.mrf.mxu0
        %v6583 = vadd.f32 0.0, %v6582
        %v6584 = vpop.f32.mrf.mxu0
        %v6585 = vadd.f32 0.0, %v6584
        %6586 = vmatprep.mubr.bf16.mxu0 %v6081
        %6587 = vmatmul.mubr.bf16.gmra.mxu0 %v6080
        %v6588 = vpop.f32.mrf.mxu0
        %v6589 = vadd.f32 0.0, %v6588
        %v6590 = vpop.f32.mrf.mxu0
        %v6591 = vadd.f32 0.0, %v6590
        %v6592 = vpop.f32.mrf.mxu0
        %v6593 = vadd.f32 0.0, %v6592
        %v6594 = vpop.f32.mrf.mxu0
        %v6595 = vadd.f32 0.0, %v6594
        %6596 = vmatprep.mubr.bf16.mxu0 %v6083
        %6597 = vmatmul.mubr.bf16.gmra.mxu0 %v6082
        %v6598 = vpop.f32.mrf.mxu0
        %v6599 = vadd.f32 0.0, %v6598
        %v6600 = vpop.f32.mrf.mxu0
        %v6601 = vadd.f32 0.0, %v6600
        %v6602 = vpop.f32.mrf.mxu0
        %v6603 = vadd.f32 0.0, %v6602
        %v6604 = vpop.f32.mrf.mxu0
        %v6605 = vadd.f32 0.0, %v6604
        %6606 = vmatprep.mubr.bf16.mxu0 %v6085
        %6607 = vmatmul.mubr.bf16.gmra.mxu0 %v6084
        %v6608 = vpop.f32.mrf.mxu0
        %v6609 = vadd.f32 0.0, %v6608
        %v6610 = vpop.f32.mrf.mxu0
        %v6611 = vadd.f32 0.0, %v6610
        %v6612 = vpop.f32.mrf.mxu0
        %v6613 = vadd.f32 0.0, %v6612
        %v6614 = vpop.f32.mrf.mxu0
        %v6615 = vadd.f32 0.0, %v6614
        %6616 = vdwg.mxu0
        %v6617 = vadd.f32 %v6030, %v6506
        %v6618 = vadd.f32 %v6031, %v6508
        %v6619 = vadd.f32 %v6032, %v6579
        %v6620 = vadd.f32 %v6033, %v6581
        %v6621 = vadd.f32 %v6034, %v6510
        %v6622 = vadd.f32 %v6035, %v6512
        %v6623 = vadd.f32 %v6036, %v6583
        %v6624 = vadd.f32 %v6037, %v6585
        %v6625 = vadd.f32 %v6038, %v6516
        %v6626 = vadd.f32 %v6039, %v6518
        %v6627 = vadd.f32 %v6040, %v6589
        %v6628 = vadd.f32 %v6041, %v6591
        %v6629 = vadd.f32 %v6042, %v6520
        %v6630 = vadd.f32 %v6043, %v6522
        %v6631 = vadd.f32 %v6044, %v6593
        %v6632 = vadd.f32 %v6045, %v6595
        %v6633 = vadd.f32 %v6046, %v6526
        %v6634 = vadd.f32 %v6047, %v6528
        %v6635 = vadd.f32 %v6048, %v6599
        %v6636 = vadd.f32 %v6049, %v6601
        %v6637 = vadd.f32 %v6050, %v6530
        %v6638 = vadd.f32 %v6051, %v6532
        %v6639 = vadd.f32 %v6052, %v6603
        %v6640 = vadd.f32 %v6053, %v6605
        %v6641 = vadd.f32 %v6054, %v6536
        %v6642 = vadd.f32 %v6055, %v6538
        %v6643 = vadd.f32 %v6056, %v6609
        %v6644 = vadd.f32 %v6057, %v6611
        %v6645 = vadd.f32 %v6058, %v6540
        %v6646 = vadd.f32 %v6059, %v6542
        %v6647 = vadd.f32 %v6060, %v6613
        %v6648 = vadd.f32 %v6061, %v6615
        %v6649 = vld [vmem:[%s4] sm:$0xf]
        %v6651 = vlaneseq
        %v6652 = vshrl.u32 %v6651, 7
        %v6653 = vsub.s32 0, %v6652
        %v6654 = vrot.slane %v6649, %v6653
        %v6655 = vlaneseq
        %v6656 = vshrl.u32 %v6655, 7
        %v6657 = vsub.s32 1, %v6656
        %v6658 = vrot.slane %v6649, %v6657
        %v6659 = vlaneseq
        %v6660 = vshrl.u32 %v6659, 7
        %v6661 = vsub.s32 2, %v6660
        %v6662 = vrot.slane %v6649, %v6661
        %v6663 = vlaneseq
        %v6664 = vshrl.u32 %v6663, 7
        %v6665 = vsub.s32 3, %v6664
        %v6666 = vrot.slane %v6649, %v6665
        %v6671 = vadd.f32 %v6617, %v6654
        %v6672 = vadd.f32 %v6618, %v6658
        %v6673 = vadd.f32 %v6619, %v6662
        %v6674 = vadd.f32 %v6620, %v6666
        %v6675 = vadd.f32 %v6621, %v6654
        %v6676 = vadd.f32 %v6622, %v6658
        %v6677 = vadd.f32 %v6623, %v6662
        %v6678 = vadd.f32 %v6624, %v6666
        %v6679 = vadd.f32 %v6625, %v6654
        %v6680 = vadd.f32 %v6626, %v6658
        %v6681 = vadd.f32 %v6627, %v6662
        %v6682 = vadd.f32 %v6628, %v6666
        %v6683 = vadd.f32 %v6629, %v6654
        %v6684 = vadd.f32 %v6630, %v6658
        %v6685 = vadd.f32 %v6631, %v6662
        %v6686 = vadd.f32 %v6632, %v6666
        %v6687 = vadd.f32 %v6633, %v6654
        %v6688 = vadd.f32 %v6634, %v6658
        %v6689 = vadd.f32 %v6635, %v6662
        %v6690 = vadd.f32 %v6636, %v6666
        %v6691 = vadd.f32 %v6637, %v6654
        %v6692 = vadd.f32 %v6638, %v6658
        %v6693 = vadd.f32 %v6639, %v6662
        %v6694 = vadd.f32 %v6640, %v6666
        %v6695 = vadd.f32 %v6641, %v6654
        %v6696 = vadd.f32 %v6642, %v6658
        %v6697 = vadd.f32 %v6643, %v6662
        %v6698 = vadd.f32 %v6644, %v6666
        %v6699 = vadd.f32 %v6645, %v6654
        %v6700 = vadd.f32 %v6646, %v6658
        %v6701 = vadd.f32 %v6647, %v6662
        %v6702 = vadd.f32 %v6648, %v6666
        %v6703 = vmax.f32 %v6671, 0.0
        %v6704 = vmax.f32 %v6672, 0.0
        %v6705 = vmax.f32 %v6673, 0.0
        %v6706 = vmax.f32 %v6674, 0.0
        %v6707 = vmax.f32 %v6675, 0.0
        %v6708 = vmax.f32 %v6676, 0.0
        %v6709 = vmax.f32 %v6677, 0.0
        %v6710 = vmax.f32 %v6678, 0.0
        %v6711 = vmax.f32 %v6679, 0.0
        %v6712 = vmax.f32 %v6680, 0.0
        %v6713 = vmax.f32 %v6681, 0.0
        %v6714 = vmax.f32 %v6682, 0.0
        %v6715 = vmax.f32 %v6683, 0.0
        %v6716 = vmax.f32 %v6684, 0.0
        %v6717 = vmax.f32 %v6685, 0.0
        %v6718 = vmax.f32 %v6686, 0.0
        %v6719 = vmax.f32 %v6687, 0.0
        %v6720 = vmax.f32 %v6688, 0.0
        %v6721 = vmax.f32 %v6689, 0.0
        %v6722 = vmax.f32 %v6690, 0.0
        %v6723 = vmax.f32 %v6691, 0.0
        %v6724 = vmax.f32 %v6692, 0.0
        %v6725 = vmax.f32 %v6693, 0.0
        %v6726 = vmax.f32 %v6694, 0.0
        %v6727 = vmax.f32 %v6695, 0.0
        %v6728 = vmax.f32 %v6696, 0.0
        %v6729 = vmax.f32 %v6697, 0.0
        %v6730 = vmax.f32 %v6698, 0.0
        %v6731 = vmax.f32 %v6699, 0.0
        %v6732 = vmax.f32 %v6700, 0.0
        %v6733 = vmax.f32 %v6701, 0.0
        %v6734 = vmax.f32 %v6702, 0.0
        %v6735 = vmax.f32 %v6703, %v6705
        %v6736 = vmax.f32 %v6704, %v6706
        %v6737 = vmax.f32 %v6707, %v6709
        %v6738 = vmax.f32 %v6708, %v6710
        %v6739 = vmax.f32 %v6711, %v6713
        %v6740 = vmax.f32 %v6712, %v6714
        %v6741 = vmax.f32 %v6715, %v6717
        %v6742 = vmax.f32 %v6716, %v6718
        %v6743 = vmax.f32 %v6719, %v6721
        %v6744 = vmax.f32 %v6720, %v6722
        %v6745 = vmax.f32 %v6723, %v6725
        %v6746 = vmax.f32 %v6724, %v6726
        %v6747 = vmax.f32 %v6727, %v6729
        %v6748 = vmax.f32 %v6728, %v6730
        %v6749 = vmax.f32 %v6731, %v6733
        %v6750 = vmax.f32 %v6732, %v6734
        %v6751 = vmax.f32 %v6735, %v6737
        %v6752 = vmax.f32 %v6736, %v6738
        %v6753 = vpack.c.bf16 %v6751, %v6751
        %v6754 = vpack.c.bf16 %v6752, %v6752
        %v6755 = vld [vmem:[%s5] sm:$0xff]
        %v6756 = vld [vmem:[%s5 + $0x8] sm:$0xff]
        %v6757 = vld [vmem:[%s5 + $0x10] sm:$0xff]
        %v6758 = vld [vmem:[%s5 + $0x18] sm:$0xff]
        %v6759 = vld [vmem:[%s5 + $0x20] sm:$0xff]
        %v6760 = vld [vmem:[%s5 + $0x28] sm:$0xff]
        %v6761 = vld [vmem:[%s5 + $0x30] sm:$0xff]
        %v6762 = vld [vmem:[%s5 + $0x38] sm:$0xff]
        %v6763 = vld [vmem:[%s5 + $0x40] sm:$0xff]
        %v6764 = vld [vmem:[%s5 + $0x48] sm:$0xff]
        %v6765 = vld [vmem:[%s5 + $0x50] sm:$0xff]
        %v6766 = vld [vmem:[%s5 + $0x58] sm:$0xff]
        %v6767 = vld [vmem:[%s5 + $0x60] sm:$0xff]
        %v6768 = vld [vmem:[%s5 + $0x68] sm:$0xff]
        %v6769 = vld [vmem:[%s5 + $0x70] sm:$0xff]
        %v6770 = vld [vmem:[%s5 + $0x78] sm:$0xff]
        %v6771 = vld [vmem:[%s5 + $0x80] sm:$0xff]
        %v6772 = vld [vmem:[%s5 + $0x88] sm:$0xff]
        %v6773 = vld [vmem:[%s5 + $0x90] sm:$0xff]
        %v6774 = vld [vmem:[%s5 + $0x98] sm:$0xff]
        %v6775 = vld [vmem:[%s5 + $0xa0] sm:$0xff]
        %v6776 = vld [vmem:[%s5 + $0xa8] sm:$0xff]
        %v6777 = vld [vmem:[%s5 + $0xb0] sm:$0xff]
        %v6778 = vld [vmem:[%s5 + $0xb8] sm:$0xff]
        %v6779 = vld [vmem:[%s5 + $0xc0] sm:$0xff]
        %v6780 = vld [vmem:[%s5 + $0xc8] sm:$0xff]
        %v6781 = vld [vmem:[%s5 + $0xd0] sm:$0xff]
        %v6782 = vld [vmem:[%s5 + $0xd8] sm:$0xff]
        %v6783 = vld [vmem:[%s5 + $0xe0] sm:$0xff]
        %v6784 = vld [vmem:[%s5 + $0xe8] sm:$0xff]
        %v6785 = vld [vmem:[%s5 + $0xf0] sm:$0xff]
        %v6786 = vld [vmem:[%s5 + $0xf8] sm:$0xff]
        %v6787 = vld [vmem:[%s5 + $0x100] sm:$0xff]
        %v6788 = vld [vmem:[%s5 + $0x108] sm:$0xff]
        %v6789 = vld [vmem:[%s5 + $0x110] sm:$0xff]
        %v6790 = vld [vmem:[%s5 + $0x118] sm:$0xff]
        %v6791 = vld [vmem:[%s5 + $0x120] sm:$0xff]
        %v6792 = vld [vmem:[%s5 + $0x128] sm:$0xff]
        %v6793 = vld [vmem:[%s5 + $0x130] sm:$0xff]
        %v6794 = vld [vmem:[%s5 + $0x138] sm:$0xff]
        %v6795 = vld [vmem:[%s5 + $0x140] sm:$0xff]
        %v6796 = vld [vmem:[%s5 + $0x148] sm:$0xff]
        %v6797 = vld [vmem:[%s5 + $0x150] sm:$0xff]
        %v6798 = vld [vmem:[%s5 + $0x158] sm:$0xff]
        %v6799 = vld [vmem:[%s5 + $0x160] sm:$0xff]
        %v6800 = vld [vmem:[%s5 + $0x168] sm:$0xff]
        %v6801 = vld [vmem:[%s5 + $0x170] sm:$0xff]
        %v6802 = vld [vmem:[%s5 + $0x178] sm:$0xff]
        %v6803 = vld [vmem:[%s5 + $0x180] sm:$0xff]
        %v6804 = vld [vmem:[%s5 + $0x188] sm:$0xff]
        %v6805 = vld [vmem:[%s5 + $0x190] sm:$0xff]
        %v6806 = vld [vmem:[%s5 + $0x198] sm:$0xff]
        %v6807 = vld [vmem:[%s5 + $0x1a0] sm:$0xff]
        %v6808 = vld [vmem:[%s5 + $0x1a8] sm:$0xff]
        %v6809 = vld [vmem:[%s5 + $0x1b0] sm:$0xff]
        %v6810 = vld [vmem:[%s5 + $0x1b8] sm:$0xff]
        %v6811 = vld [vmem:[%s5 + $0x1c0] sm:$0xff]
        %v6812 = vld [vmem:[%s5 + $0x1c8] sm:$0xff]
        %v6813 = vld [vmem:[%s5 + $0x1d0] sm:$0xff]
        %v6814 = vld [vmem:[%s5 + $0x1d8] sm:$0xff]
        %v6815 = vld [vmem:[%s5 + $0x1e0] sm:$0xff]
        %v6816 = vld [vmem:[%s5 + $0x1e8] sm:$0xff]
        %v6817 = vld [vmem:[%s5 + $0x1f0] sm:$0xff]
        %v6818 = vld [vmem:[%s5 + $0x1f8] sm:$0xff]
        %v6819 = vmax.f32 %v6739, %v6741
        %v6820 = vmax.f32 %v6740, %v6742
        %v6821 = vpack.c.bf16 %v6819, %v6819
        %v6822 = vpack.c.bf16 %v6820, %v6820
        %s6823 = scalar_lea.vmem %s5, 512
        %v6824 = vld [vmem:[%s6823] sm:$0xff]
        %v6825 = vld [vmem:[%s6823 + $0x8] sm:$0xff]
        %v6826 = vld [vmem:[%s6823 + $0x10] sm:$0xff]
        %v6827 = vld [vmem:[%s6823 + $0x18] sm:$0xff]
        %v6828 = vld [vmem:[%s6823 + $0x20] sm:$0xff]
        %v6829 = vld [vmem:[%s6823 + $0x28] sm:$0xff]
        %v6830 = vld [vmem:[%s6823 + $0x30] sm:$0xff]
        %v6831 = vld [vmem:[%s6823 + $0x38] sm:$0xff]
        %v6832 = vld [vmem:[%s6823 + $0x40] sm:$0xff]
        %v6833 = vld [vmem:[%s6823 + $0x48] sm:$0xff]
        %v6834 = vld [vmem:[%s6823 + $0x50] sm:$0xff]
        %v6835 = vld [vmem:[%s6823 + $0x58] sm:$0xff]
        %v6836 = vld [vmem:[%s6823 + $0x60] sm:$0xff]
        %v6837 = vld [vmem:[%s6823 + $0x68] sm:$0xff]
        %v6838 = vld [vmem:[%s6823 + $0x70] sm:$0xff]
        %v6839 = vld [vmem:[%s6823 + $0x78] sm:$0xff]
        %v6840 = vld [vmem:[%s6823 + $0x80] sm:$0xff]
        %v6841 = vld [vmem:[%s6823 + $0x88] sm:$0xff]
        %v6842 = vld [vmem:[%s6823 + $0x90] sm:$0xff]
        %v6843 = vld [vmem:[%s6823 + $0x98] sm:$0xff]
        %v6844 = vld [vmem:[%s6823 + $0xa0] sm:$0xff]
        %v6845 = vld [vmem:[%s6823 + $0xa8] sm:$0xff]
        %v6846 = vld [vmem:[%s6823 + $0xb0] sm:$0xff]
        %v6847 = vld [vmem:[%s6823 + $0xb8] sm:$0xff]
        %v6848 = vld [vmem:[%s6823 + $0xc0] sm:$0xff]
        %v6849 = vld [vmem:[%s6823 + $0xc8] sm:$0xff]
        %v6850 = vld [vmem:[%s6823 + $0xd0] sm:$0xff]
        %v6851 = vld [vmem:[%s6823 + $0xd8] sm:$0xff]
        %v6852 = vld [vmem:[%s6823 + $0xe0] sm:$0xff]
        %v6853 = vld [vmem:[%s6823 + $0xe8] sm:$0xff]
        %v6854 = vld [vmem:[%s6823 + $0xf0] sm:$0xff]
        %v6855 = vld [vmem:[%s6823 + $0xf8] sm:$0xff]
        %v6856 = vld [vmem:[%s6823 + $0x100] sm:$0xff]
        %v6857 = vld [vmem:[%s6823 + $0x108] sm:$0xff]
        %v6858 = vld [vmem:[%s6823 + $0x110] sm:$0xff]
        %v6859 = vld [vmem:[%s6823 + $0x118] sm:$0xff]
        %v6860 = vld [vmem:[%s6823 + $0x120] sm:$0xff]
        %v6861 = vld [vmem:[%s6823 + $0x128] sm:$0xff]
        %v6862 = vld [vmem:[%s6823 + $0x130] sm:$0xff]
        %v6863 = vld [vmem:[%s6823 + $0x138] sm:$0xff]
        %v6864 = vld [vmem:[%s6823 + $0x140] sm:$0xff]
        %v6865 = vld [vmem:[%s6823 + $0x148] sm:$0xff]
        %v6866 = vld [vmem:[%s6823 + $0x150] sm:$0xff]
        %v6867 = vld [vmem:[%s6823 + $0x158] sm:$0xff]
        %v6868 = vld [vmem:[%s6823 + $0x160] sm:$0xff]
        %v6869 = vld [vmem:[%s6823 + $0x168] sm:$0xff]
        %v6870 = vld [vmem:[%s6823 + $0x170] sm:$0xff]
        %v6871 = vld [vmem:[%s6823 + $0x178] sm:$0xff]
        %v6872 = vld [vmem:[%s6823 + $0x180] sm:$0xff]
        %v6873 = vld [vmem:[%s6823 + $0x188] sm:$0xff]
        %v6874 = vld [vmem:[%s6823 + $0x190] sm:$0xff]
        %v6875 = vld [vmem:[%s6823 + $0x198] sm:$0xff]
        %v6876 = vld [vmem:[%s6823 + $0x1a0] sm:$0xff]
        %v6877 = vld [vmem:[%s6823 + $0x1a8] sm:$0xff]
        %v6878 = vld [vmem:[%s6823 + $0x1b0] sm:$0xff]
        %v6879 = vld [vmem:[%s6823 + $0x1b8] sm:$0xff]
        %v6880 = vld [vmem:[%s6823 + $0x1c0] sm:$0xff]
        %v6881 = vld [vmem:[%s6823 + $0x1c8] sm:$0xff]
        %v6882 = vld [vmem:[%s6823 + $0x1d0] sm:$0xff]
        %v6883 = vld [vmem:[%s6823 + $0x1d8] sm:$0xff]
        %v6884 = vld [vmem:[%s6823 + $0x1e0] sm:$0xff]
        %v6885 = vld [vmem:[%s6823 + $0x1e8] sm:$0xff]
        %v6886 = vld [vmem:[%s6823 + $0x1f0] sm:$0xff]
        %v6887 = vld [vmem:[%s6823 + $0x1f8] sm:$0xff]
        %v6952 = vunpack.c.l.b16 %v6824
        %v6953 = vunpack.c.h.b16 %v6824
        %v6954 = vunpack.c.l.b16 %v6825
        %v6955 = vunpack.c.h.b16 %v6825
        %v6956 = vunpack.c.l.b16 %v6826
        %v6957 = vunpack.c.h.b16 %v6826
        %v6958 = vunpack.c.l.b16 %v6827
        %v6959 = vunpack.c.h.b16 %v6827
        %v6960 = vunpack.c.l.b16 %v6828
        %v6961 = vunpack.c.h.b16 %v6828
        %v6962 = vunpack.c.l.b16 %v6829
        %v6963 = vunpack.c.h.b16 %v6829
        %v6964 = vunpack.c.l.b16 %v6830
        %v6965 = vunpack.c.h.b16 %v6830
        %v6966 = vunpack.c.l.b16 %v6831
        %v6967 = vunpack.c.h.b16 %v6831
        %v6968 = vunpack.c.l.b16 %v6832
        %v6969 = vunpack.c.h.b16 %v6832
        %v6970 = vunpack.c.l.b16 %v6833
        %v6971 = vunpack.c.h.b16 %v6833
        %v6972 = vunpack.c.l.b16 %v6834
        %v6973 = vunpack.c.h.b16 %v6834
        %v6974 = vunpack.c.l.b16 %v6835
        %v6975 = vunpack.c.h.b16 %v6835
        %v6976 = vunpack.c.l.b16 %v6836
        %v6977 = vunpack.c.h.b16 %v6836
        %v6978 = vunpack.c.l.b16 %v6837
        %v6979 = vunpack.c.h.b16 %v6837
        %v6980 = vunpack.c.l.b16 %v6838
        %v6981 = vunpack.c.h.b16 %v6838
        %v6982 = vunpack.c.l.b16 %v6839
        %v6983 = vunpack.c.h.b16 %v6839
        %v6984 = vunpack.c.l.b16 %v6840
        %v6985 = vunpack.c.h.b16 %v6840
        %v6986 = vunpack.c.l.b16 %v6841
        %v6987 = vunpack.c.h.b16 %v6841
        %v6988 = vunpack.c.l.b16 %v6842
        %v6989 = vunpack.c.h.b16 %v6842
        %v6990 = vunpack.c.l.b16 %v6843
        %v6991 = vunpack.c.h.b16 %v6843
        %v6992 = vunpack.c.l.b16 %v6844
        %v6993 = vunpack.c.h.b16 %v6844
        %v6994 = vunpack.c.l.b16 %v6845
        %v6995 = vunpack.c.h.b16 %v6845
        %v6996 = vunpack.c.l.b16 %v6846
        %v6997 = vunpack.c.h.b16 %v6846
        %v6998 = vunpack.c.l.b16 %v6847
        %v6999 = vunpack.c.h.b16 %v6847
        %v7000 = vunpack.c.l.b16 %v6848
        %v7001 = vunpack.c.h.b16 %v6848
        %v7002 = vunpack.c.l.b16 %v6849
        %v7003 = vunpack.c.h.b16 %v6849
        %v7004 = vunpack.c.l.b16 %v6850
        %v7005 = vunpack.c.h.b16 %v6850
        %v7006 = vunpack.c.l.b16 %v6851
        %v7007 = vunpack.c.h.b16 %v6851
        %v7008 = vunpack.c.l.b16 %v6852
        %v7009 = vunpack.c.h.b16 %v6852
        %v7010 = vunpack.c.l.b16 %v6853
        %v7011 = vunpack.c.h.b16 %v6853
        %v7012 = vunpack.c.l.b16 %v6854
        %v7013 = vunpack.c.h.b16 %v6854
        %v7014 = vunpack.c.l.b16 %v6855
        %v7015 = vunpack.c.h.b16 %v6855
        %v7016 = vunpack.c.l.b16 %v6856
        %v7017 = vunpack.c.h.b16 %v6856
        %v7018 = vunpack.c.l.b16 %v6857
        %v7019 = vunpack.c.h.b16 %v6857
        %v7020 = vunpack.c.l.b16 %v6858
        %v7021 = vunpack.c.h.b16 %v6858
        %v7022 = vunpack.c.l.b16 %v6859
        %v7023 = vunpack.c.h.b16 %v6859
        %v7024 = vunpack.c.l.b16 %v6860
        %v7025 = vunpack.c.h.b16 %v6860
        %v7026 = vunpack.c.l.b16 %v6861
        %v7027 = vunpack.c.h.b16 %v6861
        %v7028 = vunpack.c.l.b16 %v6862
        %v7029 = vunpack.c.h.b16 %v6862
        %v7030 = vunpack.c.l.b16 %v6863
        %v7031 = vunpack.c.h.b16 %v6863
        %v7032 = vunpack.c.l.b16 %v6864
        %v7033 = vunpack.c.h.b16 %v6864
        %v7034 = vunpack.c.l.b16 %v6865
        %v7035 = vunpack.c.h.b16 %v6865
        %v7036 = vunpack.c.l.b16 %v6866
        %v7037 = vunpack.c.h.b16 %v6866
        %v7038 = vunpack.c.l.b16 %v6867
        %v7039 = vunpack.c.h.b16 %v6867
        %v7040 = vunpack.c.l.b16 %v6868
        %v7041 = vunpack.c.h.b16 %v6868
        %v7042 = vunpack.c.l.b16 %v6869
        %v7043 = vunpack.c.h.b16 %v6869
        %v7044 = vunpack.c.l.b16 %v6870
        %v7045 = vunpack.c.h.b16 %v6870
        %v7046 = vunpack.c.l.b16 %v6871
        %v7047 = vunpack.c.h.b16 %v6871
        %v7048 = vunpack.c.l.b16 %v6872
        %v7049 = vunpack.c.h.b16 %v6872
        %v7050 = vunpack.c.l.b16 %v6873
        %v7051 = vunpack.c.h.b16 %v6873
        %v7052 = vunpack.c.l.b16 %v6874
        %v7053 = vunpack.c.h.b16 %v6874
        %v7054 = vunpack.c.l.b16 %v6875
        %v7055 = vunpack.c.h.b16 %v6875
        %v7056 = vunpack.c.l.b16 %v6876
        %v7057 = vunpack.c.h.b16 %v6876
        %v7058 = vunpack.c.l.b16 %v6877
        %v7059 = vunpack.c.h.b16 %v6877
        %v7060 = vunpack.c.l.b16 %v6878
        %v7061 = vunpack.c.h.b16 %v6878
        %v7062 = vunpack.c.l.b16 %v6879
        %v7063 = vunpack.c.h.b16 %v6879
        %v7064 = vunpack.c.l.b16 %v6880
        %v7065 = vunpack.c.h.b16 %v6880
        %v7066 = vunpack.c.l.b16 %v6881
        %v7067 = vunpack.c.h.b16 %v6881
        %v7068 = vunpack.c.l.b16 %v6882
        %v7069 = vunpack.c.h.b16 %v6882
        %v7070 = vunpack.c.l.b16 %v6883
        %v7071 = vunpack.c.h.b16 %v6883
        %v7072 = vunpack.c.l.b16 %v6884
        %v7073 = vunpack.c.h.b16 %v6884
        %v7074 = vunpack.c.l.b16 %v6885
        %v7075 = vunpack.c.h.b16 %v6885
        %v7076 = vunpack.c.l.b16 %v6886
        %v7077 = vunpack.c.h.b16 %v6886
        %v7078 = vunpack.c.l.b16 %v6887
        %v7079 = vunpack.c.h.b16 %v6887
        %v7080 = vpack.c.b16 %v6956, %v6952
        %v7081 = vpack.c.b16 %v6957, %v6953
        %v7082 = vpack.c.b16 %v6958, %v6954
        %v7083 = vpack.c.b16 %v6959, %v6955
        %v7084 = vpack.c.b16 %v6964, %v6960
        %v7085 = vpack.c.b16 %v6965, %v6961
        %v7086 = vpack.c.b16 %v6966, %v6962
        %v7087 = vpack.c.b16 %v6967, %v6963
        %v7088 = vpack.c.b16 %v6972, %v6968
        %v7089 = vpack.c.b16 %v6973, %v6969
        %v7090 = vpack.c.b16 %v6974, %v6970
        %v7091 = vpack.c.b16 %v6975, %v6971
        %v7092 = vpack.c.b16 %v6980, %v6976
        %v7093 = vpack.c.b16 %v6981, %v6977
        %v7094 = vpack.c.b16 %v6982, %v6978
        %v7095 = vpack.c.b16 %v6983, %v6979
        %v7096 = vpack.c.b16 %v6988, %v6984
        %v7097 = vpack.c.b16 %v6989, %v6985
        %v7098 = vpack.c.b16 %v6990, %v6986
        %v7099 = vpack.c.b16 %v6991, %v6987
        %v7100 = vpack.c.b16 %v6996, %v6992
        %v7101 = vpack.c.b16 %v6997, %v6993
        %v7102 = vpack.c.b16 %v6998, %v6994
        %v7103 = vpack.c.b16 %v6999, %v6995
        %v7104 = vpack.c.b16 %v7004, %v7000
        %v7105 = vpack.c.b16 %v7005, %v7001
        %v7106 = vpack.c.b16 %v7006, %v7002
        %v7107 = vpack.c.b16 %v7007, %v7003
        %v7108 = vpack.c.b16 %v7012, %v7008
        %v7109 = vpack.c.b16 %v7013, %v7009
        %v7110 = vpack.c.b16 %v7014, %v7010
        %v7111 = vpack.c.b16 %v7015, %v7011
        %v7112 = vpack.c.b16 %v7020, %v7016
        %v7113 = vpack.c.b16 %v7021, %v7017
        %v7114 = vpack.c.b16 %v7022, %v7018
        %v7115 = vpack.c.b16 %v7023, %v7019
        %v7116 = vpack.c.b16 %v7028, %v7024
        %v7117 = vpack.c.b16 %v7029, %v7025
        %v7118 = vpack.c.b16 %v7030, %v7026
        %v7119 = vpack.c.b16 %v7031, %v7027
        %v7120 = vpack.c.b16 %v7036, %v7032
        %v7121 = vpack.c.b16 %v7037, %v7033
        %v7122 = vpack.c.b16 %v7038, %v7034
        %v7123 = vpack.c.b16 %v7039, %v7035
        %v7124 = vpack.c.b16 %v7044, %v7040
        %v7125 = vpack.c.b16 %v7045, %v7041
        %v7126 = vpack.c.b16 %v7046, %v7042
        %v7127 = vpack.c.b16 %v7047, %v7043
        %v7128 = vpack.c.b16 %v7052, %v7048
        %v7129 = vpack.c.b16 %v7053, %v7049
        %v7130 = vpack.c.b16 %v7054, %v7050
        %v7131 = vpack.c.b16 %v7055, %v7051
        %v7132 = vpack.c.b16 %v7060, %v7056
        %v7133 = vpack.c.b16 %v7061, %v7057
        %v7134 = vpack.c.b16 %v7062, %v7058
        %v7135 = vpack.c.b16 %v7063, %v7059
        %v7136 = vpack.c.b16 %v7068, %v7064
        %v7137 = vpack.c.b16 %v7069, %v7065
        %v7138 = vpack.c.b16 %v7070, %v7066
        %v7139 = vpack.c.b16 %v7071, %v7067
        %v7140 = vpack.c.b16 %v7076, %v7072
        %v7141 = vpack.c.b16 %v7077, %v7073
        %v7142 = vpack.c.b16 %v7078, %v7074
        %v7143 = vpack.c.b16 %v7079, %v7075
        %7208 = vmatprep.subr.bf16.mxu0 %v7109
        %7209 = vmatpush1.bf16.msra.mxu0 %v7108
        %7210 = vmatprep.subr.bf16.mxu0 %v7105
        %7211 = vmatpush1.bf16.msra.mxu0 %v7104
        %7212 = vmatprep.subr.bf16.mxu0 %v7101
        %7213 = vmatpush1.bf16.msra.mxu0 %v7100
        %7214 = vmatprep.subr.bf16.mxu0 %v7097
        %7215 = vmatpush1.bf16.msra.mxu0 %v7096
        %7216 = vmatprep.subr.bf16.mxu0 %v7093
        %7217 = vmatpush1.bf16.msra.mxu0 %v7092
        %7218 = vmatprep.subr.bf16.mxu0 %v7089
        %7219 = vmatpush1.bf16.msra.mxu0 %v7088
        %7220 = vmatprep.subr.bf16.mxu0 %v7085
        %7221 = vmatpush1.bf16.msra.mxu0 %v7084
        %7222 = vmatprep.subr.bf16.mxu0 %v7081
        %7223 = vmatpush1.bf16.msra.mxu0 %v7080
        %7224 = vmatprep.subr.bf16.mxu0 %v7141
        %7225 = vmatpush2.bf16.msra.mxu0 %v7140
        %7226 = vmatprep.subr.bf16.mxu0 %v7137
        %7227 = vmatpush2.bf16.msra.mxu0 %v7136
        %7228 = vmatprep.subr.bf16.mxu0 %v7133
        %7229 = vmatpush2.bf16.msra.mxu0 %v7132
        %7230 = vmatprep.subr.bf16.mxu0 %v7129
        %7231 = vmatpush2.bf16.msra.mxu0 %v7128
        %7232 = vmatprep.subr.bf16.mxu0 %v7125
        %7233 = vmatpush2.bf16.msra.mxu0 %v7124
        %7234 = vmatprep.subr.bf16.mxu0 %v7121
        %7235 = vmatpush2.bf16.msra.mxu0 %v7120
        %7236 = vmatprep.subr.bf16.mxu0 %v7117
        %7237 = vmatpush2.bf16.msra.mxu0 %v7116
        %7238 = vmatprep.subr.bf16.mxu0 %v7113
        %7239 = vmatpush2.bf16.msra.mxu0 %v7112
        %7240 = vmatprep.mubr.bf16.mxu0 %v6822
        %7241 = vmatmul.mubr.bf16.gmra.mxu0 %v6821
        %v7242 = vpop.f32.mrf.mxu0
        %v7243 = vadd.f32 0.0, %v7242
        %v7244 = vpop.f32.mrf.mxu0
        %v7245 = vadd.f32 0.0, %v7244
        %v7246 = vpop.f32.mrf.mxu0
        %v7247 = vpop.f32.mrf.mxu0
        %7248 = vdwg.mxu0
        %7249 = vmatprep.subr.bf16.mxu0 %v7111
        %7250 = vmatpush1.bf16.msra.mxu0 %v7110
        %7251 = vmatprep.subr.bf16.mxu0 %v7107
        %7252 = vmatpush1.bf16.msra.mxu0 %v7106
        %7253 = vmatprep.subr.bf16.mxu0 %v7103
        %7254 = vmatpush1.bf16.msra.mxu0 %v7102
        %7255 = vmatprep.subr.bf16.mxu0 %v7099
        %7256 = vmatpush1.bf16.msra.mxu0 %v7098
        %7257 = vmatprep.subr.bf16.mxu0 %v7095
        %7258 = vmatpush1.bf16.msra.mxu0 %v7094
        %7259 = vmatprep.subr.bf16.mxu0 %v7091
        %7260 = vmatpush1.bf16.msra.mxu0 %v7090
        %7261 = vmatprep.subr.bf16.mxu0 %v7087
        %7262 = vmatpush1.bf16.msra.mxu0 %v7086
        %7263 = vmatprep.subr.bf16.mxu0 %v7083
        %7264 = vmatpush1.bf16.msra.mxu0 %v7082
        %7265 = vmatprep.subr.bf16.mxu0 %v7143
        %7266 = vmatpush2.bf16.msra.mxu0 %v7142
        %7267 = vmatprep.subr.bf16.mxu0 %v7139
        %7268 = vmatpush2.bf16.msra.mxu0 %v7138
        %7269 = vmatprep.subr.bf16.mxu0 %v7135
        %7270 = vmatpush2.bf16.msra.mxu0 %v7134
        %7271 = vmatprep.subr.bf16.mxu0 %v7131
        %7272 = vmatpush2.bf16.msra.mxu0 %v7130
        %7273 = vmatprep.subr.bf16.mxu0 %v7127
        %7274 = vmatpush2.bf16.msra.mxu0 %v7126
        %7275 = vmatprep.subr.bf16.mxu0 %v7123
        %7276 = vmatpush2.bf16.msra.mxu0 %v7122
        %7277 = vmatprep.subr.bf16.mxu0 %v7119
        %7278 = vmatpush2.bf16.msra.mxu0 %v7118
        %7279 = vmatprep.subr.bf16.mxu0 %v7115
        %7280 = vmatpush2.bf16.msra.mxu0 %v7114
        %7281 = vmatprep.mubr.bf16.mxu0 %v6822
        %7282 = vmatmul.mubr.bf16.gmra.mxu0 %v6821
        %v7283 = vpop.f32.mrf.mxu0
        %v7284 = vadd.f32 0.0, %v7283
        %v7285 = vpop.f32.mrf.mxu0
        %v7286 = vadd.f32 0.0, %v7285
        %v7287 = vpop.f32.mrf.mxu0
        %v7288 = vpop.f32.mrf.mxu0
        %7289 = vdwg.mxu0
        %v7354 = vunpack.c.l.b16 %v6755
        %v7355 = vunpack.c.h.b16 %v6755
        %v7356 = vunpack.c.l.b16 %v6756
        %v7357 = vunpack.c.h.b16 %v6756
        %v7358 = vunpack.c.l.b16 %v6757
        %v7359 = vunpack.c.h.b16 %v6757
        %v7360 = vunpack.c.l.b16 %v6758
        %v7361 = vunpack.c.h.b16 %v6758
        %v7362 = vunpack.c.l.b16 %v6759
        %v7363 = vunpack.c.h.b16 %v6759
        %v7364 = vunpack.c.l.b16 %v6760
        %v7365 = vunpack.c.h.b16 %v6760
        %v7366 = vunpack.c.l.b16 %v6761
        %v7367 = vunpack.c.h.b16 %v6761
        %v7368 = vunpack.c.l.b16 %v6762
        %v7369 = vunpack.c.h.b16 %v6762
        %v7370 = vunpack.c.l.b16 %v6763
        %v7371 = vunpack.c.h.b16 %v6763
        %v7372 = vunpack.c.l.b16 %v6764
        %v7373 = vunpack.c.h.b16 %v6764
        %v7374 = vunpack.c.l.b16 %v6765
        %v7375 = vunpack.c.h.b16 %v6765
        %v7376 = vunpack.c.l.b16 %v6766
        %v7377 = vunpack.c.h.b16 %v6766
        %v7378 = vunpack.c.l.b16 %v6767
        %v7379 = vunpack.c.h.b16 %v6767
        %v7380 = vunpack.c.l.b16 %v6768
        %v7381 = vunpack.c.h.b16 %v6768
        %v7382 = vunpack.c.l.b16 %v6769
        %v7383 = vunpack.c.h.b16 %v6769
        %v7384 = vunpack.c.l.b16 %v6770
        %v7385 = vunpack.c.h.b16 %v6770
        %v7386 = vunpack.c.l.b16 %v6771
        %v7387 = vunpack.c.h.b16 %v6771
        %v7388 = vunpack.c.l.b16 %v6772
        %v7389 = vunpack.c.h.b16 %v6772
        %v7390 = vunpack.c.l.b16 %v6773
        %v7391 = vunpack.c.h.b16 %v6773
        %v7392 = vunpack.c.l.b16 %v6774
        %v7393 = vunpack.c.h.b16 %v6774
        %v7394 = vunpack.c.l.b16 %v6775
        %v7395 = vunpack.c.h.b16 %v6775
        %v7396 = vunpack.c.l.b16 %v6776
        %v7397 = vunpack.c.h.b16 %v6776
        %v7398 = vunpack.c.l.b16 %v6777
        %v7399 = vunpack.c.h.b16 %v6777
        %v7400 = vunpack.c.l.b16 %v6778
        %v7401 = vunpack.c.h.b16 %v6778
        %v7402 = vunpack.c.l.b16 %v6779
        %v7403 = vunpack.c.h.b16 %v6779
        %v7404 = vunpack.c.l.b16 %v6780
        %v7405 = vunpack.c.h.b16 %v6780
        %v7406 = vunpack.c.l.b16 %v6781
        %v7407 = vunpack.c.h.b16 %v6781
        %v7408 = vunpack.c.l.b16 %v6782
        %v7409 = vunpack.c.h.b16 %v6782
        %v7410 = vunpack.c.l.b16 %v6783
        %v7411 = vunpack.c.h.b16 %v6783
        %v7412 = vunpack.c.l.b16 %v6784
        %v7413 = vunpack.c.h.b16 %v6784
        %v7414 = vunpack.c.l.b16 %v6785
        %v7415 = vunpack.c.h.b16 %v6785
        %v7416 = vunpack.c.l.b16 %v6786
        %v7417 = vunpack.c.h.b16 %v6786
        %v7418 = vunpack.c.l.b16 %v6787
        %v7419 = vunpack.c.h.b16 %v6787
        %v7420 = vunpack.c.l.b16 %v6788
        %v7421 = vunpack.c.h.b16 %v6788
        %v7422 = vunpack.c.l.b16 %v6789
        %v7423 = vunpack.c.h.b16 %v6789
        %v7424 = vunpack.c.l.b16 %v6790
        %v7425 = vunpack.c.h.b16 %v6790
        %v7426 = vunpack.c.l.b16 %v6791
        %v7427 = vunpack.c.h.b16 %v6791
        %v7428 = vunpack.c.l.b16 %v6792
        %v7429 = vunpack.c.h.b16 %v6792
        %v7430 = vunpack.c.l.b16 %v6793
        %v7431 = vunpack.c.h.b16 %v6793
        %v7432 = vunpack.c.l.b16 %v6794
        %v7433 = vunpack.c.h.b16 %v6794
        %v7434 = vunpack.c.l.b16 %v6795
        %v7435 = vunpack.c.h.b16 %v6795
        %v7436 = vunpack.c.l.b16 %v6796
        %v7437 = vunpack.c.h.b16 %v6796
        %v7438 = vunpack.c.l.b16 %v6797
        %v7439 = vunpack.c.h.b16 %v6797
        %v7440 = vunpack.c.l.b16 %v6798
        %v7441 = vunpack.c.h.b16 %v6798
        %v7442 = vunpack.c.l.b16 %v6799
        %v7443 = vunpack.c.h.b16 %v6799
        %v7444 = vunpack.c.l.b16 %v6800
        %v7445 = vunpack.c.h.b16 %v6800
        %v7446 = vunpack.c.l.b16 %v6801
        %v7447 = vunpack.c.h.b16 %v6801
        %v7448 = vunpack.c.l.b16 %v6802
        %v7449 = vunpack.c.h.b16 %v6802
        %v7450 = vunpack.c.l.b16 %v6803
        %v7451 = vunpack.c.h.b16 %v6803
        %v7452 = vunpack.c.l.b16 %v6804
        %v7453 = vunpack.c.h.b16 %v6804
        %v7454 = vunpack.c.l.b16 %v6805
        %v7455 = vunpack.c.h.b16 %v6805
        %v7456 = vunpack.c.l.b16 %v6806
        %v7457 = vunpack.c.h.b16 %v6806
        %v7458 = vunpack.c.l.b16 %v6807
        %v7459 = vunpack.c.h.b16 %v6807
        %v7460 = vunpack.c.l.b16 %v6808
        %v7461 = vunpack.c.h.b16 %v6808
        %v7462 = vunpack.c.l.b16 %v6809
        %v7463 = vunpack.c.h.b16 %v6809
        %v7464 = vunpack.c.l.b16 %v6810
        %v7465 = vunpack.c.h.b16 %v6810
        %v7466 = vunpack.c.l.b16 %v6811
        %v7467 = vunpack.c.h.b16 %v6811
        %v7468 = vunpack.c.l.b16 %v6812
        %v7469 = vunpack.c.h.b16 %v6812
        %v7470 = vunpack.c.l.b16 %v6813
        %v7471 = vunpack.c.h.b16 %v6813
        %v7472 = vunpack.c.l.b16 %v6814
        %v7473 = vunpack.c.h.b16 %v6814
        %v7474 = vunpack.c.l.b16 %v6815
        %v7475 = vunpack.c.h.b16 %v6815
        %v7476 = vunpack.c.l.b16 %v6816
        %v7477 = vunpack.c.h.b16 %v6816
        %v7478 = vunpack.c.l.b16 %v6817
        %v7479 = vunpack.c.h.b16 %v6817
        %v7480 = vunpack.c.l.b16 %v6818
        %v7481 = vunpack.c.h.b16 %v6818
        %v7482 = vpack.c.b16 %v7358, %v7354
        %v7483 = vpack.c.b16 %v7359, %v7355
        %v7484 = vpack.c.b16 %v7360, %v7356
        %v7485 = vpack.c.b16 %v7361, %v7357
        %v7486 = vpack.c.b16 %v7366, %v7362
        %v7487 = vpack.c.b16 %v7367, %v7363
        %v7488 = vpack.c.b16 %v7368, %v7364
        %v7489 = vpack.c.b16 %v7369, %v7365
        %v7490 = vpack.c.b16 %v7374, %v7370
        %v7491 = vpack.c.b16 %v7375, %v7371
        %v7492 = vpack.c.b16 %v7376, %v7372
        %v7493 = vpack.c.b16 %v7377, %v7373
        %v7494 = vpack.c.b16 %v7382, %v7378
        %v7495 = vpack.c.b16 %v7383, %v7379
        %v7496 = vpack.c.b16 %v7384, %v7380
        %v7497 = vpack.c.b16 %v7385, %v7381
        %v7498 = vpack.c.b16 %v7390, %v7386
        %v7499 = vpack.c.b16 %v7391, %v7387
        %v7500 = vpack.c.b16 %v7392, %v7388
        %v7501 = vpack.c.b16 %v7393, %v7389
        %v7502 = vpack.c.b16 %v7398, %v7394
        %v7503 = vpack.c.b16 %v7399, %v7395
        %v7504 = vpack.c.b16 %v7400, %v7396
        %v7505 = vpack.c.b16 %v7401, %v7397
        %v7506 = vpack.c.b16 %v7406, %v7402
        %v7507 = vpack.c.b16 %v7407, %v7403
        %v7508 = vpack.c.b16 %v7408, %v7404
        %v7509 = vpack.c.b16 %v7409, %v7405
        %v7510 = vpack.c.b16 %v7414, %v7410
        %v7511 = vpack.c.b16 %v7415, %v7411
        %v7512 = vpack.c.b16 %v7416, %v7412
        %v7513 = vpack.c.b16 %v7417, %v7413
        %v7514 = vpack.c.b16 %v7422, %v7418
        %v7515 = vpack.c.b16 %v7423, %v7419
        %v7516 = vpack.c.b16 %v7424, %v7420
        %v7517 = vpack.c.b16 %v7425, %v7421
        %v7518 = vpack.c.b16 %v7430, %v7426
        %v7519 = vpack.c.b16 %v7431, %v7427
        %v7520 = vpack.c.b16 %v7432, %v7428
        %v7521 = vpack.c.b16 %v7433, %v7429
        %v7522 = vpack.c.b16 %v7438, %v7434
        %v7523 = vpack.c.b16 %v7439, %v7435
        %v7524 = vpack.c.b16 %v7440, %v7436
        %v7525 = vpack.c.b16 %v7441, %v7437
        %v7526 = vpack.c.b16 %v7446, %v7442
        %v7527 = vpack.c.b16 %v7447, %v7443
        %v7528 = vpack.c.b16 %v7448, %v7444
        %v7529 = vpack.c.b16 %v7449, %v7445
        %v7530 = vpack.c.b16 %v7454, %v7450
        %v7531 = vpack.c.b16 %v7455, %v7451
        %v7532 = vpack.c.b16 %v7456, %v7452
        %v7533 = vpack.c.b16 %v7457, %v7453
        %v7534 = vpack.c.b16 %v7462, %v7458
        %v7535 = vpack.c.b16 %v7463, %v7459
        %v7536 = vpack.c.b16 %v7464, %v7460
        %v7537 = vpack.c.b16 %v7465, %v7461
        %v7538 = vpack.c.b16 %v7470, %v7466
        %v7539 = vpack.c.b16 %v7471, %v7467
        %v7540 = vpack.c.b16 %v7472, %v7468
        %v7541 = vpack.c.b16 %v7473, %v7469
        %v7542 = vpack.c.b16 %v7478, %v7474
        %v7543 = vpack.c.b16 %v7479, %v7475
        %v7544 = vpack.c.b16 %v7480, %v7476
        %v7545 = vpack.c.b16 %v7481, %v7477
        %7610 = vmatprep.subr.bf16.mxu0 %v7511
        %7611 = vmatpush1.bf16.msra.mxu0 %v7510
        %7612 = vmatprep.subr.bf16.mxu0 %v7507
        %7613 = vmatpush1.bf16.msra.mxu0 %v7506
        %7614 = vmatprep.subr.bf16.mxu0 %v7503
        %7615 = vmatpush1.bf16.msra.mxu0 %v7502
        %7616 = vmatprep.subr.bf16.mxu0 %v7499
        %7617 = vmatpush1.bf16.msra.mxu0 %v7498
        %7618 = vmatprep.subr.bf16.mxu0 %v7495
        %7619 = vmatpush1.bf16.msra.mxu0 %v7494
        %7620 = vmatprep.subr.bf16.mxu0 %v7491
        %7621 = vmatpush1.bf16.msra.mxu0 %v7490
        %7622 = vmatprep.subr.bf16.mxu0 %v7487
        %7623 = vmatpush1.bf16.msra.mxu0 %v7486
        %7624 = vmatprep.subr.bf16.mxu0 %v7483
        %7625 = vmatpush1.bf16.msra.mxu0 %v7482
        %7626 = vmatprep.subr.bf16.mxu0 %v7543
        %7627 = vmatpush2.bf16.msra.mxu0 %v7542
        %7628 = vmatprep.subr.bf16.mxu0 %v7539
        %7629 = vmatpush2.bf16.msra.mxu0 %v7538
        %7630 = vmatprep.subr.bf16.mxu0 %v7535
        %7631 = vmatpush2.bf16.msra.mxu0 %v7534
        %7632 = vmatprep.subr.bf16.mxu0 %v7531
        %7633 = vmatpush2.bf16.msra.mxu0 %v7530
        %7634 = vmatprep.subr.bf16.mxu0 %v7527
        %7635 = vmatpush2.bf16.msra.mxu0 %v7526
        %7636 = vmatprep.subr.bf16.mxu0 %v7523
        %7637 = vmatpush2.bf16.msra.mxu0 %v7522
        %7638 = vmatprep.subr.bf16.mxu0 %v7519
        %7639 = vmatpush2.bf16.msra.mxu0 %v7518
        %7640 = vmatprep.subr.bf16.mxu0 %v7515
        %7641 = vmatpush2.bf16.msra.mxu0 %v7514
        %7642 = vmatprep.mubr.bf16.mxu0 %v6754
        %7643 = vmatmul.mubr.bf16.gmra.mxu0 %v6753
        %v7644 = vpop.f32.mrf.mxu0
        %v7645 = vadd.f32 %v7243, %v7644
        %v7646 = vpop.f32.mrf.mxu0
        %v7647 = vadd.f32 %v7245, %v7646
        %v7648 = vpop.f32.mrf.mxu0
        %v7649 = vpop.f32.mrf.mxu0
        %7650 = vdwg.mxu0
        %7651 = vmatprep.subr.bf16.mxu0 %v7513
        %7652 = vmatpush1.bf16.msra.mxu0 %v7512
        %7653 = vmatprep.subr.bf16.mxu0 %v7509
        %7654 = vmatpush1.bf16.msra.mxu0 %v7508
        %7655 = vmatprep.subr.bf16.mxu0 %v7505
        %7656 = vmatpush1.bf16.msra.mxu0 %v7504
        %7657 = vmatprep.subr.bf16.mxu0 %v7501
        %7658 = vmatpush1.bf16.msra.mxu0 %v7500
        %7659 = vmatprep.subr.bf16.mxu0 %v7497
        %7660 = vmatpush1.bf16.msra.mxu0 %v7496
        %7661 = vmatprep.subr.bf16.mxu0 %v7493
        %7662 = vmatpush1.bf16.msra.mxu0 %v7492
        %7663 = vmatprep.subr.bf16.mxu0 %v7489
        %7664 = vmatpush1.bf16.msra.mxu0 %v7488
        %7665 = vmatprep.subr.bf16.mxu0 %v7485
        %7666 = vmatpush1.bf16.msra.mxu0 %v7484
        %7667 = vmatprep.subr.bf16.mxu0 %v7545
        %7668 = vmatpush2.bf16.msra.mxu0 %v7544
        %7669 = vmatprep.subr.bf16.mxu0 %v7541
        %7670 = vmatpush2.bf16.msra.mxu0 %v7540
        %7671 = vmatprep.subr.bf16.mxu0 %v7537
        %7672 = vmatpush2.bf16.msra.mxu0 %v7536
        %7673 = vmatprep.subr.bf16.mxu0 %v7533
        %7674 = vmatpush2.bf16.msra.mxu0 %v7532
        %7675 = vmatprep.subr.bf16.mxu0 %v7529
        %7676 = vmatpush2.bf16.msra.mxu0 %v7528
        %7677 = vmatprep.subr.bf16.mxu0 %v7525
        %7678 = vmatpush2.bf16.msra.mxu0 %v7524
        %7679 = vmatprep.subr.bf16.mxu0 %v7521
        %7680 = vmatpush2.bf16.msra.mxu0 %v7520
        %7681 = vmatprep.subr.bf16.mxu0 %v7517
        %7682 = vmatpush2.bf16.msra.mxu0 %v7516
        %7683 = vmatprep.mubr.bf16.mxu0 %v6754
        %7684 = vmatmul.mubr.bf16.gmra.mxu0 %v6753
        %v7685 = vpop.f32.mrf.mxu0
        %v7686 = vadd.f32 %v7284, %v7685
        %v7687 = vpop.f32.mrf.mxu0
        %v7688 = vadd.f32 %v7286, %v7687
        %v7689 = vpop.f32.mrf.mxu0
        %v7690 = vpop.f32.mrf.mxu0
        %7691 = vdwg.mxu0
        %v7692 = vmax.f32 %v6743, %v6745
        %v7693 = vmax.f32 %v6744, %v6746
        %v7694 = vpack.c.bf16 %v7692, %v7692
        %v7695 = vpack.c.bf16 %v7693, %v7693
        %s7696 = scalar_lea.vmem %s5, 1024
        %v7697 = vld [vmem:[%s7696] sm:$0xff]
        %v7698 = vld [vmem:[%s7696 + $0x8] sm:$0xff]
        %v7699 = vld [vmem:[%s7696 + $0x10] sm:$0xff]
        %v7700 = vld [vmem:[%s7696 + $0x18] sm:$0xff]
        %v7701 = vld [vmem:[%s7696 + $0x20] sm:$0xff]
        %v7702 = vld [vmem:[%s7696 + $0x28] sm:$0xff]
        %v7703 = vld [vmem:[%s7696 + $0x30] sm:$0xff]
        %v7704 = vld [vmem:[%s7696 + $0x38] sm:$0xff]
        %v7705 = vld [vmem:[%s7696 + $0x40] sm:$0xff]
        %v7706 = vld [vmem:[%s7696 + $0x48] sm:$0xff]
        %v7707 = vld [vmem:[%s7696 + $0x50] sm:$0xff]
        %v7708 = vld [vmem:[%s7696 + $0x58] sm:$0xff]
        %v7709 = vld [vmem:[%s7696 + $0x60] sm:$0xff]
        %v7710 = vld [vmem:[%s7696 + $0x68] sm:$0xff]
        %v7711 = vld [vmem:[%s7696 + $0x70] sm:$0xff]
        %v7712 = vld [vmem:[%s7696 + $0x78] sm:$0xff]
        %v7713 = vld [vmem:[%s7696 + $0x80] sm:$0xff]
        %v7714 = vld [vmem:[%s7696 + $0x88] sm:$0xff]
        %v7715 = vld [vmem:[%s7696 + $0x90] sm:$0xff]
        %v7716 = vld [vmem:[%s7696 + $0x98] sm:$0xff]
        %v7717 = vld [vmem:[%s7696 + $0xa0] sm:$0xff]
        %v7718 = vld [vmem:[%s7696 + $0xa8] sm:$0xff]
        %v7719 = vld [vmem:[%s7696 + $0xb0] sm:$0xff]
        %v7720 = vld [vmem:[%s7696 + $0xb8] sm:$0xff]
        %v7721 = vld [vmem:[%s7696 + $0xc0] sm:$0xff]
        %v7722 = vld [vmem:[%s7696 + $0xc8] sm:$0xff]
        %v7723 = vld [vmem:[%s7696 + $0xd0] sm:$0xff]
        %v7724 = vld [vmem:[%s7696 + $0xd8] sm:$0xff]
        %v7725 = vld [vmem:[%s7696 + $0xe0] sm:$0xff]
        %v7726 = vld [vmem:[%s7696 + $0xe8] sm:$0xff]
        %v7727 = vld [vmem:[%s7696 + $0xf0] sm:$0xff]
        %v7728 = vld [vmem:[%s7696 + $0xf8] sm:$0xff]
        %v7729 = vld [vmem:[%s7696 + $0x100] sm:$0xff]
        %v7730 = vld [vmem:[%s7696 + $0x108] sm:$0xff]
        %v7731 = vld [vmem:[%s7696 + $0x110] sm:$0xff]
        %v7732 = vld [vmem:[%s7696 + $0x118] sm:$0xff]
        %v7733 = vld [vmem:[%s7696 + $0x120] sm:$0xff]
        %v7734 = vld [vmem:[%s7696 + $0x128] sm:$0xff]
        %v7735 = vld [vmem:[%s7696 + $0x130] sm:$0xff]
        %v7736 = vld [vmem:[%s7696 + $0x138] sm:$0xff]
        %v7737 = vld [vmem:[%s7696 + $0x140] sm:$0xff]
        %v7738 = vld [vmem:[%s7696 + $0x148] sm:$0xff]
        %v7739 = vld [vmem:[%s7696 + $0x150] sm:$0xff]
        %v7740 = vld [vmem:[%s7696 + $0x158] sm:$0xff]
        %v7741 = vld [vmem:[%s7696 + $0x160] sm:$0xff]
        %v7742 = vld [vmem:[%s7696 + $0x168] sm:$0xff]
        %v7743 = vld [vmem:[%s7696 + $0x170] sm:$0xff]
        %v7744 = vld [vmem:[%s7696 + $0x178] sm:$0xff]
        %v7745 = vld [vmem:[%s7696 + $0x180] sm:$0xff]
        %v7746 = vld [vmem:[%s7696 + $0x188] sm:$0xff]
        %v7747 = vld [vmem:[%s7696 + $0x190] sm:$0xff]
        %v7748 = vld [vmem:[%s7696 + $0x198] sm:$0xff]
        %v7749 = vld [vmem:[%s7696 + $0x1a0] sm:$0xff]
        %v7750 = vld [vmem:[%s7696 + $0x1a8] sm:$0xff]
        %v7751 = vld [vmem:[%s7696 + $0x1b0] sm:$0xff]
        %v7752 = vld [vmem:[%s7696 + $0x1b8] sm:$0xff]
        %v7753 = vld [vmem:[%s7696 + $0x1c0] sm:$0xff]
        %v7754 = vld [vmem:[%s7696 + $0x1c8] sm:$0xff]
        %v7755 = vld [vmem:[%s7696 + $0x1d0] sm:$0xff]
        %v7756 = vld [vmem:[%s7696 + $0x1d8] sm:$0xff]
        %v7757 = vld [vmem:[%s7696 + $0x1e0] sm:$0xff]
        %v7758 = vld [vmem:[%s7696 + $0x1e8] sm:$0xff]
        %v7759 = vld [vmem:[%s7696 + $0x1f0] sm:$0xff]
        %v7760 = vld [vmem:[%s7696 + $0x1f8] sm:$0xff]
        %v7825 = vunpack.c.l.b16 %v7697
        %v7826 = vunpack.c.h.b16 %v7697
        %v7827 = vunpack.c.l.b16 %v7698
        %v7828 = vunpack.c.h.b16 %v7698
        %v7829 = vunpack.c.l.b16 %v7699
        %v7830 = vunpack.c.h.b16 %v7699
        %v7831 = vunpack.c.l.b16 %v7700
        %v7832 = vunpack.c.h.b16 %v7700
        %v7833 = vunpack.c.l.b16 %v7701
        %v7834 = vunpack.c.h.b16 %v7701
        %v7835 = vunpack.c.l.b16 %v7702
        %v7836 = vunpack.c.h.b16 %v7702
        %v7837 = vunpack.c.l.b16 %v7703
        %v7838 = vunpack.c.h.b16 %v7703
        %v7839 = vunpack.c.l.b16 %v7704
        %v7840 = vunpack.c.h.b16 %v7704
        %v7841 = vunpack.c.l.b16 %v7705
        %v7842 = vunpack.c.h.b16 %v7705
        %v7843 = vunpack.c.l.b16 %v7706
        %v7844 = vunpack.c.h.b16 %v7706
        %v7845 = vunpack.c.l.b16 %v7707
        %v7846 = vunpack.c.h.b16 %v7707
        %v7847 = vunpack.c.l.b16 %v7708
        %v7848 = vunpack.c.h.b16 %v7708
        %v7849 = vunpack.c.l.b16 %v7709
        %v7850 = vunpack.c.h.b16 %v7709
        %v7851 = vunpack.c.l.b16 %v7710
        %v7852 = vunpack.c.h.b16 %v7710
        %v7853 = vunpack.c.l.b16 %v7711
        %v7854 = vunpack.c.h.b16 %v7711
        %v7855 = vunpack.c.l.b16 %v7712
        %v7856 = vunpack.c.h.b16 %v7712
        %v7857 = vunpack.c.l.b16 %v7713
        %v7858 = vunpack.c.h.b16 %v7713
        %v7859 = vunpack.c.l.b16 %v7714
        %v7860 = vunpack.c.h.b16 %v7714
        %v7861 = vunpack.c.l.b16 %v7715
        %v7862 = vunpack.c.h.b16 %v7715
        %v7863 = vunpack.c.l.b16 %v7716
        %v7864 = vunpack.c.h.b16 %v7716
        %v7865 = vunpack.c.l.b16 %v7717
        %v7866 = vunpack.c.h.b16 %v7717
        %v7867 = vunpack.c.l.b16 %v7718
        %v7868 = vunpack.c.h.b16 %v7718
        %v7869 = vunpack.c.l.b16 %v7719
        %v7870 = vunpack.c.h.b16 %v7719
        %v7871 = vunpack.c.l.b16 %v7720
        %v7872 = vunpack.c.h.b16 %v7720
        %v7873 = vunpack.c.l.b16 %v7721
        %v7874 = vunpack.c.h.b16 %v7721
        %v7875 = vunpack.c.l.b16 %v7722
        %v7876 = vunpack.c.h.b16 %v7722
        %v7877 = vunpack.c.l.b16 %v7723
        %v7878 = vunpack.c.h.b16 %v7723
        %v7879 = vunpack.c.l.b16 %v7724
        %v7880 = vunpack.c.h.b16 %v7724
        %v7881 = vunpack.c.l.b16 %v7725
        %v7882 = vunpack.c.h.b16 %v7725
        %v7883 = vunpack.c.l.b16 %v7726
        %v7884 = vunpack.c.h.b16 %v7726
        %v7885 = vunpack.c.l.b16 %v7727
        %v7886 = vunpack.c.h.b16 %v7727
        %v7887 = vunpack.c.l.b16 %v7728
        %v7888 = vunpack.c.h.b16 %v7728
        %v7889 = vunpack.c.l.b16 %v7729
        %v7890 = vunpack.c.h.b16 %v7729
        %v7891 = vunpack.c.l.b16 %v7730
        %v7892 = vunpack.c.h.b16 %v7730
        %v7893 = vunpack.c.l.b16 %v7731
        %v7894 = vunpack.c.h.b16 %v7731
        %v7895 = vunpack.c.l.b16 %v7732
        %v7896 = vunpack.c.h.b16 %v7732
        %v7897 = vunpack.c.l.b16 %v7733
        %v7898 = vunpack.c.h.b16 %v7733
        %v7899 = vunpack.c.l.b16 %v7734
        %v7900 = vunpack.c.h.b16 %v7734
        %v7901 = vunpack.c.l.b16 %v7735
        %v7902 = vunpack.c.h.b16 %v7735
        %v7903 = vunpack.c.l.b16 %v7736
        %v7904 = vunpack.c.h.b16 %v7736
        %v7905 = vunpack.c.l.b16 %v7737
        %v7906 = vunpack.c.h.b16 %v7737
        %v7907 = vunpack.c.l.b16 %v7738
        %v7908 = vunpack.c.h.b16 %v7738
        %v7909 = vunpack.c.l.b16 %v7739
        %v7910 = vunpack.c.h.b16 %v7739
        %v7911 = vunpack.c.l.b16 %v7740
        %v7912 = vunpack.c.h.b16 %v7740
        %v7913 = vunpack.c.l.b16 %v7741
        %v7914 = vunpack.c.h.b16 %v7741
        %v7915 = vunpack.c.l.b16 %v7742
        %v7916 = vunpack.c.h.b16 %v7742
        %v7917 = vunpack.c.l.b16 %v7743
        %v7918 = vunpack.c.h.b16 %v7743
        %v7919 = vunpack.c.l.b16 %v7744
        %v7920 = vunpack.c.h.b16 %v7744
        %v7921 = vunpack.c.l.b16 %v7745
        %v7922 = vunpack.c.h.b16 %v7745
        %v7923 = vunpack.c.l.b16 %v7746
        %v7924 = vunpack.c.h.b16 %v7746
        %v7925 = vunpack.c.l.b16 %v7747
        %v7926 = vunpack.c.h.b16 %v7747
        %v7927 = vunpack.c.l.b16 %v7748
        %v7928 = vunpack.c.h.b16 %v7748
        %v7929 = vunpack.c.l.b16 %v7749
        %v7930 = vunpack.c.h.b16 %v7749
        %v7931 = vunpack.c.l.b16 %v7750
        %v7932 = vunpack.c.h.b16 %v7750
        %v7933 = vunpack.c.l.b16 %v7751
        %v7934 = vunpack.c.h.b16 %v7751
        %v7935 = vunpack.c.l.b16 %v7752
        %v7936 = vunpack.c.h.b16 %v7752
        %v7937 = vunpack.c.l.b16 %v7753
        %v7938 = vunpack.c.h.b16 %v7753
        %v7939 = vunpack.c.l.b16 %v7754
        %v7940 = vunpack.c.h.b16 %v7754
        %v7941 = vunpack.c.l.b16 %v7755
        %v7942 = vunpack.c.h.b16 %v7755
        %v7943 = vunpack.c.l.b16 %v7756
        %v7944 = vunpack.c.h.b16 %v7756
        %v7945 = vunpack.c.l.b16 %v7757
        %v7946 = vunpack.c.h.b16 %v7757
        %v7947 = vunpack.c.l.b16 %v7758
        %v7948 = vunpack.c.h.b16 %v7758
        %v7949 = vunpack.c.l.b16 %v7759
        %v7950 = vunpack.c.h.b16 %v7759
        %v7951 = vunpack.c.l.b16 %v7760
        %v7952 = vunpack.c.h.b16 %v7760
        %v7953 = vpack.c.b16 %v7829, %v7825
        %v7954 = vpack.c.b16 %v7830, %v7826
        %v7955 = vpack.c.b16 %v7831, %v7827
        %v7956 = vpack.c.b16 %v7832, %v7828
        %v7957 = vpack.c.b16 %v7837, %v7833
        %v7958 = vpack.c.b16 %v7838, %v7834
        %v7959 = vpack.c.b16 %v7839, %v7835
        %v7960 = vpack.c.b16 %v7840, %v7836
        %v7961 = vpack.c.b16 %v7845, %v7841
        %v7962 = vpack.c.b16 %v7846, %v7842
        %v7963 = vpack.c.b16 %v7847, %v7843
        %v7964 = vpack.c.b16 %v7848, %v7844
        %v7965 = vpack.c.b16 %v7853, %v7849
        %v7966 = vpack.c.b16 %v7854, %v7850
        %v7967 = vpack.c.b16 %v7855, %v7851
        %v7968 = vpack.c.b16 %v7856, %v7852
        %v7969 = vpack.c.b16 %v7861, %v7857
        %v7970 = vpack.c.b16 %v7862, %v7858
        %v7971 = vpack.c.b16 %v7863, %v7859
        %v7972 = vpack.c.b16 %v7864, %v7860
        %v7973 = vpack.c.b16 %v7869, %v7865
        %v7974 = vpack.c.b16 %v7870, %v7866
        %v7975 = vpack.c.b16 %v7871, %v7867
        %v7976 = vpack.c.b16 %v7872, %v7868
        %v7977 = vpack.c.b16 %v7877, %v7873
        %v7978 = vpack.c.b16 %v7878, %v7874
        %v7979 = vpack.c.b16 %v7879, %v7875
        %v7980 = vpack.c.b16 %v7880, %v7876
        %v7981 = vpack.c.b16 %v7885, %v7881
        %v7982 = vpack.c.b16 %v7886, %v7882
        %v7983 = vpack.c.b16 %v7887, %v7883
        %v7984 = vpack.c.b16 %v7888, %v7884
        %v7985 = vpack.c.b16 %v7893, %v7889
        %v7986 = vpack.c.b16 %v7894, %v7890
        %v7987 = vpack.c.b16 %v7895, %v7891
        %v7988 = vpack.c.b16 %v7896, %v7892
        %v7989 = vpack.c.b16 %v7901, %v7897
        %v7990 = vpack.c.b16 %v7902, %v7898
        %v7991 = vpack.c.b16 %v7903, %v7899
        %v7992 = vpack.c.b16 %v7904, %v7900
        %v7993 = vpack.c.b16 %v7909, %v7905
        %v7994 = vpack.c.b16 %v7910, %v7906
        %v7995 = vpack.c.b16 %v7911, %v7907
        %v7996 = vpack.c.b16 %v7912, %v7908
        %v7997 = vpack.c.b16 %v7917, %v7913
        %v7998 = vpack.c.b16 %v7918, %v7914
        %v7999 = vpack.c.b16 %v7919, %v7915
        %v8000 = vpack.c.b16 %v7920, %v7916
        %v8001 = vpack.c.b16 %v7925, %v7921
        %v8002 = vpack.c.b16 %v7926, %v7922
        %v8003 = vpack.c.b16 %v7927, %v7923
        %v8004 = vpack.c.b16 %v7928, %v7924
        %v8005 = vpack.c.b16 %v7933, %v7929
        %v8006 = vpack.c.b16 %v7934, %v7930
        %v8007 = vpack.c.b16 %v7935, %v7931
        %v8008 = vpack.c.b16 %v7936, %v7932
        %v8009 = vpack.c.b16 %v7941, %v7937
        %v8010 = vpack.c.b16 %v7942, %v7938
        %v8011 = vpack.c.b16 %v7943, %v7939
        %v8012 = vpack.c.b16 %v7944, %v7940
        %v8013 = vpack.c.b16 %v7949, %v7945
        %v8014 = vpack.c.b16 %v7950, %v7946
        %v8015 = vpack.c.b16 %v7951, %v7947
        %v8016 = vpack.c.b16 %v7952, %v7948
        %8081 = vmatprep.subr.bf16.mxu0 %v7982
        %8082 = vmatpush1.bf16.msra.mxu0 %v7981
        %8083 = vmatprep.subr.bf16.mxu0 %v7978
        %8084 = vmatpush1.bf16.msra.mxu0 %v7977
        %8085 = vmatprep.subr.bf16.mxu0 %v7974
        %8086 = vmatpush1.bf16.msra.mxu0 %v7973
        %8087 = vmatprep.subr.bf16.mxu0 %v7970
        %8088 = vmatpush1.bf16.msra.mxu0 %v7969
        %8089 = vmatprep.subr.bf16.mxu0 %v7966
        %8090 = vmatpush1.bf16.msra.mxu0 %v7965
        %8091 = vmatprep.subr.bf16.mxu0 %v7962
        %8092 = vmatpush1.bf16.msra.mxu0 %v7961
        %8093 = vmatprep.subr.bf16.mxu0 %v7958
        %8094 = vmatpush1.bf16.msra.mxu0 %v7957
        %8095 = vmatprep.subr.bf16.mxu0 %v7954
        %8096 = vmatpush1.bf16.msra.mxu0 %v7953
        %8097 = vmatprep.subr.bf16.mxu0 %v8014
        %8098 = vmatpush2.bf16.msra.mxu0 %v8013
        %8099 = vmatprep.subr.bf16.mxu0 %v8010
        %8100 = vmatpush2.bf16.msra.mxu0 %v8009
        %8101 = vmatprep.subr.bf16.mxu0 %v8006
        %8102 = vmatpush2.bf16.msra.mxu0 %v8005
        %8103 = vmatprep.subr.bf16.mxu0 %v8002
        %8104 = vmatpush2.bf16.msra.mxu0 %v8001
        %8105 = vmatprep.subr.bf16.mxu0 %v7998
        %8106 = vmatpush2.bf16.msra.mxu0 %v7997
        %8107 = vmatprep.subr.bf16.mxu0 %v7994
        %8108 = vmatpush2.bf16.msra.mxu0 %v7993
        %8109 = vmatprep.subr.bf16.mxu0 %v7990
        %8110 = vmatpush2.bf16.msra.mxu0 %v7989
        %8111 = vmatprep.subr.bf16.mxu0 %v7986
        %8112 = vmatpush2.bf16.msra.mxu0 %v7985
        %8113 = vmatprep.mubr.bf16.mxu0 %v7695
        %8114 = vmatmul.mubr.bf16.gmra.mxu0 %v7694
        %v8115 = vpop.f32.mrf.mxu0
        %v8116 = vadd.f32 0.0, %v8115
        %v8117 = vpop.f32.mrf.mxu0
        %v8118 = vadd.f32 0.0, %v8117
        %v8119 = vpop.f32.mrf.mxu0
        %v8120 = vpop.f32.mrf.mxu0
        %8121 = vdwg.mxu0
        %8122 = vmatprep.subr.bf16.mxu0 %v7984
        %8123 = vmatpush1.bf16.msra.mxu0 %v7983
        %8124 = vmatprep.subr.bf16.mxu0 %v7980
        %8125 = vmatpush1.bf16.msra.mxu0 %v7979
        %8126 = vmatprep.subr.bf16.mxu0 %v7976
        %8127 = vmatpush1.bf16.msra.mxu0 %v7975
        %8128 = vmatprep.subr.bf16.mxu0 %v7972
        %8129 = vmatpush1.bf16.msra.mxu0 %v7971
        %8130 = vmatprep.subr.bf16.mxu0 %v7968
        %8131 = vmatpush1.bf16.msra.mxu0 %v7967
        %8132 = vmatprep.subr.bf16.mxu0 %v7964
        %8133 = vmatpush1.bf16.msra.mxu0 %v7963
        %8134 = vmatprep.subr.bf16.mxu0 %v7960
        %8135 = vmatpush1.bf16.msra.mxu0 %v7959
        %8136 = vmatprep.subr.bf16.mxu0 %v7956
        %8137 = vmatpush1.bf16.msra.mxu0 %v7955
        %8138 = vmatprep.subr.bf16.mxu0 %v8016
        %8139 = vmatpush2.bf16.msra.mxu0 %v8015
        %8140 = vmatprep.subr.bf16.mxu0 %v8012
        %8141 = vmatpush2.bf16.msra.mxu0 %v8011
        %8142 = vmatprep.subr.bf16.mxu0 %v8008
        %8143 = vmatpush2.bf16.msra.mxu0 %v8007
        %8144 = vmatprep.subr.bf16.mxu0 %v8004
        %8145 = vmatpush2.bf16.msra.mxu0 %v8003
        %8146 = vmatprep.subr.bf16.mxu0 %v8000
        %8147 = vmatpush2.bf16.msra.mxu0 %v7999
        %8148 = vmatprep.subr.bf16.mxu0 %v7996
        %8149 = vmatpush2.bf16.msra.mxu0 %v7995
        %8150 = vmatprep.subr.bf16.mxu0 %v7992
        %8151 = vmatpush2.bf16.msra.mxu0 %v7991
        %8152 = vmatprep.subr.bf16.mxu0 %v7988
        %8153 = vmatpush2.bf16.msra.mxu0 %v7987
        %8154 = vmatprep.mubr.bf16.mxu0 %v7695
        %8155 = vmatmul.mubr.bf16.gmra.mxu0 %v7694
        %v8156 = vpop.f32.mrf.mxu0
        %v8157 = vadd.f32 0.0, %v8156
        %v8158 = vpop.f32.mrf.mxu0
        %v8159 = vadd.f32 0.0, %v8158
        %v8160 = vpop.f32.mrf.mxu0
        %v8161 = vpop.f32.mrf.mxu0
        %8162 = vdwg.mxu0
        %v8163 = vadd.f32 %v7645, %v8116
        %v8164 = vadd.f32 %v7647, %v8118
        %v8165 = vadd.f32 %v7686, %v8157
        %v8166 = vadd.f32 %v7688, %v8159
        %v8167 = vmax.f32 %v6747, %v6749
        %v8168 = vmax.f32 %v6748, %v6750
        %v8169 = vpack.c.bf16 %v8167, %v8167
        %v8170 = vpack.c.bf16 %v8168, %v8168
        %s8171 = scalar_lea.vmem %s5, 1536
        %v8172 = vld [vmem:[%s8171] sm:$0xff]
        %v8173 = vld [vmem:[%s8171 + $0x8] sm:$0xff]
        %v8174 = vld [vmem:[%s8171 + $0x10] sm:$0xff]
        %v8175 = vld [vmem:[%s8171 + $0x18] sm:$0xff]
        %v8176 = vld [vmem:[%s8171 + $0x20] sm:$0xff]
        %v8177 = vld [vmem:[%s8171 + $0x28] sm:$0xff]
        %v8178 = vld [vmem:[%s8171 + $0x30] sm:$0xff]
        %v8179 = vld [vmem:[%s8171 + $0x38] sm:$0xff]
        %v8180 = vld [vmem:[%s8171 + $0x40] sm:$0xff]
        %v8181 = vld [vmem:[%s8171 + $0x48] sm:$0xff]
        %v8182 = vld [vmem:[%s8171 + $0x50] sm:$0xff]
        %v8183 = vld [vmem:[%s8171 + $0x58] sm:$0xff]
        %v8184 = vld [vmem:[%s8171 + $0x60] sm:$0xff]
        %v8185 = vld [vmem:[%s8171 + $0x68] sm:$0xff]
        %v8186 = vld [vmem:[%s8171 + $0x70] sm:$0xff]
        %v8187 = vld [vmem:[%s8171 + $0x78] sm:$0xff]
        %v8188 = vld [vmem:[%s8171 + $0x80] sm:$0xff]
        %v8189 = vld [vmem:[%s8171 + $0x88] sm:$0xff]
        %v8190 = vld [vmem:[%s8171 + $0x90] sm:$0xff]
        %v8191 = vld [vmem:[%s8171 + $0x98] sm:$0xff]
        %v8192 = vld [vmem:[%s8171 + $0xa0] sm:$0xff]
        %v8193 = vld [vmem:[%s8171 + $0xa8] sm:$0xff]
        %v8194 = vld [vmem:[%s8171 + $0xb0] sm:$0xff]
        %v8195 = vld [vmem:[%s8171 + $0xb8] sm:$0xff]
        %v8196 = vld [vmem:[%s8171 + $0xc0] sm:$0xff]
        %v8197 = vld [vmem:[%s8171 + $0xc8] sm:$0xff]
        %v8198 = vld [vmem:[%s8171 + $0xd0] sm:$0xff]
        %v8199 = vld [vmem:[%s8171 + $0xd8] sm:$0xff]
        %v8200 = vld [vmem:[%s8171 + $0xe0] sm:$0xff]
        %v8201 = vld [vmem:[%s8171 + $0xe8] sm:$0xff]
        %v8202 = vld [vmem:[%s8171 + $0xf0] sm:$0xff]
        %v8203 = vld [vmem:[%s8171 + $0xf8] sm:$0xff]
        %v8204 = vld [vmem:[%s8171 + $0x100] sm:$0xff]
        %v8205 = vld [vmem:[%s8171 + $0x108] sm:$0xff]
        %v8206 = vld [vmem:[%s8171 + $0x110] sm:$0xff]
        %v8207 = vld [vmem:[%s8171 + $0x118] sm:$0xff]
        %v8208 = vld [vmem:[%s8171 + $0x120] sm:$0xff]
        %v8209 = vld [vmem:[%s8171 + $0x128] sm:$0xff]
        %v8210 = vld [vmem:[%s8171 + $0x130] sm:$0xff]
        %v8211 = vld [vmem:[%s8171 + $0x138] sm:$0xff]
        %v8212 = vld [vmem:[%s8171 + $0x140] sm:$0xff]
        %v8213 = vld [vmem:[%s8171 + $0x148] sm:$0xff]
        %v8214 = vld [vmem:[%s8171 + $0x150] sm:$0xff]
        %v8215 = vld [vmem:[%s8171 + $0x158] sm:$0xff]
        %v8216 = vld [vmem:[%s8171 + $0x160] sm:$0xff]
        %v8217 = vld [vmem:[%s8171 + $0x168] sm:$0xff]
        %v8218 = vld [vmem:[%s8171 + $0x170] sm:$0xff]
        %v8219 = vld [vmem:[%s8171 + $0x178] sm:$0xff]
        %v8220 = vld [vmem:[%s8171 + $0x180] sm:$0xff]
        %v8221 = vld [vmem:[%s8171 + $0x188] sm:$0xff]
        %v8222 = vld [vmem:[%s8171 + $0x190] sm:$0xff]
        %v8223 = vld [vmem:[%s8171 + $0x198] sm:$0xff]
        %v8224 = vld [vmem:[%s8171 + $0x1a0] sm:$0xff]
        %v8225 = vld [vmem:[%s8171 + $0x1a8] sm:$0xff]
        %v8226 = vld [vmem:[%s8171 + $0x1b0] sm:$0xff]
        %v8227 = vld [vmem:[%s8171 + $0x1b8] sm:$0xff]
        %v8228 = vld [vmem:[%s8171 + $0x1c0] sm:$0xff]
        %v8229 = vld [vmem:[%s8171 + $0x1c8] sm:$0xff]
        %v8230 = vld [vmem:[%s8171 + $0x1d0] sm:$0xff]
        %v8231 = vld [vmem:[%s8171 + $0x1d8] sm:$0xff]
        %v8232 = vld [vmem:[%s8171 + $0x1e0] sm:$0xff]
        %v8233 = vld [vmem:[%s8171 + $0x1e8] sm:$0xff]
        %v8234 = vld [vmem:[%s8171 + $0x1f0] sm:$0xff]
        %v8235 = vld [vmem:[%s8171 + $0x1f8] sm:$0xff]
        %v8300 = vunpack.c.l.b16 %v8172
        %v8301 = vunpack.c.h.b16 %v8172
        %v8302 = vunpack.c.l.b16 %v8173
        %v8303 = vunpack.c.h.b16 %v8173
        %v8304 = vunpack.c.l.b16 %v8174
        %v8305 = vunpack.c.h.b16 %v8174
        %v8306 = vunpack.c.l.b16 %v8175
        %v8307 = vunpack.c.h.b16 %v8175
        %v8308 = vunpack.c.l.b16 %v8176
        %v8309 = vunpack.c.h.b16 %v8176
        %v8310 = vunpack.c.l.b16 %v8177
        %v8311 = vunpack.c.h.b16 %v8177
        %v8312 = vunpack.c.l.b16 %v8178
        %v8313 = vunpack.c.h.b16 %v8178
        %v8314 = vunpack.c.l.b16 %v8179
        %v8315 = vunpack.c.h.b16 %v8179
        %v8316 = vunpack.c.l.b16 %v8180
        %v8317 = vunpack.c.h.b16 %v8180
        %v8318 = vunpack.c.l.b16 %v8181
        %v8319 = vunpack.c.h.b16 %v8181
        %v8320 = vunpack.c.l.b16 %v8182
        %v8321 = vunpack.c.h.b16 %v8182
        %v8322 = vunpack.c.l.b16 %v8183
        %v8323 = vunpack.c.h.b16 %v8183
        %v8324 = vunpack.c.l.b16 %v8184
        %v8325 = vunpack.c.h.b16 %v8184
        %v8326 = vunpack.c.l.b16 %v8185
        %v8327 = vunpack.c.h.b16 %v8185
        %v8328 = vunpack.c.l.b16 %v8186
        %v8329 = vunpack.c.h.b16 %v8186
        %v8330 = vunpack.c.l.b16 %v8187
        %v8331 = vunpack.c.h.b16 %v8187
        %v8332 = vunpack.c.l.b16 %v8188
        %v8333 = vunpack.c.h.b16 %v8188
        %v8334 = vunpack.c.l.b16 %v8189
        %v8335 = vunpack.c.h.b16 %v8189
        %v8336 = vunpack.c.l.b16 %v8190
        %v8337 = vunpack.c.h.b16 %v8190
        %v8338 = vunpack.c.l.b16 %v8191
        %v8339 = vunpack.c.h.b16 %v8191
        %v8340 = vunpack.c.l.b16 %v8192
        %v8341 = vunpack.c.h.b16 %v8192
        %v8342 = vunpack.c.l.b16 %v8193
        %v8343 = vunpack.c.h.b16 %v8193
        %v8344 = vunpack.c.l.b16 %v8194
        %v8345 = vunpack.c.h.b16 %v8194
        %v8346 = vunpack.c.l.b16 %v8195
        %v8347 = vunpack.c.h.b16 %v8195
        %v8348 = vunpack.c.l.b16 %v8196
        %v8349 = vunpack.c.h.b16 %v8196
        %v8350 = vunpack.c.l.b16 %v8197
        %v8351 = vunpack.c.h.b16 %v8197
        %v8352 = vunpack.c.l.b16 %v8198
        %v8353 = vunpack.c.h.b16 %v8198
        %v8354 = vunpack.c.l.b16 %v8199
        %v8355 = vunpack.c.h.b16 %v8199
        %v8356 = vunpack.c.l.b16 %v8200
        %v8357 = vunpack.c.h.b16 %v8200
        %v8358 = vunpack.c.l.b16 %v8201
        %v8359 = vunpack.c.h.b16 %v8201
        %v8360 = vunpack.c.l.b16 %v8202
        %v8361 = vunpack.c.h.b16 %v8202
        %v8362 = vunpack.c.l.b16 %v8203
        %v8363 = vunpack.c.h.b16 %v8203
        %v8364 = vunpack.c.l.b16 %v8204
        %v8365 = vunpack.c.h.b16 %v8204
        %v8366 = vunpack.c.l.b16 %v8205
        %v8367 = vunpack.c.h.b16 %v8205
        %v8368 = vunpack.c.l.b16 %v8206
        %v8369 = vunpack.c.h.b16 %v8206
        %v8370 = vunpack.c.l.b16 %v8207
        %v8371 = vunpack.c.h.b16 %v8207
        %v8372 = vunpack.c.l.b16 %v8208
        %v8373 = vunpack.c.h.b16 %v8208
        %v8374 = vunpack.c.l.b16 %v8209
        %v8375 = vunpack.c.h.b16 %v8209
        %v8376 = vunpack.c.l.b16 %v8210
        %v8377 = vunpack.c.h.b16 %v8210
        %v8378 = vunpack.c.l.b16 %v8211
        %v8379 = vunpack.c.h.b16 %v8211
        %v8380 = vunpack.c.l.b16 %v8212
        %v8381 = vunpack.c.h.b16 %v8212
        %v8382 = vunpack.c.l.b16 %v8213
        %v8383 = vunpack.c.h.b16 %v8213
        %v8384 = vunpack.c.l.b16 %v8214
        %v8385 = vunpack.c.h.b16 %v8214
        %v8386 = vunpack.c.l.b16 %v8215
        %v8387 = vunpack.c.h.b16 %v8215
        %v8388 = vunpack.c.l.b16 %v8216
        %v8389 = vunpack.c.h.b16 %v8216
        %v8390 = vunpack.c.l.b16 %v8217
        %v8391 = vunpack.c.h.b16 %v8217
        %v8392 = vunpack.c.l.b16 %v8218
        %v8393 = vunpack.c.h.b16 %v8218
        %v8394 = vunpack.c.l.b16 %v8219
        %v8395 = vunpack.c.h.b16 %v8219
        %v8396 = vunpack.c.l.b16 %v8220
        %v8397 = vunpack.c.h.b16 %v8220
        %v8398 = vunpack.c.l.b16 %v8221
        %v8399 = vunpack.c.h.b16 %v8221
        %v8400 = vunpack.c.l.b16 %v8222
        %v8401 = vunpack.c.h.b16 %v8222
        %v8402 = vunpack.c.l.b16 %v8223
        %v8403 = vunpack.c.h.b16 %v8223
        %v8404 = vunpack.c.l.b16 %v8224
        %v8405 = vunpack.c.h.b16 %v8224
        %v8406 = vunpack.c.l.b16 %v8225
        %v8407 = vunpack.c.h.b16 %v8225
        %v8408 = vunpack.c.l.b16 %v8226
        %v8409 = vunpack.c.h.b16 %v8226
        %v8410 = vunpack.c.l.b16 %v8227
        %v8411 = vunpack.c.h.b16 %v8227
        %v8412 = vunpack.c.l.b16 %v8228
        %v8413 = vunpack.c.h.b16 %v8228
        %v8414 = vunpack.c.l.b16 %v8229
        %v8415 = vunpack.c.h.b16 %v8229
        %v8416 = vunpack.c.l.b16 %v8230
        %v8417 = vunpack.c.h.b16 %v8230
        %v8418 = vunpack.c.l.b16 %v8231
        %v8419 = vunpack.c.h.b16 %v8231
        %v8420 = vunpack.c.l.b16 %v8232
        %v8421 = vunpack.c.h.b16 %v8232
        %v8422 = vunpack.c.l.b16 %v8233
        %v8423 = vunpack.c.h.b16 %v8233
        %v8424 = vunpack.c.l.b16 %v8234
        %v8425 = vunpack.c.h.b16 %v8234
        %v8426 = vunpack.c.l.b16 %v8235
        %v8427 = vunpack.c.h.b16 %v8235
        %v8428 = vpack.c.b16 %v8304, %v8300
        %v8429 = vpack.c.b16 %v8305, %v8301
        %v8430 = vpack.c.b16 %v8306, %v8302
        %v8431 = vpack.c.b16 %v8307, %v8303
        %v8432 = vpack.c.b16 %v8312, %v8308
        %v8433 = vpack.c.b16 %v8313, %v8309
        %v8434 = vpack.c.b16 %v8314, %v8310
        %v8435 = vpack.c.b16 %v8315, %v8311
        %v8436 = vpack.c.b16 %v8320, %v8316
        %v8437 = vpack.c.b16 %v8321, %v8317
        %v8438 = vpack.c.b16 %v8322, %v8318
        %v8439 = vpack.c.b16 %v8323, %v8319
        %v8440 = vpack.c.b16 %v8328, %v8324
        %v8441 = vpack.c.b16 %v8329, %v8325
        %v8442 = vpack.c.b16 %v8330, %v8326
        %v8443 = vpack.c.b16 %v8331, %v8327
        %v8444 = vpack.c.b16 %v8336, %v8332
        %v8445 = vpack.c.b16 %v8337, %v8333
        %v8446 = vpack.c.b16 %v8338, %v8334
        %v8447 = vpack.c.b16 %v8339, %v8335
        %v8448 = vpack.c.b16 %v8344, %v8340
        %v8449 = vpack.c.b16 %v8345, %v8341
        %v8450 = vpack.c.b16 %v8346, %v8342
        %v8451 = vpack.c.b16 %v8347, %v8343
        %v8452 = vpack.c.b16 %v8352, %v8348
        %v8453 = vpack.c.b16 %v8353, %v8349
        %v8454 = vpack.c.b16 %v8354, %v8350
        %v8455 = vpack.c.b16 %v8355, %v8351
        %v8456 = vpack.c.b16 %v8360, %v8356
        %v8457 = vpack.c.b16 %v8361, %v8357
        %v8458 = vpack.c.b16 %v8362, %v8358
        %v8459 = vpack.c.b16 %v8363, %v8359
        %v8460 = vpack.c.b16 %v8368, %v8364
        %v8461 = vpack.c.b16 %v8369, %v8365
        %v8462 = vpack.c.b16 %v8370, %v8366
        %v8463 = vpack.c.b16 %v8371, %v8367
        %v8464 = vpack.c.b16 %v8376, %v8372
        %v8465 = vpack.c.b16 %v8377, %v8373
        %v8466 = vpack.c.b16 %v8378, %v8374
        %v8467 = vpack.c.b16 %v8379, %v8375
        %v8468 = vpack.c.b16 %v8384, %v8380
        %v8469 = vpack.c.b16 %v8385, %v8381
        %v8470 = vpack.c.b16 %v8386, %v8382
        %v8471 = vpack.c.b16 %v8387, %v8383
        %v8472 = vpack.c.b16 %v8392, %v8388
        %v8473 = vpack.c.b16 %v8393, %v8389
        %v8474 = vpack.c.b16 %v8394, %v8390
        %v8475 = vpack.c.b16 %v8395, %v8391
        %v8476 = vpack.c.b16 %v8400, %v8396
        %v8477 = vpack.c.b16 %v8401, %v8397
        %v8478 = vpack.c.b16 %v8402, %v8398
        %v8479 = vpack.c.b16 %v8403, %v8399
        %v8480 = vpack.c.b16 %v8408, %v8404
        %v8481 = vpack.c.b16 %v8409, %v8405
        %v8482 = vpack.c.b16 %v8410, %v8406
        %v8483 = vpack.c.b16 %v8411, %v8407
        %v8484 = vpack.c.b16 %v8416, %v8412
        %v8485 = vpack.c.b16 %v8417, %v8413
        %v8486 = vpack.c.b16 %v8418, %v8414
        %v8487 = vpack.c.b16 %v8419, %v8415
        %v8488 = vpack.c.b16 %v8424, %v8420
        %v8489 = vpack.c.b16 %v8425, %v8421
        %v8490 = vpack.c.b16 %v8426, %v8422
        %v8491 = vpack.c.b16 %v8427, %v8423
        %8556 = vmatprep.subr.bf16.mxu0 %v8457
        %8557 = vmatpush1.bf16.msra.mxu0 %v8456
        %8558 = vmatprep.subr.bf16.mxu0 %v8453
        %8559 = vmatpush1.bf16.msra.mxu0 %v8452
        %8560 = vmatprep.subr.bf16.mxu0 %v8449
        %8561 = vmatpush1.bf16.msra.mxu0 %v8448
        %8562 = vmatprep.subr.bf16.mxu0 %v8445
        %8563 = vmatpush1.bf16.msra.mxu0 %v8444
        %8564 = vmatprep.subr.bf16.mxu0 %v8441
        %8565 = vmatpush1.bf16.msra.mxu0 %v8440
        %8566 = vmatprep.subr.bf16.mxu0 %v8437
        %8567 = vmatpush1.bf16.msra.mxu0 %v8436
        %8568 = vmatprep.subr.bf16.mxu0 %v8433
        %8569 = vmatpush1.bf16.msra.mxu0 %v8432
        %8570 = vmatprep.subr.bf16.mxu0 %v8429
        %8571 = vmatpush1.bf16.msra.mxu0 %v8428
        %8572 = vmatprep.subr.bf16.mxu0 %v8489
        %8573 = vmatpush2.bf16.msra.mxu0 %v8488
        %8574 = vmatprep.subr.bf16.mxu0 %v8485
        %8575 = vmatpush2.bf16.msra.mxu0 %v8484
        %8576 = vmatprep.subr.bf16.mxu0 %v8481
        %8577 = vmatpush2.bf16.msra.mxu0 %v8480
        %8578 = vmatprep.subr.bf16.mxu0 %v8477
        %8579 = vmatpush2.bf16.msra.mxu0 %v8476
        %8580 = vmatprep.subr.bf16.mxu0 %v8473
        %8581 = vmatpush2.bf16.msra.mxu0 %v8472
        %8582 = vmatprep.subr.bf16.mxu0 %v8469
        %8583 = vmatpush2.bf16.msra.mxu0 %v8468
        %8584 = vmatprep.subr.bf16.mxu0 %v8465
        %8585 = vmatpush2.bf16.msra.mxu0 %v8464
        %8586 = vmatprep.subr.bf16.mxu0 %v8461
        %8587 = vmatpush2.bf16.msra.mxu0 %v8460
        %8588 = vmatprep.mubr.bf16.mxu0 %v8170
        %8589 = vmatmul.mubr.bf16.gmra.mxu0 %v8169
        %v8590 = vpop.f32.mrf.mxu0
        %v8591 = vadd.f32 0.0, %v8590
        %v8592 = vpop.f32.mrf.mxu0
        %v8593 = vadd.f32 0.0, %v8592
        %v8594 = vpop.f32.mrf.mxu0
        %v8595 = vpop.f32.mrf.mxu0
        %8596 = vdwg.mxu0
        %8597 = vmatprep.subr.bf16.mxu0 %v8459
        %8598 = vmatpush1.bf16.msra.mxu0 %v8458
        %8599 = vmatprep.subr.bf16.mxu0 %v8455
        %8600 = vmatpush1.bf16.msra.mxu0 %v8454
        %8601 = vmatprep.subr.bf16.mxu0 %v8451
        %8602 = vmatpush1.bf16.msra.mxu0 %v8450
        %8603 = vmatprep.subr.bf16.mxu0 %v8447
        %8604 = vmatpush1.bf16.msra.mxu0 %v8446
        %8605 = vmatprep.subr.bf16.mxu0 %v8443
        %8606 = vmatpush1.bf16.msra.mxu0 %v8442
        %8607 = vmatprep.subr.bf16.mxu0 %v8439
        %8608 = vmatpush1.bf16.msra.mxu0 %v8438
        %8609 = vmatprep.subr.bf16.mxu0 %v8435
        %8610 = vmatpush1.bf16.msra.mxu0 %v8434
        %8611 = vmatprep.subr.bf16.mxu0 %v8431
        %8612 = vmatpush1.bf16.msra.mxu0 %v8430
        %8613 = vmatprep.subr.bf16.mxu0 %v8491
        %8614 = vmatpush2.bf16.msra.mxu0 %v8490
        %8615 = vmatprep.subr.bf16.mxu0 %v8487
        %8616 = vmatpush2.bf16.msra.mxu0 %v8486
        %8617 = vmatprep.subr.bf16.mxu0 %v8483
        %8618 = vmatpush2.bf16.msra.mxu0 %v8482
        %8619 = vmatprep.subr.bf16.mxu0 %v8479
        %8620 = vmatpush2.bf16.msra.mxu0 %v8478
        %8621 = vmatprep.subr.bf16.mxu0 %v8475
        %8622 = vmatpush2.bf16.msra.mxu0 %v8474
        %8623 = vmatprep.subr.bf16.mxu0 %v8471
        %8624 = vmatpush2.bf16.msra.mxu0 %v8470
        %8625 = vmatprep.subr.bf16.mxu0 %v8467
        %8626 = vmatpush2.bf16.msra.mxu0 %v8466
        %8627 = vmatprep.subr.bf16.mxu0 %v8463
        %8628 = vmatpush2.bf16.msra.mxu0 %v8462
        %8629 = vmatprep.mubr.bf16.mxu0 %v8170
        %8630 = vmatmul.mubr.bf16.gmra.mxu0 %v8169
        %v8631 = vpop.f32.mrf.mxu0
        %v8632 = vadd.f32 0.0, %v8631
        %v8633 = vpop.f32.mrf.mxu0
        %v8634 = vadd.f32 0.0, %v8633
        %v8635 = vpop.f32.mrf.mxu0
        %v8636 = vpop.f32.mrf.mxu0
        %8637 = vdwg.mxu0
        %v8638 = vadd.f32 %v8163, %v8591
        %v8639 = vadd.f32 %v8164, %v8593
        %v8640 = vadd.f32 %v8165, %v8632
        %v8641 = vadd.f32 %v8166, %v8634
        %v8642 = vld [vmem:[%s6] sm:$0xf]
        %v8644 = vlaneseq
        %v8645 = vshrl.u32 %v8644, 7
        %v8646 = vsub.s32 0, %v8645
        %v8647 = vrot.slane %v8642, %v8646
        %v8648 = vlaneseq
        %v8649 = vshrl.u32 %v8648, 7
        %v8650 = vsub.s32 1, %v8649
        %v8651 = vrot.slane %v8642, %v8650
        %v8652 = vlaneseq
        %v8653 = vshrl.u32 %v8652, 7
        %v8654 = vsub.s32 2, %v8653
        %v8655 = vrot.slane %v8642, %v8654
        %v8656 = vlaneseq
        %v8657 = vshrl.u32 %v8656, 7
        %v8658 = vsub.s32 3, %v8657
        %v8659 = vrot.slane %v8642, %v8658
        %v8664 = vadd.f32 %v8638, %v8647
        %v8665 = vadd.f32 %v8639, %v8651
        %v8666 = vadd.f32 %v8640, %v8655
        %v8667 = vadd.f32 %v8641, %v8659
        %v8668 = vmax.f32 %v8664, 0.0
        %v8669 = vmax.f32 %v8665, 0.0
        %v8670 = vmax.f32 %v8666, 0.0
        %v8671 = vmax.f32 %v8667, 0.0
        %v8672 = vpack.c.bf16 %v8668, %v8668
        %v8673 = vpack.c.bf16 %v8669, %v8669
        %v8674 = vpack.c.bf16 %v8670, %v8670
        %v8675 = vpack.c.bf16 %v8671, %v8671
        %v8676 = vld [vmem:[%s7] sm:$0xf]
        %v8677 = vld [vmem:[%s7 + $0x4] sm:$0xf]
        %v8678 = vld [vmem:[%s7 + $0x8] sm:$0xf]
        %v8679 = vld [vmem:[%s7 + $0xc] sm:$0xf]
        %v8680 = vld [vmem:[%s7 + $0x10] sm:$0xf]
        %v8681 = vld [vmem:[%s7 + $0x14] sm:$0xf]
        %v8682 = vld [vmem:[%s7 + $0x18] sm:$0xf]
        %v8683 = vld [vmem:[%s7 + $0x1c] sm:$0xf]
        %v8684 = vld [vmem:[%s7 + $0x20] sm:$0xf]
        %v8685 = vld [vmem:[%s7 + $0x24] sm:$0xf]
        %v8686 = vld [vmem:[%s7 + $0x28] sm:$0xf]
        %v8687 = vld [vmem:[%s7 + $0x2c] sm:$0xf]
        %v8688 = vld [vmem:[%s7 + $0x30] sm:$0xf]
        %v8689 = vld [vmem:[%s7 + $0x34] sm:$0xf]
        %v8690 = vld [vmem:[%s7 + $0x38] sm:$0xf]
        %v8691 = vld [vmem:[%s7 + $0x3c] sm:$0xf]
        %v8692 = vld [vmem:[%s7 + $0x40] sm:$0xf]
        %v8693 = vld [vmem:[%s7 + $0x44] sm:$0xf]
        %v8694 = vld [vmem:[%s7 + $0x48] sm:$0xf]
        %v8695 = vld [vmem:[%s7 + $0x4c] sm:$0xf]
        %v8696 = vld [vmem:[%s7 + $0x50] sm:$0xf]
        %v8697 = vld [vmem:[%s7 + $0x54] sm:$0xf]
        %v8698 = vld [vmem:[%s7 + $0x58] sm:$0xf]
        %v8699 = vld [vmem:[%s7 + $0x5c] sm:$0xf]
        %v8700 = vld [vmem:[%s7 + $0x60] sm:$0xf]
        %v8701 = vld [vmem:[%s7 + $0x64] sm:$0xf]
        %v8702 = vld [vmem:[%s7 + $0x68] sm:$0xf]
        %v8703 = vld [vmem:[%s7 + $0x6c] sm:$0xf]
        %v8704 = vld [vmem:[%s7 + $0x70] sm:$0xf]
        %v8705 = vld [vmem:[%s7 + $0x74] sm:$0xf]
        %v8706 = vld [vmem:[%s7 + $0x78] sm:$0xf]
        %v8707 = vld [vmem:[%s7 + $0x7c] sm:$0xf]
        %v8708 = vld [vmem:[%s7 + $0x80] sm:$0xf]
        %v8709 = vld [vmem:[%s7 + $0x84] sm:$0xf]
        %v8710 = vld [vmem:[%s7 + $0x88] sm:$0xf]
        %v8711 = vld [vmem:[%s7 + $0x8c] sm:$0xf]
        %v8712 = vld [vmem:[%s7 + $0x90] sm:$0xf]
        %v8713 = vld [vmem:[%s7 + $0x94] sm:$0xf]
        %v8714 = vld [vmem:[%s7 + $0x98] sm:$0xf]
        %v8715 = vld [vmem:[%s7 + $0x9c] sm:$0xf]
        %v8716 = vld [vmem:[%s7 + $0xa0] sm:$0xf]
        %v8717 = vld [vmem:[%s7 + $0xa4] sm:$0xf]
        %v8718 = vld [vmem:[%s7 + $0xa8] sm:$0xf]
        %v8719 = vld [vmem:[%s7 + $0xac] sm:$0xf]
        %v8720 = vld [vmem:[%s7 + $0xb0] sm:$0xf]
        %v8721 = vld [vmem:[%s7 + $0xb4] sm:$0xf]
        %v8722 = vld [vmem:[%s7 + $0xb8] sm:$0xf]
        %v8723 = vld [vmem:[%s7 + $0xbc] sm:$0xf]
        %v8724 = vld [vmem:[%s7 + $0xc0] sm:$0xf]
        %v8725 = vld [vmem:[%s7 + $0xc4] sm:$0xf]
        %v8726 = vld [vmem:[%s7 + $0xc8] sm:$0xf]
        %v8727 = vld [vmem:[%s7 + $0xcc] sm:$0xf]
        %v8728 = vld [vmem:[%s7 + $0xd0] sm:$0xf]
        %v8729 = vld [vmem:[%s7 + $0xd4] sm:$0xf]
        %v8730 = vld [vmem:[%s7 + $0xd8] sm:$0xf]
        %v8731 = vld [vmem:[%s7 + $0xdc] sm:$0xf]
        %v8732 = vld [vmem:[%s7 + $0xe0] sm:$0xf]
        %v8733 = vld [vmem:[%s7 + $0xe4] sm:$0xf]
        %v8734 = vld [vmem:[%s7 + $0xe8] sm:$0xf]
        %v8735 = vld [vmem:[%s7 + $0xec] sm:$0xf]
        %v8736 = vld [vmem:[%s7 + $0xf0] sm:$0xf]
        %v8737 = vld [vmem:[%s7 + $0xf4] sm:$0xf]
        %v8738 = vld [vmem:[%s7 + $0xf8] sm:$0x3]
        %v8739 = vld [vmem:[%s8] sm:$0x1]
        %v8741 = vlaneseq
        %v8742 = vshrl.u32 %v8741, 7
        %v8743 = vsub.s32 0, %v8742
        %v8744 = vrot.slane %v8739, %v8743
        %v8809 = vunpack.c.l.b16 %v8676
        %v8810 = vunpack.c.l.b16 %v8677
        %v8811 = vunpack.c.l.b16 %v8678
        %v8812 = vunpack.c.l.b16 %v8679
        %v8813 = vunpack.c.l.b16 %v8680
        %v8814 = vunpack.c.l.b16 %v8681
        %v8815 = vunpack.c.l.b16 %v8682
        %v8816 = vunpack.c.l.b16 %v8683
        %v8817 = vunpack.c.l.b16 %v8684
        %v8818 = vunpack.c.l.b16 %v8685
        %v8819 = vunpack.c.l.b16 %v8686
        %v8820 = vunpack.c.l.b16 %v8687
        %v8821 = vunpack.c.l.b16 %v8688
        %v8822 = vunpack.c.l.b16 %v8689
        %v8823 = vunpack.c.l.b16 %v8690
        %v8824 = vunpack.c.l.b16 %v8691
        %v8825 = vunpack.c.l.b16 %v8692
        %v8826 = vunpack.c.l.b16 %v8693
        %v8827 = vunpack.c.l.b16 %v8694
        %v8828 = vunpack.c.l.b16 %v8695
        %v8829 = vunpack.c.l.b16 %v8696
        %v8830 = vunpack.c.l.b16 %v8697
        %v8831 = vunpack.c.l.b16 %v8698
        %v8832 = vunpack.c.l.b16 %v8699
        %v8833 = vunpack.c.l.b16 %v8700
        %v8834 = vunpack.c.l.b16 %v8701
        %v8835 = vunpack.c.l.b16 %v8702
        %v8836 = vunpack.c.l.b16 %v8703
        %v8837 = vunpack.c.l.b16 %v8704
        %v8838 = vunpack.c.l.b16 %v8705
        %v8839 = vunpack.c.l.b16 %v8706
        %v8840 = vunpack.c.l.b16 %v8707
        %v8841 = vunpack.c.l.b16 %v8708
        %v8842 = vunpack.c.l.b16 %v8709
        %v8843 = vunpack.c.l.b16 %v8710
        %v8844 = vunpack.c.l.b16 %v8711
        %v8845 = vunpack.c.l.b16 %v8712
        %v8846 = vunpack.c.l.b16 %v8713
        %v8847 = vunpack.c.l.b16 %v8714
        %v8848 = vunpack.c.l.b16 %v8715
        %v8849 = vunpack.c.l.b16 %v8716
        %v8850 = vunpack.c.l.b16 %v8717
        %v8851 = vunpack.c.l.b16 %v8718
        %v8852 = vunpack.c.l.b16 %v8719
        %v8853 = vunpack.c.l.b16 %v8720
        %v8854 = vunpack.c.l.b16 %v8721
        %v8855 = vunpack.c.l.b16 %v8722
        %v8856 = vunpack.c.l.b16 %v8723
        %v8857 = vunpack.c.l.b16 %v8724
        %v8858 = vunpack.c.l.b16 %v8725
        %v8859 = vunpack.c.l.b16 %v8726
        %v8860 = vunpack.c.l.b16 %v8727
        %v8861 = vunpack.c.l.b16 %v8728
        %v8862 = vunpack.c.l.b16 %v8729
        %v8863 = vunpack.c.l.b16 %v8730
        %v8864 = vunpack.c.l.b16 %v8731
        %v8865 = vunpack.c.l.b16 %v8732
        %v8866 = vunpack.c.l.b16 %v8733
        %v8867 = vunpack.c.l.b16 %v8734
        %v8868 = vunpack.c.l.b16 %v8735
        %v8869 = vunpack.c.l.b16 %v8736
        %v8870 = vunpack.c.l.b16 %v8737
        %v8871 = vunpack.c.l.b16 %v8738
        %v8872 = vpack.c.b16 %v8810, %v8809
        %v8873 = vpack.c.b16 %v8812, %v8811
        %v8874 = vpack.c.b16 %v8814, %v8813
        %v8875 = vpack.c.b16 %v8816, %v8815
        %v8876 = vpack.c.b16 %v8818, %v8817
        %v8877 = vpack.c.b16 %v8820, %v8819
        %v8878 = vpack.c.b16 %v8822, %v8821
        %v8879 = vpack.c.b16 %v8824, %v8823
        %v8880 = vpack.c.b16 %v8826, %v8825
        %v8881 = vpack.c.b16 %v8828, %v8827
        %v8882 = vpack.c.b16 %v8830, %v8829
        %v8883 = vpack.c.b16 %v8832, %v8831
        %v8884 = vpack.c.b16 %v8834, %v8833
        %v8885 = vpack.c.b16 %v8836, %v8835
        %v8886 = vpack.c.b16 %v8838, %v8837
        %v8887 = vpack.c.b16 %v8840, %v8839
        %v8888 = vpack.c.b16 %v8842, %v8841
        %v8889 = vpack.c.b16 %v8844, %v8843
        %v8890 = vpack.c.b16 %v8846, %v8845
        %v8891 = vpack.c.b16 %v8848, %v8847
        %v8892 = vpack.c.b16 %v8850, %v8849
        %v8893 = vpack.c.b16 %v8852, %v8851
        %v8894 = vpack.c.b16 %v8854, %v8853
        %v8895 = vpack.c.b16 %v8856, %v8855
        %v8896 = vpack.c.b16 %v8858, %v8857
        %v8897 = vpack.c.b16 %v8860, %v8859
        %v8898 = vpack.c.b16 %v8862, %v8861
        %v8899 = vpack.c.b16 %v8864, %v8863
        %v8900 = vpack.c.b16 %v8866, %v8865
        %v8901 = vpack.c.b16 %v8868, %v8867
        %v8902 = vpack.c.b16 %v8870, %v8869
        %v8903 = vpack.c.b16 %v8871, %v8871
        %vm8935 = vcmask 949248
        %v8937 = vsel %vm8935, %v8675, 0
        %vm8939 = vcmask 1041408
        %v8941 = vsel %vm8939, %v8903, 0
        %8943 = vmatprep.subr.bf16.mxu0 0
        %8944 = vmatpush1.bf16.msra.mxu0 %v8879
        %8945 = vmatprep.subr.bf16.mxu0 0
        %8946 = vmatpush1.bf16.msra.mxu0 %v8878
        %8947 = vmatprep.subr.bf16.mxu0 0
        %8948 = vmatpush1.bf16.msra.mxu0 %v8877
        %8949 = vmatprep.subr.bf16.mxu0 0
        %8950 = vmatpush1.bf16.msra.mxu0 %v8876
        %8951 = vmatprep.subr.bf16.mxu0 0
        %8952 = vmatpush1.bf16.msra.mxu0 %v8875
        %8953 = vmatprep.subr.bf16.mxu0 0
        %8954 = vmatpush1.bf16.msra.mxu0 %v8874
        %8955 = vmatprep.subr.bf16.mxu0 0
        %8956 = vmatpush1.bf16.msra.mxu0 %v8873
        %8957 = vmatprep.subr.bf16.mxu0 0
        %8958 = vmatpush1.bf16.msra.mxu0 %v8872
        %8959 = vmatprep.subr.bf16.mxu0 0
        %8960 = vmatpush2.bf16.msra.mxu0 %v8887
        %8961 = vmatprep.subr.bf16.mxu0 0
        %8962 = vmatpush2.bf16.msra.mxu0 %v8886
        %8963 = vmatprep.subr.bf16.mxu0 0
        %8964 = vmatpush2.bf16.msra.mxu0 %v8885
        %8965 = vmatprep.subr.bf16.mxu0 0
        %8966 = vmatpush2.bf16.msra.mxu0 %v8884
        %8967 = vmatprep.subr.bf16.mxu0 0
        %8968 = vmatpush2.bf16.msra.mxu0 %v8883
        %8969 = vmatprep.subr.bf16.mxu0 0
        %8970 = vmatpush2.bf16.msra.mxu0 %v8882
        %8971 = vmatprep.subr.bf16.mxu0 0
        %8972 = vmatpush2.bf16.msra.mxu0 %v8881
        %8973 = vmatprep.subr.bf16.mxu0 0
        %8974 = vmatpush2.bf16.msra.mxu0 %v8880
        %8975 = vmatprep.mubr.bf16.mxu0 %v8673
        %8976 = vmatmul.mubr.bf16.gmra.mxu0 %v8672
        %v8977 = vpop.f32.mrf.mxu0
        %v8978 = vadd.f32 %v8744, %v8977
        %v8979 = vpop.f32.mrf.mxu0
        %v8980 = vpop.f32.mrf.mxu0
        %v8981 = vpop.f32.mrf.mxu0
        %8982 = vdwg.mxu0
        %8983 = vmatprep.subr.bf16.mxu0 0
        %8984 = vmatpush1.bf16.msra.mxu0 %v8895
        %8985 = vmatprep.subr.bf16.mxu0 0
        %8986 = vmatpush1.bf16.msra.mxu0 %v8894
        %8987 = vmatprep.subr.bf16.mxu0 0
        %8988 = vmatpush1.bf16.msra.mxu0 %v8893
        %8989 = vmatprep.subr.bf16.mxu0 0
        %8990 = vmatpush1.bf16.msra.mxu0 %v8892
        %8991 = vmatprep.subr.bf16.mxu0 0
        %8992 = vmatpush1.bf16.msra.mxu0 %v8891
        %8993 = vmatprep.subr.bf16.mxu0 0
        %8994 = vmatpush1.bf16.msra.mxu0 %v8890
        %8995 = vmatprep.subr.bf16.mxu0 0
        %8996 = vmatpush1.bf16.msra.mxu0 %v8889
        %8997 = vmatprep.subr.bf16.mxu0 0
        %8998 = vmatpush1.bf16.msra.mxu0 %v8888
        %8999 = vmatprep.subr.bf16.mxu0 0
        %9000 = vmatpush2.bf16.msra.mxu0 %v8941
        %9001 = vmatprep.subr.bf16.mxu0 0
        %9002 = vmatpush2.bf16.msra.mxu0 %v8902
        %9003 = vmatprep.subr.bf16.mxu0 0
        %9004 = vmatpush2.bf16.msra.mxu0 %v8901
        %9005 = vmatprep.subr.bf16.mxu0 0
        %9006 = vmatpush2.bf16.msra.mxu0 %v8900
        %9007 = vmatprep.subr.bf16.mxu0 0
        %9008 = vmatpush2.bf16.msra.mxu0 %v8899
        %9009 = vmatprep.subr.bf16.mxu0 0
        %9010 = vmatpush2.bf16.msra.mxu0 %v8898
        %9011 = vmatprep.subr.bf16.mxu0 0
        %9012 = vmatpush2.bf16.msra.mxu0 %v8897
        %9013 = vmatprep.subr.bf16.mxu0 0
        %9014 = vmatpush2.bf16.msra.mxu0 %v8896
        %9015 = vmatprep.mubr.bf16.mxu0 %v8937
        %9016 = vmatmul.mubr.bf16.gmra.mxu0 %v8674
        %v9017 = vpop.f32.mrf.mxu0
        %v9018 = vadd.f32 %v8978, %v9017
        %v9019 = vpop.f32.mrf.mxu0
        %v9020 = vpop.f32.mrf.mxu0
        %v9021 = vpop.f32.mrf.mxu0
        %9022 = vdwg.mxu0
        %vm9023 = vcmask 80896
        %v9024 = vsel %vm9023, %v9018, -inf
        %9025 = vmax.xlane.f32.xlu0 %v9024
        %v9026 = vpop.xlane.xlu0 %9025
        %v9027 = vsub.f32 %v9018, %v9026
        %v9028 = vmul.f32 %v9027, 1.442695
        %v9029 = vpow.pop %v9028
        %v9030 = vsel %vm9023, %v9029, 0.0
        %9031 = vadd.xlane.f32.xlu0 %v9030
        %v9032 = vpop.xlane.xlu0 %9031
        %v9033 = vlog2.pop %v9032
        %v9034 = vmul.f32 %v9033, 0.6931472
        %v9035 = vadd.f32 %v9026, %v9034
        %v9036 = vsub.f32 %v9018, %v9035
        %9037 = vst.msk [vmem:[%s473] sm:$0xff] %vm9023, %v9036
        %s9038 = sand.u32 %s225, 1
        %s9039 = scalar_lea.sflag [#allocation5], %s9038
        %s9040 = sand.u32 %s225, 1
        %s9041 = smul.addr %s9040, 8
        %s9042 = scalar_lea.vmem [#allocation4], %s9041
        // Predicated region
        $region95: #{net_forward.1} parent=89 // pred_check
          %p9043 = pneg %p235
        $region96: #{net_forward.1} parent=89 // pred_check_branch
          %9045 = sbr.rel (%p9043) target = $region98
        $region97: #{net_forward.1} parent=89 // pred_region
          %s9047 = ssub.s32 128, 128
          %9048 = vsyncadd %s9039, %s9047
          %s9049 = smul.addr %s23, 128
          %s9050 = scalar_lea.hbm %s9, %s9049
          %s9052 = sshll.u32 %s9042, 4
          %s9053 = int_to_ptr.vmem [resolvable:$true] %s9052
          %9055 = dma.vmem_to_hbm [thread:$0]  %s9053, 128, %s9050, %s9039
        $region98: #{net_forward.1} parent=89 // pred_fallthru
          _
      $region90: #{net_forward.1} parent=5 // pred_fallthru
        _
      %p9056 = scmp.le.s32.totalorder 2, %s18
      // Predicated region
      $region99: #{net_forward.1} parent=5 // pred_check
        %p9057 = pneg %p9056
      $region100: #{net_forward.1} parent=5 // pred_check_branch
        %9059 = sbr.rel (%p9057) target = $region102
      $region101: #{net_forward.1} parent=5 // pred_region
        %s9060 = ssub.s32 %s18, 2
        // Predicated region
        $region103: #{net_forward.1} parent=101 // pred_check
          %p9061 = pneg %p241
        $region104: #{net_forward.1} parent=101 // pred_check_branch
          %9063 = sbr.rel (%p9061) target = $region106
        $region105: #{net_forward.1} parent=101 // pred_region
          %s9064 = sand.u32 %s226, 1
          %s9065 = scalar_lea.sflag [#allocation5], %s9064
          %s9066 = sand.u32 %s226, 1
          %s9067 = smul.addr %s9066, 8
          %s9068 = scalar_lea.vmem [#allocation4], %s9067
          %9069 = dma.done %s9065, 128
        $region106: #{net_forward.1} parent=101 // pred_fallthru
          _
      $region102: #{net_forward.1} parent=5 // pred_fallthru
        _
    $region6: #{net_forward.1} parent=1 // loop_footer
      %s22 = sadd.s32 1, %s18
    $region7: #{net_forward.1} parent=1 // loop_footer_branch
      %17 = sbr.rel target = $region3
    $region8: #{net_forward.1} parent=1 // loop_exit
      _
    %9070 = vsyncpa [#allocation5], 1
    %s9071 = scalar_lea.sflag [#allocation5], 1
    %9072 = vsyncpa %s9071, 1

</llo_original>
